<compile_context>
chip_gen: v6e
topology: v6e:2x2x1
jax: 0.10.0
libtpu: 0.0.40
codegen_flags: <defaults>
</compile_context>

<pallas_src>
import functools
import math

import jax
import jax.numpy as jnp
from jax.experimental import pallas as pl
from jax.experimental.pallas import tpu as pltpu


# ---------------------------------------------------------------------------
# Kernel 1: tap-folded 3x3 valid conv (+ optional fused BN+ReLU of the
# previous stage applied to the input) + bias + per-image BN partial stats.
# One grid step == one image.  No program_id / pl.when anywhere.
# ---------------------------------------------------------------------------
def _conv3x3_kernel(x_ref, w_ref, b_ref, scale_ref, shift_ref,
                    o_ref, sum_ref, ssq_ref, *,
                    H, W, Ho, Wo, fuse_input_bn_relu):
    Cin = x_ref.shape[1]
    Cout = w_ref.shape[1]

    # Whole image: channels on sublanes, flattened spatial on lanes.
    x = x_ref[0].reshape(Cin, H * W)
    if fuse_input_bn_relu:
        # Previous stage's BatchNorm + ReLU, applied on load (f32 math).
        x = jnp.maximum(x.astype(jnp.float32) * scale_ref[...] + shift_ref[...],
                        0.0)
    x = x.astype(jnp.bfloat16)

    # Contract channels first on the full frame, then shift-and-accumulate the
    # 9 taps.  Never materializes im2col patches.
    acc = jnp.zeros((Cout, Ho, Wo), jnp.float32)
    for t in range(9):
        kh, kw = t // 3, t % 3
        z = jnp.dot(w_ref[t], x, preferred_element_type=jnp.float32)  # (Cout, H*W)
        z = z.reshape(Cout, H, W)
        acc = acc + z[:, kh:kh + Ho, kw:kw + Wo]

    # Bias add + lane-dense store + fused BN batch-stat partials (all f32).
    r = acc.reshape(Cout, Ho * Wo) + b_ref[...]        # pre-BN conv output
    o_ref[0] = r.astype(o_ref.dtype)
    sum_ref[0] = jnp.sum(r, axis=1, keepdims=True)
    ssq_ref[0] = jnp.sum(r * r, axis=1, keepdims=True)


def conv3x3_bias_stats(x_nchw, w, b, scale_in=None, shift_in=None, *,
                       out_dtype=jnp.float32):
    """3x3 valid conv + bias.  Returns (pre_bn (N,Cout,Ho*Wo), sums, ssqs).

    If scale_in/shift_in are given, relu(x * scale_in + shift_in) is applied to
    the input inside the kernel (fused BN+ReLU of the previous stage).
    """
    N, Cin, H, W = x_nchw.shape
    Cout = w.shape[0]
    Ho, Wo = H - 2, W - 2
    Mo = Ho * Wo

    # Weights in tap-major GEMM layout: wt[t, co, ci] = w[co, ci, kh, kw].
    wt = jnp.transpose(w, (2, 3, 0, 1)).reshape(9, Cout, Cin).astype(jnp.bfloat16)
    bias = b.astype(jnp.float32).reshape(Cout, 1)

    fuse = scale_in is not None
    if not fuse:
        scale_in = jnp.ones((Cin,), jnp.float32)
        shift_in = jnp.zeros((Cin,), jnp.float32)
    scale_in = scale_in.astype(jnp.float32).reshape(Cin, 1)
    shift_in = shift_in.astype(jnp.float32).reshape(Cin, 1)

    kernel = functools.partial(_conv3x3_kernel, H=H, W=W, Ho=Ho, Wo=Wo,
                               fuse_input_bn_relu=fuse)
    out_shape = (
        jax.ShapeDtypeStruct((N, Cout, Mo), out_dtype),   # pre-BN conv output
        jax.ShapeDtypeStruct((N, Cout, 1), jnp.float32),  # per-image channel sums
        jax.ShapeDtypeStruct((N, Cout, 1), jnp.float32),  # per-image channel sum sq
    )
    grid_spec = pltpu.PrefetchScalarGridSpec(
        num_scalar_prefetch=0,
        grid=(N,),
        in_specs=[
            pl.BlockSpec((1, Cin, H, W), lambda n: (n, 0, 0, 0)),   # x (one image)
            pl.BlockSpec((9, Cout, Cin), lambda n: (0, 0, 0)),      # weights
            pl.BlockSpec((Cout, 1), lambda n: (0, 0)),              # bias
            pl.BlockSpec((Cin, 1), lambda n: (0, 0)),               # input-BN scale
            pl.BlockSpec((Cin, 1), lambda n: (0, 0)),               # input-BN shift
        ],
        out_specs=(
            pl.BlockSpec((1, Cout, Mo), lambda n: (n, 0, 0)),
            pl.BlockSpec((1, Cout, 1), lambda n: (n, 0, 0)),
            pl.BlockSpec((1, Cout, 1), lambda n: (n, 0, 0)),
        ),
    )
    return pl.pallas_call(
        kernel,
        out_shape=out_shape,
        grid_spec=grid_spec,
        compiler_params=pltpu.CompilerParams(
            dimension_semantics=("parallel",)),
    )(x_nchw, wt, bias, scale_in, shift_in)


# ---------------------------------------------------------------------------
# Kernel 2: final BatchNorm (folded to scale/shift) + ReLU, lane-dense layout.
# Only needed for the last stage; earlier stages fuse this into the next conv.
# ---------------------------------------------------------------------------
def _bn_relu_kernel(x_ref, scale_ref, shift_ref, o_ref):
    y = jnp.maximum(
        x_ref[0].astype(jnp.float32) * scale_ref[...] + shift_ref[...], 0.0)
    o_ref[0] = y.astype(o_ref.dtype)


def bn_relu(x, scale, shift, *, out_dtype):
    N, C, Mo = x.shape
    grid_spec = pltpu.PrefetchScalarGridSpec(
        num_scalar_prefetch=0,
        grid=(N,),
        in_specs=[
            pl.BlockSpec((1, C, Mo), lambda n: (n, 0, 0)),
            pl.BlockSpec((C, 1), lambda n: (0, 0)),
            pl.BlockSpec((C, 1), lambda n: (0, 0)),
        ],
        out_specs=pl.BlockSpec((1, C, Mo), lambda n: (n, 0, 0)),
    )
    return pl.pallas_call(
        _bn_relu_kernel,
        out_shape=jax.ShapeDtypeStruct((N, C, Mo), out_dtype),
        grid_spec=grid_spec,
        compiler_params=pltpu.CompilerParams(dimension_semantics=("parallel",)),
    )(x, scale.reshape(C, 1), shift.reshape(C, 1))


# ---------------------------------------------------------------------------
# BN statistics finalize: tiny (C,)-sized math done in plain XLA.
# ---------------------------------------------------------------------------
def _bn_affine(sums, ssqs, count, gamma, beta, eps):
    s = jnp.sum(sums, axis=0)[:, 0]
    sq = jnp.sum(ssqs, axis=0)[:, 0]
    mean = s / count
    # TODO(synk): single-pass E[x^2]-mean^2 can cancel when |mean| >> std after
    # training; switch to a centered/compensated reduction if that matters.
    var = jnp.maximum(sq / count - mean * mean, 0.0)   # biased (training-mode BN)
    inv = jax.lax.rsqrt(var + eps)
    scale = gamma.astype(jnp.float32) * inv
    shift = beta.astype(jnp.float32) - mean * scale
    return scale, shift


# ---------------------------------------------------------------------------
# unetDown forward: conv1 -> BN1 -> ReLU -> conv2 -> BN2 -> ReLU  (NCHW in/out)
# ---------------------------------------------------------------------------
def unet_down_forward(params, x_nchw, *, eps=1e-5):
    N, _, H, W = x_nchw.shape
    C1 = params["w1"].shape[0]
    C2 = params["w2"].shape[0]
    H1, W1 = H - 2, W - 2
    H2, W2 = H1 - 2, W1 - 2

    # Stage 1: conv1 (pre-BN output in bf16) + fused batch-stat partials.
    pre1, s1, sq1 = conv3x3_bias_stats(
        x_nchw, params["w1"], params["b1"], out_dtype=jnp.bfloat16)
    scale1, shift1 = _bn_affine(s1, sq1, N * H1 * W1,
                                params["g1"], params["be1"], eps)

    # Stage 2: conv2 with BN1 + ReLU fused into its input prologue.
    pre1_img = pre1.reshape(N, C1, H1, W1)            # contiguous, free
    pre2, s2, sq2 = conv3x3_bias_stats(
        pre1_img, params["w2"], params["b2"],
        scale_in=scale1, shift_in=shift1, out_dtype=jnp.float32)
    scale2, shift2 = _bn_affine(s2, sq2, N * H2 * W2,
                                params["g2"], params["be2"], eps)

    # Final BN2 + ReLU.
    y = bn_relu(pre2, scale2, shift2, out_dtype=jnp.float32)
    return y.reshape(N, C2, H2, W2)


# ---------------------------------------------------------------------------
# Deterministic parameter init (shapes match the PyTorch module) + reference.
# ---------------------------------------------------------------------------
def init_unet_down(key, cin, cout):
    def conv_init(k, co, ci):
        kw_, kb_ = jax.random.split(k)
        std = 1.0 / math.sqrt(ci * 9)
        w = jax.random.normal(kw_, (co, ci, 3, 3), jnp.float32) * std
        b = jax.random.normal(kb_, (co,), jnp.float32) * std
        return w, b

    k1, k2 = jax.random.split(key)
    w1, b1 = conv_init(k1, cout, cin)
    w2, b2 = conv_init(k2, cout, cout)
    return dict(
        w1=w1, b1=b1, g1=jnp.ones((cout,), jnp.float32),
        be1=jnp.zeros((cout,), jnp.float32),
        w2=w2, b2=b2, g2=jnp.ones((cout,), jnp.float32),
        be2=jnp.zeros((cout,), jnp.float32),
    )


def _reference_forward(params, x, eps=1e-5):
    """Pure-XLA f32 reference (training-mode BatchNorm, batch stats)."""
    def stage(h, w, b, g, be):
        y = jax.lax.conv_general_dilated(
            h, w, (1, 1), "VALID",
            dimension_numbers=("NCHW", "OIHW", "NCHW"))
        y = y + b[None, :, None, None]
        mean = jnp.mean(y, axis=(0, 2, 3))
        var = jnp.mean((y - mean[None, :, None, None]) ** 2, axis=(0, 2, 3))
        y = (y - mean[None, :, None, None]) * \
            jax.lax.rsqrt(var + eps)[None, :, None, None]
        y = y * g[None, :, None, None] + be[None, :, None, None]
        return jnp.maximum(y, 0.0)

    h = stage(x, params["w1"], params["b1"], params["g1"], params["be1"])
    return stage(h, params["w2"], params["b2"], params["g2"], params["be2"])


if __name__ == "__main__":
    key = jax.random.PRNGKey(0)
    pkey, xkey = jax.random.split(key)
    in_channels, out_channels = 4, 8
    params = init_unet_down(pkey, in_channels, out_channels)
    x = jax.random.normal(xkey, (2, in_channels, 16, 16), jnp.float32)

    fwd = jax.jit(unet_down_forward)
    y = fwd(params, x)
    jax.block_until_ready(y)
    assert y.shape == (2, out_channels, 12, 12), y.shape
    assert bool(jnp.all(jnp.isfinite(y)))

    # Numerical sanity check vs. pure-XLA f32 reference (bf16 MXU operands ->
    # loose tolerance; documented deviation from PyTorch f32 conv).
    y_ref = _reference_forward(params, x)
    max_err = float(jnp.max(jnp.abs(y - y_ref)))
    assert max_err < 0.3, max_err

    print("KERNEL_OK")
</pallas_src>

<mosaic_0001>
module attributes {stable_mosaic.version = 11 : i64} {
  func.func @_conv3x3_kernel(%arg0: i32, %arg1: memref<1x4x16x16xf32, #tpu.memory_space<vmem>>, %arg2: memref<9x8x4xbf16, #tpu.memory_space<vmem>>, %arg3: memref<8x1xf32, #tpu.memory_space<vmem>>, %arg4: memref<4x1xf32, #tpu.memory_space<vmem>>, %arg5: memref<4x1xf32, #tpu.memory_space<vmem>>, %arg6: memref<1x8x196xbf16, #tpu.memory_space<vmem>>, %arg7: memref<1x8x1xf32, #tpu.memory_space<vmem>>, %arg8: memref<1x8x1xf32, #tpu.memory_space<vmem>>) attributes {dimension_semantics = [#tpu.dimension_semantics<parallel>], iteration_bounds = array<i64: 2>, scalar_prefetch = 0 : i64, scratch_operands = 0 : i64, tpu.core_type = #tpu.core_type<tc>, window_params = [{transform_indices = @transform_0, window_bounds = array<i64: 1, 4, 16, 16>}, {pipeline_mode = #tpu.pipeline_mode<synchronous>, transform_indices = @transform_1, window_bounds = array<i64: 9, 8, 4>}, {pipeline_mode = #tpu.pipeline_mode<synchronous>, transform_indices = @transform_2, window_bounds = array<i64: 8, 1>}, {pipeline_mode = #tpu.pipeline_mode<synchronous>, transform_indices = @transform_3, window_bounds = array<i64: 4, 1>}, {pipeline_mode = #tpu.pipeline_mode<synchronous>, transform_indices = @transform_4, window_bounds = array<i64: 4, 1>}, {transform_indices = @transform_5, window_bounds = array<i64: 1, 8, 196>}, {transform_indices = @transform_6, window_bounds = array<i64: 1, 8, 1>}, {transform_indices = @transform_7, window_bounds = array<i64: 1, 8, 1>}]} {
    %c0 = arith.constant 0 : index
    %c0_0 = arith.constant 0 : index
    %c0_1 = arith.constant 0 : index
    %c0_2 = arith.constant 0 : index
    %0 = vector.load %arg1[%c0, %c0_0, %c0_1, %c0_2] : memref<1x4x16x16xf32, #tpu.memory_space<vmem>>, vector<1x4x16x16xf32>
    %1 = vector.shape_cast %0 : vector<1x4x16x16xf32> to vector<4x16x16xf32>
    %2 = vector.shape_cast %1 : vector<4x16x16xf32> to vector<4x256xf32>
    %3 = arith.truncf %2 : vector<4x256xf32> to vector<4x256xbf16>
    %cst = arith.constant 0.000000e+00 : f32
    %4 = vector.broadcast %cst : f32 to vector<8x14x14xf32>
    %c0_3 = arith.constant 0 : index
    %c0_4 = arith.constant 0 : index
    %c0_5 = arith.constant 0 : index
    %5 = vector.load %arg2[%c0_3, %c0_4, %c0_5] : memref<9x8x4xbf16, #tpu.memory_space<vmem>>, vector<1x8x4xbf16>
    %6 = vector.shape_cast %5 : vector<1x8x4xbf16> to vector<8x4xbf16>
    %cst_6 = arith.constant dense<0.000000e+00> : vector<8x256xf32>
    %7 = tpu.matmul %6, %3, %cst_6 {dimension_numbers = #tpu.dot_dimension_numbers<[1], [0], [0], [1], [0, 0, 1, 1], [], []>} : vector<8x4xbf16>, vector<4x256xbf16>, vector<8x256xf32> -> vector<8x256xf32>
    %8 = vector.shape_cast %7 : vector<8x256xf32> to vector<8x16x16xf32>
    %9 = vector.extract_strided_slice %8 {offsets = [0, 0, 0], sizes = [8, 14, 14], strides = [1, 1, 1]} : vector<8x16x16xf32> to vector<8x14x14xf32>
    %10 = arith.addf %4, %9 : vector<8x14x14xf32>
    %c1 = arith.constant 1 : index
    %c0_7 = arith.constant 0 : index
    %c0_8 = arith.constant 0 : index
    %11 = vector.load %arg2[%c1, %c0_7, %c0_8] : memref<9x8x4xbf16, #tpu.memory_space<vmem>>, vector<1x8x4xbf16>
    %12 = vector.shape_cast %11 : vector<1x8x4xbf16> to vector<8x4xbf16>
    %cst_9 = arith.constant dense<0.000000e+00> : vector<8x256xf32>
    %13 = tpu.matmul %12, %3, %cst_9 {dimension_numbers = #tpu.dot_dimension_numbers<[1], [0], [0], [1], [0, 0, 1, 1], [], []>} : vector<8x4xbf16>, vector<4x256xbf16>, vector<8x256xf32> -> vector<8x256xf32>
    %14 = vector.shape_cast %13 : vector<8x256xf32> to vector<8x16x16xf32>
    %15 = vector.extract_strided_slice %14 {offsets = [0, 0, 1], sizes = [8, 14, 14], strides = [1, 1, 1]} : vector<8x16x16xf32> to vector<8x14x14xf32>
    %16 = arith.addf %10, %15 : vector<8x14x14xf32>
    %c2 = arith.constant 2 : index
    %c0_10 = arith.constant 0 : index
    %c0_11 = arith.constant 0 : index
    %17 = vector.load %arg2[%c2, %c0_10, %c0_11] : memref<9x8x4xbf16, #tpu.memory_space<vmem>>, vector<1x8x4xbf16>
    %18 = vector.shape_cast %17 : vector<1x8x4xbf16> to vector<8x4xbf16>
    %cst_12 = arith.constant dense<0.000000e+00> : vector<8x256xf32>
    %19 = tpu.matmul %18, %3, %cst_12 {dimension_numbers = #tpu.dot_dimension_numbers<[1], [0], [0], [1], [0, 0, 1, 1], [], []>} : vector<8x4xbf16>, vector<4x256xbf16>, vector<8x256xf32> -> vector<8x256xf32>
    %20 = vector.shape_cast %19 : vector<8x256xf32> to vector<8x16x16xf32>
    %21 = vector.extract_strided_slice %20 {offsets = [0, 0, 2], sizes = [8, 14, 14], strides = [1, 1, 1]} : vector<8x16x16xf32> to vector<8x14x14xf32>
    %22 = arith.addf %16, %21 : vector<8x14x14xf32>
    %c3 = arith.constant 3 : index
    %c0_13 = arith.constant 0 : index
    %c0_14 = arith.constant 0 : index
    %23 = vector.load %arg2[%c3, %c0_13, %c0_14] : memref<9x8x4xbf16, #tpu.memory_space<vmem>>, vector<1x8x4xbf16>
    %24 = vector.shape_cast %23 : vector<1x8x4xbf16> to vector<8x4xbf16>
    %cst_15 = arith.constant dense<0.000000e+00> : vector<8x256xf32>
    %25 = tpu.matmul %24, %3, %cst_15 {dimension_numbers = #tpu.dot_dimension_numbers<[1], [0], [0], [1], [0, 0, 1, 1], [], []>} : vector<8x4xbf16>, vector<4x256xbf16>, vector<8x256xf32> -> vector<8x256xf32>
    %26 = vector.shape_cast %25 : vector<8x256xf32> to vector<8x16x16xf32>
    %27 = vector.extract_strided_slice %26 {offsets = [0, 1, 0], sizes = [8, 14, 14], strides = [1, 1, 1]} : vector<8x16x16xf32> to vector<8x14x14xf32>
    %28 = arith.addf %22, %27 : vector<8x14x14xf32>
    %c4 = arith.constant 4 : index
    %c0_16 = arith.constant 0 : index
    %c0_17 = arith.constant 0 : index
    %29 = vector.load %arg2[%c4, %c0_16, %c0_17] : memref<9x8x4xbf16, #tpu.memory_space<vmem>>, vector<1x8x4xbf16>
    %30 = vector.shape_cast %29 : vector<1x8x4xbf16> to vector<8x4xbf16>
    %cst_18 = arith.constant dense<0.000000e+00> : vector<8x256xf32>
    %31 = tpu.matmul %30, %3, %cst_18 {dimension_numbers = #tpu.dot_dimension_numbers<[1], [0], [0], [1], [0, 0, 1, 1], [], []>} : vector<8x4xbf16>, vector<4x256xbf16>, vector<8x256xf32> -> vector<8x256xf32>
    %32 = vector.shape_cast %31 : vector<8x256xf32> to vector<8x16x16xf32>
    %33 = vector.extract_strided_slice %32 {offsets = [0, 1, 1], sizes = [8, 14, 14], strides = [1, 1, 1]} : vector<8x16x16xf32> to vector<8x14x14xf32>
    %34 = arith.addf %28, %33 : vector<8x14x14xf32>
    %c5 = arith.constant 5 : index
    %c0_19 = arith.constant 0 : index
    %c0_20 = arith.constant 0 : index
    %35 = vector.load %arg2[%c5, %c0_19, %c0_20] : memref<9x8x4xbf16, #tpu.memory_space<vmem>>, vector<1x8x4xbf16>
    %36 = vector.shape_cast %35 : vector<1x8x4xbf16> to vector<8x4xbf16>
    %cst_21 = arith.constant dense<0.000000e+00> : vector<8x256xf32>
    %37 = tpu.matmul %36, %3, %cst_21 {dimension_numbers = #tpu.dot_dimension_numbers<[1], [0], [0], [1], [0, 0, 1, 1], [], []>} : vector<8x4xbf16>, vector<4x256xbf16>, vector<8x256xf32> -> vector<8x256xf32>
    %38 = vector.shape_cast %37 : vector<8x256xf32> to vector<8x16x16xf32>
    %39 = vector.extract_strided_slice %38 {offsets = [0, 1, 2], sizes = [8, 14, 14], strides = [1, 1, 1]} : vector<8x16x16xf32> to vector<8x14x14xf32>
    %40 = arith.addf %34, %39 : vector<8x14x14xf32>
    %c6 = arith.constant 6 : index
    %c0_22 = arith.constant 0 : index
    %c0_23 = arith.constant 0 : index
    %41 = vector.load %arg2[%c6, %c0_22, %c0_23] : memref<9x8x4xbf16, #tpu.memory_space<vmem>>, vector<1x8x4xbf16>
    %42 = vector.shape_cast %41 : vector<1x8x4xbf16> to vector<8x4xbf16>
    %cst_24 = arith.constant dense<0.000000e+00> : vector<8x256xf32>
    %43 = tpu.matmul %42, %3, %cst_24 {dimension_numbers = #tpu.dot_dimension_numbers<[1], [0], [0], [1], [0, 0, 1, 1], [], []>} : vector<8x4xbf16>, vector<4x256xbf16>, vector<8x256xf32> -> vector<8x256xf32>
    %44 = vector.shape_cast %43 : vector<8x256xf32> to vector<8x16x16xf32>
    %45 = vector.extract_strided_slice %44 {offsets = [0, 2, 0], sizes = [8, 14, 14], strides = [1, 1, 1]} : vector<8x16x16xf32> to vector<8x14x14xf32>
    %46 = arith.addf %40, %45 : vector<8x14x14xf32>
    %c7 = arith.constant 7 : index
    %c0_25 = arith.constant 0 : index
    %c0_26 = arith.constant 0 : index
    %47 = vector.load %arg2[%c7, %c0_25, %c0_26] : memref<9x8x4xbf16, #tpu.memory_space<vmem>>, vector<1x8x4xbf16>
    %48 = vector.shape_cast %47 : vector<1x8x4xbf16> to vector<8x4xbf16>
    %cst_27 = arith.constant dense<0.000000e+00> : vector<8x256xf32>
    %49 = tpu.matmul %48, %3, %cst_27 {dimension_numbers = #tpu.dot_dimension_numbers<[1], [0], [0], [1], [0, 0, 1, 1], [], []>} : vector<8x4xbf16>, vector<4x256xbf16>, vector<8x256xf32> -> vector<8x256xf32>
    %50 = vector.shape_cast %49 : vector<8x256xf32> to vector<8x16x16xf32>
    %51 = vector.extract_strided_slice %50 {offsets = [0, 2, 1], sizes = [8, 14, 14], strides = [1, 1, 1]} : vector<8x16x16xf32> to vector<8x14x14xf32>
    %52 = arith.addf %46, %51 : vector<8x14x14xf32>
    %c8 = arith.constant 8 : index
    %c0_28 = arith.constant 0 : index
    %c0_29 = arith.constant 0 : index
    %53 = vector.load %arg2[%c8, %c0_28, %c0_29] : memref<9x8x4xbf16, #tpu.memory_space<vmem>>, vector<1x8x4xbf16>
    %54 = vector.shape_cast %53 : vector<1x8x4xbf16> to vector<8x4xbf16>
    %cst_30 = arith.constant dense<0.000000e+00> : vector<8x256xf32>
    %55 = tpu.matmul %54, %3, %cst_30 {dimension_numbers = #tpu.dot_dimension_numbers<[1], [0], [0], [1], [0, 0, 1, 1], [], []>} : vector<8x4xbf16>, vector<4x256xbf16>, vector<8x256xf32> -> vector<8x256xf32>
    %56 = vector.shape_cast %55 : vector<8x256xf32> to vector<8x16x16xf32>
    %57 = vector.extract_strided_slice %56 {offsets = [0, 2, 2], sizes = [8, 14, 14], strides = [1, 1, 1]} : vector<8x16x16xf32> to vector<8x14x14xf32>
    %58 = arith.addf %52, %57 : vector<8x14x14xf32>
    %59 = vector.shape_cast %58 : vector<8x14x14xf32> to vector<8x196xf32>
    %c0_31 = arith.constant 0 : index
    %c0_32 = arith.constant 0 : index
    %60 = vector.load %arg3[%c0_31, %c0_32] : memref<8x1xf32, #tpu.memory_space<vmem>>, vector<8x1xf32>
    %61 = vector.broadcast %60 : vector<8x1xf32> to vector<8x196xf32>
    %62 = arith.addf %59, %61 : vector<8x196xf32>
    %63 = arith.truncf %62 : vector<8x196xf32> to vector<8x196xbf16>
    %c0_33 = arith.constant 0 : index
    %c0_34 = arith.constant 0 : index
    %c0_35 = arith.constant 0 : index
    %64 = vector.load %arg6[%c0_33, %c0_34, %c0_35] : memref<1x8x196xbf16, #tpu.memory_space<vmem>>, vector<1x8x196xbf16>
    %65 = vector.shape_cast %64 : vector<1x8x196xbf16> to vector<8x196xbf16>
    %66 = vector.shape_cast %63 : vector<8x196xbf16> to vector<1x8x196xbf16>
    tpu.vector_store %arg6[%c0_33, %c0_34, %c0_35], %66 {strides = array<i32>} : memref<1x8x196xbf16, #tpu.memory_space<vmem>>, vector<1x8x196xbf16>,
    %cst_36 = arith.constant dense<0.000000e+00> : vector<8xf32>
    %67 = vector.multi_reduction <add>, %62, %cst_36 [1] : vector<8x196xf32> to vector<8xf32>
    %68 = vector.shape_cast %67 : vector<8xf32> to vector<8x1xf32>
    %c0_37 = arith.constant 0 : index
    %c0_38 = arith.constant 0 : index
    %c0_39 = arith.constant 0 : index
    %69 = vector.load %arg7[%c0_37, %c0_38, %c0_39] : memref<1x8x1xf32, #tpu.memory_space<vmem>>, vector<1x8x1xf32>
    %70 = vector.shape_cast %69 : vector<1x8x1xf32> to vector<8x1xf32>
    %71 = vector.shape_cast %68 : vector<8x1xf32> to vector<1x8x1xf32>
    tpu.vector_store %arg7[%c0_37, %c0_38, %c0_39], %71 {strides = array<i32>} : memref<1x8x1xf32, #tpu.memory_space<vmem>>, vector<1x8x1xf32>,
    %72 = arith.mulf %62, %62 : vector<8x196xf32>
    %cst_40 = arith.constant dense<0.000000e+00> : vector<8xf32>
    %73 = vector.multi_reduction <add>, %72, %cst_40 [1] : vector<8x196xf32> to vector<8xf32>
    %74 = vector.shape_cast %73 : vector<8xf32> to vector<8x1xf32>
    %c0_41 = arith.constant 0 : index
    %c0_42 = arith.constant 0 : index
    %c0_43 = arith.constant 0 : index
    %75 = vector.load %arg8[%c0_41, %c0_42, %c0_43] : memref<1x8x1xf32, #tpu.memory_space<vmem>>, vector<1x8x1xf32>
    %76 = vector.shape_cast %75 : vector<1x8x1xf32> to vector<8x1xf32>
    %77 = vector.shape_cast %74 : vector<8x1xf32> to vector<1x8x1xf32>
    tpu.vector_store %arg8[%c0_41, %c0_42, %c0_43], %77 {strides = array<i32>} : memref<1x8x1xf32, #tpu.memory_space<vmem>>, vector<1x8x1xf32>,
    return
  }
  func.func @transform_0(%arg0: i32) -> (i32, i32, i32, i32) {
    %c0_i32 = arith.constant 0 : i32
    %c0_i32_0 = arith.constant 0 : i32
    %c0_i32_1 = arith.constant 0 : i32
    %c0_i32_2 = arith.constant 0 : i32
    return %arg0, %c0_i32, %c0_i32_0, %c0_i32_1 : i32, i32, i32, i32
  }
  func.func @transform_1(%arg0: i32) -> (i32, i32, i32) {
    %c0_i32 = arith.constant 0 : i32
    %c0_i32_0 = arith.constant 0 : i32
    %c0_i32_1 = arith.constant 0 : i32
    %c0_i32_2 = arith.constant 0 : i32
    return %c0_i32, %c0_i32_0, %c0_i32_1 : i32, i32, i32
  }
  func.func @transform_2(%arg0: i32) -> (i32, i32) {
    %c0_i32 = arith.constant 0 : i32
    %c0_i32_0 = arith.constant 0 : i32
    %c0_i32_1 = arith.constant 0 : i32
    return %c0_i32, %c0_i32_0 : i32, i32
  }
  func.func @transform_3(%arg0: i32) -> (i32, i32) {
    %c0_i32 = arith.constant 0 : i32
    %c0_i32_0 = arith.constant 0 : i32
    %c0_i32_1 = arith.constant 0 : i32
    return %c0_i32, %c0_i32_0 : i32, i32
  }
  func.func @transform_4(%arg0: i32) -> (i32, i32) {
    %c0_i32 = arith.constant 0 : i32
    %c0_i32_0 = arith.constant 0 : i32
    %c0_i32_1 = arith.constant 0 : i32
    return %c0_i32, %c0_i32_0 : i32, i32
  }
  func.func @transform_5(%arg0: i32) -> (i32, i32, i32) {
    %c0_i32 = arith.constant 0 : i32
    %c0_i32_0 = arith.constant 0 : i32
    %c0_i32_1 = arith.constant 0 : i32
    return %arg0, %c0_i32, %c0_i32_0 : i32, i32, i32
  }
  func.func @transform_6(%arg0: i32) -> (i32, i32, i32) {
    %c0_i32 = arith.constant 0 : i32
    %c0_i32_0 = arith.constant 0 : i32
    %c0_i32_1 = arith.constant 0 : i32
    return %arg0, %c0_i32, %c0_i32_0 : i32, i32, i32
  }
  func.func @transform_7(%arg0: i32) -> (i32, i32, i32) {
    %c0_i32 = arith.constant 0 : i32
    %c0_i32_0 = arith.constant 0 : i32
    %c0_i32_1 = arith.constant 0 : i32
    return %arg0, %c0_i32, %c0_i32_0 : i32, i32, i32
  }
}

module attributes {stable_mosaic.version = 11 : i64} {
  func.func @_bn_relu_kernel(%arg0: i32, %arg1: memref<1x8x144xf32, #tpu.memory_space<vmem>>, %arg2: memref<8x1xf32, #tpu.memory_space<vmem>>, %arg3: memref<8x1xf32, #tpu.memory_space<vmem>>, %arg4: memref<1x8x144xf32, #tpu.memory_space<vmem>>) attributes {dimension_semantics = [#tpu.dimension_semantics<parallel>], iteration_bounds = array<i64: 2>, scalar_prefetch = 0 : i64, scratch_operands = 0 : i64, tpu.core_type = #tpu.core_type<tc>, window_params = [{transform_indices = @transform_0, window_bounds = array<i64: 1, 8, 144>}, {pipeline_mode = #tpu.pipeline_mode<synchronous>, transform_indices = @transform_1, window_bounds = array<i64: 8, 1>}, {pipeline_mode = #tpu.pipeline_mode<synchronous>, transform_indices = @transform_2, window_bounds = array<i64: 8, 1>}, {transform_indices = @transform_3, window_bounds = array<i64: 1, 8, 144>}]} {
    %c0 = arith.constant 0 : index
    %c0_0 = arith.constant 0 : index
    %c0_1 = arith.constant 0 : index
    %0 = vector.load %arg1[%c0, %c0_0, %c0_1] : memref<1x8x144xf32, #tpu.memory_space<vmem>>, vector<1x8x144xf32>
    %1 = vector.shape_cast %0 : vector<1x8x144xf32> to vector<8x144xf32>
    %c0_2 = arith.constant 0 : index
    %c0_3 = arith.constant 0 : index
    %2 = vector.load %arg2[%c0_2, %c0_3] : memref<8x1xf32, #tpu.memory_space<vmem>>, vector<8x1xf32>
    %3 = vector.broadcast %2 : vector<8x1xf32> to vector<8x144xf32>
    %4 = arith.mulf %1, %3 : vector<8x144xf32>
    %c0_4 = arith.constant 0 : index
    %c0_5 = arith.constant 0 : index
    %5 = vector.load %arg3[%c0_4, %c0_5] : memref<8x1xf32, #tpu.memory_space<vmem>>, vector<8x1xf32>
    %6 = vector.broadcast %5 : vector<8x1xf32> to vector<8x144xf32>
    %7 = arith.addf %4, %6 : vector<8x144xf32>
    %cst = arith.constant 0.000000e+00 : f32
    %8 = vector.broadcast %cst : f32 to vector<8x144xf32>
    %9 = arith.maximumf %7, %8 : vector<8x144xf32>
    %c0_6 = arith.constant 0 : index
    %c0_7 = arith.constant 0 : index
    %c0_8 = arith.constant 0 : index
    %10 = vector.load %arg4[%c0_6, %c0_7, %c0_8] : memref<1x8x144xf32, #tpu.memory_space<vmem>>, vector<1x8x144xf32>
    %11 = vector.shape_cast %10 : vector<1x8x144xf32> to vector<8x144xf32>
    %12 = vector.shape_cast %9 : vector<8x144xf32> to vector<1x8x144xf32>
    tpu.vector_store %arg4[%c0_6, %c0_7, %c0_8], %12 {strides = array<i32>} : memref<1x8x144xf32, #tpu.memory_space<vmem>>, vector<1x8x144xf32>,
    return
  }
  func.func @transform_0(%arg0: i32) -> (i32, i32, i32) {
    %c0_i32 = arith.constant 0 : i32
    %c0_i32_0 = arith.constant 0 : i32
    %c0_i32_1 = arith.constant 0 : i32
    return %arg0, %c0_i32, %c0_i32_0 : i32, i32, i32
  }
  func.func @transform_1(%arg0: i32) -> (i32, i32) {
    %c0_i32 = arith.constant 0 : i32
    %c0_i32_0 = arith.constant 0 : i32
    %c0_i32_1 = arith.constant 0 : i32
    return %c0_i32, %c0_i32_0 : i32, i32
  }
  func.func @transform_2(%arg0: i32) -> (i32, i32) {
    %c0_i32 = arith.constant 0 : i32
    %c0_i32_0 = arith.constant 0 : i32
    %c0_i32_1 = arith.constant 0 : i32
    return %c0_i32, %c0_i32_0 : i32, i32
  }
  func.func @transform_3(%arg0: i32) -> (i32, i32, i32) {
    %c0_i32 = arith.constant 0 : i32
    %c0_i32_0 = arith.constant 0 : i32
    %c0_i32_1 = arith.constant 0 : i32
    return %arg0, %c0_i32, %c0_i32_0 : i32, i32, i32
  }
}

module attributes {stable_mosaic.version = 11 : i64} {
  func.func @_conv3x3_kernel(%arg0: i32, %arg1: memref<1x8x14x14xbf16, #tpu.memory_space<vmem>>, %arg2: memref<9x8x8xbf16, #tpu.memory_space<vmem>>, %arg3: memref<8x1xf32, #tpu.memory_space<vmem>>, %arg4: memref<8x1xf32, #tpu.memory_space<vmem>>, %arg5: memref<8x1xf32, #tpu.memory_space<vmem>>, %arg6: memref<1x8x144xf32, #tpu.memory_space<vmem>>, %arg7: memref<1x8x1xf32, #tpu.memory_space<vmem>>, %arg8: memref<1x8x1xf32, #tpu.memory_space<vmem>>) attributes {dimension_semantics = [#tpu.dimension_semantics<parallel>], iteration_bounds = array<i64: 2>, scalar_prefetch = 0 : i64, scratch_operands = 0 : i64, tpu.core_type = #tpu.core_type<tc>, window_params = [{transform_indices = @transform_0, window_bounds = array<i64: 1, 8, 14, 14>}, {pipeline_mode = #tpu.pipeline_mode<synchronous>, transform_indices = @transform_1, window_bounds = array<i64: 9, 8, 8>}, {pipeline_mode = #tpu.pipeline_mode<synchronous>, transform_indices = @transform_2, window_bounds = array<i64: 8, 1>}, {pipeline_mode = #tpu.pipeline_mode<synchronous>, transform_indices = @transform_3, window_bounds = array<i64: 8, 1>}, {pipeline_mode = #tpu.pipeline_mode<synchronous>, transform_indices = @transform_4, window_bounds = array<i64: 8, 1>}, {transform_indices = @transform_5, window_bounds = array<i64: 1, 8, 144>}, {transform_indices = @transform_6, window_bounds = array<i64: 1, 8, 1>}, {transform_indices = @transform_7, window_bounds = array<i64: 1, 8, 1>}]} {
    %c0 = arith.constant 0 : index
    %c0_0 = arith.constant 0 : index
    %c0_1 = arith.constant 0 : index
    %c0_2 = arith.constant 0 : index
    %0 = vector.load %arg1[%c0, %c0_0, %c0_1, %c0_2] : memref<1x8x14x14xbf16, #tpu.memory_space<vmem>>, vector<1x8x14x14xbf16>
    %1 = vector.shape_cast %0 : vector<1x8x14x14xbf16> to vector<8x14x14xbf16>
    %2 = vector.shape_cast %1 : vector<8x14x14xbf16> to vector<8x196xbf16>
    %3 = arith.extf %2 : vector<8x196xbf16> to vector<8x196xf32>
    %c0_3 = arith.constant 0 : index
    %c0_4 = arith.constant 0 : index
    %4 = vector.load %arg4[%c0_3, %c0_4] : memref<8x1xf32, #tpu.memory_space<vmem>>, vector<8x1xf32>
    %5 = vector.broadcast %4 : vector<8x1xf32> to vector<8x196xf32>
    %6 = arith.mulf %3, %5 : vector<8x196xf32>
    %c0_5 = arith.constant 0 : index
    %c0_6 = arith.constant 0 : index
    %7 = vector.load %arg5[%c0_5, %c0_6] : memref<8x1xf32, #tpu.memory_space<vmem>>, vector<8x1xf32>
    %8 = vector.broadcast %7 : vector<8x1xf32> to vector<8x196xf32>
    %9 = arith.addf %6, %8 : vector<8x196xf32>
    %cst = arith.constant 0.000000e+00 : f32
    %10 = vector.broadcast %cst : f32 to vector<8x196xf32>
    %11 = arith.maximumf %9, %10 : vector<8x196xf32>
    %12 = arith.truncf %11 : vector<8x196xf32> to vector<8x196xbf16>
    %cst_7 = arith.constant 0.000000e+00 : f32
    %13 = vector.broadcast %cst_7 : f32 to vector<8x12x12xf32>
    %c0_8 = arith.constant 0 : index
    %c0_9 = arith.constant 0 : index
    %c0_10 = arith.constant 0 : index
    %14 = vector.load %arg2[%c0_8, %c0_9, %c0_10] : memref<9x8x8xbf16, #tpu.memory_space<vmem>>, vector<1x8x8xbf16>
    %15 = vector.shape_cast %14 : vector<1x8x8xbf16> to vector<8x8xbf16>
    %cst_11 = arith.constant dense<0.000000e+00> : vector<8x196xf32>
    %16 = tpu.matmul %15, %12, %cst_11 {dimension_numbers = #tpu.dot_dimension_numbers<[1], [0], [0], [1], [0, 0, 1, 1], [], []>} : vector<8x8xbf16>, vector<8x196xbf16>, vector<8x196xf32> -> vector<8x196xf32>
    %17 = vector.shape_cast %16 : vector<8x196xf32> to vector<8x14x14xf32>
    %18 = vector.extract_strided_slice %17 {offsets = [0, 0, 0], sizes = [8, 12, 12], strides = [1, 1, 1]} : vector<8x14x14xf32> to vector<8x12x12xf32>
    %19 = arith.addf %13, %18 : vector<8x12x12xf32>
    %c1 = arith.constant 1 : index
    %c0_12 = arith.constant 0 : index
    %c0_13 = arith.constant 0 : index
    %20 = vector.load %arg2[%c1, %c0_12, %c0_13] : memref<9x8x8xbf16, #tpu.memory_space<vmem>>, vector<1x8x8xbf16>
    %21 = vector.shape_cast %20 : vector<1x8x8xbf16> to vector<8x8xbf16>
    %cst_14 = arith.constant dense<0.000000e+00> : vector<8x196xf32>
    %22 = tpu.matmul %21, %12, %cst_14 {dimension_numbers = #tpu.dot_dimension_numbers<[1], [0], [0], [1], [0, 0, 1, 1], [], []>} : vector<8x8xbf16>, vector<8x196xbf16>, vector<8x196xf32> -> vector<8x196xf32>
    %23 = vector.shape_cast %22 : vector<8x196xf32> to vector<8x14x14xf32>
    %24 = vector.extract_strided_slice %23 {offsets = [0, 0, 1], sizes = [8, 12, 12], strides = [1, 1, 1]} : vector<8x14x14xf32> to vector<8x12x12xf32>
    %25 = arith.addf %19, %24 : vector<8x12x12xf32>
    %c2 = arith.constant 2 : index
    %c0_15 = arith.constant 0 : index
    %c0_16 = arith.constant 0 : index
    %26 = vector.load %arg2[%c2, %c0_15, %c0_16] : memref<9x8x8xbf16, #tpu.memory_space<vmem>>, vector<1x8x8xbf16>
    %27 = vector.shape_cast %26 : vector<1x8x8xbf16> to vector<8x8xbf16>
    %cst_17 = arith.constant dense<0.000000e+00> : vector<8x196xf32>
    %28 = tpu.matmul %27, %12, %cst_17 {dimension_numbers = #tpu.dot_dimension_numbers<[1], [0], [0], [1], [0, 0, 1, 1], [], []>} : vector<8x8xbf16>, vector<8x196xbf16>, vector<8x196xf32> -> vector<8x196xf32>
    %29 = vector.shape_cast %28 : vector<8x196xf32> to vector<8x14x14xf32>
    %30 = vector.extract_strided_slice %29 {offsets = [0, 0, 2], sizes = [8, 12, 12], strides = [1, 1, 1]} : vector<8x14x14xf32> to vector<8x12x12xf32>
    %31 = arith.addf %25, %30 : vector<8x12x12xf32>
    %c3 = arith.constant 3 : index
    %c0_18 = arith.constant 0 : index
    %c0_19 = arith.constant 0 : index
    %32 = vector.load %arg2[%c3, %c0_18, %c0_19] : memref<9x8x8xbf16, #tpu.memory_space<vmem>>, vector<1x8x8xbf16>
    %33 = vector.shape_cast %32 : vector<1x8x8xbf16> to vector<8x8xbf16>
    %cst_20 = arith.constant dense<0.000000e+00> : vector<8x196xf32>
    %34 = tpu.matmul %33, %12, %cst_20 {dimension_numbers = #tpu.dot_dimension_numbers<[1], [0], [0], [1], [0, 0, 1, 1], [], []>} : vector<8x8xbf16>, vector<8x196xbf16>, vector<8x196xf32> -> vector<8x196xf32>
    %35 = vector.shape_cast %34 : vector<8x196xf32> to vector<8x14x14xf32>
    %36 = vector.extract_strided_slice %35 {offsets = [0, 1, 0], sizes = [8, 12, 12], strides = [1, 1, 1]} : vector<8x14x14xf32> to vector<8x12x12xf32>
    %37 = arith.addf %31, %36 : vector<8x12x12xf32>
    %c4 = arith.constant 4 : index
    %c0_21 = arith.constant 0 : index
    %c0_22 = arith.constant 0 : index
    %38 = vector.load %arg2[%c4, %c0_21, %c0_22] : memref<9x8x8xbf16, #tpu.memory_space<vmem>>, vector<1x8x8xbf16>
    %39 = vector.shape_cast %38 : vector<1x8x8xbf16> to vector<8x8xbf16>
    %cst_23 = arith.constant dense<0.000000e+00> : vector<8x196xf32>
    %40 = tpu.matmul %39, %12, %cst_23 {dimension_numbers = #tpu.dot_dimension_numbers<[1], [0], [0], [1], [0, 0, 1, 1], [], []>} : vector<8x8xbf16>, vector<8x196xbf16>, vector<8x196xf32> -> vector<8x196xf32>
    %41 = vector.shape_cast %40 : vector<8x196xf32> to vector<8x14x14xf32>
    %42 = vector.extract_strided_slice %41 {offsets = [0, 1, 1], sizes = [8, 12, 12], strides = [1, 1, 1]} : vector<8x14x14xf32> to vector<8x12x12xf32>
    %43 = arith.addf %37, %42 : vector<8x12x12xf32>
    %c5 = arith.constant 5 : index
    %c0_24 = arith.constant 0 : index
    %c0_25 = arith.constant 0 : index
    %44 = vector.load %arg2[%c5, %c0_24, %c0_25] : memref<9x8x8xbf16, #tpu.memory_space<vmem>>, vector<1x8x8xbf16>
    %45 = vector.shape_cast %44 : vector<1x8x8xbf16> to vector<8x8xbf16>
    %cst_26 = arith.constant dense<0.000000e+00> : vector<8x196xf32>
    %46 = tpu.matmul %45, %12, %cst_26 {dimension_numbers = #tpu.dot_dimension_numbers<[1], [0], [0], [1], [0, 0, 1, 1], [], []>} : vector<8x8xbf16>, vector<8x196xbf16>, vector<8x196xf32> -> vector<8x196xf32>
    %47 = vector.shape_cast %46 : vector<8x196xf32> to vector<8x14x14xf32>
    %48 = vector.extract_strided_slice %47 {offsets = [0, 1, 2], sizes = [8, 12, 12], strides = [1, 1, 1]} : vector<8x14x14xf32> to vector<8x12x12xf32>
    %49 = arith.addf %43, %48 : vector<8x12x12xf32>
    %c6 = arith.constant 6 : index
    %c0_27 = arith.constant 0 : index
    %c0_28 = arith.constant 0 : index
    %50 = vector.load %arg2[%c6, %c0_27, %c0_28] : memref<9x8x8xbf16, #tpu.memory_space<vmem>>, vector<1x8x8xbf16>
    %51 = vector.shape_cast %50 : vector<1x8x8xbf16> to vector<8x8xbf16>
    %cst_29 = arith.constant dense<0.000000e+00> : vector<8x196xf32>
    %52 = tpu.matmul %51, %12, %cst_29 {dimension_numbers = #tpu.dot_dimension_numbers<[1], [0], [0], [1], [0, 0, 1, 1], [], []>} : vector<8x8xbf16>, vector<8x196xbf16>, vector<8x196xf32> -> vector<8x196xf32>
    %53 = vector.shape_cast %52 : vector<8x196xf32> to vector<8x14x14xf32>
    %54 = vector.extract_strided_slice %53 {offsets = [0, 2, 0], sizes = [8, 12, 12], strides = [1, 1, 1]} : vector<8x14x14xf32> to vector<8x12x12xf32>
    %55 = arith.addf %49, %54 : vector<8x12x12xf32>
    %c7 = arith.constant 7 : index
    %c0_30 = arith.constant 0 : index
    %c0_31 = arith.constant 0 : index
    %56 = vector.load %arg2[%c7, %c0_30, %c0_31] : memref<9x8x8xbf16, #tpu.memory_space<vmem>>, vector<1x8x8xbf16>
    %57 = vector.shape_cast %56 : vector<1x8x8xbf16> to vector<8x8xbf16>
    %cst_32 = arith.constant dense<0.000000e+00> : vector<8x196xf32>
    %58 = tpu.matmul %57, %12, %cst_32 {dimension_numbers = #tpu.dot_dimension_numbers<[1], [0], [0], [1], [0, 0, 1, 1], [], []>} : vector<8x8xbf16>, vector<8x196xbf16>, vector<8x196xf32> -> vector<8x196xf32>
    %59 = vector.shape_cast %58 : vector<8x196xf32> to vector<8x14x14xf32>
    %60 = vector.extract_strided_slice %59 {offsets = [0, 2, 1], sizes = [8, 12, 12], strides = [1, 1, 1]} : vector<8x14x14xf32> to vector<8x12x12xf32>
    %61 = arith.addf %55, %60 : vector<8x12x12xf32>
    %c8 = arith.constant 8 : index
    %c0_33 = arith.constant 0 : index
    %c0_34 = arith.constant 0 : index
    %62 = vector.load %arg2[%c8, %c0_33, %c0_34] : memref<9x8x8xbf16, #tpu.memory_space<vmem>>, vector<1x8x8xbf16>
    %63 = vector.shape_cast %62 : vector<1x8x8xbf16> to vector<8x8xbf16>
    %cst_35 = arith.constant dense<0.000000e+00> : vector<8x196xf32>
    %64 = tpu.matmul %63, %12, %cst_35 {dimension_numbers = #tpu.dot_dimension_numbers<[1], [0], [0], [1], [0, 0, 1, 1], [], []>} : vector<8x8xbf16>, vector<8x196xbf16>, vector<8x196xf32> -> vector<8x196xf32>
    %65 = vector.shape_cast %64 : vector<8x196xf32> to vector<8x14x14xf32>
    %66 = vector.extract_strided_slice %65 {offsets = [0, 2, 2], sizes = [8, 12, 12], strides = [1, 1, 1]} : vector<8x14x14xf32> to vector<8x12x12xf32>
    %67 = arith.addf %61, %66 : vector<8x12x12xf32>
    %68 = vector.shape_cast %67 : vector<8x12x12xf32> to vector<8x144xf32>
    %c0_36 = arith.constant 0 : index
    %c0_37 = arith.constant 0 : index
    %69 = vector.load %arg3[%c0_36, %c0_37] : memref<8x1xf32, #tpu.memory_space<vmem>>, vector<8x1xf32>
    %70 = vector.broadcast %69 : vector<8x1xf32> to vector<8x144xf32>
    %71 = arith.addf %68, %70 : vector<8x144xf32>
    %c0_38 = arith.constant 0 : index
    %c0_39 = arith.constant 0 : index
    %c0_40 = arith.constant 0 : index
    %72 = vector.load %arg6[%c0_38, %c0_39, %c0_40] : memref<1x8x144xf32, #tpu.memory_space<vmem>>, vector<1x8x144xf32>
    %73 = vector.shape_cast %72 : vector<1x8x144xf32> to vector<8x144xf32>
    %74 = vector.shape_cast %71 : vector<8x144xf32> to vector<1x8x144xf32>
    tpu.vector_store %arg6[%c0_38, %c0_39, %c0_40], %74 {strides = array<i32>} : memref<1x8x144xf32, #tpu.memory_space<vmem>>, vector<1x8x144xf32>,
    %cst_41 = arith.constant dense<0.000000e+00> : vector<8xf32>
    %75 = vector.multi_reduction <add>, %71, %cst_41 [1] : vector<8x144xf32> to vector<8xf32>
    %76 = vector.shape_cast %75 : vector<8xf32> to vector<8x1xf32>
    %c0_42 = arith.constant 0 : index
    %c0_43 = arith.constant 0 : index
    %c0_44 = arith.constant 0 : index
    %77 = vector.load %arg7[%c0_42, %c0_43, %c0_44] : memref<1x8x1xf32, #tpu.memory_space<vmem>>, vector<1x8x1xf32>
    %78 = vector.shape_cast %77 : vector<1x8x1xf32> to vector<8x1xf32>
    %79 = vector.shape_cast %76 : vector<8x1xf32> to vector<1x8x1xf32>
    tpu.vector_store %arg7[%c0_42, %c0_43, %c0_44], %79 {strides = array<i32>} : memref<1x8x1xf32, #tpu.memory_space<vmem>>, vector<1x8x1xf32>,
    %80 = arith.mulf %71, %71 : vector<8x144xf32>
    %cst_45 = arith.constant dense<0.000000e+00> : vector<8xf32>
    %81 = vector.multi_reduction <add>, %80, %cst_45 [1] : vector<8x144xf32> to vector<8xf32>
    %82 = vector.shape_cast %81 : vector<8xf32> to vector<8x1xf32>
    %c0_46 = arith.constant 0 : index
    %c0_47 = arith.constant 0 : index
    %c0_48 = arith.constant 0 : index
    %83 = vector.load %arg8[%c0_46, %c0_47, %c0_48] : memref<1x8x1xf32, #tpu.memory_space<vmem>>, vector<1x8x1xf32>
    %84 = vector.shape_cast %83 : vector<1x8x1xf32> to vector<8x1xf32>
    %85 = vector.shape_cast %82 : vector<8x1xf32> to vector<1x8x1xf32>
    tpu.vector_store %arg8[%c0_46, %c0_47, %c0_48], %85 {strides = array<i32>} : memref<1x8x1xf32, #tpu.memory_space<vmem>>, vector<1x8x1xf32>,
    return
  }
  func.func @transform_0(%arg0: i32) -> (i32, i32, i32, i32) {
    %c0_i32 = arith.constant 0 : i32
    %c0_i32_0 = arith.constant 0 : i32
    %c0_i32_1 = arith.constant 0 : i32
    %c0_i32_2 = arith.constant 0 : i32
    return %arg0, %c0_i32, %c0_i32_0, %c0_i32_1 : i32, i32, i32, i32
  }
  func.func @transform_1(%arg0: i32) -> (i32, i32, i32) {
    %c0_i32 = arith.constant 0 : i32
    %c0_i32_0 = arith.constant 0 : i32
    %c0_i32_1 = arith.constant 0 : i32
    %c0_i32_2 = arith.constant 0 : i32
    return %c0_i32, %c0_i32_0, %c0_i32_1 : i32, i32, i32
  }
  func.func @transform_2(%arg0: i32) -> (i32, i32) {
    %c0_i32 = arith.constant 0 : i32
    %c0_i32_0 = arith.constant 0 : i32
    %c0_i32_1 = arith.constant 0 : i32
    return %c0_i32, %c0_i32_0 : i32, i32
  }
  func.func @transform_3(%arg0: i32) -> (i32, i32) {
    %c0_i32 = arith.constant 0 : i32
    %c0_i32_0 = arith.constant 0 : i32
    %c0_i32_1 = arith.constant 0 : i32
    return %c0_i32, %c0_i32_0 : i32, i32
  }
  func.func @transform_4(%arg0: i32) -> (i32, i32) {
    %c0_i32 = arith.constant 0 : i32
    %c0_i32_0 = arith.constant 0 : i32
    %c0_i32_1 = arith.constant 0 : i32
    return %c0_i32, %c0_i32_0 : i32, i32
  }
  func.func @transform_5(%arg0: i32) -> (i32, i32, i32) {
    %c0_i32 = arith.constant 0 : i32
    %c0_i32_0 = arith.constant 0 : i32
    %c0_i32_1 = arith.constant 0 : i32
    return %arg0, %c0_i32, %c0_i32_0 : i32, i32, i32
  }
  func.func @transform_6(%arg0: i32) -> (i32, i32, i32) {
    %c0_i32 = arith.constant 0 : i32
    %c0_i32_0 = arith.constant 0 : i32
    %c0_i32_1 = arith.constant 0 : i32
    return %arg0, %c0_i32, %c0_i32_0 : i32, i32, i32
  }
  func.func @transform_7(%arg0: i32) -> (i32, i32, i32) {
    %c0_i32 = arith.constant 0 : i32
    %c0_i32_0 = arith.constant 0 : i32
    %c0_i32_1 = arith.constant 0 : i32
    return %arg0, %c0_i32, %c0_i32_0 : i32, i32, i32
  }
}

</mosaic_0001>

<llo_original>
// kernel: unet_down_forward.5
$region0: #{unet_down_forward.5}
  #allocation0 [shape = 'u32[]', space=smem, size = 0x4, offset = 0x4, fixed_abs, tag = 'smem constant byte address 0x4 - core index']
  #allocation1 [shape = 'u32[144,128]{1,0:T(1,128)}', space=vmem, size = 0x12000, scoped, tag = 'internal scratch']
  %s0 = inlined_call_operand.vmem [shape: f32[2,8,144], index: 0, kind: input, shape index: {}]
  %s1 = inlined_call_operand.vmem [shape: f32[8,1], index: 1, kind: input, shape index: {}]
  %s2 = inlined_call_operand.vmem [shape: f32[8,1], index: 2, kind: input, shape index: {}]
  %s3 = inlined_call_operand.vmem [shape: f32[2,8,144], index: 3, kind: output, shape index: {}]
  %s4 = sld [smem:[#allocation0]]
  $region45: #{unet_down_forward.5} parent=0
    _
  %s6 = ssub.s32 1, %s4
  %s7 = scalar_select 0, %s6, %s4
  loop: start=0, step=1, limit=4
  $region2: #{unet_down_forward.5} parent=0 // loop_pre_header
    _
  $region3: #{unet_down_forward.5} parent=0 // loop_header
    %s9 = sphi 0, %s13
    %p10 = scmp.ge.s32.totalorder %s9, 4
    %s19 = sphi 0, %s21
    %s22 = sphi 0, %s19
    %s23 = sphi 0, %s22
    %s39 = sphi 0, %s23
    %s43 = sphi 0, %s43
    %s45 = sphi 0, %s43
    %s46 = sphi 0, %s45
    %s60 = sphi 0, %s46
    %s64 = sphi 0, %s64
    %s66 = sphi 0, %s64
    %s67 = sphi 0, %s66
    %s81 = sphi 0, %s67
    %s87 = sphi 0, %s89
    %s90 = sphi 0, %s87
    %s91 = sphi 0, %s90
    %s107 = sphi 0, %s91
  $region4: #{unet_down_forward.5} parent=0 // loop_header_branch
    %12 = sbr.rel (%p10) target = $region8
  $region5: #{unet_down_forward.5} parent=0 // loop_body
    %s14 = ssub.s32 %s9, 1
    %s15 = ssub.s32 %s9, 2
    %s16 = sadd.s32 %s9, 1
    %s17 = ssub.s32 %s9, %s16
    %p18 = scmp.eq.s32.totalorder %s17, 0
    %s20 = sadd.s32 %s19, 1
    %s21 = scalar_select %p18, %s19, %s20
    %p24 = pneg %p18
    %p25 = scmp.eq.s32.totalorder %s9, 1
    %p26 = por %p24, %p25
    %p27 = scmp.ne.s32.totalorder %s19, %s22
    %p28 = scmp.eq.s32.totalorder %s9, 0
    %p29 = por %p27, %p28
    %p30 = scmp.ne.s32.totalorder %s19, %s22
    %p31 = scmp.eq.s32.totalorder %s14, 1
    %p32 = por %p30, %p31
    %p33 = scmp.ne.s32.totalorder %s22, %s23
    %p34 = scmp.eq.s32.totalorder %s14, 0
    %p35 = por %p33, %p34
    %p36 = scmp.ne.s32.totalorder %s22, %s23
    %p37 = scmp.eq.s32.totalorder %s15, 1
    %p38 = por %p36, %p37
    %p40 = scmp.ne.s32.totalorder %s23, %s39
    %p41 = scmp.eq.s32.totalorder %s15, 0
    %p42 = por %p40, %p41
    %s44 = sadd.s32 %s43, 1
    %p47 = scmp.eq.s32.totalorder %s9, 1
    %p48 = scmp.ne.s32.totalorder %s43, %s45
    %p49 = scmp.eq.s32.totalorder %s9, 0
    %p50 = por %p48, %p49
    %p51 = scmp.ne.s32.totalorder %s43, %s45
    %p52 = scmp.eq.s32.totalorder %s14, 1
    %p53 = por %p51, %p52
    %p54 = scmp.ne.s32.totalorder %s45, %s46
    %p55 = scmp.eq.s32.totalorder %s14, 0
    %p56 = por %p54, %p55
    %p57 = scmp.ne.s32.totalorder %s45, %s46
    %p58 = scmp.eq.s32.totalorder %s15, 1
    %p59 = por %p57, %p58
    %p61 = scmp.ne.s32.totalorder %s46, %s60
    %p62 = scmp.eq.s32.totalorder %s15, 0
    %p63 = por %p61, %p62
    %s65 = sadd.s32 %s64, 1
    %p68 = scmp.eq.s32.totalorder %s9, 1
    %p69 = scmp.ne.s32.totalorder %s64, %s66
    %p70 = scmp.eq.s32.totalorder %s9, 0
    %p71 = por %p69, %p70
    %p72 = scmp.ne.s32.totalorder %s64, %s66
    %p73 = scmp.eq.s32.totalorder %s14, 1
    %p74 = por %p72, %p73
    %p75 = scmp.ne.s32.totalorder %s66, %s67
    %p76 = scmp.eq.s32.totalorder %s14, 0
    %p77 = por %p75, %p76
    %p78 = scmp.ne.s32.totalorder %s66, %s67
    %p79 = scmp.eq.s32.totalorder %s15, 1
    %p80 = por %p78, %p79
    %p82 = scmp.ne.s32.totalorder %s67, %s81
    %p83 = scmp.eq.s32.totalorder %s15, 0
    %p84 = por %p82, %p83
    %s85 = ssub.s32 %s9, %s16
    %p86 = scmp.eq.s32.totalorder %s85, 0
    %s88 = sadd.s32 %s87, 1
    %s89 = scalar_select %p86, %s87, %s88
    %p92 = pneg %p86
    %p93 = scmp.eq.s32.totalorder %s9, 1
    %p94 = por %p92, %p93
    %p95 = scmp.ne.s32.totalorder %s87, %s90
    %p96 = scmp.eq.s32.totalorder %s9, 0
    %p97 = por %p95, %p96
    %p98 = scmp.ne.s32.totalorder %s87, %s90
    %p99 = scmp.eq.s32.totalorder %s14, 1
    %p100 = por %p98, %p99
    %p101 = scmp.ne.s32.totalorder %s90, %s91
    %p102 = scmp.eq.s32.totalorder %s14, 0
    %p103 = por %p101, %p102
    %p104 = scmp.ne.s32.totalorder %s90, %s91
    %p105 = scmp.eq.s32.totalorder %s15, 1
    %p106 = por %p104, %p105
    %p108 = scmp.ne.s32.totalorder %s91, %s107
    %p109 = scmp.eq.s32.totalorder %s15, 0
    %p110 = por %p108, %p109
    %p111 = scmp.le.s32.totalorder 1, %s9
    %p112 = scmp.lt.s32.totalorder %s9, 3
    %p113 = pnand %p111, %p112
    %p114 = pneg %p113
    // Predicated region
    $region9: #{unet_down_forward.5} parent=5 // pred_check
      _
    $region10: #{unet_down_forward.5} parent=5 // pred_check_branch
      %116 = sbr.rel (%p113) target = $region12
    $region11: #{unet_down_forward.5} parent=5 // pred_region
      %s117 = ssub.s32 %s9, 1
      // Predicated region
      $region13: #{unet_down_forward.5} parent=11 // pred_check
        %p118 = pneg %p56
      $region14: #{unet_down_forward.5} parent=11 // pred_check_branch
        %120 = sbr.rel (%p118) target = $region16
      $region15: #{unet_down_forward.5} parent=11 // pred_region
        _
      $region16: #{unet_down_forward.5} parent=11 // pred_fallthru
        _
      // Predicated region
      $region17: #{unet_down_forward.5} parent=11 // pred_check
        %p121 = pneg %p77
      $region18: #{unet_down_forward.5} parent=11 // pred_check_branch
        %123 = sbr.rel (%p121) target = $region20
      $region19: #{unet_down_forward.5} parent=11 // pred_region
        _
      $region20: #{unet_down_forward.5} parent=11 // pred_fallthru
        _
    $region12: #{unet_down_forward.5} parent=5 // pred_fallthru
      _
    %p124 = scmp.lt.s32.totalorder %s9, 2
    // Predicated region
    $region21: #{unet_down_forward.5} parent=5 // pred_check
      %p125 = pneg %p124
    $region22: #{unet_down_forward.5} parent=5 // pred_check_branch
      %127 = sbr.rel (%p125) target = $region24
    $region23: #{unet_down_forward.5} parent=5 // pred_region
      // Predicated region
      $region25: #{unet_down_forward.5} parent=23 // pred_check
        %p128 = pneg %p29
      $region26: #{unet_down_forward.5} parent=23 // pred_check_branch
        %130 = sbr.rel (%p128) target = $region28
      $region27: #{unet_down_forward.5} parent=23 // pred_region
        %p131 = scmp.lt.s32.totalorder %s9, 1
        %s132 = scalar_select %p131, %s9, 1
        %s133 = smul.addr %s132, 2
        %s134 = smul.addr %s133, 8
        %s135 = scalar_lea.vmem %s0, %s134
      $region28: #{unet_down_forward.5} parent=23 // pred_fallthru
        _
    $region24: #{unet_down_forward.5} parent=5 // pred_fallthru
      _
    %p136 = scmp.le.s32.totalorder 1, %s9
    %p137 = scmp.lt.s32.totalorder %s9, 3
    %p138 = pnand %p136, %p137
    %p139 = pneg %p138
    // Predicated region
    $region29: #{unet_down_forward.5} parent=5 // pred_check
      _
    $region30: #{unet_down_forward.5} parent=5 // pred_check_branch
      %141 = sbr.rel (%p138) target = $region32
    $region31: #{unet_down_forward.5} parent=5 // pred_region
      %s142 = ssub.s32 %s9, 1
      %p143 = scmp.lt.s32.totalorder %s14, 1
      %s144 = scalar_select %p143, %s14, 1
      %s145 = smul.addr %s144, 2
      %s146 = smul.addr %s145, 8
      %s147 = scalar_lea.vmem %s0, %s146
      %p148 = pneg %p35
      %p149 = pneg %p32
      %p150 = pneg %p56
      %p151 = pneg %p53
      %p152 = pneg %p77
      %p153 = pneg %p74
      %p154 = pneg %p103
      %p155 = pneg %p100
      %p156 = scmp.lt.s32.totalorder %s14, 1
      %s157 = scalar_select %p156, %s14, 1
      %s158 = smul.addr %s157, 2
      %s159 = smul.addr %s158, 8
      %s160 = scalar_lea.vmem %s3, %s159
      %p161 = scmp.lt.s32.totalorder %s14, 1
      %s162 = scalar_select %p161, %s14, 1
      %s163 = smul.addr %s162, 2
      %s164 = smul.addr %s163, 8
      %s165 = scalar_lea.vmem %s0, %s164
      %p166 = scmp.lt.s32.totalorder %s14, 1
      %s167 = scalar_select %p166, %s14, 1
      %s168 = smul.addr %s167, 2
      %s169 = smul.addr %s168, 8
      %s170 = scalar_lea.vmem %s3, %s169
      %v171 = vld [vmem:[%s165] sm:$0xff]
      %v172 = vld [vmem:[%s165 + $0x8] sm:$0xff]
      %v173 = vld [vmem:[%s1] sm:$0xff]
      %175 = vset.pattern.permute.xlu0 0
      %176 = vperm.xlu0 %175, %v173
      %v177 = vpop.permute.xlu0 %176
      %v179 = vmul.f32 %v171, %v177
      %v180 = vmul.f32 %v172, %v177
      %v181 = vld [vmem:[%s2] sm:$0xff]
      %183 = vset.pattern.permute.xlu0 0
      %184 = vperm.xlu0 %183, %v181
      %v185 = vpop.permute.xlu0 %184
      %v187 = vadd.f32 %v179, %v185
      %v188 = vadd.f32 %v180, %v185
      %v189 = vmax.f32 %v187, 0.0
      %v190 = vmax.f32 %v188, 0.0
      %191 = vst [vmem:[%s170] sm:$0xff] %v189
      %vm192 = vcmask 130048
      %193 = vst.msk [vmem:[%s170 + $0x8] sm:$0xff] %vm192, %v190
      %p194 = scmp.lt.s32.totalorder %s14, 1
      %s195 = scalar_select %p194, %s14, 1
      %s196 = smul.addr %s195, 2
      %s197 = smul.addr %s196, 8
      %s198 = scalar_lea.vmem %s3, %s197
      // Predicated region
      $region33: #{unet_down_forward.5} parent=31 // pred_check
        %p199 = pneg %p100
      $region34: #{unet_down_forward.5} parent=31 // pred_check_branch
        %201 = sbr.rel (%p199) target = $region36
      $region35: #{unet_down_forward.5} parent=31 // pred_region
        _
      $region36: #{unet_down_forward.5} parent=31 // pred_fallthru
        _
    $region32: #{unet_down_forward.5} parent=5 // pred_fallthru
      _
    %p202 = scmp.le.s32.totalorder 2, %s9
    // Predicated region
    $region37: #{unet_down_forward.5} parent=5 // pred_check
      %p203 = pneg %p202
    $region38: #{unet_down_forward.5} parent=5 // pred_check_branch
      %205 = sbr.rel (%p203) target = $region40
    $region39: #{unet_down_forward.5} parent=5 // pred_region
      %s206 = ssub.s32 %s9, 2
      // Predicated region
      $region41: #{unet_down_forward.5} parent=39 // pred_check
        %p207 = pneg %p106
      $region42: #{unet_down_forward.5} parent=39 // pred_check_branch
        %209 = sbr.rel (%p207) target = $region44
      $region43: #{unet_down_forward.5} parent=39 // pred_region
        %p210 = scmp.lt.s32.totalorder %s15, 1
        %s211 = scalar_select %p210, %s15, 1
        %s212 = smul.addr %s211, 2
        %s213 = smul.addr %s212, 8
        %s214 = scalar_lea.vmem %s3, %s213
      $region44: #{unet_down_forward.5} parent=39 // pred_fallthru
        _
    $region40: #{unet_down_forward.5} parent=5 // pred_fallthru
      _
  $region6: #{unet_down_forward.5} parent=0 // loop_footer
    %s13 = sadd.s32 1, %s9
  $region7: #{unet_down_forward.5} parent=0 // loop_footer_branch
    %8 = sbr.rel target = $region3
  $region8: #{unet_down_forward.5} parent=0 // loop_exit
    _

// kernel: unet_down_forward.3
$region0: #{unet_down_forward.3}
  #allocation0 [shape = 'u32[]', space=smem, size = 0x4, offset = 0x4, fixed_abs, tag = 'smem constant byte address 0x4 - core index']
  #allocation1 [shape = 'u32[144,128]{1,0:T(1,128)}', space=vmem, size = 0x12000, scoped, tag = 'internal scratch']
  %s0 = inlined_call_operand.vmem [shape: f32[2,4,16,16], index: 0, kind: input, shape index: {}]
  %s1 = inlined_call_operand.vmem [shape: bf16[9,8,4], index: 1, kind: input, shape index: {}]
  %s2 = inlined_call_operand.vmem [shape: f32[8,1], index: 2, kind: input, shape index: {}]
  %s3 = inlined_call_operand.vmem [shape: f32[4,1], index: 3, kind: input, shape index: {}]
  %s4 = inlined_call_operand.vmem [shape: f32[4,1], index: 4, kind: input, shape index: {}]
  %s5 = inlined_call_operand.vmem [shape: bf16[2,8,196], index: 5, kind: output, shape index: {0}]
  %s6 = inlined_call_operand.vmem [shape: f32[2,8,1], index: 6, kind: output, shape index: {1}]
  %s7 = inlined_call_operand.vmem [shape: f32[2,8,1], index: 7, kind: output, shape index: {2}]
  %8 = xla_tuple %s5, %s6, %s7
  %s9 = sld [smem:[#allocation0]]
  $region69: #{unet_down_forward.3} parent=0
    _
  %s11 = ssub.s32 1, %s9
  %s12 = scalar_select 0, %s11, %s9
  loop: start=0, step=1, limit=4
  $region2: #{unet_down_forward.3} parent=0 // loop_pre_header
    _
  $region3: #{unet_down_forward.3} parent=0 // loop_header
    %s14 = sphi 0, %s18
    %p15 = scmp.ge.s32.totalorder %s14, 4
    %s24 = sphi 0, %s26
    %s27 = sphi 0, %s24
    %s28 = sphi 0, %s27
    %s44 = sphi 0, %s28
    %s48 = sphi 0, %s48
    %s50 = sphi 0, %s48
    %s51 = sphi 0, %s50
    %s65 = sphi 0, %s51
    %s69 = sphi 0, %s69
    %s71 = sphi 0, %s69
    %s72 = sphi 0, %s71
    %s86 = sphi 0, %s72
    %s90 = sphi 0, %s90
    %s92 = sphi 0, %s90
    %s93 = sphi 0, %s92
    %s107 = sphi 0, %s93
    %s111 = sphi 0, %s111
    %s113 = sphi 0, %s111
    %s114 = sphi 0, %s113
    %s128 = sphi 0, %s114
    %s134 = sphi 0, %s136
    %s137 = sphi 0, %s134
    %s138 = sphi 0, %s137
    %s154 = sphi 0, %s138
    %s160 = sphi 0, %s162
    %s163 = sphi 0, %s160
    %s164 = sphi 0, %s163
    %s180 = sphi 0, %s164
    %s186 = sphi 0, %s188
    %s189 = sphi 0, %s186
    %s190 = sphi 0, %s189
    %s206 = sphi 0, %s190
  $region4: #{unet_down_forward.3} parent=0 // loop_header_branch
    %17 = sbr.rel (%p15) target = $region8
  $region5: #{unet_down_forward.3} parent=0 // loop_body
    %s19 = ssub.s32 %s14, 1
    %s20 = ssub.s32 %s14, 2
    %s21 = sadd.s32 %s14, 1
    %s22 = ssub.s32 %s14, %s21
    %p23 = scmp.eq.s32.totalorder %s22, 0
    %s25 = sadd.s32 %s24, 1
    %s26 = scalar_select %p23, %s24, %s25
    %p29 = pneg %p23
    %p30 = scmp.eq.s32.totalorder %s14, 1
    %p31 = por %p29, %p30
    %p32 = scmp.ne.s32.totalorder %s24, %s27
    %p33 = scmp.eq.s32.totalorder %s14, 0
    %p34 = por %p32, %p33
    %p35 = scmp.ne.s32.totalorder %s24, %s27
    %p36 = scmp.eq.s32.totalorder %s19, 1
    %p37 = por %p35, %p36
    %p38 = scmp.ne.s32.totalorder %s27, %s28
    %p39 = scmp.eq.s32.totalorder %s19, 0
    %p40 = por %p38, %p39
    %p41 = scmp.ne.s32.totalorder %s27, %s28
    %p42 = scmp.eq.s32.totalorder %s20, 1
    %p43 = por %p41, %p42
    %p45 = scmp.ne.s32.totalorder %s28, %s44
    %p46 = scmp.eq.s32.totalorder %s20, 0
    %p47 = por %p45, %p46
    %s49 = sadd.s32 %s48, 1
    %p52 = scmp.eq.s32.totalorder %s14, 1
    %p53 = scmp.ne.s32.totalorder %s48, %s50
    %p54 = scmp.eq.s32.totalorder %s14, 0
    %p55 = por %p53, %p54
    %p56 = scmp.ne.s32.totalorder %s48, %s50
    %p57 = scmp.eq.s32.totalorder %s19, 1
    %p58 = por %p56, %p57
    %p59 = scmp.ne.s32.totalorder %s50, %s51
    %p60 = scmp.eq.s32.totalorder %s19, 0
    %p61 = por %p59, %p60
    %p62 = scmp.ne.s32.totalorder %s50, %s51
    %p63 = scmp.eq.s32.totalorder %s20, 1
    %p64 = por %p62, %p63
    %p66 = scmp.ne.s32.totalorder %s51, %s65
    %p67 = scmp.eq.s32.totalorder %s20, 0
    %p68 = por %p66, %p67
    %s70 = sadd.s32 %s69, 1
    %p73 = scmp.eq.s32.totalorder %s14, 1
    %p74 = scmp.ne.s32.totalorder %s69, %s71
    %p75 = scmp.eq.s32.totalorder %s14, 0
    %p76 = por %p74, %p75
    %p77 = scmp.ne.s32.totalorder %s69, %s71
    %p78 = scmp.eq.s32.totalorder %s19, 1
    %p79 = por %p77, %p78
    %p80 = scmp.ne.s32.totalorder %s71, %s72
    %p81 = scmp.eq.s32.totalorder %s19, 0
    %p82 = por %p80, %p81
    %p83 = scmp.ne.s32.totalorder %s71, %s72
    %p84 = scmp.eq.s32.totalorder %s20, 1
    %p85 = por %p83, %p84
    %p87 = scmp.ne.s32.totalorder %s72, %s86
    %p88 = scmp.eq.s32.totalorder %s20, 0
    %p89 = por %p87, %p88
    %s91 = sadd.s32 %s90, 1
    %p94 = scmp.eq.s32.totalorder %s14, 1
    %p95 = scmp.ne.s32.totalorder %s90, %s92
    %p96 = scmp.eq.s32.totalorder %s14, 0
    %p97 = por %p95, %p96
    %p98 = scmp.ne.s32.totalorder %s90, %s92
    %p99 = scmp.eq.s32.totalorder %s19, 1
    %p100 = por %p98, %p99
    %p101 = scmp.ne.s32.totalorder %s92, %s93
    %p102 = scmp.eq.s32.totalorder %s19, 0
    %p103 = por %p101, %p102
    %p104 = scmp.ne.s32.totalorder %s92, %s93
    %p105 = scmp.eq.s32.totalorder %s20, 1
    %p106 = por %p104, %p105
    %p108 = scmp.ne.s32.totalorder %s93, %s107
    %p109 = scmp.eq.s32.totalorder %s20, 0
    %p110 = por %p108, %p109
    %s112 = sadd.s32 %s111, 1
    %p115 = scmp.eq.s32.totalorder %s14, 1
    %p116 = scmp.ne.s32.totalorder %s111, %s113
    %p117 = scmp.eq.s32.totalorder %s14, 0
    %p118 = por %p116, %p117
    %p119 = scmp.ne.s32.totalorder %s111, %s113
    %p120 = scmp.eq.s32.totalorder %s19, 1
    %p121 = por %p119, %p120
    %p122 = scmp.ne.s32.totalorder %s113, %s114
    %p123 = scmp.eq.s32.totalorder %s19, 0
    %p124 = por %p122, %p123
    %p125 = scmp.ne.s32.totalorder %s113, %s114
    %p126 = scmp.eq.s32.totalorder %s20, 1
    %p127 = por %p125, %p126
    %p129 = scmp.ne.s32.totalorder %s114, %s128
    %p130 = scmp.eq.s32.totalorder %s20, 0
    %p131 = por %p129, %p130
    %s132 = ssub.s32 %s14, %s21
    %p133 = scmp.eq.s32.totalorder %s132, 0
    %s135 = sadd.s32 %s134, 1
    %s136 = scalar_select %p133, %s134, %s135
    %p139 = pneg %p133
    %p140 = scmp.eq.s32.totalorder %s14, 1
    %p141 = por %p139, %p140
    %p142 = scmp.ne.s32.totalorder %s134, %s137
    %p143 = scmp.eq.s32.totalorder %s14, 0
    %p144 = por %p142, %p143
    %p145 = scmp.ne.s32.totalorder %s134, %s137
    %p146 = scmp.eq.s32.totalorder %s19, 1
    %p147 = por %p145, %p146
    %p148 = scmp.ne.s32.totalorder %s137, %s138
    %p149 = scmp.eq.s32.totalorder %s19, 0
    %p150 = por %p148, %p149
    %p151 = scmp.ne.s32.totalorder %s137, %s138
    %p152 = scmp.eq.s32.totalorder %s20, 1
    %p153 = por %p151, %p152
    %p155 = scmp.ne.s32.totalorder %s138, %s154
    %p156 = scmp.eq.s32.totalorder %s20, 0
    %p157 = por %p155, %p156
    %s158 = ssub.s32 %s14, %s21
    %p159 = scmp.eq.s32.totalorder %s158, 0
    %s161 = sadd.s32 %s160, 1
    %s162 = scalar_select %p159, %s160, %s161
    %p165 = pneg %p159
    %p166 = scmp.eq.s32.totalorder %s14, 1
    %p167 = por %p165, %p166
    %p168 = scmp.ne.s32.totalorder %s160, %s163
    %p169 = scmp.eq.s32.totalorder %s14, 0
    %p170 = por %p168, %p169
    %p171 = scmp.ne.s32.totalorder %s160, %s163
    %p172 = scmp.eq.s32.totalorder %s19, 1
    %p173 = por %p171, %p172
    %p174 = scmp.ne.s32.totalorder %s163, %s164
    %p175 = scmp.eq.s32.totalorder %s19, 0
    %p176 = por %p174, %p175
    %p177 = scmp.ne.s32.totalorder %s163, %s164
    %p178 = scmp.eq.s32.totalorder %s20, 1
    %p179 = por %p177, %p178
    %p181 = scmp.ne.s32.totalorder %s164, %s180
    %p182 = scmp.eq.s32.totalorder %s20, 0
    %p183 = por %p181, %p182
    %s184 = ssub.s32 %s14, %s21
    %p185 = scmp.eq.s32.totalorder %s184, 0
    %s187 = sadd.s32 %s186, 1
    %s188 = scalar_select %p185, %s186, %s187
    %p191 = pneg %p185
    %p192 = scmp.eq.s32.totalorder %s14, 1
    %p193 = por %p191, %p192
    %p194 = scmp.ne.s32.totalorder %s186, %s189
    %p195 = scmp.eq.s32.totalorder %s14, 0
    %p196 = por %p194, %p195
    %p197 = scmp.ne.s32.totalorder %s186, %s189
    %p198 = scmp.eq.s32.totalorder %s19, 1
    %p199 = por %p197, %p198
    %p200 = scmp.ne.s32.totalorder %s189, %s190
    %p201 = scmp.eq.s32.totalorder %s19, 0
    %p202 = por %p200, %p201
    %p203 = scmp.ne.s32.totalorder %s189, %s190
    %p204 = scmp.eq.s32.totalorder %s20, 1
    %p205 = por %p203, %p204
    %p207 = scmp.ne.s32.totalorder %s190, %s206
    %p208 = scmp.eq.s32.totalorder %s20, 0
    %p209 = por %p207, %p208
    %p210 = scmp.le.s32.totalorder 1, %s14
    %p211 = scmp.lt.s32.totalorder %s14, 3
    %p212 = pnand %p210, %p211
    %p213 = pneg %p212
    // Predicated region
    $region9: #{unet_down_forward.3} parent=5 // pred_check
      _
    $region10: #{unet_down_forward.3} parent=5 // pred_check_branch
      %215 = sbr.rel (%p212) target = $region12
    $region11: #{unet_down_forward.3} parent=5 // pred_region
      %s216 = ssub.s32 %s14, 1
      // Predicated region
      $region13: #{unet_down_forward.3} parent=11 // pred_check
        %p217 = pneg %p61
      $region14: #{unet_down_forward.3} parent=11 // pred_check_branch
        %219 = sbr.rel (%p217) target = $region16
      $region15: #{unet_down_forward.3} parent=11 // pred_region
        _
      $region16: #{unet_down_forward.3} parent=11 // pred_fallthru
        _
      // Predicated region
      $region17: #{unet_down_forward.3} parent=11 // pred_check
        %p220 = pneg %p82
      $region18: #{unet_down_forward.3} parent=11 // pred_check_branch
        %222 = sbr.rel (%p220) target = $region20
      $region19: #{unet_down_forward.3} parent=11 // pred_region
        _
      $region20: #{unet_down_forward.3} parent=11 // pred_fallthru
        _
      // Predicated region
      $region21: #{unet_down_forward.3} parent=11 // pred_check
        %p223 = pneg %p103
      $region22: #{unet_down_forward.3} parent=11 // pred_check_branch
        %225 = sbr.rel (%p223) target = $region24
      $region23: #{unet_down_forward.3} parent=11 // pred_region
        _
      $region24: #{unet_down_forward.3} parent=11 // pred_fallthru
        _
      // Predicated region
      $region25: #{unet_down_forward.3} parent=11 // pred_check
        %p226 = pneg %p124
      $region26: #{unet_down_forward.3} parent=11 // pred_check_branch
        %228 = sbr.rel (%p226) target = $region28
      $region27: #{unet_down_forward.3} parent=11 // pred_region
        _
      $region28: #{unet_down_forward.3} parent=11 // pred_fallthru
        _
    $region12: #{unet_down_forward.3} parent=5 // pred_fallthru
      _
    %p229 = scmp.lt.s32.totalorder %s14, 2
    // Predicated region
    $region29: #{unet_down_forward.3} parent=5 // pred_check
      %p230 = pneg %p229
    $region30: #{unet_down_forward.3} parent=5 // pred_check_branch
      %232 = sbr.rel (%p230) target = $region32
    $region31: #{unet_down_forward.3} parent=5 // pred_region
      // Predicated region
      $region33: #{unet_down_forward.3} parent=31 // pred_check
        %p233 = pneg %p34
      $region34: #{unet_down_forward.3} parent=31 // pred_check_branch
        %235 = sbr.rel (%p233) target = $region36
      $region35: #{unet_down_forward.3} parent=31 // pred_region
        %p236 = scmp.lt.s32.totalorder %s14, 1
        %s237 = scalar_select %p236, %s14, 1
        %s238 = smul.addr %s237, 8
        %s239 = smul.addr %s238, 8
        %s240 = scalar_lea.vmem %s0, %s239
      $region36: #{unet_down_forward.3} parent=31 // pred_fallthru
        _
    $region32: #{unet_down_forward.3} parent=5 // pred_fallthru
      _
    %p241 = scmp.le.s32.totalorder 1, %s14
    %p242 = scmp.lt.s32.totalorder %s14, 3
    %p243 = pnand %p241, %p242
    %p244 = pneg %p243
    // Predicated region
    $region37: #{unet_down_forward.3} parent=5 // pred_check
      _
    $region38: #{unet_down_forward.3} parent=5 // pred_check_branch
      %246 = sbr.rel (%p243) target = $region40
    $region39: #{unet_down_forward.3} parent=5 // pred_region
      %s247 = ssub.s32 %s14, 1
      %p248 = scmp.lt.s32.totalorder %s19, 1
      %s249 = scalar_select %p248, %s19, 1
      %s250 = smul.addr %s249, 8
      %s251 = smul.addr %s250, 8
      %s252 = scalar_lea.vmem %s0, %s251
      %p253 = pneg %p40
      %p254 = pneg %p37
      %p255 = pneg %p61
      %p256 = pneg %p58
      %p257 = pneg %p82
      %p258 = pneg %p79
      %p259 = pneg %p103
      %p260 = pneg %p100
      %p261 = pneg %p124
      %p262 = pneg %p121
      %p263 = pneg %p150
      %p264 = pneg %p147
      %p265 = scmp.lt.s32.totalorder %s19, 1
      %s266 = scalar_select %p265, %s19, 1
      %s267 = smul.addr %s266, 2
      %s268 = smul.addr %s267, 4
      %s269 = scalar_lea.vmem %s5, %s268
      %p270 = pneg %p176
      %p271 = pneg %p173
      %p272 = scmp.lt.s32.totalorder %s19, 1
      %s273 = scalar_select %p272, %s19, 1
      %s274 = smul.addr %s273, 8
      %s275 = scalar_lea.vmem %s6, %s274
      %p276 = pneg %p202
      %p277 = pneg %p199
      %p278 = scmp.lt.s32.totalorder %s19, 1
      %s279 = scalar_select %p278, %s19, 1
      %s280 = smul.addr %s279, 8
      %s281 = scalar_lea.vmem %s7, %s280
      %p282 = scmp.lt.s32.totalorder %s19, 1
      %s283 = scalar_select %p282, %s19, 1
      %s284 = smul.addr %s283, 8
      %s285 = smul.addr %s284, 8
      %s286 = scalar_lea.vmem %s0, %s285
      %p287 = scmp.lt.s32.totalorder %s19, 1
      %s288 = scalar_select %p287, %s19, 1
      %s289 = smul.addr %s288, 2
      %s290 = smul.addr %s289, 4
      %s291 = scalar_lea.vmem %s5, %s290
      %p292 = scmp.lt.s32.totalorder %s19, 1
      %s293 = scalar_select %p292, %s19, 1
      %s294 = smul.addr %s293, 8
      %s295 = scalar_lea.vmem %s6, %s294
      %p296 = scmp.lt.s32.totalorder %s19, 1
      %s297 = scalar_select %p296, %s19, 1
      %s298 = smul.addr %s297, 8
      %s299 = scalar_lea.vmem %s7, %s298
      %v301 = vld [vmem:[%s286] sm:$0xff]
      %v302 = vld [vmem:[%s286 + $0x8] sm:$0xff]
      %v303 = vld [vmem:[%s286 + $0x10] sm:$0xff]
      %v304 = vld [vmem:[%s286 + $0x18] sm:$0xff]
      %v305 = vld [vmem:[%s286 + $0x20] sm:$0xff]
      %v306 = vld [vmem:[%s286 + $0x28] sm:$0xff]
      %v307 = vld [vmem:[%s286 + $0x30] sm:$0xff]
      %v308 = vld [vmem:[%s286 + $0x38] sm:$0xff]
      %v309 = vcombine.low %v301, %v305
      %v310 = vcombine.high %v301, %v305
      %v312 = vunpack.c.l.s4 1983009808
      %v313 = vunpack.c.0.s8 %v312
      %v314 = vlaneseq
      %v315 = vshrl.u32 %v314, 7
      %v316 = vsub.s32 %v313, %v315
      %v317 = vrot.slane %v309, %v316
      %v319 = vunpack.c.l.s4 1983009808
      %v320 = vunpack.c.0.s8 %v319
      %v321 = vlaneseq
      %v322 = vshrl.u32 %v321, 7
      %v323 = vsub.s32 %v320, %v322
      %v324 = vrot.slane %v310, %v323
      %v325 = vcombine.low %v303, %v307
      %v326 = vcombine.high %v303, %v307
      %v328 = vunpack.c.l.s4 1983009808
      %v329 = vunpack.c.0.s8 %v328
      %v330 = vlaneseq
      %v331 = vshrl.u32 %v330, 7
      %v332 = vsub.s32 %v329, %v331
      %v333 = vrot.slane %v325, %v332
      %v335 = vunpack.c.l.s4 1983009808
      %v336 = vunpack.c.0.s8 %v335
      %v337 = vlaneseq
      %v338 = vshrl.u32 %v337, 7
      %v339 = vsub.s32 %v336, %v338
      %v340 = vrot.slane %v326, %v339
      %v341 = vcombine.low %v317, %v333
      %v342 = vcombine.high %v317, %v333
      %v344 = vunpack.c.l.s4 1934713408
      %v345 = vunpack.c.0.s8 %v344
      %v346 = vlaneseq
      %v347 = vshrl.u32 %v346, 7
      %v348 = vsub.s32 %v345, %v347
      %v349 = vrot.slane %v341, %v348
      %v351 = vunpack.c.l.s4 1934713408
      %v352 = vunpack.c.0.s8 %v351
      %v353 = vlaneseq
      %v354 = vshrl.u32 %v353, 7
      %v355 = vsub.s32 %v352, %v354
      %v356 = vrot.slane %v342, %v355
      %v357 = vcombine.low %v324, %v340
      %v358 = vcombine.high %v324, %v340
      %v360 = vunpack.c.l.s4 1934713408
      %v361 = vunpack.c.0.s8 %v360
      %v362 = vlaneseq
      %v363 = vshrl.u32 %v362, 7
      %v364 = vsub.s32 %v361, %v363
      %v365 = vrot.slane %v357, %v364
      %v367 = vunpack.c.l.s4 1934713408
      %v368 = vunpack.c.0.s8 %v367
      %v369 = vlaneseq
      %v370 = vshrl.u32 %v369, 7
      %v371 = vsub.s32 %v368, %v370
      %v372 = vrot.slane %v358, %v371
      %v373 = vcombine.high %v349, 0.0
      %v374 = vcombine.high %v356, 0.0
      %v375 = vcombine.high %v365, 0.0
      %v376 = vcombine.high %v372, 0.0
      %v377 = vcombine.low %v302, %v306
      %v378 = vcombine.high %v302, %v306
      %v380 = vunpack.c.l.s4 1983009808
      %v381 = vunpack.c.0.s8 %v380
      %v382 = vlaneseq
      %v383 = vshrl.u32 %v382, 7
      %v384 = vsub.s32 %v381, %v383
      %v385 = vrot.slane %v377, %v384
      %v387 = vunpack.c.l.s4 1983009808
      %v388 = vunpack.c.0.s8 %v387
      %v389 = vlaneseq
      %v390 = vshrl.u32 %v389, 7
      %v391 = vsub.s32 %v388, %v390
      %v392 = vrot.slane %v378, %v391
      %v393 = vcombine.low %v304, %v308
      %v394 = vcombine.high %v304, %v308
      %v396 = vunpack.c.l.s4 1983009808
      %v397 = vunpack.c.0.s8 %v396
      %v398 = vlaneseq
      %v399 = vshrl.u32 %v398, 7
      %v400 = vsub.s32 %v397, %v399
      %v401 = vrot.slane %v393, %v400
      %v403 = vunpack.c.l.s4 1983009808
      %v404 = vunpack.c.0.s8 %v403
      %v405 = vlaneseq
      %v406 = vshrl.u32 %v405, 7
      %v407 = vsub.s32 %v404, %v406
      %v408 = vrot.slane %v394, %v407
      %v409 = vcombine.low %v385, %v401
      %v410 = vcombine.high %v385, %v401
      %v412 = vunpack.c.l.s4 1934713408
      %v413 = vunpack.c.0.s8 %v412
      %v414 = vlaneseq
      %v415 = vshrl.u32 %v414, 7
      %v416 = vsub.s32 %v413, %v415
      %v417 = vrot.slane %v409, %v416
      %v419 = vunpack.c.l.s4 1934713408
      %v420 = vunpack.c.0.s8 %v419
      %v421 = vlaneseq
      %v422 = vshrl.u32 %v421, 7
      %v423 = vsub.s32 %v420, %v422
      %v424 = vrot.slane %v410, %v423
      %v425 = vcombine.low %v392, %v408
      %v426 = vcombine.high %v392, %v408
      %v428 = vunpack.c.l.s4 1934713408
      %v429 = vunpack.c.0.s8 %v428
      %v430 = vlaneseq
      %v431 = vshrl.u32 %v430, 7
      %v432 = vsub.s32 %v429, %v431
      %v433 = vrot.slane %v425, %v432
      %v435 = vunpack.c.l.s4 1934713408
      %v436 = vunpack.c.0.s8 %v435
      %v437 = vlaneseq
      %v438 = vshrl.u32 %v437, 7
      %v439 = vsub.s32 %v436, %v438
      %v440 = vrot.slane %v426, %v439
      %v441 = vcombine.high %v417, 0.0
      %v442 = vcombine.high %v424, 0.0
      %v443 = vcombine.high %v433, 0.0
      %v444 = vcombine.high %v440, 0.0
      %446 = vrot.lane.b32.xlu0 %v373, 16
      %v447 = vpop.permute.xlu0 %446
      %450 = vrot.lane.b32.xlu0 %v356, 32
      %v451 = vpop.permute.xlu0 %450
      %454 = vrot.lane.b32.xlu0 %v374, 48
      %v455 = vpop.permute.xlu0 %454
      %458 = vrot.lane.b32.xlu0 %v365, 64
      %v459 = vpop.permute.xlu0 %458
      %462 = vrot.lane.b32.xlu0 %v375, 80
      %v463 = vpop.permute.xlu0 %462
      %466 = vrot.lane.b32.xlu0 %v372, 96
      %v467 = vpop.permute.xlu0 %466
      %470 = vrot.lane.b32.xlu0 %v376, 112
      %v471 = vpop.permute.xlu0 %470
      %474 = vrot.lane.b32.xlu0 %v441, 16
      %v475 = vpop.permute.xlu0 %474
      %478 = vrot.lane.b32.xlu0 %v424, 32
      %v479 = vpop.permute.xlu0 %478
      %482 = vrot.lane.b32.xlu0 %v442, 48
      %v483 = vpop.permute.xlu0 %482
      %486 = vrot.lane.b32.xlu0 %v433, 64
      %v487 = vpop.permute.xlu0 %486
      %490 = vrot.lane.b32.xlu0 %v443, 80
      %v491 = vpop.permute.xlu0 %490
      %494 = vrot.lane.b32.xlu0 %v440, 96
      %v495 = vpop.permute.xlu0 %494
      %498 = vrot.lane.b32.xlu0 %v444, 112
      %v499 = vpop.permute.xlu0 %498
      %vm501 = vcmask 130048
      %v502 = vsel %vm501, %v349, %v447
      %vm503 = vcmask 261120
      %v504 = vsel %vm503, %v502, %v451
      %vm505 = vcmask 392192
      %v506 = vsel %vm505, %v504, %v455
      %vm507 = vcmask 523264
      %v508 = vsel %vm507, %v506, %v459
      %vm509 = vcmask 654336
      %v510 = vsel %vm509, %v508, %v463
      %vm511 = vcmask 785408
      %v512 = vsel %vm511, %v510, %v467
      %vm513 = vcmask 916480
      %v514 = vsel %vm513, %v512, %v471
      %v515 = vsel %vm501, %v417, %v475
      %v516 = vsel %vm503, %v515, %v479
      %v517 = vsel %vm505, %v516, %v483
      %v518 = vsel %vm507, %v517, %v487
      %v519 = vsel %vm509, %v518, %v491
      %v520 = vsel %vm511, %v519, %v495
      %v521 = vsel %vm513, %v520, %v499
      %v522 = vpack.c.bf16 %v514, %v514
      %v523 = vpack.c.bf16 %v521, %v521
      %v524 = vld [vmem:[%s1] sm:$0xf]
      %vm525 = vcmask 31744
      %v527 = vsel %vm525, %v524, 0
      %vm529 = vcmask 1041408
      %v531 = vsel %vm529, %v522, 0
      %v534 = vsel %vm529, %v523, 0
      %536 = vmatprep.subr.bf16.mxu0 0
      %537 = vmatpush1.bf16.msra.mxu0 0
      %538 = vmatprep.subr.bf16.mxu0 0
      %539 = vmatpush1.bf16.msra.mxu0 0
      %540 = vmatprep.subr.bf16.mxu0 0
      %541 = vmatpush1.bf16.msra.mxu0 0
      %542 = vmatprep.subr.bf16.mxu0 0
      %543 = vmatpush1.bf16.msra.mxu0 0
      %544 = vmatprep.subr.bf16.mxu0 0
      %545 = vmatpush1.bf16.msra.mxu0 0
      %546 = vmatprep.subr.bf16.mxu0 0
      %547 = vmatpush1.bf16.msra.mxu0 0
      %548 = vmatprep.subr.bf16.mxu0 0
      %549 = vmatpush1.bf16.msra.mxu0 0
      %550 = vmatprep.subr.bf16.mxu0 %v534
      %551 = vmatpush1.bf16.msra.mxu0 %v531
      %552 = vmatprep.subr.bf16.mxu0 0
      %553 = vmatpush2.bf16.msra.mxu0 0
      %554 = vmatprep.subr.bf16.mxu0 0
      %555 = vmatpush2.bf16.msra.mxu0 0
      %556 = vmatprep.subr.bf16.mxu0 0
      %557 = vmatpush2.bf16.msra.mxu0 0
      %558 = vmatprep.subr.bf16.mxu0 0
      %559 = vmatpush2.bf16.msra.mxu0 0
      %560 = vmatprep.subr.bf16.mxu0 0
      %561 = vmatpush2.bf16.msra.mxu0 0
      %562 = vmatprep.subr.bf16.mxu0 0
      %563 = vmatpush2.bf16.msra.mxu0 0
      %564 = vmatprep.subr.bf16.mxu0 0
      %565 = vmatpush2.bf16.msra.mxu0 0
      %566 = vmatprep.subr.bf16.mxu0 0
      %567 = vmatpush2.bf16.msra.mxu0 0
      %568 = vmatprep.mubr.bf16.mxu0 0
      %569 = vmatmul.mubr.bf16.gmra.mxu0 %v527
      %v570 = vpop.f32.mrf.mxu0
      %v571 = vadd.f32 0.0, %v570
      %v572 = vpop.f32.mrf.mxu0
      %v573 = vadd.f32 0.0, %v572
      %v574 = vpop.f32.mrf.mxu0
      %v575 = vpop.f32.mrf.mxu0
      %576 = vdwg.mxu0
      %578 = vrot.lane.b32.xlu0 %v571, 112
      %v579 = vpop.permute.xlu0 %578
      %581 = vrot.lane.b32.xlu0 %v571, 96
      %v582 = vpop.permute.xlu0 %581
      %584 = vrot.lane.b32.xlu0 %v571, 80
      %v585 = vpop.permute.xlu0 %584
      %587 = vrot.lane.b32.xlu0 %v571, 64
      %v588 = vpop.permute.xlu0 %587
      %590 = vrot.lane.b32.xlu0 %v571, 48
      %v591 = vpop.permute.xlu0 %590
      %593 = vrot.lane.b32.xlu0 %v571, 32
      %v594 = vpop.permute.xlu0 %593
      %596 = vrot.lane.b32.xlu0 %v571, 16
      %v597 = vpop.permute.xlu0 %596
      %600 = vrot.lane.b32.xlu0 %v573, 112
      %v601 = vpop.permute.xlu0 %600
      %603 = vrot.lane.b32.xlu0 %v573, 96
      %v604 = vpop.permute.xlu0 %603
      %606 = vrot.lane.b32.xlu0 %v573, 80
      %v607 = vpop.permute.xlu0 %606
      %609 = vrot.lane.b32.xlu0 %v573, 64
      %v610 = vpop.permute.xlu0 %609
      %612 = vrot.lane.b32.xlu0 %v573, 48
      %v613 = vpop.permute.xlu0 %612
      %615 = vrot.lane.b32.xlu0 %v573, 32
      %v616 = vpop.permute.xlu0 %615
      %618 = vrot.lane.b32.xlu0 %v573, 16
      %v619 = vpop.permute.xlu0 %618
      %v621 = vcombine.low %v571, %v582
      %v622 = vcombine.high %v571, %v582
      %v624 = vunpack.c.l.s4 1983009808
      %v625 = vunpack.c.0.s8 %v624
      %v626 = vlaneseq
      %v627 = vshrl.u32 %v626, 7
      %v628 = vsub.s32 %v625, %v627
      %v629 = vrot.slane %v621, %v628
      %v631 = vunpack.c.l.s4 1983009808
      %v632 = vunpack.c.0.s8 %v631
      %v633 = vlaneseq
      %v634 = vshrl.u32 %v633, 7
      %v635 = vsub.s32 %v632, %v634
      %v636 = vrot.slane %v622, %v635
      %v637 = vcombine.low %v579, %v585
      %v638 = vcombine.high %v579, %v585
      %v640 = vunpack.c.l.s4 1983009808
      %v641 = vunpack.c.0.s8 %v640
      %v642 = vlaneseq
      %v643 = vshrl.u32 %v642, 7
      %v644 = vsub.s32 %v641, %v643
      %v645 = vrot.slane %v637, %v644
      %v647 = vunpack.c.l.s4 1983009808
      %v648 = vunpack.c.0.s8 %v647
      %v649 = vlaneseq
      %v650 = vshrl.u32 %v649, 7
      %v651 = vsub.s32 %v648, %v650
      %v652 = vrot.slane %v638, %v651
      %v653 = vcombine.low %v588, %v594
      %v654 = vcombine.high %v588, %v594
      %v656 = vunpack.c.l.s4 1983009808
      %v657 = vunpack.c.0.s8 %v656
      %v658 = vlaneseq
      %v659 = vshrl.u32 %v658, 7
      %v660 = vsub.s32 %v657, %v659
      %v661 = vrot.slane %v653, %v660
      %v663 = vunpack.c.l.s4 1983009808
      %v664 = vunpack.c.0.s8 %v663
      %v665 = vlaneseq
      %v666 = vshrl.u32 %v665, 7
      %v667 = vsub.s32 %v664, %v666
      %v668 = vrot.slane %v654, %v667
      %v669 = vcombine.low %v591, %v597
      %v670 = vcombine.high %v591, %v597
      %v672 = vunpack.c.l.s4 1983009808
      %v673 = vunpack.c.0.s8 %v672
      %v674 = vlaneseq
      %v675 = vshrl.u32 %v674, 7
      %v676 = vsub.s32 %v673, %v675
      %v677 = vrot.slane %v669, %v676
      %v679 = vunpack.c.l.s4 1983009808
      %v680 = vunpack.c.0.s8 %v679
      %v681 = vlaneseq
      %v682 = vshrl.u32 %v681, 7
      %v683 = vsub.s32 %v680, %v682
      %v684 = vrot.slane %v670, %v683
      %v685 = vcombine.low %v629, %v645
      %v686 = vcombine.high %v629, %v645
      %v688 = vunpack.c.l.s4 1934713408
      %v689 = vunpack.c.0.s8 %v688
      %v690 = vlaneseq
      %v691 = vshrl.u32 %v690, 7
      %v692 = vsub.s32 %v689, %v691
      %v693 = vrot.slane %v685, %v692
      %v695 = vunpack.c.l.s4 1934713408
      %v696 = vunpack.c.0.s8 %v695
      %v697 = vlaneseq
      %v698 = vshrl.u32 %v697, 7
      %v699 = vsub.s32 %v696, %v698
      %v700 = vrot.slane %v686, %v699
      %v701 = vcombine.low %v636, %v652
      %v702 = vcombine.high %v636, %v652
      %v704 = vunpack.c.l.s4 1934713408
      %v705 = vunpack.c.0.s8 %v704
      %v706 = vlaneseq
      %v707 = vshrl.u32 %v706, 7
      %v708 = vsub.s32 %v705, %v707
      %v709 = vrot.slane %v701, %v708
      %v711 = vunpack.c.l.s4 1934713408
      %v712 = vunpack.c.0.s8 %v711
      %v713 = vlaneseq
      %v714 = vshrl.u32 %v713, 7
      %v715 = vsub.s32 %v712, %v714
      %v716 = vrot.slane %v702, %v715
      %v717 = vcombine.low %v661, %v677
      %v718 = vcombine.high %v661, %v677
      %v720 = vunpack.c.l.s4 1934713408
      %v721 = vunpack.c.0.s8 %v720
      %v722 = vlaneseq
      %v723 = vshrl.u32 %v722, 7
      %v724 = vsub.s32 %v721, %v723
      %v725 = vrot.slane %v717, %v724
      %v727 = vunpack.c.l.s4 1934713408
      %v728 = vunpack.c.0.s8 %v727
      %v729 = vlaneseq
      %v730 = vshrl.u32 %v729, 7
      %v731 = vsub.s32 %v728, %v730
      %v732 = vrot.slane %v718, %v731
      %v733 = vcombine.low %v668, %v684
      %v734 = vcombine.high %v668, %v684
      %v736 = vunpack.c.l.s4 1934713408
      %v737 = vunpack.c.0.s8 %v736
      %v738 = vlaneseq
      %v739 = vshrl.u32 %v738, 7
      %v740 = vsub.s32 %v737, %v739
      %v741 = vrot.slane %v733, %v740
      %v743 = vunpack.c.l.s4 1934713408
      %v744 = vunpack.c.0.s8 %v743
      %v745 = vlaneseq
      %v746 = vshrl.u32 %v745, 7
      %v747 = vsub.s32 %v744, %v746
      %v748 = vrot.slane %v734, %v747
      %v749 = vcombine.low %v693, %v725
      %v750 = vcombine.high %v693, %v725
      %v751 = vcombine.low %v700, %v732
      %v752 = vcombine.high %v700, %v732
      %v753 = vcombine.low %v709, %v741
      %v754 = vcombine.high %v709, %v741
      %v755 = vcombine.low %v716, %v748
      %v756 = vcombine.high %v716, %v748
      %v757 = vcombine.low %v573, %v604
      %v758 = vcombine.high %v573, %v604
      %v760 = vunpack.c.l.s4 1983009808
      %v761 = vunpack.c.0.s8 %v760
      %v762 = vlaneseq
      %v763 = vshrl.u32 %v762, 7
      %v764 = vsub.s32 %v761, %v763
      %v765 = vrot.slane %v757, %v764
      %v767 = vunpack.c.l.s4 1983009808
      %v768 = vunpack.c.0.s8 %v767
      %v769 = vlaneseq
      %v770 = vshrl.u32 %v769, 7
      %v771 = vsub.s32 %v768, %v770
      %v772 = vrot.slane %v758, %v771
      %v773 = vcombine.low %v601, %v607
      %v774 = vcombine.high %v601, %v607
      %v776 = vunpack.c.l.s4 1983009808
      %v777 = vunpack.c.0.s8 %v776
      %v778 = vlaneseq
      %v779 = vshrl.u32 %v778, 7
      %v780 = vsub.s32 %v777, %v779
      %v781 = vrot.slane %v773, %v780
      %v783 = vunpack.c.l.s4 1983009808
      %v784 = vunpack.c.0.s8 %v783
      %v785 = vlaneseq
      %v786 = vshrl.u32 %v785, 7
      %v787 = vsub.s32 %v784, %v786
      %v788 = vrot.slane %v774, %v787
      %v789 = vcombine.low %v610, %v616
      %v790 = vcombine.high %v610, %v616
      %v792 = vunpack.c.l.s4 1983009808
      %v793 = vunpack.c.0.s8 %v792
      %v794 = vlaneseq
      %v795 = vshrl.u32 %v794, 7
      %v796 = vsub.s32 %v793, %v795
      %v797 = vrot.slane %v789, %v796
      %v799 = vunpack.c.l.s4 1983009808
      %v800 = vunpack.c.0.s8 %v799
      %v801 = vlaneseq
      %v802 = vshrl.u32 %v801, 7
      %v803 = vsub.s32 %v800, %v802
      %v804 = vrot.slane %v790, %v803
      %v805 = vcombine.low %v613, %v619
      %v806 = vcombine.high %v613, %v619
      %v808 = vunpack.c.l.s4 1983009808
      %v809 = vunpack.c.0.s8 %v808
      %v810 = vlaneseq
      %v811 = vshrl.u32 %v810, 7
      %v812 = vsub.s32 %v809, %v811
      %v813 = vrot.slane %v805, %v812
      %v815 = vunpack.c.l.s4 1983009808
      %v816 = vunpack.c.0.s8 %v815
      %v817 = vlaneseq
      %v818 = vshrl.u32 %v817, 7
      %v819 = vsub.s32 %v816, %v818
      %v820 = vrot.slane %v806, %v819
      %v821 = vcombine.low %v765, %v781
      %v822 = vcombine.high %v765, %v781
      %v824 = vunpack.c.l.s4 1934713408
      %v825 = vunpack.c.0.s8 %v824
      %v826 = vlaneseq
      %v827 = vshrl.u32 %v826, 7
      %v828 = vsub.s32 %v825, %v827
      %v829 = vrot.slane %v821, %v828
      %v831 = vunpack.c.l.s4 1934713408
      %v832 = vunpack.c.0.s8 %v831
      %v833 = vlaneseq
      %v834 = vshrl.u32 %v833, 7
      %v835 = vsub.s32 %v832, %v834
      %v836 = vrot.slane %v822, %v835
      %v837 = vcombine.low %v772, %v788
      %v838 = vcombine.high %v772, %v788
      %v840 = vunpack.c.l.s4 1934713408
      %v841 = vunpack.c.0.s8 %v840
      %v842 = vlaneseq
      %v843 = vshrl.u32 %v842, 7
      %v844 = vsub.s32 %v841, %v843
      %v845 = vrot.slane %v837, %v844
      %v847 = vunpack.c.l.s4 1934713408
      %v848 = vunpack.c.0.s8 %v847
      %v849 = vlaneseq
      %v850 = vshrl.u32 %v849, 7
      %v851 = vsub.s32 %v848, %v850
      %v852 = vrot.slane %v838, %v851
      %v853 = vcombine.low %v797, %v813
      %v854 = vcombine.high %v797, %v813
      %v856 = vunpack.c.l.s4 1934713408
      %v857 = vunpack.c.0.s8 %v856
      %v858 = vlaneseq
      %v859 = vshrl.u32 %v858, 7
      %v860 = vsub.s32 %v857, %v859
      %v861 = vrot.slane %v853, %v860
      %v863 = vunpack.c.l.s4 1934713408
      %v864 = vunpack.c.0.s8 %v863
      %v865 = vlaneseq
      %v866 = vshrl.u32 %v865, 7
      %v867 = vsub.s32 %v864, %v866
      %v868 = vrot.slane %v854, %v867
      %v869 = vcombine.low %v804, %v820
      %v870 = vcombine.high %v804, %v820
      %v872 = vunpack.c.l.s4 1934713408
      %v873 = vunpack.c.0.s8 %v872
      %v874 = vlaneseq
      %v875 = vshrl.u32 %v874, 7
      %v876 = vsub.s32 %v873, %v875
      %v877 = vrot.slane %v869, %v876
      %v879 = vunpack.c.l.s4 1934713408
      %v880 = vunpack.c.0.s8 %v879
      %v881 = vlaneseq
      %v882 = vshrl.u32 %v881, 7
      %v883 = vsub.s32 %v880, %v882
      %v884 = vrot.slane %v870, %v883
      %v885 = vcombine.low %v829, %v861
      %v886 = vcombine.high %v829, %v861
      %v887 = vcombine.low %v836, %v868
      %v888 = vcombine.high %v836, %v868
      %v889 = vcombine.low %v845, %v877
      %v890 = vcombine.high %v845, %v877
      %v891 = vcombine.low %v852, %v884
      %v892 = vcombine.high %v852, %v884
      %v893 = vadd.f32 %v749, 0.0
      %v894 = vadd.f32 %v885, 0.0
      %v895 = vadd.f32 %v750, 0.0
      %v896 = vadd.f32 %v886, 0.0
      %v897 = vadd.f32 %v751, 0.0
      %v898 = vadd.f32 %v887, 0.0
      %v899 = vadd.f32 %v752, 0.0
      %v900 = vadd.f32 %v888, 0.0
      %v901 = vadd.f32 %v753, 0.0
      %v902 = vadd.f32 %v889, 0.0
      %v903 = vadd.f32 %v754, 0.0
      %v904 = vadd.f32 %v890, 0.0
      %v905 = vadd.f32 %v755, 0.0
      %v906 = vadd.f32 %v891, 0.0
      %v907 = vadd.f32 %v756, 0.0
      %v908 = vadd.f32 %v892, 0.0
      %s909 = scalar_lea.vmem %s1, 4
      %v910 = vld [vmem:[%s909] sm:$0xf]
      %v912 = vsel %vm525, %v910, 0
      %914 = vmatprep.subr.bf16.mxu0 0
      %915 = vmatpush1.bf16.msra.mxu0 0
      %916 = vmatprep.subr.bf16.mxu0 0
      %917 = vmatpush1.bf16.msra.mxu0 0
      %918 = vmatprep.subr.bf16.mxu0 0
      %919 = vmatpush1.bf16.msra.mxu0 0
      %920 = vmatprep.subr.bf16.mxu0 0
      %921 = vmatpush1.bf16.msra.mxu0 0
      %922 = vmatprep.subr.bf16.mxu0 0
      %923 = vmatpush1.bf16.msra.mxu0 0
      %924 = vmatprep.subr.bf16.mxu0 0
      %925 = vmatpush1.bf16.msra.mxu0 0
      %926 = vmatprep.subr.bf16.mxu0 0
      %927 = vmatpush1.bf16.msra.mxu0 0
      %928 = vmatprep.subr.bf16.mxu0 %v534
      %929 = vmatpush1.bf16.msra.mxu0 %v531
      %930 = vmatprep.subr.bf16.mxu0 0
      %931 = vmatpush2.bf16.msra.mxu0 0
      %932 = vmatprep.subr.bf16.mxu0 0
      %933 = vmatpush2.bf16.msra.mxu0 0
      %934 = vmatprep.subr.bf16.mxu0 0
      %935 = vmatpush2.bf16.msra.mxu0 0
      %936 = vmatprep.subr.bf16.mxu0 0
      %937 = vmatpush2.bf16.msra.mxu0 0
      %938 = vmatprep.subr.bf16.mxu0 0
      %939 = vmatpush2.bf16.msra.mxu0 0
      %940 = vmatprep.subr.bf16.mxu0 0
      %941 = vmatpush2.bf16.msra.mxu0 0
      %942 = vmatprep.subr.bf16.mxu0 0
      %943 = vmatpush2.bf16.msra.mxu0 0
      %944 = vmatprep.subr.bf16.mxu0 0
      %945 = vmatpush2.bf16.msra.mxu0 0
      %946 = vmatprep.mubr.bf16.mxu0 0
      %947 = vmatmul.mubr.bf16.gmra.mxu0 %v912
      %v948 = vpop.f32.mrf.mxu0
      %v949 = vadd.f32 0.0, %v948
      %v950 = vpop.f32.mrf.mxu0
      %v951 = vadd.f32 0.0, %v950
      %v952 = vpop.f32.mrf.mxu0
      %v953 = vpop.f32.mrf.mxu0
      %954 = vdwg.mxu0
      %956 = vrot.lane.b32.xlu0 %v949, 112
      %v957 = vpop.permute.xlu0 %956
      %959 = vrot.lane.b32.xlu0 %v949, 96
      %v960 = vpop.permute.xlu0 %959
      %962 = vrot.lane.b32.xlu0 %v949, 80
      %v963 = vpop.permute.xlu0 %962
      %965 = vrot.lane.b32.xlu0 %v949, 64
      %v966 = vpop.permute.xlu0 %965
      %968 = vrot.lane.b32.xlu0 %v949, 48
      %v969 = vpop.permute.xlu0 %968
      %971 = vrot.lane.b32.xlu0 %v949, 32
      %v972 = vpop.permute.xlu0 %971
      %974 = vrot.lane.b32.xlu0 %v949, 16
      %v975 = vpop.permute.xlu0 %974
      %978 = vrot.lane.b32.xlu0 %v951, 112
      %v979 = vpop.permute.xlu0 %978
      %981 = vrot.lane.b32.xlu0 %v951, 96
      %v982 = vpop.permute.xlu0 %981
      %984 = vrot.lane.b32.xlu0 %v951, 80
      %v985 = vpop.permute.xlu0 %984
      %987 = vrot.lane.b32.xlu0 %v951, 64
      %v988 = vpop.permute.xlu0 %987
      %990 = vrot.lane.b32.xlu0 %v951, 48
      %v991 = vpop.permute.xlu0 %990
      %993 = vrot.lane.b32.xlu0 %v951, 32
      %v994 = vpop.permute.xlu0 %993
      %996 = vrot.lane.b32.xlu0 %v951, 16
      %v997 = vpop.permute.xlu0 %996
      %v999 = vcombine.low %v949, %v960
      %v1000 = vcombine.high %v949, %v960
      %v1002 = vunpack.c.l.s4 1983009808
      %v1003 = vunpack.c.0.s8 %v1002
      %v1004 = vlaneseq
      %v1005 = vshrl.u32 %v1004, 7
      %v1006 = vsub.s32 %v1003, %v1005
      %v1007 = vrot.slane %v999, %v1006
      %v1009 = vunpack.c.l.s4 1983009808
      %v1010 = vunpack.c.0.s8 %v1009
      %v1011 = vlaneseq
      %v1012 = vshrl.u32 %v1011, 7
      %v1013 = vsub.s32 %v1010, %v1012
      %v1014 = vrot.slane %v1000, %v1013
      %v1015 = vcombine.low %v957, %v963
      %v1016 = vcombine.high %v957, %v963
      %v1018 = vunpack.c.l.s4 1983009808
      %v1019 = vunpack.c.0.s8 %v1018
      %v1020 = vlaneseq
      %v1021 = vshrl.u32 %v1020, 7
      %v1022 = vsub.s32 %v1019, %v1021
      %v1023 = vrot.slane %v1015, %v1022
      %v1025 = vunpack.c.l.s4 1983009808
      %v1026 = vunpack.c.0.s8 %v1025
      %v1027 = vlaneseq
      %v1028 = vshrl.u32 %v1027, 7
      %v1029 = vsub.s32 %v1026, %v1028
      %v1030 = vrot.slane %v1016, %v1029
      %v1031 = vcombine.low %v966, %v972
      %v1032 = vcombine.high %v966, %v972
      %v1034 = vunpack.c.l.s4 1983009808
      %v1035 = vunpack.c.0.s8 %v1034
      %v1036 = vlaneseq
      %v1037 = vshrl.u32 %v1036, 7
      %v1038 = vsub.s32 %v1035, %v1037
      %v1039 = vrot.slane %v1031, %v1038
      %v1041 = vunpack.c.l.s4 1983009808
      %v1042 = vunpack.c.0.s8 %v1041
      %v1043 = vlaneseq
      %v1044 = vshrl.u32 %v1043, 7
      %v1045 = vsub.s32 %v1042, %v1044
      %v1046 = vrot.slane %v1032, %v1045
      %v1047 = vcombine.low %v969, %v975
      %v1048 = vcombine.high %v969, %v975
      %v1050 = vunpack.c.l.s4 1983009808
      %v1051 = vunpack.c.0.s8 %v1050
      %v1052 = vlaneseq
      %v1053 = vshrl.u32 %v1052, 7
      %v1054 = vsub.s32 %v1051, %v1053
      %v1055 = vrot.slane %v1047, %v1054
      %v1057 = vunpack.c.l.s4 1983009808
      %v1058 = vunpack.c.0.s8 %v1057
      %v1059 = vlaneseq
      %v1060 = vshrl.u32 %v1059, 7
      %v1061 = vsub.s32 %v1058, %v1060
      %v1062 = vrot.slane %v1048, %v1061
      %v1063 = vcombine.low %v1007, %v1023
      %v1064 = vcombine.high %v1007, %v1023
      %v1066 = vunpack.c.l.s4 1934713408
      %v1067 = vunpack.c.0.s8 %v1066
      %v1068 = vlaneseq
      %v1069 = vshrl.u32 %v1068, 7
      %v1070 = vsub.s32 %v1067, %v1069
      %v1071 = vrot.slane %v1063, %v1070
      %v1073 = vunpack.c.l.s4 1934713408
      %v1074 = vunpack.c.0.s8 %v1073
      %v1075 = vlaneseq
      %v1076 = vshrl.u32 %v1075, 7
      %v1077 = vsub.s32 %v1074, %v1076
      %v1078 = vrot.slane %v1064, %v1077
      %v1079 = vcombine.low %v1014, %v1030
      %v1080 = vcombine.high %v1014, %v1030
      %v1082 = vunpack.c.l.s4 1934713408
      %v1083 = vunpack.c.0.s8 %v1082
      %v1084 = vlaneseq
      %v1085 = vshrl.u32 %v1084, 7
      %v1086 = vsub.s32 %v1083, %v1085
      %v1087 = vrot.slane %v1079, %v1086
      %v1089 = vunpack.c.l.s4 1934713408
      %v1090 = vunpack.c.0.s8 %v1089
      %v1091 = vlaneseq
      %v1092 = vshrl.u32 %v1091, 7
      %v1093 = vsub.s32 %v1090, %v1092
      %v1094 = vrot.slane %v1080, %v1093
      %v1095 = vcombine.low %v1039, %v1055
      %v1096 = vcombine.high %v1039, %v1055
      %v1098 = vunpack.c.l.s4 1934713408
      %v1099 = vunpack.c.0.s8 %v1098
      %v1100 = vlaneseq
      %v1101 = vshrl.u32 %v1100, 7
      %v1102 = vsub.s32 %v1099, %v1101
      %v1103 = vrot.slane %v1095, %v1102
      %v1105 = vunpack.c.l.s4 1934713408
      %v1106 = vunpack.c.0.s8 %v1105
      %v1107 = vlaneseq
      %v1108 = vshrl.u32 %v1107, 7
      %v1109 = vsub.s32 %v1106, %v1108
      %v1110 = vrot.slane %v1096, %v1109
      %v1111 = vcombine.low %v1046, %v1062
      %v1112 = vcombine.high %v1046, %v1062
      %v1114 = vunpack.c.l.s4 1934713408
      %v1115 = vunpack.c.0.s8 %v1114
      %v1116 = vlaneseq
      %v1117 = vshrl.u32 %v1116, 7
      %v1118 = vsub.s32 %v1115, %v1117
      %v1119 = vrot.slane %v1111, %v1118
      %v1121 = vunpack.c.l.s4 1934713408
      %v1122 = vunpack.c.0.s8 %v1121
      %v1123 = vlaneseq
      %v1124 = vshrl.u32 %v1123, 7
      %v1125 = vsub.s32 %v1122, %v1124
      %v1126 = vrot.slane %v1112, %v1125
      %v1127 = vcombine.low %v1071, %v1103
      %v1128 = vcombine.high %v1071, %v1103
      %v1129 = vcombine.low %v1078, %v1110
      %v1130 = vcombine.high %v1078, %v1110
      %v1131 = vcombine.low %v1087, %v1119
      %v1132 = vcombine.high %v1087, %v1119
      %v1133 = vcombine.low %v1094, %v1126
      %v1134 = vcombine.high %v1094, %v1126
      %v1135 = vcombine.low %v951, %v982
      %v1136 = vcombine.high %v951, %v982
      %v1138 = vunpack.c.l.s4 1983009808
      %v1139 = vunpack.c.0.s8 %v1138
      %v1140 = vlaneseq
      %v1141 = vshrl.u32 %v1140, 7
      %v1142 = vsub.s32 %v1139, %v1141
      %v1143 = vrot.slane %v1135, %v1142
      %v1145 = vunpack.c.l.s4 1983009808
      %v1146 = vunpack.c.0.s8 %v1145
      %v1147 = vlaneseq
      %v1148 = vshrl.u32 %v1147, 7
      %v1149 = vsub.s32 %v1146, %v1148
      %v1150 = vrot.slane %v1136, %v1149
      %v1151 = vcombine.low %v979, %v985
      %v1152 = vcombine.high %v979, %v985
      %v1154 = vunpack.c.l.s4 1983009808
      %v1155 = vunpack.c.0.s8 %v1154
      %v1156 = vlaneseq
      %v1157 = vshrl.u32 %v1156, 7
      %v1158 = vsub.s32 %v1155, %v1157
      %v1159 = vrot.slane %v1151, %v1158
      %v1161 = vunpack.c.l.s4 1983009808
      %v1162 = vunpack.c.0.s8 %v1161
      %v1163 = vlaneseq
      %v1164 = vshrl.u32 %v1163, 7
      %v1165 = vsub.s32 %v1162, %v1164
      %v1166 = vrot.slane %v1152, %v1165
      %v1167 = vcombine.low %v988, %v994
      %v1168 = vcombine.high %v988, %v994
      %v1170 = vunpack.c.l.s4 1983009808
      %v1171 = vunpack.c.0.s8 %v1170
      %v1172 = vlaneseq
      %v1173 = vshrl.u32 %v1172, 7
      %v1174 = vsub.s32 %v1171, %v1173
      %v1175 = vrot.slane %v1167, %v1174
      %v1177 = vunpack.c.l.s4 1983009808
      %v1178 = vunpack.c.0.s8 %v1177
      %v1179 = vlaneseq
      %v1180 = vshrl.u32 %v1179, 7
      %v1181 = vsub.s32 %v1178, %v1180
      %v1182 = vrot.slane %v1168, %v1181
      %v1183 = vcombine.low %v991, %v997
      %v1184 = vcombine.high %v991, %v997
      %v1186 = vunpack.c.l.s4 1983009808
      %v1187 = vunpack.c.0.s8 %v1186
      %v1188 = vlaneseq
      %v1189 = vshrl.u32 %v1188, 7
      %v1190 = vsub.s32 %v1187, %v1189
      %v1191 = vrot.slane %v1183, %v1190
      %v1193 = vunpack.c.l.s4 1983009808
      %v1194 = vunpack.c.0.s8 %v1193
      %v1195 = vlaneseq
      %v1196 = vshrl.u32 %v1195, 7
      %v1197 = vsub.s32 %v1194, %v1196
      %v1198 = vrot.slane %v1184, %v1197
      %v1199 = vcombine.low %v1143, %v1159
      %v1200 = vcombine.high %v1143, %v1159
      %v1202 = vunpack.c.l.s4 1934713408
      %v1203 = vunpack.c.0.s8 %v1202
      %v1204 = vlaneseq
      %v1205 = vshrl.u32 %v1204, 7
      %v1206 = vsub.s32 %v1203, %v1205
      %v1207 = vrot.slane %v1199, %v1206
      %v1209 = vunpack.c.l.s4 1934713408
      %v1210 = vunpack.c.0.s8 %v1209
      %v1211 = vlaneseq
      %v1212 = vshrl.u32 %v1211, 7
      %v1213 = vsub.s32 %v1210, %v1212
      %v1214 = vrot.slane %v1200, %v1213
      %v1215 = vcombine.low %v1150, %v1166
      %v1216 = vcombine.high %v1150, %v1166
      %v1218 = vunpack.c.l.s4 1934713408
      %v1219 = vunpack.c.0.s8 %v1218
      %v1220 = vlaneseq
      %v1221 = vshrl.u32 %v1220, 7
      %v1222 = vsub.s32 %v1219, %v1221
      %v1223 = vrot.slane %v1215, %v1222
      %v1225 = vunpack.c.l.s4 1934713408
      %v1226 = vunpack.c.0.s8 %v1225
      %v1227 = vlaneseq
      %v1228 = vshrl.u32 %v1227, 7
      %v1229 = vsub.s32 %v1226, %v1228
      %v1230 = vrot.slane %v1216, %v1229
      %v1231 = vcombine.low %v1175, %v1191
      %v1232 = vcombine.high %v1175, %v1191
      %v1234 = vunpack.c.l.s4 1934713408
      %v1235 = vunpack.c.0.s8 %v1234
      %v1236 = vlaneseq
      %v1237 = vshrl.u32 %v1236, 7
      %v1238 = vsub.s32 %v1235, %v1237
      %v1239 = vrot.slane %v1231, %v1238
      %v1241 = vunpack.c.l.s4 1934713408
      %v1242 = vunpack.c.0.s8 %v1241
      %v1243 = vlaneseq
      %v1244 = vshrl.u32 %v1243, 7
      %v1245 = vsub.s32 %v1242, %v1244
      %v1246 = vrot.slane %v1232, %v1245
      %v1247 = vcombine.low %v1182, %v1198
      %v1248 = vcombine.high %v1182, %v1198
      %v1250 = vunpack.c.l.s4 1934713408
      %v1251 = vunpack.c.0.s8 %v1250
      %v1252 = vlaneseq
      %v1253 = vshrl.u32 %v1252, 7
      %v1254 = vsub.s32 %v1251, %v1253
      %v1255 = vrot.slane %v1247, %v1254
      %v1257 = vunpack.c.l.s4 1934713408
      %v1258 = vunpack.c.0.s8 %v1257
      %v1259 = vlaneseq
      %v1260 = vshrl.u32 %v1259, 7
      %v1261 = vsub.s32 %v1258, %v1260
      %v1262 = vrot.slane %v1248, %v1261
      %v1263 = vcombine.low %v1207, %v1239
      %v1264 = vcombine.high %v1207, %v1239
      %v1265 = vcombine.low %v1214, %v1246
      %v1266 = vcombine.high %v1214, %v1246
      %v1267 = vcombine.low %v1223, %v1255
      %v1268 = vcombine.high %v1223, %v1255
      %v1269 = vcombine.low %v1230, %v1262
      %v1270 = vcombine.high %v1230, %v1262
      %1287 = vrot.lane.b32.xlu0 %v1127, 127
      %v1288 = vpop.permute.xlu0 %1287
      %1289 = vrot.lane.b32.xlu0 %v1263, 127
      %v1290 = vpop.permute.xlu0 %1289
      %1291 = vrot.lane.b32.xlu0 %v1128, 127
      %v1292 = vpop.permute.xlu0 %1291
      %1293 = vrot.lane.b32.xlu0 %v1264, 127
      %v1294 = vpop.permute.xlu0 %1293
      %1295 = vrot.lane.b32.xlu0 %v1129, 127
      %v1296 = vpop.permute.xlu0 %1295
      %1297 = vrot.lane.b32.xlu0 %v1265, 127
      %v1298 = vpop.permute.xlu0 %1297
      %1299 = vrot.lane.b32.xlu0 %v1130, 127
      %v1300 = vpop.permute.xlu0 %1299
      %1301 = vrot.lane.b32.xlu0 %v1266, 127
      %v1302 = vpop.permute.xlu0 %1301
      %1303 = vrot.lane.b32.xlu0 %v1131, 127
      %v1304 = vpop.permute.xlu0 %1303
      %1305 = vrot.lane.b32.xlu0 %v1267, 127
      %v1306 = vpop.permute.xlu0 %1305
      %1307 = vrot.lane.b32.xlu0 %v1132, 127
      %v1308 = vpop.permute.xlu0 %1307
      %1309 = vrot.lane.b32.xlu0 %v1268, 127
      %v1310 = vpop.permute.xlu0 %1309
      %1311 = vrot.lane.b32.xlu0 %v1133, 127
      %v1312 = vpop.permute.xlu0 %1311
      %1313 = vrot.lane.b32.xlu0 %v1269, 127
      %v1314 = vpop.permute.xlu0 %1313
      %1315 = vrot.lane.b32.xlu0 %v1134, 127
      %v1316 = vpop.permute.xlu0 %1315
      %1317 = vrot.lane.b32.xlu0 %v1270, 127
      %v1318 = vpop.permute.xlu0 %1317
      %v1335 = vadd.f32 %v893, %v1288
      %v1336 = vadd.f32 %v894, %v1290
      %v1337 = vadd.f32 %v895, %v1292
      %v1338 = vadd.f32 %v896, %v1294
      %v1339 = vadd.f32 %v897, %v1296
      %v1340 = vadd.f32 %v898, %v1298
      %v1341 = vadd.f32 %v899, %v1300
      %v1342 = vadd.f32 %v900, %v1302
      %v1343 = vadd.f32 %v901, %v1304
      %v1344 = vadd.f32 %v902, %v1306
      %v1345 = vadd.f32 %v903, %v1308
      %v1346 = vadd.f32 %v904, %v1310
      %v1347 = vadd.f32 %v905, %v1312
      %v1348 = vadd.f32 %v906, %v1314
      %v1349 = vadd.f32 %v907, %v1316
      %v1350 = vadd.f32 %v908, %v1318
      %s1351 = scalar_lea.vmem %s1, 8
      %v1352 = vld [vmem:[%s1351] sm:$0xf]
      %v1354 = vsel %vm525, %v1352, 0
      %1356 = vmatprep.subr.bf16.mxu0 0
      %1357 = vmatpush1.bf16.msra.mxu0 0
      %1358 = vmatprep.subr.bf16.mxu0 0
      %1359 = vmatpush1.bf16.msra.mxu0 0
      %1360 = vmatprep.subr.bf16.mxu0 0
      %1361 = vmatpush1.bf16.msra.mxu0 0
      %1362 = vmatprep.subr.bf16.mxu0 0
      %1363 = vmatpush1.bf16.msra.mxu0 0
      %1364 = vmatprep.subr.bf16.mxu0 0
      %1365 = vmatpush1.bf16.msra.mxu0 0
      %1366 = vmatprep.subr.bf16.mxu0 0
      %1367 = vmatpush1.bf16.msra.mxu0 0
      %1368 = vmatprep.subr.bf16.mxu0 0
      %1369 = vmatpush1.bf16.msra.mxu0 0
      %1370 = vmatprep.subr.bf16.mxu0 %v534
      %1371 = vmatpush1.bf16.msra.mxu0 %v531
      %1372 = vmatprep.subr.bf16.mxu0 0
      %1373 = vmatpush2.bf16.msra.mxu0 0
      %1374 = vmatprep.subr.bf16.mxu0 0
      %1375 = vmatpush2.bf16.msra.mxu0 0
      %1376 = vmatprep.subr.bf16.mxu0 0
      %1377 = vmatpush2.bf16.msra.mxu0 0
      %1378 = vmatprep.subr.bf16.mxu0 0
      %1379 = vmatpush2.bf16.msra.mxu0 0
      %1380 = vmatprep.subr.bf16.mxu0 0
      %1381 = vmatpush2.bf16.msra.mxu0 0
      %1382 = vmatprep.subr.bf16.mxu0 0
      %1383 = vmatpush2.bf16.msra.mxu0 0
      %1384 = vmatprep.subr.bf16.mxu0 0
      %1385 = vmatpush2.bf16.msra.mxu0 0
      %1386 = vmatprep.subr.bf16.mxu0 0
      %1387 = vmatpush2.bf16.msra.mxu0 0
      %1388 = vmatprep.mubr.bf16.mxu0 0
      %1389 = vmatmul.mubr.bf16.gmra.mxu0 %v1354
      %v1390 = vpop.f32.mrf.mxu0
      %v1391 = vadd.f32 0.0, %v1390
      %v1392 = vpop.f32.mrf.mxu0
      %v1393 = vadd.f32 0.0, %v1392
      %v1394 = vpop.f32.mrf.mxu0
      %v1395 = vpop.f32.mrf.mxu0
      %1396 = vdwg.mxu0
      %1398 = vrot.lane.b32.xlu0 %v1391, 112
      %v1399 = vpop.permute.xlu0 %1398
      %1401 = vrot.lane.b32.xlu0 %v1391, 96
      %v1402 = vpop.permute.xlu0 %1401
      %1404 = vrot.lane.b32.xlu0 %v1391, 80
      %v1405 = vpop.permute.xlu0 %1404
      %1407 = vrot.lane.b32.xlu0 %v1391, 64
      %v1408 = vpop.permute.xlu0 %1407
      %1410 = vrot.lane.b32.xlu0 %v1391, 48
      %v1411 = vpop.permute.xlu0 %1410
      %1413 = vrot.lane.b32.xlu0 %v1391, 32
      %v1414 = vpop.permute.xlu0 %1413
      %1416 = vrot.lane.b32.xlu0 %v1391, 16
      %v1417 = vpop.permute.xlu0 %1416
      %1420 = vrot.lane.b32.xlu0 %v1393, 112
      %v1421 = vpop.permute.xlu0 %1420
      %1423 = vrot.lane.b32.xlu0 %v1393, 96
      %v1424 = vpop.permute.xlu0 %1423
      %1426 = vrot.lane.b32.xlu0 %v1393, 80
      %v1427 = vpop.permute.xlu0 %1426
      %1429 = vrot.lane.b32.xlu0 %v1393, 64
      %v1430 = vpop.permute.xlu0 %1429
      %1432 = vrot.lane.b32.xlu0 %v1393, 48
      %v1433 = vpop.permute.xlu0 %1432
      %1435 = vrot.lane.b32.xlu0 %v1393, 32
      %v1436 = vpop.permute.xlu0 %1435
      %1438 = vrot.lane.b32.xlu0 %v1393, 16
      %v1439 = vpop.permute.xlu0 %1438
      %v1441 = vcombine.low %v1391, %v1402
      %v1442 = vcombine.high %v1391, %v1402
      %v1444 = vunpack.c.l.s4 1983009808
      %v1445 = vunpack.c.0.s8 %v1444
      %v1446 = vlaneseq
      %v1447 = vshrl.u32 %v1446, 7
      %v1448 = vsub.s32 %v1445, %v1447
      %v1449 = vrot.slane %v1441, %v1448
      %v1451 = vunpack.c.l.s4 1983009808
      %v1452 = vunpack.c.0.s8 %v1451
      %v1453 = vlaneseq
      %v1454 = vshrl.u32 %v1453, 7
      %v1455 = vsub.s32 %v1452, %v1454
      %v1456 = vrot.slane %v1442, %v1455
      %v1457 = vcombine.low %v1399, %v1405
      %v1458 = vcombine.high %v1399, %v1405
      %v1460 = vunpack.c.l.s4 1983009808
      %v1461 = vunpack.c.0.s8 %v1460
      %v1462 = vlaneseq
      %v1463 = vshrl.u32 %v1462, 7
      %v1464 = vsub.s32 %v1461, %v1463
      %v1465 = vrot.slane %v1457, %v1464
      %v1467 = vunpack.c.l.s4 1983009808
      %v1468 = vunpack.c.0.s8 %v1467
      %v1469 = vlaneseq
      %v1470 = vshrl.u32 %v1469, 7
      %v1471 = vsub.s32 %v1468, %v1470
      %v1472 = vrot.slane %v1458, %v1471
      %v1473 = vcombine.low %v1408, %v1414
      %v1474 = vcombine.high %v1408, %v1414
      %v1476 = vunpack.c.l.s4 1983009808
      %v1477 = vunpack.c.0.s8 %v1476
      %v1478 = vlaneseq
      %v1479 = vshrl.u32 %v1478, 7
      %v1480 = vsub.s32 %v1477, %v1479
      %v1481 = vrot.slane %v1473, %v1480
      %v1483 = vunpack.c.l.s4 1983009808
      %v1484 = vunpack.c.0.s8 %v1483
      %v1485 = vlaneseq
      %v1486 = vshrl.u32 %v1485, 7
      %v1487 = vsub.s32 %v1484, %v1486
      %v1488 = vrot.slane %v1474, %v1487
      %v1489 = vcombine.low %v1411, %v1417
      %v1490 = vcombine.high %v1411, %v1417
      %v1492 = vunpack.c.l.s4 1983009808
      %v1493 = vunpack.c.0.s8 %v1492
      %v1494 = vlaneseq
      %v1495 = vshrl.u32 %v1494, 7
      %v1496 = vsub.s32 %v1493, %v1495
      %v1497 = vrot.slane %v1489, %v1496
      %v1499 = vunpack.c.l.s4 1983009808
      %v1500 = vunpack.c.0.s8 %v1499
      %v1501 = vlaneseq
      %v1502 = vshrl.u32 %v1501, 7
      %v1503 = vsub.s32 %v1500, %v1502
      %v1504 = vrot.slane %v1490, %v1503
      %v1505 = vcombine.low %v1449, %v1465
      %v1506 = vcombine.high %v1449, %v1465
      %v1508 = vunpack.c.l.s4 1934713408
      %v1509 = vunpack.c.0.s8 %v1508
      %v1510 = vlaneseq
      %v1511 = vshrl.u32 %v1510, 7
      %v1512 = vsub.s32 %v1509, %v1511
      %v1513 = vrot.slane %v1505, %v1512
      %v1515 = vunpack.c.l.s4 1934713408
      %v1516 = vunpack.c.0.s8 %v1515
      %v1517 = vlaneseq
      %v1518 = vshrl.u32 %v1517, 7
      %v1519 = vsub.s32 %v1516, %v1518
      %v1520 = vrot.slane %v1506, %v1519
      %v1521 = vcombine.low %v1456, %v1472
      %v1522 = vcombine.high %v1456, %v1472
      %v1524 = vunpack.c.l.s4 1934713408
      %v1525 = vunpack.c.0.s8 %v1524
      %v1526 = vlaneseq
      %v1527 = vshrl.u32 %v1526, 7
      %v1528 = vsub.s32 %v1525, %v1527
      %v1529 = vrot.slane %v1521, %v1528
      %v1531 = vunpack.c.l.s4 1934713408
      %v1532 = vunpack.c.0.s8 %v1531
      %v1533 = vlaneseq
      %v1534 = vshrl.u32 %v1533, 7
      %v1535 = vsub.s32 %v1532, %v1534
      %v1536 = vrot.slane %v1522, %v1535
      %v1537 = vcombine.low %v1481, %v1497
      %v1538 = vcombine.high %v1481, %v1497
      %v1540 = vunpack.c.l.s4 1934713408
      %v1541 = vunpack.c.0.s8 %v1540
      %v1542 = vlaneseq
      %v1543 = vshrl.u32 %v1542, 7
      %v1544 = vsub.s32 %v1541, %v1543
      %v1545 = vrot.slane %v1537, %v1544
      %v1547 = vunpack.c.l.s4 1934713408
      %v1548 = vunpack.c.0.s8 %v1547
      %v1549 = vlaneseq
      %v1550 = vshrl.u32 %v1549, 7
      %v1551 = vsub.s32 %v1548, %v1550
      %v1552 = vrot.slane %v1538, %v1551
      %v1553 = vcombine.low %v1488, %v1504
      %v1554 = vcombine.high %v1488, %v1504
      %v1556 = vunpack.c.l.s4 1934713408
      %v1557 = vunpack.c.0.s8 %v1556
      %v1558 = vlaneseq
      %v1559 = vshrl.u32 %v1558, 7
      %v1560 = vsub.s32 %v1557, %v1559
      %v1561 = vrot.slane %v1553, %v1560
      %v1563 = vunpack.c.l.s4 1934713408
      %v1564 = vunpack.c.0.s8 %v1563
      %v1565 = vlaneseq
      %v1566 = vshrl.u32 %v1565, 7
      %v1567 = vsub.s32 %v1564, %v1566
      %v1568 = vrot.slane %v1554, %v1567
      %v1569 = vcombine.low %v1513, %v1545
      %v1570 = vcombine.high %v1513, %v1545
      %v1571 = vcombine.low %v1520, %v1552
      %v1572 = vcombine.high %v1520, %v1552
      %v1573 = vcombine.low %v1529, %v1561
      %v1574 = vcombine.high %v1529, %v1561
      %v1575 = vcombine.low %v1536, %v1568
      %v1576 = vcombine.high %v1536, %v1568
      %v1577 = vcombine.low %v1393, %v1424
      %v1578 = vcombine.high %v1393, %v1424
      %v1580 = vunpack.c.l.s4 1983009808
      %v1581 = vunpack.c.0.s8 %v1580
      %v1582 = vlaneseq
      %v1583 = vshrl.u32 %v1582, 7
      %v1584 = vsub.s32 %v1581, %v1583
      %v1585 = vrot.slane %v1577, %v1584
      %v1587 = vunpack.c.l.s4 1983009808
      %v1588 = vunpack.c.0.s8 %v1587
      %v1589 = vlaneseq
      %v1590 = vshrl.u32 %v1589, 7
      %v1591 = vsub.s32 %v1588, %v1590
      %v1592 = vrot.slane %v1578, %v1591
      %v1593 = vcombine.low %v1421, %v1427
      %v1594 = vcombine.high %v1421, %v1427
      %v1596 = vunpack.c.l.s4 1983009808
      %v1597 = vunpack.c.0.s8 %v1596
      %v1598 = vlaneseq
      %v1599 = vshrl.u32 %v1598, 7
      %v1600 = vsub.s32 %v1597, %v1599
      %v1601 = vrot.slane %v1593, %v1600
      %v1603 = vunpack.c.l.s4 1983009808
      %v1604 = vunpack.c.0.s8 %v1603
      %v1605 = vlaneseq
      %v1606 = vshrl.u32 %v1605, 7
      %v1607 = vsub.s32 %v1604, %v1606
      %v1608 = vrot.slane %v1594, %v1607
      %v1609 = vcombine.low %v1430, %v1436
      %v1610 = vcombine.high %v1430, %v1436
      %v1612 = vunpack.c.l.s4 1983009808
      %v1613 = vunpack.c.0.s8 %v1612
      %v1614 = vlaneseq
      %v1615 = vshrl.u32 %v1614, 7
      %v1616 = vsub.s32 %v1613, %v1615
      %v1617 = vrot.slane %v1609, %v1616
      %v1619 = vunpack.c.l.s4 1983009808
      %v1620 = vunpack.c.0.s8 %v1619
      %v1621 = vlaneseq
      %v1622 = vshrl.u32 %v1621, 7
      %v1623 = vsub.s32 %v1620, %v1622
      %v1624 = vrot.slane %v1610, %v1623
      %v1625 = vcombine.low %v1433, %v1439
      %v1626 = vcombine.high %v1433, %v1439
      %v1628 = vunpack.c.l.s4 1983009808
      %v1629 = vunpack.c.0.s8 %v1628
      %v1630 = vlaneseq
      %v1631 = vshrl.u32 %v1630, 7
      %v1632 = vsub.s32 %v1629, %v1631
      %v1633 = vrot.slane %v1625, %v1632
      %v1635 = vunpack.c.l.s4 1983009808
      %v1636 = vunpack.c.0.s8 %v1635
      %v1637 = vlaneseq
      %v1638 = vshrl.u32 %v1637, 7
      %v1639 = vsub.s32 %v1636, %v1638
      %v1640 = vrot.slane %v1626, %v1639
      %v1641 = vcombine.low %v1585, %v1601
      %v1642 = vcombine.high %v1585, %v1601
      %v1644 = vunpack.c.l.s4 1934713408
      %v1645 = vunpack.c.0.s8 %v1644
      %v1646 = vlaneseq
      %v1647 = vshrl.u32 %v1646, 7
      %v1648 = vsub.s32 %v1645, %v1647
      %v1649 = vrot.slane %v1641, %v1648
      %v1651 = vunpack.c.l.s4 1934713408
      %v1652 = vunpack.c.0.s8 %v1651
      %v1653 = vlaneseq
      %v1654 = vshrl.u32 %v1653, 7
      %v1655 = vsub.s32 %v1652, %v1654
      %v1656 = vrot.slane %v1642, %v1655
      %v1657 = vcombine.low %v1592, %v1608
      %v1658 = vcombine.high %v1592, %v1608
      %v1660 = vunpack.c.l.s4 1934713408
      %v1661 = vunpack.c.0.s8 %v1660
      %v1662 = vlaneseq
      %v1663 = vshrl.u32 %v1662, 7
      %v1664 = vsub.s32 %v1661, %v1663
      %v1665 = vrot.slane %v1657, %v1664
      %v1667 = vunpack.c.l.s4 1934713408
      %v1668 = vunpack.c.0.s8 %v1667
      %v1669 = vlaneseq
      %v1670 = vshrl.u32 %v1669, 7
      %v1671 = vsub.s32 %v1668, %v1670
      %v1672 = vrot.slane %v1658, %v1671
      %v1673 = vcombine.low %v1617, %v1633
      %v1674 = vcombine.high %v1617, %v1633
      %v1676 = vunpack.c.l.s4 1934713408
      %v1677 = vunpack.c.0.s8 %v1676
      %v1678 = vlaneseq
      %v1679 = vshrl.u32 %v1678, 7
      %v1680 = vsub.s32 %v1677, %v1679
      %v1681 = vrot.slane %v1673, %v1680
      %v1683 = vunpack.c.l.s4 1934713408
      %v1684 = vunpack.c.0.s8 %v1683
      %v1685 = vlaneseq
      %v1686 = vshrl.u32 %v1685, 7
      %v1687 = vsub.s32 %v1684, %v1686
      %v1688 = vrot.slane %v1674, %v1687
      %v1689 = vcombine.low %v1624, %v1640
      %v1690 = vcombine.high %v1624, %v1640
      %v1692 = vunpack.c.l.s4 1934713408
      %v1693 = vunpack.c.0.s8 %v1692
      %v1694 = vlaneseq
      %v1695 = vshrl.u32 %v1694, 7
      %v1696 = vsub.s32 %v1693, %v1695
      %v1697 = vrot.slane %v1689, %v1696
      %v1699 = vunpack.c.l.s4 1934713408
      %v1700 = vunpack.c.0.s8 %v1699
      %v1701 = vlaneseq
      %v1702 = vshrl.u32 %v1701, 7
      %v1703 = vsub.s32 %v1700, %v1702
      %v1704 = vrot.slane %v1690, %v1703
      %v1705 = vcombine.low %v1649, %v1681
      %v1706 = vcombine.high %v1649, %v1681
      %v1707 = vcombine.low %v1656, %v1688
      %v1708 = vcombine.high %v1656, %v1688
      %v1709 = vcombine.low %v1665, %v1697
      %v1710 = vcombine.high %v1665, %v1697
      %v1711 = vcombine.low %v1672, %v1704
      %v1712 = vcombine.high %v1672, %v1704
      %1729 = vrot.lane.b32.xlu0 %v1569, 126
      %v1730 = vpop.permute.xlu0 %1729
      %1731 = vrot.lane.b32.xlu0 %v1705, 126
      %v1732 = vpop.permute.xlu0 %1731
      %1733 = vrot.lane.b32.xlu0 %v1570, 126
      %v1734 = vpop.permute.xlu0 %1733
      %1735 = vrot.lane.b32.xlu0 %v1706, 126
      %v1736 = vpop.permute.xlu0 %1735
      %1737 = vrot.lane.b32.xlu0 %v1571, 126
      %v1738 = vpop.permute.xlu0 %1737
      %1739 = vrot.lane.b32.xlu0 %v1707, 126
      %v1740 = vpop.permute.xlu0 %1739
      %1741 = vrot.lane.b32.xlu0 %v1572, 126
      %v1742 = vpop.permute.xlu0 %1741
      %1743 = vrot.lane.b32.xlu0 %v1708, 126
      %v1744 = vpop.permute.xlu0 %1743
      %1745 = vrot.lane.b32.xlu0 %v1573, 126
      %v1746 = vpop.permute.xlu0 %1745
      %1747 = vrot.lane.b32.xlu0 %v1709, 126
      %v1748 = vpop.permute.xlu0 %1747
      %1749 = vrot.lane.b32.xlu0 %v1574, 126
      %v1750 = vpop.permute.xlu0 %1749
      %1751 = vrot.lane.b32.xlu0 %v1710, 126
      %v1752 = vpop.permute.xlu0 %1751
      %1753 = vrot.lane.b32.xlu0 %v1575, 126
      %v1754 = vpop.permute.xlu0 %1753
      %1755 = vrot.lane.b32.xlu0 %v1711, 126
      %v1756 = vpop.permute.xlu0 %1755
      %1757 = vrot.lane.b32.xlu0 %v1576, 126
      %v1758 = vpop.permute.xlu0 %1757
      %1759 = vrot.lane.b32.xlu0 %v1712, 126
      %v1760 = vpop.permute.xlu0 %1759
      %v1777 = vadd.f32 %v1335, %v1730
      %v1778 = vadd.f32 %v1336, %v1732
      %v1779 = vadd.f32 %v1337, %v1734
      %v1780 = vadd.f32 %v1338, %v1736
      %v1781 = vadd.f32 %v1339, %v1738
      %v1782 = vadd.f32 %v1340, %v1740
      %v1783 = vadd.f32 %v1341, %v1742
      %v1784 = vadd.f32 %v1342, %v1744
      %v1785 = vadd.f32 %v1343, %v1746
      %v1786 = vadd.f32 %v1344, %v1748
      %v1787 = vadd.f32 %v1345, %v1750
      %v1788 = vadd.f32 %v1346, %v1752
      %v1789 = vadd.f32 %v1347, %v1754
      %v1790 = vadd.f32 %v1348, %v1756
      %v1791 = vadd.f32 %v1349, %v1758
      %v1792 = vadd.f32 %v1350, %v1760
      %s1793 = scalar_lea.vmem %s1, 12
      %v1794 = vld [vmem:[%s1793] sm:$0xf]
      %v1796 = vsel %vm525, %v1794, 0
      %1798 = vmatprep.subr.bf16.mxu0 0
      %1799 = vmatpush1.bf16.msra.mxu0 0
      %1800 = vmatprep.subr.bf16.mxu0 0
      %1801 = vmatpush1.bf16.msra.mxu0 0
      %1802 = vmatprep.subr.bf16.mxu0 0
      %1803 = vmatpush1.bf16.msra.mxu0 0
      %1804 = vmatprep.subr.bf16.mxu0 0
      %1805 = vmatpush1.bf16.msra.mxu0 0
      %1806 = vmatprep.subr.bf16.mxu0 0
      %1807 = vmatpush1.bf16.msra.mxu0 0
      %1808 = vmatprep.subr.bf16.mxu0 0
      %1809 = vmatpush1.bf16.msra.mxu0 0
      %1810 = vmatprep.subr.bf16.mxu0 0
      %1811 = vmatpush1.bf16.msra.mxu0 0
      %1812 = vmatprep.subr.bf16.mxu0 %v534
      %1813 = vmatpush1.bf16.msra.mxu0 %v531
      %1814 = vmatprep.subr.bf16.mxu0 0
      %1815 = vmatpush2.bf16.msra.mxu0 0
      %1816 = vmatprep.subr.bf16.mxu0 0
      %1817 = vmatpush2.bf16.msra.mxu0 0
      %1818 = vmatprep.subr.bf16.mxu0 0
      %1819 = vmatpush2.bf16.msra.mxu0 0
      %1820 = vmatprep.subr.bf16.mxu0 0
      %1821 = vmatpush2.bf16.msra.mxu0 0
      %1822 = vmatprep.subr.bf16.mxu0 0
      %1823 = vmatpush2.bf16.msra.mxu0 0
      %1824 = vmatprep.subr.bf16.mxu0 0
      %1825 = vmatpush2.bf16.msra.mxu0 0
      %1826 = vmatprep.subr.bf16.mxu0 0
      %1827 = vmatpush2.bf16.msra.mxu0 0
      %1828 = vmatprep.subr.bf16.mxu0 0
      %1829 = vmatpush2.bf16.msra.mxu0 0
      %1830 = vmatprep.mubr.bf16.mxu0 0
      %1831 = vmatmul.mubr.bf16.gmra.mxu0 %v1796
      %v1832 = vpop.f32.mrf.mxu0
      %v1833 = vadd.f32 0.0, %v1832
      %v1834 = vpop.f32.mrf.mxu0
      %v1835 = vadd.f32 0.0, %v1834
      %v1836 = vpop.f32.mrf.mxu0
      %v1837 = vpop.f32.mrf.mxu0
      %1838 = vdwg.mxu0
      %1840 = vrot.lane.b32.xlu0 %v1833, 112
      %v1841 = vpop.permute.xlu0 %1840
      %1843 = vrot.lane.b32.xlu0 %v1833, 96
      %v1844 = vpop.permute.xlu0 %1843
      %1846 = vrot.lane.b32.xlu0 %v1833, 80
      %v1847 = vpop.permute.xlu0 %1846
      %1849 = vrot.lane.b32.xlu0 %v1833, 64
      %v1850 = vpop.permute.xlu0 %1849
      %1852 = vrot.lane.b32.xlu0 %v1833, 48
      %v1853 = vpop.permute.xlu0 %1852
      %1855 = vrot.lane.b32.xlu0 %v1833, 32
      %v1856 = vpop.permute.xlu0 %1855
      %1858 = vrot.lane.b32.xlu0 %v1833, 16
      %v1859 = vpop.permute.xlu0 %1858
      %1862 = vrot.lane.b32.xlu0 %v1835, 112
      %v1863 = vpop.permute.xlu0 %1862
      %1865 = vrot.lane.b32.xlu0 %v1835, 96
      %v1866 = vpop.permute.xlu0 %1865
      %1868 = vrot.lane.b32.xlu0 %v1835, 80
      %v1869 = vpop.permute.xlu0 %1868
      %1871 = vrot.lane.b32.xlu0 %v1835, 64
      %v1872 = vpop.permute.xlu0 %1871
      %1874 = vrot.lane.b32.xlu0 %v1835, 48
      %v1875 = vpop.permute.xlu0 %1874
      %1877 = vrot.lane.b32.xlu0 %v1835, 32
      %v1878 = vpop.permute.xlu0 %1877
      %1880 = vrot.lane.b32.xlu0 %v1835, 16
      %v1881 = vpop.permute.xlu0 %1880
      %v1883 = vcombine.low %v1833, %v1844
      %v1884 = vcombine.high %v1833, %v1844
      %v1886 = vunpack.c.l.s4 1983009808
      %v1887 = vunpack.c.0.s8 %v1886
      %v1888 = vlaneseq
      %v1889 = vshrl.u32 %v1888, 7
      %v1890 = vsub.s32 %v1887, %v1889
      %v1891 = vrot.slane %v1883, %v1890
      %v1893 = vunpack.c.l.s4 1983009808
      %v1894 = vunpack.c.0.s8 %v1893
      %v1895 = vlaneseq
      %v1896 = vshrl.u32 %v1895, 7
      %v1897 = vsub.s32 %v1894, %v1896
      %v1898 = vrot.slane %v1884, %v1897
      %v1899 = vcombine.low %v1841, %v1847
      %v1900 = vcombine.high %v1841, %v1847
      %v1902 = vunpack.c.l.s4 1983009808
      %v1903 = vunpack.c.0.s8 %v1902
      %v1904 = vlaneseq
      %v1905 = vshrl.u32 %v1904, 7
      %v1906 = vsub.s32 %v1903, %v1905
      %v1907 = vrot.slane %v1899, %v1906
      %v1909 = vunpack.c.l.s4 1983009808
      %v1910 = vunpack.c.0.s8 %v1909
      %v1911 = vlaneseq
      %v1912 = vshrl.u32 %v1911, 7
      %v1913 = vsub.s32 %v1910, %v1912
      %v1914 = vrot.slane %v1900, %v1913
      %v1915 = vcombine.low %v1850, %v1856
      %v1916 = vcombine.high %v1850, %v1856
      %v1918 = vunpack.c.l.s4 1983009808
      %v1919 = vunpack.c.0.s8 %v1918
      %v1920 = vlaneseq
      %v1921 = vshrl.u32 %v1920, 7
      %v1922 = vsub.s32 %v1919, %v1921
      %v1923 = vrot.slane %v1915, %v1922
      %v1925 = vunpack.c.l.s4 1983009808
      %v1926 = vunpack.c.0.s8 %v1925
      %v1927 = vlaneseq
      %v1928 = vshrl.u32 %v1927, 7
      %v1929 = vsub.s32 %v1926, %v1928
      %v1930 = vrot.slane %v1916, %v1929
      %v1931 = vcombine.low %v1853, %v1859
      %v1932 = vcombine.high %v1853, %v1859
      %v1934 = vunpack.c.l.s4 1983009808
      %v1935 = vunpack.c.0.s8 %v1934
      %v1936 = vlaneseq
      %v1937 = vshrl.u32 %v1936, 7
      %v1938 = vsub.s32 %v1935, %v1937
      %v1939 = vrot.slane %v1931, %v1938
      %v1941 = vunpack.c.l.s4 1983009808
      %v1942 = vunpack.c.0.s8 %v1941
      %v1943 = vlaneseq
      %v1944 = vshrl.u32 %v1943, 7
      %v1945 = vsub.s32 %v1942, %v1944
      %v1946 = vrot.slane %v1932, %v1945
      %v1947 = vcombine.low %v1891, %v1907
      %v1948 = vcombine.high %v1891, %v1907
      %v1950 = vunpack.c.l.s4 1934713408
      %v1951 = vunpack.c.0.s8 %v1950
      %v1952 = vlaneseq
      %v1953 = vshrl.u32 %v1952, 7
      %v1954 = vsub.s32 %v1951, %v1953
      %v1955 = vrot.slane %v1947, %v1954
      %v1957 = vunpack.c.l.s4 1934713408
      %v1958 = vunpack.c.0.s8 %v1957
      %v1959 = vlaneseq
      %v1960 = vshrl.u32 %v1959, 7
      %v1961 = vsub.s32 %v1958, %v1960
      %v1962 = vrot.slane %v1948, %v1961
      %v1963 = vcombine.low %v1898, %v1914
      %v1964 = vcombine.high %v1898, %v1914
      %v1966 = vunpack.c.l.s4 1934713408
      %v1967 = vunpack.c.0.s8 %v1966
      %v1968 = vlaneseq
      %v1969 = vshrl.u32 %v1968, 7
      %v1970 = vsub.s32 %v1967, %v1969
      %v1971 = vrot.slane %v1963, %v1970
      %v1973 = vunpack.c.l.s4 1934713408
      %v1974 = vunpack.c.0.s8 %v1973
      %v1975 = vlaneseq
      %v1976 = vshrl.u32 %v1975, 7
      %v1977 = vsub.s32 %v1974, %v1976
      %v1978 = vrot.slane %v1964, %v1977
      %v1979 = vcombine.low %v1923, %v1939
      %v1980 = vcombine.high %v1923, %v1939
      %v1982 = vunpack.c.l.s4 1934713408
      %v1983 = vunpack.c.0.s8 %v1982
      %v1984 = vlaneseq
      %v1985 = vshrl.u32 %v1984, 7
      %v1986 = vsub.s32 %v1983, %v1985
      %v1987 = vrot.slane %v1979, %v1986
      %v1989 = vunpack.c.l.s4 1934713408
      %v1990 = vunpack.c.0.s8 %v1989
      %v1991 = vlaneseq
      %v1992 = vshrl.u32 %v1991, 7
      %v1993 = vsub.s32 %v1990, %v1992
      %v1994 = vrot.slane %v1980, %v1993
      %v1995 = vcombine.low %v1930, %v1946
      %v1996 = vcombine.high %v1930, %v1946
      %v1998 = vunpack.c.l.s4 1934713408
      %v1999 = vunpack.c.0.s8 %v1998
      %v2000 = vlaneseq
      %v2001 = vshrl.u32 %v2000, 7
      %v2002 = vsub.s32 %v1999, %v2001
      %v2003 = vrot.slane %v1995, %v2002
      %v2005 = vunpack.c.l.s4 1934713408
      %v2006 = vunpack.c.0.s8 %v2005
      %v2007 = vlaneseq
      %v2008 = vshrl.u32 %v2007, 7
      %v2009 = vsub.s32 %v2006, %v2008
      %v2010 = vrot.slane %v1996, %v2009
      %v2011 = vcombine.low %v1955, %v1987
      %v2012 = vcombine.high %v1955, %v1987
      %v2013 = vcombine.low %v1962, %v1994
      %v2014 = vcombine.high %v1962, %v1994
      %v2015 = vcombine.low %v1971, %v2003
      %v2016 = vcombine.high %v1971, %v2003
      %v2017 = vcombine.low %v1978, %v2010
      %v2018 = vcombine.high %v1978, %v2010
      %v2019 = vcombine.low %v1835, %v1866
      %v2020 = vcombine.high %v1835, %v1866
      %v2022 = vunpack.c.l.s4 1983009808
      %v2023 = vunpack.c.0.s8 %v2022
      %v2024 = vlaneseq
      %v2025 = vshrl.u32 %v2024, 7
      %v2026 = vsub.s32 %v2023, %v2025
      %v2027 = vrot.slane %v2019, %v2026
      %v2029 = vunpack.c.l.s4 1983009808
      %v2030 = vunpack.c.0.s8 %v2029
      %v2031 = vlaneseq
      %v2032 = vshrl.u32 %v2031, 7
      %v2033 = vsub.s32 %v2030, %v2032
      %v2034 = vrot.slane %v2020, %v2033
      %v2035 = vcombine.low %v1863, %v1869
      %v2036 = vcombine.high %v1863, %v1869
      %v2038 = vunpack.c.l.s4 1983009808
      %v2039 = vunpack.c.0.s8 %v2038
      %v2040 = vlaneseq
      %v2041 = vshrl.u32 %v2040, 7
      %v2042 = vsub.s32 %v2039, %v2041
      %v2043 = vrot.slane %v2035, %v2042
      %v2045 = vunpack.c.l.s4 1983009808
      %v2046 = vunpack.c.0.s8 %v2045
      %v2047 = vlaneseq
      %v2048 = vshrl.u32 %v2047, 7
      %v2049 = vsub.s32 %v2046, %v2048
      %v2050 = vrot.slane %v2036, %v2049
      %v2051 = vcombine.low %v1872, %v1878
      %v2052 = vcombine.high %v1872, %v1878
      %v2054 = vunpack.c.l.s4 1983009808
      %v2055 = vunpack.c.0.s8 %v2054
      %v2056 = vlaneseq
      %v2057 = vshrl.u32 %v2056, 7
      %v2058 = vsub.s32 %v2055, %v2057
      %v2059 = vrot.slane %v2051, %v2058
      %v2061 = vunpack.c.l.s4 1983009808
      %v2062 = vunpack.c.0.s8 %v2061
      %v2063 = vlaneseq
      %v2064 = vshrl.u32 %v2063, 7
      %v2065 = vsub.s32 %v2062, %v2064
      %v2066 = vrot.slane %v2052, %v2065
      %v2067 = vcombine.low %v1875, %v1881
      %v2068 = vcombine.high %v1875, %v1881
      %v2070 = vunpack.c.l.s4 1983009808
      %v2071 = vunpack.c.0.s8 %v2070
      %v2072 = vlaneseq
      %v2073 = vshrl.u32 %v2072, 7
      %v2074 = vsub.s32 %v2071, %v2073
      %v2075 = vrot.slane %v2067, %v2074
      %v2077 = vunpack.c.l.s4 1983009808
      %v2078 = vunpack.c.0.s8 %v2077
      %v2079 = vlaneseq
      %v2080 = vshrl.u32 %v2079, 7
      %v2081 = vsub.s32 %v2078, %v2080
      %v2082 = vrot.slane %v2068, %v2081
      %v2083 = vcombine.low %v2027, %v2043
      %v2084 = vcombine.high %v2027, %v2043
      %v2086 = vunpack.c.l.s4 1934713408
      %v2087 = vunpack.c.0.s8 %v2086
      %v2088 = vlaneseq
      %v2089 = vshrl.u32 %v2088, 7
      %v2090 = vsub.s32 %v2087, %v2089
      %v2091 = vrot.slane %v2083, %v2090
      %v2093 = vunpack.c.l.s4 1934713408
      %v2094 = vunpack.c.0.s8 %v2093
      %v2095 = vlaneseq
      %v2096 = vshrl.u32 %v2095, 7
      %v2097 = vsub.s32 %v2094, %v2096
      %v2098 = vrot.slane %v2084, %v2097
      %v2099 = vcombine.low %v2034, %v2050
      %v2100 = vcombine.high %v2034, %v2050
      %v2102 = vunpack.c.l.s4 1934713408
      %v2103 = vunpack.c.0.s8 %v2102
      %v2104 = vlaneseq
      %v2105 = vshrl.u32 %v2104, 7
      %v2106 = vsub.s32 %v2103, %v2105
      %v2107 = vrot.slane %v2099, %v2106
      %v2109 = vunpack.c.l.s4 1934713408
      %v2110 = vunpack.c.0.s8 %v2109
      %v2111 = vlaneseq
      %v2112 = vshrl.u32 %v2111, 7
      %v2113 = vsub.s32 %v2110, %v2112
      %v2114 = vrot.slane %v2100, %v2113
      %v2115 = vcombine.low %v2059, %v2075
      %v2116 = vcombine.high %v2059, %v2075
      %v2118 = vunpack.c.l.s4 1934713408
      %v2119 = vunpack.c.0.s8 %v2118
      %v2120 = vlaneseq
      %v2121 = vshrl.u32 %v2120, 7
      %v2122 = vsub.s32 %v2119, %v2121
      %v2123 = vrot.slane %v2115, %v2122
      %v2125 = vunpack.c.l.s4 1934713408
      %v2126 = vunpack.c.0.s8 %v2125
      %v2127 = vlaneseq
      %v2128 = vshrl.u32 %v2127, 7
      %v2129 = vsub.s32 %v2126, %v2128
      %v2130 = vrot.slane %v2116, %v2129
      %v2131 = vcombine.low %v2066, %v2082
      %v2132 = vcombine.high %v2066, %v2082
      %v2134 = vunpack.c.l.s4 1934713408
      %v2135 = vunpack.c.0.s8 %v2134
      %v2136 = vlaneseq
      %v2137 = vshrl.u32 %v2136, 7
      %v2138 = vsub.s32 %v2135, %v2137
      %v2139 = vrot.slane %v2131, %v2138
      %v2141 = vunpack.c.l.s4 1934713408
      %v2142 = vunpack.c.0.s8 %v2141
      %v2143 = vlaneseq
      %v2144 = vshrl.u32 %v2143, 7
      %v2145 = vsub.s32 %v2142, %v2144
      %v2146 = vrot.slane %v2132, %v2145
      %v2147 = vcombine.low %v2091, %v2123
      %v2148 = vcombine.high %v2091, %v2123
      %v2149 = vcombine.low %v2098, %v2130
      %v2150 = vcombine.high %v2098, %v2130
      %v2151 = vcombine.low %v2107, %v2139
      %v2152 = vcombine.high %v2107, %v2139
      %v2153 = vcombine.low %v2114, %v2146
      %v2154 = vcombine.high %v2114, %v2146
      %vm2171 = vcmask 1046528
      %v2172 = vrot.slane %v2011, 1
      %v2173 = vrot.slane %v2147, 1
      %v2174 = vsel %vm2171, %v2172, %v2173
      %v2175 = vrot.slane %v2012, 1
      %v2176 = vrot.slane %v2148, 1
      %v2177 = vsel %vm2171, %v2175, %v2176
      %v2178 = vrot.slane %v2013, 1
      %v2179 = vrot.slane %v2149, 1
      %v2180 = vsel %vm2171, %v2178, %v2179
      %v2181 = vrot.slane %v2014, 1
      %v2182 = vrot.slane %v2150, 1
      %v2183 = vsel %vm2171, %v2181, %v2182
      %v2184 = vrot.slane %v2015, 1
      %v2185 = vrot.slane %v2151, 1
      %v2186 = vsel %vm2171, %v2184, %v2185
      %v2187 = vrot.slane %v2016, 1
      %v2188 = vrot.slane %v2152, 1
      %v2189 = vsel %vm2171, %v2187, %v2188
      %v2190 = vrot.slane %v2017, 1
      %v2191 = vrot.slane %v2153, 1
      %v2192 = vsel %vm2171, %v2190, %v2191
      %v2193 = vrot.slane %v2018, 1
      %v2194 = vrot.slane %v2154, 1
      %v2195 = vsel %vm2171, %v2193, %v2194
      %v2212 = vadd.f32 %v1777, %v2174
      %v2213 = vadd.f32 %v1778, %v2173
      %v2214 = vadd.f32 %v1779, %v2177
      %v2215 = vadd.f32 %v1780, %v2176
      %v2216 = vadd.f32 %v1781, %v2180
      %v2217 = vadd.f32 %v1782, %v2179
      %v2218 = vadd.f32 %v1783, %v2183
      %v2219 = vadd.f32 %v1784, %v2182
      %v2220 = vadd.f32 %v1785, %v2186
      %v2221 = vadd.f32 %v1786, %v2185
      %v2222 = vadd.f32 %v1787, %v2189
      %v2223 = vadd.f32 %v1788, %v2188
      %v2224 = vadd.f32 %v1789, %v2192
      %v2225 = vadd.f32 %v1790, %v2191
      %v2226 = vadd.f32 %v1791, %v2195
      %v2227 = vadd.f32 %v1792, %v2194
      %s2228 = scalar_lea.vmem %s1, 16
      %v2229 = vld [vmem:[%s2228] sm:$0xf]
      %v2231 = vsel %vm525, %v2229, 0
      %2233 = vmatprep.subr.bf16.mxu0 0
      %2234 = vmatpush1.bf16.msra.mxu0 0
      %2235 = vmatprep.subr.bf16.mxu0 0
      %2236 = vmatpush1.bf16.msra.mxu0 0
      %2237 = vmatprep.subr.bf16.mxu0 0
      %2238 = vmatpush1.bf16.msra.mxu0 0
      %2239 = vmatprep.subr.bf16.mxu0 0
      %2240 = vmatpush1.bf16.msra.mxu0 0
      %2241 = vmatprep.subr.bf16.mxu0 0
      %2242 = vmatpush1.bf16.msra.mxu0 0
      %2243 = vmatprep.subr.bf16.mxu0 0
      %2244 = vmatpush1.bf16.msra.mxu0 0
      %2245 = vmatprep.subr.bf16.mxu0 0
      %2246 = vmatpush1.bf16.msra.mxu0 0
      %2247 = vmatprep.subr.bf16.mxu0 %v534
      %2248 = vmatpush1.bf16.msra.mxu0 %v531
      %2249 = vmatprep.subr.bf16.mxu0 0
      %2250 = vmatpush2.bf16.msra.mxu0 0
      %2251 = vmatprep.subr.bf16.mxu0 0
      %2252 = vmatpush2.bf16.msra.mxu0 0
      %2253 = vmatprep.subr.bf16.mxu0 0
      %2254 = vmatpush2.bf16.msra.mxu0 0
      %2255 = vmatprep.subr.bf16.mxu0 0
      %2256 = vmatpush2.bf16.msra.mxu0 0
      %2257 = vmatprep.subr.bf16.mxu0 0
      %2258 = vmatpush2.bf16.msra.mxu0 0
      %2259 = vmatprep.subr.bf16.mxu0 0
      %2260 = vmatpush2.bf16.msra.mxu0 0
      %2261 = vmatprep.subr.bf16.mxu0 0
      %2262 = vmatpush2.bf16.msra.mxu0 0
      %2263 = vmatprep.subr.bf16.mxu0 0
      %2264 = vmatpush2.bf16.msra.mxu0 0
      %2265 = vmatprep.mubr.bf16.mxu0 0
      %2266 = vmatmul.mubr.bf16.gmra.mxu0 %v2231
      %v2267 = vpop.f32.mrf.mxu0
      %v2268 = vadd.f32 0.0, %v2267
      %v2269 = vpop.f32.mrf.mxu0
      %v2270 = vadd.f32 0.0, %v2269
      %v2271 = vpop.f32.mrf.mxu0
      %v2272 = vpop.f32.mrf.mxu0
      %2273 = vdwg.mxu0
      %2275 = vrot.lane.b32.xlu0 %v2268, 112
      %v2276 = vpop.permute.xlu0 %2275
      %2278 = vrot.lane.b32.xlu0 %v2268, 96
      %v2279 = vpop.permute.xlu0 %2278
      %2281 = vrot.lane.b32.xlu0 %v2268, 80
      %v2282 = vpop.permute.xlu0 %2281
      %2284 = vrot.lane.b32.xlu0 %v2268, 64
      %v2285 = vpop.permute.xlu0 %2284
      %2287 = vrot.lane.b32.xlu0 %v2268, 48
      %v2288 = vpop.permute.xlu0 %2287
      %2290 = vrot.lane.b32.xlu0 %v2268, 32
      %v2291 = vpop.permute.xlu0 %2290
      %2293 = vrot.lane.b32.xlu0 %v2268, 16
      %v2294 = vpop.permute.xlu0 %2293
      %2297 = vrot.lane.b32.xlu0 %v2270, 112
      %v2298 = vpop.permute.xlu0 %2297
      %2300 = vrot.lane.b32.xlu0 %v2270, 96
      %v2301 = vpop.permute.xlu0 %2300
      %2303 = vrot.lane.b32.xlu0 %v2270, 80
      %v2304 = vpop.permute.xlu0 %2303
      %2306 = vrot.lane.b32.xlu0 %v2270, 64
      %v2307 = vpop.permute.xlu0 %2306
      %2309 = vrot.lane.b32.xlu0 %v2270, 48
      %v2310 = vpop.permute.xlu0 %2309
      %2312 = vrot.lane.b32.xlu0 %v2270, 32
      %v2313 = vpop.permute.xlu0 %2312
      %2315 = vrot.lane.b32.xlu0 %v2270, 16
      %v2316 = vpop.permute.xlu0 %2315
      %v2318 = vcombine.low %v2268, %v2279
      %v2319 = vcombine.high %v2268, %v2279
      %v2321 = vunpack.c.l.s4 1983009808
      %v2322 = vunpack.c.0.s8 %v2321
      %v2323 = vlaneseq
      %v2324 = vshrl.u32 %v2323, 7
      %v2325 = vsub.s32 %v2322, %v2324
      %v2326 = vrot.slane %v2318, %v2325
      %v2328 = vunpack.c.l.s4 1983009808
      %v2329 = vunpack.c.0.s8 %v2328
      %v2330 = vlaneseq
      %v2331 = vshrl.u32 %v2330, 7
      %v2332 = vsub.s32 %v2329, %v2331
      %v2333 = vrot.slane %v2319, %v2332
      %v2334 = vcombine.low %v2276, %v2282
      %v2335 = vcombine.high %v2276, %v2282
      %v2337 = vunpack.c.l.s4 1983009808
      %v2338 = vunpack.c.0.s8 %v2337
      %v2339 = vlaneseq
      %v2340 = vshrl.u32 %v2339, 7
      %v2341 = vsub.s32 %v2338, %v2340
      %v2342 = vrot.slane %v2334, %v2341
      %v2344 = vunpack.c.l.s4 1983009808
      %v2345 = vunpack.c.0.s8 %v2344
      %v2346 = vlaneseq
      %v2347 = vshrl.u32 %v2346, 7
      %v2348 = vsub.s32 %v2345, %v2347
      %v2349 = vrot.slane %v2335, %v2348
      %v2350 = vcombine.low %v2285, %v2291
      %v2351 = vcombine.high %v2285, %v2291
      %v2353 = vunpack.c.l.s4 1983009808
      %v2354 = vunpack.c.0.s8 %v2353
      %v2355 = vlaneseq
      %v2356 = vshrl.u32 %v2355, 7
      %v2357 = vsub.s32 %v2354, %v2356
      %v2358 = vrot.slane %v2350, %v2357
      %v2360 = vunpack.c.l.s4 1983009808
      %v2361 = vunpack.c.0.s8 %v2360
      %v2362 = vlaneseq
      %v2363 = vshrl.u32 %v2362, 7
      %v2364 = vsub.s32 %v2361, %v2363
      %v2365 = vrot.slane %v2351, %v2364
      %v2366 = vcombine.low %v2288, %v2294
      %v2367 = vcombine.high %v2288, %v2294
      %v2369 = vunpack.c.l.s4 1983009808
      %v2370 = vunpack.c.0.s8 %v2369
      %v2371 = vlaneseq
      %v2372 = vshrl.u32 %v2371, 7
      %v2373 = vsub.s32 %v2370, %v2372
      %v2374 = vrot.slane %v2366, %v2373
      %v2376 = vunpack.c.l.s4 1983009808
      %v2377 = vunpack.c.0.s8 %v2376
      %v2378 = vlaneseq
      %v2379 = vshrl.u32 %v2378, 7
      %v2380 = vsub.s32 %v2377, %v2379
      %v2381 = vrot.slane %v2367, %v2380
      %v2382 = vcombine.low %v2326, %v2342
      %v2383 = vcombine.high %v2326, %v2342
      %v2385 = vunpack.c.l.s4 1934713408
      %v2386 = vunpack.c.0.s8 %v2385
      %v2387 = vlaneseq
      %v2388 = vshrl.u32 %v2387, 7
      %v2389 = vsub.s32 %v2386, %v2388
      %v2390 = vrot.slane %v2382, %v2389
      %v2392 = vunpack.c.l.s4 1934713408
      %v2393 = vunpack.c.0.s8 %v2392
      %v2394 = vlaneseq
      %v2395 = vshrl.u32 %v2394, 7
      %v2396 = vsub.s32 %v2393, %v2395
      %v2397 = vrot.slane %v2383, %v2396
      %v2398 = vcombine.low %v2333, %v2349
      %v2399 = vcombine.high %v2333, %v2349
      %v2401 = vunpack.c.l.s4 1934713408
      %v2402 = vunpack.c.0.s8 %v2401
      %v2403 = vlaneseq
      %v2404 = vshrl.u32 %v2403, 7
      %v2405 = vsub.s32 %v2402, %v2404
      %v2406 = vrot.slane %v2398, %v2405
      %v2408 = vunpack.c.l.s4 1934713408
      %v2409 = vunpack.c.0.s8 %v2408
      %v2410 = vlaneseq
      %v2411 = vshrl.u32 %v2410, 7
      %v2412 = vsub.s32 %v2409, %v2411
      %v2413 = vrot.slane %v2399, %v2412
      %v2414 = vcombine.low %v2358, %v2374
      %v2415 = vcombine.high %v2358, %v2374
      %v2417 = vunpack.c.l.s4 1934713408
      %v2418 = vunpack.c.0.s8 %v2417
      %v2419 = vlaneseq
      %v2420 = vshrl.u32 %v2419, 7
      %v2421 = vsub.s32 %v2418, %v2420
      %v2422 = vrot.slane %v2414, %v2421
      %v2424 = vunpack.c.l.s4 1934713408
      %v2425 = vunpack.c.0.s8 %v2424
      %v2426 = vlaneseq
      %v2427 = vshrl.u32 %v2426, 7
      %v2428 = vsub.s32 %v2425, %v2427
      %v2429 = vrot.slane %v2415, %v2428
      %v2430 = vcombine.low %v2365, %v2381
      %v2431 = vcombine.high %v2365, %v2381
      %v2433 = vunpack.c.l.s4 1934713408
      %v2434 = vunpack.c.0.s8 %v2433
      %v2435 = vlaneseq
      %v2436 = vshrl.u32 %v2435, 7
      %v2437 = vsub.s32 %v2434, %v2436
      %v2438 = vrot.slane %v2430, %v2437
      %v2440 = vunpack.c.l.s4 1934713408
      %v2441 = vunpack.c.0.s8 %v2440
      %v2442 = vlaneseq
      %v2443 = vshrl.u32 %v2442, 7
      %v2444 = vsub.s32 %v2441, %v2443
      %v2445 = vrot.slane %v2431, %v2444
      %v2446 = vcombine.low %v2390, %v2422
      %v2447 = vcombine.high %v2390, %v2422
      %v2448 = vcombine.low %v2397, %v2429
      %v2449 = vcombine.high %v2397, %v2429
      %v2450 = vcombine.low %v2406, %v2438
      %v2451 = vcombine.high %v2406, %v2438
      %v2452 = vcombine.low %v2413, %v2445
      %v2453 = vcombine.high %v2413, %v2445
      %v2454 = vcombine.low %v2270, %v2301
      %v2455 = vcombine.high %v2270, %v2301
      %v2457 = vunpack.c.l.s4 1983009808
      %v2458 = vunpack.c.0.s8 %v2457
      %v2459 = vlaneseq
      %v2460 = vshrl.u32 %v2459, 7
      %v2461 = vsub.s32 %v2458, %v2460
      %v2462 = vrot.slane %v2454, %v2461
      %v2464 = vunpack.c.l.s4 1983009808
      %v2465 = vunpack.c.0.s8 %v2464
      %v2466 = vlaneseq
      %v2467 = vshrl.u32 %v2466, 7
      %v2468 = vsub.s32 %v2465, %v2467
      %v2469 = vrot.slane %v2455, %v2468
      %v2470 = vcombine.low %v2298, %v2304
      %v2471 = vcombine.high %v2298, %v2304
      %v2473 = vunpack.c.l.s4 1983009808
      %v2474 = vunpack.c.0.s8 %v2473
      %v2475 = vlaneseq
      %v2476 = vshrl.u32 %v2475, 7
      %v2477 = vsub.s32 %v2474, %v2476
      %v2478 = vrot.slane %v2470, %v2477
      %v2480 = vunpack.c.l.s4 1983009808
      %v2481 = vunpack.c.0.s8 %v2480
      %v2482 = vlaneseq
      %v2483 = vshrl.u32 %v2482, 7
      %v2484 = vsub.s32 %v2481, %v2483
      %v2485 = vrot.slane %v2471, %v2484
      %v2486 = vcombine.low %v2307, %v2313
      %v2487 = vcombine.high %v2307, %v2313
      %v2489 = vunpack.c.l.s4 1983009808
      %v2490 = vunpack.c.0.s8 %v2489
      %v2491 = vlaneseq
      %v2492 = vshrl.u32 %v2491, 7
      %v2493 = vsub.s32 %v2490, %v2492
      %v2494 = vrot.slane %v2486, %v2493
      %v2496 = vunpack.c.l.s4 1983009808
      %v2497 = vunpack.c.0.s8 %v2496
      %v2498 = vlaneseq
      %v2499 = vshrl.u32 %v2498, 7
      %v2500 = vsub.s32 %v2497, %v2499
      %v2501 = vrot.slane %v2487, %v2500
      %v2502 = vcombine.low %v2310, %v2316
      %v2503 = vcombine.high %v2310, %v2316
      %v2505 = vunpack.c.l.s4 1983009808
      %v2506 = vunpack.c.0.s8 %v2505
      %v2507 = vlaneseq
      %v2508 = vshrl.u32 %v2507, 7
      %v2509 = vsub.s32 %v2506, %v2508
      %v2510 = vrot.slane %v2502, %v2509
      %v2512 = vunpack.c.l.s4 1983009808
      %v2513 = vunpack.c.0.s8 %v2512
      %v2514 = vlaneseq
      %v2515 = vshrl.u32 %v2514, 7
      %v2516 = vsub.s32 %v2513, %v2515
      %v2517 = vrot.slane %v2503, %v2516
      %v2518 = vcombine.low %v2462, %v2478
      %v2519 = vcombine.high %v2462, %v2478
      %v2521 = vunpack.c.l.s4 1934713408
      %v2522 = vunpack.c.0.s8 %v2521
      %v2523 = vlaneseq
      %v2524 = vshrl.u32 %v2523, 7
      %v2525 = vsub.s32 %v2522, %v2524
      %v2526 = vrot.slane %v2518, %v2525
      %v2528 = vunpack.c.l.s4 1934713408
      %v2529 = vunpack.c.0.s8 %v2528
      %v2530 = vlaneseq
      %v2531 = vshrl.u32 %v2530, 7
      %v2532 = vsub.s32 %v2529, %v2531
      %v2533 = vrot.slane %v2519, %v2532
      %v2534 = vcombine.low %v2469, %v2485
      %v2535 = vcombine.high %v2469, %v2485
      %v2537 = vunpack.c.l.s4 1934713408
      %v2538 = vunpack.c.0.s8 %v2537
      %v2539 = vlaneseq
      %v2540 = vshrl.u32 %v2539, 7
      %v2541 = vsub.s32 %v2538, %v2540
      %v2542 = vrot.slane %v2534, %v2541
      %v2544 = vunpack.c.l.s4 1934713408
      %v2545 = vunpack.c.0.s8 %v2544
      %v2546 = vlaneseq
      %v2547 = vshrl.u32 %v2546, 7
      %v2548 = vsub.s32 %v2545, %v2547
      %v2549 = vrot.slane %v2535, %v2548
      %v2550 = vcombine.low %v2494, %v2510
      %v2551 = vcombine.high %v2494, %v2510
      %v2553 = vunpack.c.l.s4 1934713408
      %v2554 = vunpack.c.0.s8 %v2553
      %v2555 = vlaneseq
      %v2556 = vshrl.u32 %v2555, 7
      %v2557 = vsub.s32 %v2554, %v2556
      %v2558 = vrot.slane %v2550, %v2557
      %v2560 = vunpack.c.l.s4 1934713408
      %v2561 = vunpack.c.0.s8 %v2560
      %v2562 = vlaneseq
      %v2563 = vshrl.u32 %v2562, 7
      %v2564 = vsub.s32 %v2561, %v2563
      %v2565 = vrot.slane %v2551, %v2564
      %v2566 = vcombine.low %v2501, %v2517
      %v2567 = vcombine.high %v2501, %v2517
      %v2569 = vunpack.c.l.s4 1934713408
      %v2570 = vunpack.c.0.s8 %v2569
      %v2571 = vlaneseq
      %v2572 = vshrl.u32 %v2571, 7
      %v2573 = vsub.s32 %v2570, %v2572
      %v2574 = vrot.slane %v2566, %v2573
      %v2576 = vunpack.c.l.s4 1934713408
      %v2577 = vunpack.c.0.s8 %v2576
      %v2578 = vlaneseq
      %v2579 = vshrl.u32 %v2578, 7
      %v2580 = vsub.s32 %v2577, %v2579
      %v2581 = vrot.slane %v2567, %v2580
      %v2582 = vcombine.low %v2526, %v2558
      %v2583 = vcombine.high %v2526, %v2558
      %v2584 = vcombine.low %v2533, %v2565
      %v2585 = vcombine.high %v2533, %v2565
      %v2586 = vcombine.low %v2542, %v2574
      %v2587 = vcombine.high %v2542, %v2574
      %v2588 = vcombine.low %v2549, %v2581
      %v2589 = vcombine.high %v2549, %v2581
      %v2606 = vrot.slane %v2446, 1
      %v2607 = vrot.slane %v2582, 1
      %v2608 = vsel %vm2171, %v2606, %v2607
      %v2609 = vrot.slane %v2447, 1
      %v2610 = vrot.slane %v2583, 1
      %v2611 = vsel %vm2171, %v2609, %v2610
      %v2612 = vrot.slane %v2448, 1
      %v2613 = vrot.slane %v2584, 1
      %v2614 = vsel %vm2171, %v2612, %v2613
      %v2615 = vrot.slane %v2449, 1
      %v2616 = vrot.slane %v2585, 1
      %v2617 = vsel %vm2171, %v2615, %v2616
      %v2618 = vrot.slane %v2450, 1
      %v2619 = vrot.slane %v2586, 1
      %v2620 = vsel %vm2171, %v2618, %v2619
      %v2621 = vrot.slane %v2451, 1
      %v2622 = vrot.slane %v2587, 1
      %v2623 = vsel %vm2171, %v2621, %v2622
      %v2624 = vrot.slane %v2452, 1
      %v2625 = vrot.slane %v2588, 1
      %v2626 = vsel %vm2171, %v2624, %v2625
      %v2627 = vrot.slane %v2453, 1
      %v2628 = vrot.slane %v2589, 1
      %v2629 = vsel %vm2171, %v2627, %v2628
      %2630 = vrot.lane.b32.xlu0 %v2608, 127
      %v2631 = vpop.permute.xlu0 %2630
      %2632 = vrot.lane.b32.xlu0 %v2607, 127
      %v2633 = vpop.permute.xlu0 %2632
      %2634 = vrot.lane.b32.xlu0 %v2611, 127
      %v2635 = vpop.permute.xlu0 %2634
      %2636 = vrot.lane.b32.xlu0 %v2610, 127
      %v2637 = vpop.permute.xlu0 %2636
      %2638 = vrot.lane.b32.xlu0 %v2614, 127
      %v2639 = vpop.permute.xlu0 %2638
      %2640 = vrot.lane.b32.xlu0 %v2613, 127
      %v2641 = vpop.permute.xlu0 %2640
      %2642 = vrot.lane.b32.xlu0 %v2617, 127
      %v2643 = vpop.permute.xlu0 %2642
      %2644 = vrot.lane.b32.xlu0 %v2616, 127
      %v2645 = vpop.permute.xlu0 %2644
      %2646 = vrot.lane.b32.xlu0 %v2620, 127
      %v2647 = vpop.permute.xlu0 %2646
      %2648 = vrot.lane.b32.xlu0 %v2619, 127
      %v2649 = vpop.permute.xlu0 %2648
      %2650 = vrot.lane.b32.xlu0 %v2623, 127
      %v2651 = vpop.permute.xlu0 %2650
      %2652 = vrot.lane.b32.xlu0 %v2622, 127
      %v2653 = vpop.permute.xlu0 %2652
      %2654 = vrot.lane.b32.xlu0 %v2626, 127
      %v2655 = vpop.permute.xlu0 %2654
      %2656 = vrot.lane.b32.xlu0 %v2625, 127
      %v2657 = vpop.permute.xlu0 %2656
      %2658 = vrot.lane.b32.xlu0 %v2629, 127
      %v2659 = vpop.permute.xlu0 %2658
      %2660 = vrot.lane.b32.xlu0 %v2628, 127
      %v2661 = vpop.permute.xlu0 %2660
      %v2678 = vadd.f32 %v2212, %v2631
      %v2679 = vadd.f32 %v2213, %v2633
      %v2680 = vadd.f32 %v2214, %v2635
      %v2681 = vadd.f32 %v2215, %v2637
      %v2682 = vadd.f32 %v2216, %v2639
      %v2683 = vadd.f32 %v2217, %v2641
      %v2684 = vadd.f32 %v2218, %v2643
      %v2685 = vadd.f32 %v2219, %v2645
      %v2686 = vadd.f32 %v2220, %v2647
      %v2687 = vadd.f32 %v2221, %v2649
      %v2688 = vadd.f32 %v2222, %v2651
      %v2689 = vadd.f32 %v2223, %v2653
      %v2690 = vadd.f32 %v2224, %v2655
      %v2691 = vadd.f32 %v2225, %v2657
      %v2692 = vadd.f32 %v2226, %v2659
      %v2693 = vadd.f32 %v2227, %v2661
      %s2694 = scalar_lea.vmem %s1, 20
      %v2695 = vld [vmem:[%s2694] sm:$0xf]
      %v2697 = vsel %vm525, %v2695, 0
      %2699 = vmatprep.subr.bf16.mxu0 0
      %2700 = vmatpush1.bf16.msra.mxu0 0
      %2701 = vmatprep.subr.bf16.mxu0 0
      %2702 = vmatpush1.bf16.msra.mxu0 0
      %2703 = vmatprep.subr.bf16.mxu0 0
      %2704 = vmatpush1.bf16.msra.mxu0 0
      %2705 = vmatprep.subr.bf16.mxu0 0
      %2706 = vmatpush1.bf16.msra.mxu0 0
      %2707 = vmatprep.subr.bf16.mxu0 0
      %2708 = vmatpush1.bf16.msra.mxu0 0
      %2709 = vmatprep.subr.bf16.mxu0 0
      %2710 = vmatpush1.bf16.msra.mxu0 0
      %2711 = vmatprep.subr.bf16.mxu0 0
      %2712 = vmatpush1.bf16.msra.mxu0 0
      %2713 = vmatprep.subr.bf16.mxu0 %v534
      %2714 = vmatpush1.bf16.msra.mxu0 %v531
      %2715 = vmatprep.subr.bf16.mxu0 0
      %2716 = vmatpush2.bf16.msra.mxu0 0
      %2717 = vmatprep.subr.bf16.mxu0 0
      %2718 = vmatpush2.bf16.msra.mxu0 0
      %2719 = vmatprep.subr.bf16.mxu0 0
      %2720 = vmatpush2.bf16.msra.mxu0 0
      %2721 = vmatprep.subr.bf16.mxu0 0
      %2722 = vmatpush2.bf16.msra.mxu0 0
      %2723 = vmatprep.subr.bf16.mxu0 0
      %2724 = vmatpush2.bf16.msra.mxu0 0
      %2725 = vmatprep.subr.bf16.mxu0 0
      %2726 = vmatpush2.bf16.msra.mxu0 0
      %2727 = vmatprep.subr.bf16.mxu0 0
      %2728 = vmatpush2.bf16.msra.mxu0 0
      %2729 = vmatprep.subr.bf16.mxu0 0
      %2730 = vmatpush2.bf16.msra.mxu0 0
      %2731 = vmatprep.mubr.bf16.mxu0 0
      %2732 = vmatmul.mubr.bf16.gmra.mxu0 %v2697
      %v2733 = vpop.f32.mrf.mxu0
      %v2734 = vadd.f32 0.0, %v2733
      %v2735 = vpop.f32.mrf.mxu0
      %v2736 = vadd.f32 0.0, %v2735
      %v2737 = vpop.f32.mrf.mxu0
      %v2738 = vpop.f32.mrf.mxu0
      %2739 = vdwg.mxu0
      %2741 = vrot.lane.b32.xlu0 %v2734, 112
      %v2742 = vpop.permute.xlu0 %2741
      %2744 = vrot.lane.b32.xlu0 %v2734, 96
      %v2745 = vpop.permute.xlu0 %2744
      %2747 = vrot.lane.b32.xlu0 %v2734, 80
      %v2748 = vpop.permute.xlu0 %2747
      %2750 = vrot.lane.b32.xlu0 %v2734, 64
      %v2751 = vpop.permute.xlu0 %2750
      %2753 = vrot.lane.b32.xlu0 %v2734, 48
      %v2754 = vpop.permute.xlu0 %2753
      %2756 = vrot.lane.b32.xlu0 %v2734, 32
      %v2757 = vpop.permute.xlu0 %2756
      %2759 = vrot.lane.b32.xlu0 %v2734, 16
      %v2760 = vpop.permute.xlu0 %2759
      %2763 = vrot.lane.b32.xlu0 %v2736, 112
      %v2764 = vpop.permute.xlu0 %2763
      %2766 = vrot.lane.b32.xlu0 %v2736, 96
      %v2767 = vpop.permute.xlu0 %2766
      %2769 = vrot.lane.b32.xlu0 %v2736, 80
      %v2770 = vpop.permute.xlu0 %2769
      %2772 = vrot.lane.b32.xlu0 %v2736, 64
      %v2773 = vpop.permute.xlu0 %2772
      %2775 = vrot.lane.b32.xlu0 %v2736, 48
      %v2776 = vpop.permute.xlu0 %2775
      %2778 = vrot.lane.b32.xlu0 %v2736, 32
      %v2779 = vpop.permute.xlu0 %2778
      %2781 = vrot.lane.b32.xlu0 %v2736, 16
      %v2782 = vpop.permute.xlu0 %2781
      %v2784 = vcombine.low %v2734, %v2745
      %v2785 = vcombine.high %v2734, %v2745
      %v2787 = vunpack.c.l.s4 1983009808
      %v2788 = vunpack.c.0.s8 %v2787
      %v2789 = vlaneseq
      %v2790 = vshrl.u32 %v2789, 7
      %v2791 = vsub.s32 %v2788, %v2790
      %v2792 = vrot.slane %v2784, %v2791
      %v2794 = vunpack.c.l.s4 1983009808
      %v2795 = vunpack.c.0.s8 %v2794
      %v2796 = vlaneseq
      %v2797 = vshrl.u32 %v2796, 7
      %v2798 = vsub.s32 %v2795, %v2797
      %v2799 = vrot.slane %v2785, %v2798
      %v2800 = vcombine.low %v2742, %v2748
      %v2801 = vcombine.high %v2742, %v2748
      %v2803 = vunpack.c.l.s4 1983009808
      %v2804 = vunpack.c.0.s8 %v2803
      %v2805 = vlaneseq
      %v2806 = vshrl.u32 %v2805, 7
      %v2807 = vsub.s32 %v2804, %v2806
      %v2808 = vrot.slane %v2800, %v2807
      %v2810 = vunpack.c.l.s4 1983009808
      %v2811 = vunpack.c.0.s8 %v2810
      %v2812 = vlaneseq
      %v2813 = vshrl.u32 %v2812, 7
      %v2814 = vsub.s32 %v2811, %v2813
      %v2815 = vrot.slane %v2801, %v2814
      %v2816 = vcombine.low %v2751, %v2757
      %v2817 = vcombine.high %v2751, %v2757
      %v2819 = vunpack.c.l.s4 1983009808
      %v2820 = vunpack.c.0.s8 %v2819
      %v2821 = vlaneseq
      %v2822 = vshrl.u32 %v2821, 7
      %v2823 = vsub.s32 %v2820, %v2822
      %v2824 = vrot.slane %v2816, %v2823
      %v2826 = vunpack.c.l.s4 1983009808
      %v2827 = vunpack.c.0.s8 %v2826
      %v2828 = vlaneseq
      %v2829 = vshrl.u32 %v2828, 7
      %v2830 = vsub.s32 %v2827, %v2829
      %v2831 = vrot.slane %v2817, %v2830
      %v2832 = vcombine.low %v2754, %v2760
      %v2833 = vcombine.high %v2754, %v2760
      %v2835 = vunpack.c.l.s4 1983009808
      %v2836 = vunpack.c.0.s8 %v2835
      %v2837 = vlaneseq
      %v2838 = vshrl.u32 %v2837, 7
      %v2839 = vsub.s32 %v2836, %v2838
      %v2840 = vrot.slane %v2832, %v2839
      %v2842 = vunpack.c.l.s4 1983009808
      %v2843 = vunpack.c.0.s8 %v2842
      %v2844 = vlaneseq
      %v2845 = vshrl.u32 %v2844, 7
      %v2846 = vsub.s32 %v2843, %v2845
      %v2847 = vrot.slane %v2833, %v2846
      %v2848 = vcombine.low %v2792, %v2808
      %v2849 = vcombine.high %v2792, %v2808
      %v2851 = vunpack.c.l.s4 1934713408
      %v2852 = vunpack.c.0.s8 %v2851
      %v2853 = vlaneseq
      %v2854 = vshrl.u32 %v2853, 7
      %v2855 = vsub.s32 %v2852, %v2854
      %v2856 = vrot.slane %v2848, %v2855
      %v2858 = vunpack.c.l.s4 1934713408
      %v2859 = vunpack.c.0.s8 %v2858
      %v2860 = vlaneseq
      %v2861 = vshrl.u32 %v2860, 7
      %v2862 = vsub.s32 %v2859, %v2861
      %v2863 = vrot.slane %v2849, %v2862
      %v2864 = vcombine.low %v2799, %v2815
      %v2865 = vcombine.high %v2799, %v2815
      %v2867 = vunpack.c.l.s4 1934713408
      %v2868 = vunpack.c.0.s8 %v2867
      %v2869 = vlaneseq
      %v2870 = vshrl.u32 %v2869, 7
      %v2871 = vsub.s32 %v2868, %v2870
      %v2872 = vrot.slane %v2864, %v2871
      %v2874 = vunpack.c.l.s4 1934713408
      %v2875 = vunpack.c.0.s8 %v2874
      %v2876 = vlaneseq
      %v2877 = vshrl.u32 %v2876, 7
      %v2878 = vsub.s32 %v2875, %v2877
      %v2879 = vrot.slane %v2865, %v2878
      %v2880 = vcombine.low %v2824, %v2840
      %v2881 = vcombine.high %v2824, %v2840
      %v2883 = vunpack.c.l.s4 1934713408
      %v2884 = vunpack.c.0.s8 %v2883
      %v2885 = vlaneseq
      %v2886 = vshrl.u32 %v2885, 7
      %v2887 = vsub.s32 %v2884, %v2886
      %v2888 = vrot.slane %v2880, %v2887
      %v2890 = vunpack.c.l.s4 1934713408
      %v2891 = vunpack.c.0.s8 %v2890
      %v2892 = vlaneseq
      %v2893 = vshrl.u32 %v2892, 7
      %v2894 = vsub.s32 %v2891, %v2893
      %v2895 = vrot.slane %v2881, %v2894
      %v2896 = vcombine.low %v2831, %v2847
      %v2897 = vcombine.high %v2831, %v2847
      %v2899 = vunpack.c.l.s4 1934713408
      %v2900 = vunpack.c.0.s8 %v2899
      %v2901 = vlaneseq
      %v2902 = vshrl.u32 %v2901, 7
      %v2903 = vsub.s32 %v2900, %v2902
      %v2904 = vrot.slane %v2896, %v2903
      %v2906 = vunpack.c.l.s4 1934713408
      %v2907 = vunpack.c.0.s8 %v2906
      %v2908 = vlaneseq
      %v2909 = vshrl.u32 %v2908, 7
      %v2910 = vsub.s32 %v2907, %v2909
      %v2911 = vrot.slane %v2897, %v2910
      %v2912 = vcombine.low %v2856, %v2888
      %v2913 = vcombine.high %v2856, %v2888
      %v2914 = vcombine.low %v2863, %v2895
      %v2915 = vcombine.high %v2863, %v2895
      %v2916 = vcombine.low %v2872, %v2904
      %v2917 = vcombine.high %v2872, %v2904
      %v2918 = vcombine.low %v2879, %v2911
      %v2919 = vcombine.high %v2879, %v2911
      %v2920 = vcombine.low %v2736, %v2767
      %v2921 = vcombine.high %v2736, %v2767
      %v2923 = vunpack.c.l.s4 1983009808
      %v2924 = vunpack.c.0.s8 %v2923
      %v2925 = vlaneseq
      %v2926 = vshrl.u32 %v2925, 7
      %v2927 = vsub.s32 %v2924, %v2926
      %v2928 = vrot.slane %v2920, %v2927
      %v2930 = vunpack.c.l.s4 1983009808
      %v2931 = vunpack.c.0.s8 %v2930
      %v2932 = vlaneseq
      %v2933 = vshrl.u32 %v2932, 7
      %v2934 = vsub.s32 %v2931, %v2933
      %v2935 = vrot.slane %v2921, %v2934
      %v2936 = vcombine.low %v2764, %v2770
      %v2937 = vcombine.high %v2764, %v2770
      %v2939 = vunpack.c.l.s4 1983009808
      %v2940 = vunpack.c.0.s8 %v2939
      %v2941 = vlaneseq
      %v2942 = vshrl.u32 %v2941, 7
      %v2943 = vsub.s32 %v2940, %v2942
      %v2944 = vrot.slane %v2936, %v2943
      %v2946 = vunpack.c.l.s4 1983009808
      %v2947 = vunpack.c.0.s8 %v2946
      %v2948 = vlaneseq
      %v2949 = vshrl.u32 %v2948, 7
      %v2950 = vsub.s32 %v2947, %v2949
      %v2951 = vrot.slane %v2937, %v2950
      %v2952 = vcombine.low %v2773, %v2779
      %v2953 = vcombine.high %v2773, %v2779
      %v2955 = vunpack.c.l.s4 1983009808
      %v2956 = vunpack.c.0.s8 %v2955
      %v2957 = vlaneseq
      %v2958 = vshrl.u32 %v2957, 7
      %v2959 = vsub.s32 %v2956, %v2958
      %v2960 = vrot.slane %v2952, %v2959
      %v2962 = vunpack.c.l.s4 1983009808
      %v2963 = vunpack.c.0.s8 %v2962
      %v2964 = vlaneseq
      %v2965 = vshrl.u32 %v2964, 7
      %v2966 = vsub.s32 %v2963, %v2965
      %v2967 = vrot.slane %v2953, %v2966
      %v2968 = vcombine.low %v2776, %v2782
      %v2969 = vcombine.high %v2776, %v2782
      %v2971 = vunpack.c.l.s4 1983009808
      %v2972 = vunpack.c.0.s8 %v2971
      %v2973 = vlaneseq
      %v2974 = vshrl.u32 %v2973, 7
      %v2975 = vsub.s32 %v2972, %v2974
      %v2976 = vrot.slane %v2968, %v2975
      %v2978 = vunpack.c.l.s4 1983009808
      %v2979 = vunpack.c.0.s8 %v2978
      %v2980 = vlaneseq
      %v2981 = vshrl.u32 %v2980, 7
      %v2982 = vsub.s32 %v2979, %v2981
      %v2983 = vrot.slane %v2969, %v2982
      %v2984 = vcombine.low %v2928, %v2944
      %v2985 = vcombine.high %v2928, %v2944
      %v2987 = vunpack.c.l.s4 1934713408
      %v2988 = vunpack.c.0.s8 %v2987
      %v2989 = vlaneseq
      %v2990 = vshrl.u32 %v2989, 7
      %v2991 = vsub.s32 %v2988, %v2990
      %v2992 = vrot.slane %v2984, %v2991
      %v2994 = vunpack.c.l.s4 1934713408
      %v2995 = vunpack.c.0.s8 %v2994
      %v2996 = vlaneseq
      %v2997 = vshrl.u32 %v2996, 7
      %v2998 = vsub.s32 %v2995, %v2997
      %v2999 = vrot.slane %v2985, %v2998
      %v3000 = vcombine.low %v2935, %v2951
      %v3001 = vcombine.high %v2935, %v2951
      %v3003 = vunpack.c.l.s4 1934713408
      %v3004 = vunpack.c.0.s8 %v3003
      %v3005 = vlaneseq
      %v3006 = vshrl.u32 %v3005, 7
      %v3007 = vsub.s32 %v3004, %v3006
      %v3008 = vrot.slane %v3000, %v3007
      %v3010 = vunpack.c.l.s4 1934713408
      %v3011 = vunpack.c.0.s8 %v3010
      %v3012 = vlaneseq
      %v3013 = vshrl.u32 %v3012, 7
      %v3014 = vsub.s32 %v3011, %v3013
      %v3015 = vrot.slane %v3001, %v3014
      %v3016 = vcombine.low %v2960, %v2976
      %v3017 = vcombine.high %v2960, %v2976
      %v3019 = vunpack.c.l.s4 1934713408
      %v3020 = vunpack.c.0.s8 %v3019
      %v3021 = vlaneseq
      %v3022 = vshrl.u32 %v3021, 7
      %v3023 = vsub.s32 %v3020, %v3022
      %v3024 = vrot.slane %v3016, %v3023
      %v3026 = vunpack.c.l.s4 1934713408
      %v3027 = vunpack.c.0.s8 %v3026
      %v3028 = vlaneseq
      %v3029 = vshrl.u32 %v3028, 7
      %v3030 = vsub.s32 %v3027, %v3029
      %v3031 = vrot.slane %v3017, %v3030
      %v3032 = vcombine.low %v2967, %v2983
      %v3033 = vcombine.high %v2967, %v2983
      %v3035 = vunpack.c.l.s4 1934713408
      %v3036 = vunpack.c.0.s8 %v3035
      %v3037 = vlaneseq
      %v3038 = vshrl.u32 %v3037, 7
      %v3039 = vsub.s32 %v3036, %v3038
      %v3040 = vrot.slane %v3032, %v3039
      %v3042 = vunpack.c.l.s4 1934713408
      %v3043 = vunpack.c.0.s8 %v3042
      %v3044 = vlaneseq
      %v3045 = vshrl.u32 %v3044, 7
      %v3046 = vsub.s32 %v3043, %v3045
      %v3047 = vrot.slane %v3033, %v3046
      %v3048 = vcombine.low %v2992, %v3024
      %v3049 = vcombine.high %v2992, %v3024
      %v3050 = vcombine.low %v2999, %v3031
      %v3051 = vcombine.high %v2999, %v3031
      %v3052 = vcombine.low %v3008, %v3040
      %v3053 = vcombine.high %v3008, %v3040
      %v3054 = vcombine.low %v3015, %v3047
      %v3055 = vcombine.high %v3015, %v3047
      %v3072 = vrot.slane %v2912, 1
      %v3073 = vrot.slane %v3048, 1
      %v3074 = vsel %vm2171, %v3072, %v3073
      %v3075 = vrot.slane %v2913, 1
      %v3076 = vrot.slane %v3049, 1
      %v3077 = vsel %vm2171, %v3075, %v3076
      %v3078 = vrot.slane %v2914, 1
      %v3079 = vrot.slane %v3050, 1
      %v3080 = vsel %vm2171, %v3078, %v3079
      %v3081 = vrot.slane %v2915, 1
      %v3082 = vrot.slane %v3051, 1
      %v3083 = vsel %vm2171, %v3081, %v3082
      %v3084 = vrot.slane %v2916, 1
      %v3085 = vrot.slane %v3052, 1
      %v3086 = vsel %vm2171, %v3084, %v3085
      %v3087 = vrot.slane %v2917, 1
      %v3088 = vrot.slane %v3053, 1
      %v3089 = vsel %vm2171, %v3087, %v3088
      %v3090 = vrot.slane %v2918, 1
      %v3091 = vrot.slane %v3054, 1
      %v3092 = vsel %vm2171, %v3090, %v3091
      %v3093 = vrot.slane %v2919, 1
      %v3094 = vrot.slane %v3055, 1
      %v3095 = vsel %vm2171, %v3093, %v3094
      %3096 = vrot.lane.b32.xlu0 %v3074, 126
      %v3097 = vpop.permute.xlu0 %3096
      %3098 = vrot.lane.b32.xlu0 %v3073, 126
      %v3099 = vpop.permute.xlu0 %3098
      %3100 = vrot.lane.b32.xlu0 %v3077, 126
      %v3101 = vpop.permute.xlu0 %3100
      %3102 = vrot.lane.b32.xlu0 %v3076, 126
      %v3103 = vpop.permute.xlu0 %3102
      %3104 = vrot.lane.b32.xlu0 %v3080, 126
      %v3105 = vpop.permute.xlu0 %3104
      %3106 = vrot.lane.b32.xlu0 %v3079, 126
      %v3107 = vpop.permute.xlu0 %3106
      %3108 = vrot.lane.b32.xlu0 %v3083, 126
      %v3109 = vpop.permute.xlu0 %3108
      %3110 = vrot.lane.b32.xlu0 %v3082, 126
      %v3111 = vpop.permute.xlu0 %3110
      %3112 = vrot.lane.b32.xlu0 %v3086, 126
      %v3113 = vpop.permute.xlu0 %3112
      %3114 = vrot.lane.b32.xlu0 %v3085, 126
      %v3115 = vpop.permute.xlu0 %3114
      %3116 = vrot.lane.b32.xlu0 %v3089, 126
      %v3117 = vpop.permute.xlu0 %3116
      %3118 = vrot.lane.b32.xlu0 %v3088, 126
      %v3119 = vpop.permute.xlu0 %3118
      %3120 = vrot.lane.b32.xlu0 %v3092, 126
      %v3121 = vpop.permute.xlu0 %3120
      %3122 = vrot.lane.b32.xlu0 %v3091, 126
      %v3123 = vpop.permute.xlu0 %3122
      %3124 = vrot.lane.b32.xlu0 %v3095, 126
      %v3125 = vpop.permute.xlu0 %3124
      %3126 = vrot.lane.b32.xlu0 %v3094, 126
      %v3127 = vpop.permute.xlu0 %3126
      %v3144 = vadd.f32 %v2678, %v3097
      %v3145 = vadd.f32 %v2679, %v3099
      %v3146 = vadd.f32 %v2680, %v3101
      %v3147 = vadd.f32 %v2681, %v3103
      %v3148 = vadd.f32 %v2682, %v3105
      %v3149 = vadd.f32 %v2683, %v3107
      %v3150 = vadd.f32 %v2684, %v3109
      %v3151 = vadd.f32 %v2685, %v3111
      %v3152 = vadd.f32 %v2686, %v3113
      %v3153 = vadd.f32 %v2687, %v3115
      %v3154 = vadd.f32 %v2688, %v3117
      %v3155 = vadd.f32 %v2689, %v3119
      %v3156 = vadd.f32 %v2690, %v3121
      %v3157 = vadd.f32 %v2691, %v3123
      %v3158 = vadd.f32 %v2692, %v3125
      %v3159 = vadd.f32 %v2693, %v3127
      %s3160 = scalar_lea.vmem %s1, 24
      %v3161 = vld [vmem:[%s3160] sm:$0xf]
      %v3163 = vsel %vm525, %v3161, 0
      %3165 = vmatprep.subr.bf16.mxu0 0
      %3166 = vmatpush1.bf16.msra.mxu0 0
      %3167 = vmatprep.subr.bf16.mxu0 0
      %3168 = vmatpush1.bf16.msra.mxu0 0
      %3169 = vmatprep.subr.bf16.mxu0 0
      %3170 = vmatpush1.bf16.msra.mxu0 0
      %3171 = vmatprep.subr.bf16.mxu0 0
      %3172 = vmatpush1.bf16.msra.mxu0 0
      %3173 = vmatprep.subr.bf16.mxu0 0
      %3174 = vmatpush1.bf16.msra.mxu0 0
      %3175 = vmatprep.subr.bf16.mxu0 0
      %3176 = vmatpush1.bf16.msra.mxu0 0
      %3177 = vmatprep.subr.bf16.mxu0 0
      %3178 = vmatpush1.bf16.msra.mxu0 0
      %3179 = vmatprep.subr.bf16.mxu0 %v534
      %3180 = vmatpush1.bf16.msra.mxu0 %v531
      %3181 = vmatprep.subr.bf16.mxu0 0
      %3182 = vmatpush2.bf16.msra.mxu0 0
      %3183 = vmatprep.subr.bf16.mxu0 0
      %3184 = vmatpush2.bf16.msra.mxu0 0
      %3185 = vmatprep.subr.bf16.mxu0 0
      %3186 = vmatpush2.bf16.msra.mxu0 0
      %3187 = vmatprep.subr.bf16.mxu0 0
      %3188 = vmatpush2.bf16.msra.mxu0 0
      %3189 = vmatprep.subr.bf16.mxu0 0
      %3190 = vmatpush2.bf16.msra.mxu0 0
      %3191 = vmatprep.subr.bf16.mxu0 0
      %3192 = vmatpush2.bf16.msra.mxu0 0
      %3193 = vmatprep.subr.bf16.mxu0 0
      %3194 = vmatpush2.bf16.msra.mxu0 0
      %3195 = vmatprep.subr.bf16.mxu0 0
      %3196 = vmatpush2.bf16.msra.mxu0 0
      %3197 = vmatprep.mubr.bf16.mxu0 0
      %3198 = vmatmul.mubr.bf16.gmra.mxu0 %v3163
      %v3199 = vpop.f32.mrf.mxu0
      %v3200 = vadd.f32 0.0, %v3199
      %v3201 = vpop.f32.mrf.mxu0
      %v3202 = vadd.f32 0.0, %v3201
      %v3203 = vpop.f32.mrf.mxu0
      %v3204 = vpop.f32.mrf.mxu0
      %3205 = vdwg.mxu0
      %3207 = vrot.lane.b32.xlu0 %v3200, 112
      %v3208 = vpop.permute.xlu0 %3207
      %3210 = vrot.lane.b32.xlu0 %v3200, 96
      %v3211 = vpop.permute.xlu0 %3210
      %3213 = vrot.lane.b32.xlu0 %v3200, 80
      %v3214 = vpop.permute.xlu0 %3213
      %3216 = vrot.lane.b32.xlu0 %v3200, 64
      %v3217 = vpop.permute.xlu0 %3216
      %3219 = vrot.lane.b32.xlu0 %v3200, 48
      %v3220 = vpop.permute.xlu0 %3219
      %3222 = vrot.lane.b32.xlu0 %v3200, 32
      %v3223 = vpop.permute.xlu0 %3222
      %3225 = vrot.lane.b32.xlu0 %v3200, 16
      %v3226 = vpop.permute.xlu0 %3225
      %3229 = vrot.lane.b32.xlu0 %v3202, 112
      %v3230 = vpop.permute.xlu0 %3229
      %3232 = vrot.lane.b32.xlu0 %v3202, 96
      %v3233 = vpop.permute.xlu0 %3232
      %3235 = vrot.lane.b32.xlu0 %v3202, 80
      %v3236 = vpop.permute.xlu0 %3235
      %3238 = vrot.lane.b32.xlu0 %v3202, 64
      %v3239 = vpop.permute.xlu0 %3238
      %3241 = vrot.lane.b32.xlu0 %v3202, 48
      %v3242 = vpop.permute.xlu0 %3241
      %3244 = vrot.lane.b32.xlu0 %v3202, 32
      %v3245 = vpop.permute.xlu0 %3244
      %3247 = vrot.lane.b32.xlu0 %v3202, 16
      %v3248 = vpop.permute.xlu0 %3247
      %v3250 = vcombine.low %v3200, %v3211
      %v3251 = vcombine.high %v3200, %v3211
      %v3253 = vunpack.c.l.s4 1983009808
      %v3254 = vunpack.c.0.s8 %v3253
      %v3255 = vlaneseq
      %v3256 = vshrl.u32 %v3255, 7
      %v3257 = vsub.s32 %v3254, %v3256
      %v3258 = vrot.slane %v3250, %v3257
      %v3260 = vunpack.c.l.s4 1983009808
      %v3261 = vunpack.c.0.s8 %v3260
      %v3262 = vlaneseq
      %v3263 = vshrl.u32 %v3262, 7
      %v3264 = vsub.s32 %v3261, %v3263
      %v3265 = vrot.slane %v3251, %v3264
      %v3266 = vcombine.low %v3208, %v3214
      %v3267 = vcombine.high %v3208, %v3214
      %v3269 = vunpack.c.l.s4 1983009808
      %v3270 = vunpack.c.0.s8 %v3269
      %v3271 = vlaneseq
      %v3272 = vshrl.u32 %v3271, 7
      %v3273 = vsub.s32 %v3270, %v3272
      %v3274 = vrot.slane %v3266, %v3273
      %v3276 = vunpack.c.l.s4 1983009808
      %v3277 = vunpack.c.0.s8 %v3276
      %v3278 = vlaneseq
      %v3279 = vshrl.u32 %v3278, 7
      %v3280 = vsub.s32 %v3277, %v3279
      %v3281 = vrot.slane %v3267, %v3280
      %v3282 = vcombine.low %v3217, %v3223
      %v3283 = vcombine.high %v3217, %v3223
      %v3285 = vunpack.c.l.s4 1983009808
      %v3286 = vunpack.c.0.s8 %v3285
      %v3287 = vlaneseq
      %v3288 = vshrl.u32 %v3287, 7
      %v3289 = vsub.s32 %v3286, %v3288
      %v3290 = vrot.slane %v3282, %v3289
      %v3292 = vunpack.c.l.s4 1983009808
      %v3293 = vunpack.c.0.s8 %v3292
      %v3294 = vlaneseq
      %v3295 = vshrl.u32 %v3294, 7
      %v3296 = vsub.s32 %v3293, %v3295
      %v3297 = vrot.slane %v3283, %v3296
      %v3298 = vcombine.low %v3220, %v3226
      %v3299 = vcombine.high %v3220, %v3226
      %v3301 = vunpack.c.l.s4 1983009808
      %v3302 = vunpack.c.0.s8 %v3301
      %v3303 = vlaneseq
      %v3304 = vshrl.u32 %v3303, 7
      %v3305 = vsub.s32 %v3302, %v3304
      %v3306 = vrot.slane %v3298, %v3305
      %v3308 = vunpack.c.l.s4 1983009808
      %v3309 = vunpack.c.0.s8 %v3308
      %v3310 = vlaneseq
      %v3311 = vshrl.u32 %v3310, 7
      %v3312 = vsub.s32 %v3309, %v3311
      %v3313 = vrot.slane %v3299, %v3312
      %v3314 = vcombine.low %v3258, %v3274
      %v3315 = vcombine.high %v3258, %v3274
      %v3317 = vunpack.c.l.s4 1934713408
      %v3318 = vunpack.c.0.s8 %v3317
      %v3319 = vlaneseq
      %v3320 = vshrl.u32 %v3319, 7
      %v3321 = vsub.s32 %v3318, %v3320
      %v3322 = vrot.slane %v3314, %v3321
      %v3324 = vunpack.c.l.s4 1934713408
      %v3325 = vunpack.c.0.s8 %v3324
      %v3326 = vlaneseq
      %v3327 = vshrl.u32 %v3326, 7
      %v3328 = vsub.s32 %v3325, %v3327
      %v3329 = vrot.slane %v3315, %v3328
      %v3330 = vcombine.low %v3265, %v3281
      %v3331 = vcombine.high %v3265, %v3281
      %v3333 = vunpack.c.l.s4 1934713408
      %v3334 = vunpack.c.0.s8 %v3333
      %v3335 = vlaneseq
      %v3336 = vshrl.u32 %v3335, 7
      %v3337 = vsub.s32 %v3334, %v3336
      %v3338 = vrot.slane %v3330, %v3337
      %v3340 = vunpack.c.l.s4 1934713408
      %v3341 = vunpack.c.0.s8 %v3340
      %v3342 = vlaneseq
      %v3343 = vshrl.u32 %v3342, 7
      %v3344 = vsub.s32 %v3341, %v3343
      %v3345 = vrot.slane %v3331, %v3344
      %v3346 = vcombine.low %v3290, %v3306
      %v3347 = vcombine.high %v3290, %v3306
      %v3349 = vunpack.c.l.s4 1934713408
      %v3350 = vunpack.c.0.s8 %v3349
      %v3351 = vlaneseq
      %v3352 = vshrl.u32 %v3351, 7
      %v3353 = vsub.s32 %v3350, %v3352
      %v3354 = vrot.slane %v3346, %v3353
      %v3356 = vunpack.c.l.s4 1934713408
      %v3357 = vunpack.c.0.s8 %v3356
      %v3358 = vlaneseq
      %v3359 = vshrl.u32 %v3358, 7
      %v3360 = vsub.s32 %v3357, %v3359
      %v3361 = vrot.slane %v3347, %v3360
      %v3362 = vcombine.low %v3297, %v3313
      %v3363 = vcombine.high %v3297, %v3313
      %v3365 = vunpack.c.l.s4 1934713408
      %v3366 = vunpack.c.0.s8 %v3365
      %v3367 = vlaneseq
      %v3368 = vshrl.u32 %v3367, 7
      %v3369 = vsub.s32 %v3366, %v3368
      %v3370 = vrot.slane %v3362, %v3369
      %v3372 = vunpack.c.l.s4 1934713408
      %v3373 = vunpack.c.0.s8 %v3372
      %v3374 = vlaneseq
      %v3375 = vshrl.u32 %v3374, 7
      %v3376 = vsub.s32 %v3373, %v3375
      %v3377 = vrot.slane %v3363, %v3376
      %v3378 = vcombine.low %v3322, %v3354
      %v3379 = vcombine.high %v3322, %v3354
      %v3380 = vcombine.low %v3329, %v3361
      %v3381 = vcombine.high %v3329, %v3361
      %v3382 = vcombine.low %v3338, %v3370
      %v3383 = vcombine.high %v3338, %v3370
      %v3384 = vcombine.low %v3345, %v3377
      %v3385 = vcombine.high %v3345, %v3377
      %v3386 = vcombine.low %v3202, %v3233
      %v3387 = vcombine.high %v3202, %v3233
      %v3389 = vunpack.c.l.s4 1983009808
      %v3390 = vunpack.c.0.s8 %v3389
      %v3391 = vlaneseq
      %v3392 = vshrl.u32 %v3391, 7
      %v3393 = vsub.s32 %v3390, %v3392
      %v3394 = vrot.slane %v3386, %v3393
      %v3396 = vunpack.c.l.s4 1983009808
      %v3397 = vunpack.c.0.s8 %v3396
      %v3398 = vlaneseq
      %v3399 = vshrl.u32 %v3398, 7
      %v3400 = vsub.s32 %v3397, %v3399
      %v3401 = vrot.slane %v3387, %v3400
      %v3402 = vcombine.low %v3230, %v3236
      %v3403 = vcombine.high %v3230, %v3236
      %v3405 = vunpack.c.l.s4 1983009808
      %v3406 = vunpack.c.0.s8 %v3405
      %v3407 = vlaneseq
      %v3408 = vshrl.u32 %v3407, 7
      %v3409 = vsub.s32 %v3406, %v3408
      %v3410 = vrot.slane %v3402, %v3409
      %v3412 = vunpack.c.l.s4 1983009808
      %v3413 = vunpack.c.0.s8 %v3412
      %v3414 = vlaneseq
      %v3415 = vshrl.u32 %v3414, 7
      %v3416 = vsub.s32 %v3413, %v3415
      %v3417 = vrot.slane %v3403, %v3416
      %v3418 = vcombine.low %v3239, %v3245
      %v3419 = vcombine.high %v3239, %v3245
      %v3421 = vunpack.c.l.s4 1983009808
      %v3422 = vunpack.c.0.s8 %v3421
      %v3423 = vlaneseq
      %v3424 = vshrl.u32 %v3423, 7
      %v3425 = vsub.s32 %v3422, %v3424
      %v3426 = vrot.slane %v3418, %v3425
      %v3428 = vunpack.c.l.s4 1983009808
      %v3429 = vunpack.c.0.s8 %v3428
      %v3430 = vlaneseq
      %v3431 = vshrl.u32 %v3430, 7
      %v3432 = vsub.s32 %v3429, %v3431
      %v3433 = vrot.slane %v3419, %v3432
      %v3434 = vcombine.low %v3242, %v3248
      %v3435 = vcombine.high %v3242, %v3248
      %v3437 = vunpack.c.l.s4 1983009808
      %v3438 = vunpack.c.0.s8 %v3437
      %v3439 = vlaneseq
      %v3440 = vshrl.u32 %v3439, 7
      %v3441 = vsub.s32 %v3438, %v3440
      %v3442 = vrot.slane %v3434, %v3441
      %v3444 = vunpack.c.l.s4 1983009808
      %v3445 = vunpack.c.0.s8 %v3444
      %v3446 = vlaneseq
      %v3447 = vshrl.u32 %v3446, 7
      %v3448 = vsub.s32 %v3445, %v3447
      %v3449 = vrot.slane %v3435, %v3448
      %v3450 = vcombine.low %v3394, %v3410
      %v3451 = vcombine.high %v3394, %v3410
      %v3453 = vunpack.c.l.s4 1934713408
      %v3454 = vunpack.c.0.s8 %v3453
      %v3455 = vlaneseq
      %v3456 = vshrl.u32 %v3455, 7
      %v3457 = vsub.s32 %v3454, %v3456
      %v3458 = vrot.slane %v3450, %v3457
      %v3460 = vunpack.c.l.s4 1934713408
      %v3461 = vunpack.c.0.s8 %v3460
      %v3462 = vlaneseq
      %v3463 = vshrl.u32 %v3462, 7
      %v3464 = vsub.s32 %v3461, %v3463
      %v3465 = vrot.slane %v3451, %v3464
      %v3466 = vcombine.low %v3401, %v3417
      %v3467 = vcombine.high %v3401, %v3417
      %v3469 = vunpack.c.l.s4 1934713408
      %v3470 = vunpack.c.0.s8 %v3469
      %v3471 = vlaneseq
      %v3472 = vshrl.u32 %v3471, 7
      %v3473 = vsub.s32 %v3470, %v3472
      %v3474 = vrot.slane %v3466, %v3473
      %v3476 = vunpack.c.l.s4 1934713408
      %v3477 = vunpack.c.0.s8 %v3476
      %v3478 = vlaneseq
      %v3479 = vshrl.u32 %v3478, 7
      %v3480 = vsub.s32 %v3477, %v3479
      %v3481 = vrot.slane %v3467, %v3480
      %v3482 = vcombine.low %v3426, %v3442
      %v3483 = vcombine.high %v3426, %v3442
      %v3485 = vunpack.c.l.s4 1934713408
      %v3486 = vunpack.c.0.s8 %v3485
      %v3487 = vlaneseq
      %v3488 = vshrl.u32 %v3487, 7
      %v3489 = vsub.s32 %v3486, %v3488
      %v3490 = vrot.slane %v3482, %v3489
      %v3492 = vunpack.c.l.s4 1934713408
      %v3493 = vunpack.c.0.s8 %v3492
      %v3494 = vlaneseq
      %v3495 = vshrl.u32 %v3494, 7
      %v3496 = vsub.s32 %v3493, %v3495
      %v3497 = vrot.slane %v3483, %v3496
      %v3498 = vcombine.low %v3433, %v3449
      %v3499 = vcombine.high %v3433, %v3449
      %v3501 = vunpack.c.l.s4 1934713408
      %v3502 = vunpack.c.0.s8 %v3501
      %v3503 = vlaneseq
      %v3504 = vshrl.u32 %v3503, 7
      %v3505 = vsub.s32 %v3502, %v3504
      %v3506 = vrot.slane %v3498, %v3505
      %v3508 = vunpack.c.l.s4 1934713408
      %v3509 = vunpack.c.0.s8 %v3508
      %v3510 = vlaneseq
      %v3511 = vshrl.u32 %v3510, 7
      %v3512 = vsub.s32 %v3509, %v3511
      %v3513 = vrot.slane %v3499, %v3512
      %v3514 = vcombine.low %v3458, %v3490
      %v3515 = vcombine.high %v3458, %v3490
      %v3516 = vcombine.low %v3465, %v3497
      %v3517 = vcombine.high %v3465, %v3497
      %v3518 = vcombine.low %v3474, %v3506
      %v3519 = vcombine.high %v3474, %v3506
      %v3520 = vcombine.low %v3481, %v3513
      %v3521 = vcombine.high %v3481, %v3513
      %vm3538 = vcmask 1045504
      %v3539 = vrot.slane %v3378, 2
      %v3540 = vrot.slane %v3514, 2
      %v3541 = vsel %vm3538, %v3539, %v3540
      %v3542 = vrot.slane %v3379, 2
      %v3543 = vrot.slane %v3515, 2
      %v3544 = vsel %vm3538, %v3542, %v3543
      %v3545 = vrot.slane %v3380, 2
      %v3546 = vrot.slane %v3516, 2
      %v3547 = vsel %vm3538, %v3545, %v3546
      %v3548 = vrot.slane %v3381, 2
      %v3549 = vrot.slane %v3517, 2
      %v3550 = vsel %vm3538, %v3548, %v3549
      %v3551 = vrot.slane %v3382, 2
      %v3552 = vrot.slane %v3518, 2
      %v3553 = vsel %vm3538, %v3551, %v3552
      %v3554 = vrot.slane %v3383, 2
      %v3555 = vrot.slane %v3519, 2
      %v3556 = vsel %vm3538, %v3554, %v3555
      %v3557 = vrot.slane %v3384, 2
      %v3558 = vrot.slane %v3520, 2
      %v3559 = vsel %vm3538, %v3557, %v3558
      %v3560 = vrot.slane %v3385, 2
      %v3561 = vrot.slane %v3521, 2
      %v3562 = vsel %vm3538, %v3560, %v3561
      %v3579 = vadd.f32 %v3144, %v3541
      %v3580 = vadd.f32 %v3145, %v3540
      %v3581 = vadd.f32 %v3146, %v3544
      %v3582 = vadd.f32 %v3147, %v3543
      %v3583 = vadd.f32 %v3148, %v3547
      %v3584 = vadd.f32 %v3149, %v3546
      %v3585 = vadd.f32 %v3150, %v3550
      %v3586 = vadd.f32 %v3151, %v3549
      %v3587 = vadd.f32 %v3152, %v3553
      %v3588 = vadd.f32 %v3153, %v3552
      %v3589 = vadd.f32 %v3154, %v3556
      %v3590 = vadd.f32 %v3155, %v3555
      %v3591 = vadd.f32 %v3156, %v3559
      %v3592 = vadd.f32 %v3157, %v3558
      %v3593 = vadd.f32 %v3158, %v3562
      %v3594 = vadd.f32 %v3159, %v3561
      %s3595 = scalar_lea.vmem %s1, 28
      %v3596 = vld [vmem:[%s3595] sm:$0xf]
      %v3598 = vsel %vm525, %v3596, 0
      %3600 = vmatprep.subr.bf16.mxu0 0
      %3601 = vmatpush1.bf16.msra.mxu0 0
      %3602 = vmatprep.subr.bf16.mxu0 0
      %3603 = vmatpush1.bf16.msra.mxu0 0
      %3604 = vmatprep.subr.bf16.mxu0 0
      %3605 = vmatpush1.bf16.msra.mxu0 0
      %3606 = vmatprep.subr.bf16.mxu0 0
      %3607 = vmatpush1.bf16.msra.mxu0 0
      %3608 = vmatprep.subr.bf16.mxu0 0
      %3609 = vmatpush1.bf16.msra.mxu0 0
      %3610 = vmatprep.subr.bf16.mxu0 0
      %3611 = vmatpush1.bf16.msra.mxu0 0
      %3612 = vmatprep.subr.bf16.mxu0 0
      %3613 = vmatpush1.bf16.msra.mxu0 0
      %3614 = vmatprep.subr.bf16.mxu0 %v534
      %3615 = vmatpush1.bf16.msra.mxu0 %v531
      %3616 = vmatprep.subr.bf16.mxu0 0
      %3617 = vmatpush2.bf16.msra.mxu0 0
      %3618 = vmatprep.subr.bf16.mxu0 0
      %3619 = vmatpush2.bf16.msra.mxu0 0
      %3620 = vmatprep.subr.bf16.mxu0 0
      %3621 = vmatpush2.bf16.msra.mxu0 0
      %3622 = vmatprep.subr.bf16.mxu0 0
      %3623 = vmatpush2.bf16.msra.mxu0 0
      %3624 = vmatprep.subr.bf16.mxu0 0
      %3625 = vmatpush2.bf16.msra.mxu0 0
      %3626 = vmatprep.subr.bf16.mxu0 0
      %3627 = vmatpush2.bf16.msra.mxu0 0
      %3628 = vmatprep.subr.bf16.mxu0 0
      %3629 = vmatpush2.bf16.msra.mxu0 0
      %3630 = vmatprep.subr.bf16.mxu0 0
      %3631 = vmatpush2.bf16.msra.mxu0 0
      %3632 = vmatprep.mubr.bf16.mxu0 0
      %3633 = vmatmul.mubr.bf16.gmra.mxu0 %v3598
      %v3634 = vpop.f32.mrf.mxu0
      %v3635 = vadd.f32 0.0, %v3634
      %v3636 = vpop.f32.mrf.mxu0
      %v3637 = vadd.f32 0.0, %v3636
      %v3638 = vpop.f32.mrf.mxu0
      %v3639 = vpop.f32.mrf.mxu0
      %3640 = vdwg.mxu0
      %3642 = vrot.lane.b32.xlu0 %v3635, 112
      %v3643 = vpop.permute.xlu0 %3642
      %3645 = vrot.lane.b32.xlu0 %v3635, 96
      %v3646 = vpop.permute.xlu0 %3645
      %3648 = vrot.lane.b32.xlu0 %v3635, 80
      %v3649 = vpop.permute.xlu0 %3648
      %3651 = vrot.lane.b32.xlu0 %v3635, 64
      %v3652 = vpop.permute.xlu0 %3651
      %3654 = vrot.lane.b32.xlu0 %v3635, 48
      %v3655 = vpop.permute.xlu0 %3654
      %3657 = vrot.lane.b32.xlu0 %v3635, 32
      %v3658 = vpop.permute.xlu0 %3657
      %3660 = vrot.lane.b32.xlu0 %v3635, 16
      %v3661 = vpop.permute.xlu0 %3660
      %3664 = vrot.lane.b32.xlu0 %v3637, 112
      %v3665 = vpop.permute.xlu0 %3664
      %3667 = vrot.lane.b32.xlu0 %v3637, 96
      %v3668 = vpop.permute.xlu0 %3667
      %3670 = vrot.lane.b32.xlu0 %v3637, 80
      %v3671 = vpop.permute.xlu0 %3670
      %3673 = vrot.lane.b32.xlu0 %v3637, 64
      %v3674 = vpop.permute.xlu0 %3673
      %3676 = vrot.lane.b32.xlu0 %v3637, 48
      %v3677 = vpop.permute.xlu0 %3676
      %3679 = vrot.lane.b32.xlu0 %v3637, 32
      %v3680 = vpop.permute.xlu0 %3679
      %3682 = vrot.lane.b32.xlu0 %v3637, 16
      %v3683 = vpop.permute.xlu0 %3682
      %v3685 = vcombine.low %v3635, %v3646
      %v3686 = vcombine.high %v3635, %v3646
      %v3688 = vunpack.c.l.s4 1983009808
      %v3689 = vunpack.c.0.s8 %v3688
      %v3690 = vlaneseq
      %v3691 = vshrl.u32 %v3690, 7
      %v3692 = vsub.s32 %v3689, %v3691
      %v3693 = vrot.slane %v3685, %v3692
      %v3695 = vunpack.c.l.s4 1983009808
      %v3696 = vunpack.c.0.s8 %v3695
      %v3697 = vlaneseq
      %v3698 = vshrl.u32 %v3697, 7
      %v3699 = vsub.s32 %v3696, %v3698
      %v3700 = vrot.slane %v3686, %v3699
      %v3701 = vcombine.low %v3643, %v3649
      %v3702 = vcombine.high %v3643, %v3649
      %v3704 = vunpack.c.l.s4 1983009808
      %v3705 = vunpack.c.0.s8 %v3704
      %v3706 = vlaneseq
      %v3707 = vshrl.u32 %v3706, 7
      %v3708 = vsub.s32 %v3705, %v3707
      %v3709 = vrot.slane %v3701, %v3708
      %v3711 = vunpack.c.l.s4 1983009808
      %v3712 = vunpack.c.0.s8 %v3711
      %v3713 = vlaneseq
      %v3714 = vshrl.u32 %v3713, 7
      %v3715 = vsub.s32 %v3712, %v3714
      %v3716 = vrot.slane %v3702, %v3715
      %v3717 = vcombine.low %v3652, %v3658
      %v3718 = vcombine.high %v3652, %v3658
      %v3720 = vunpack.c.l.s4 1983009808
      %v3721 = vunpack.c.0.s8 %v3720
      %v3722 = vlaneseq
      %v3723 = vshrl.u32 %v3722, 7
      %v3724 = vsub.s32 %v3721, %v3723
      %v3725 = vrot.slane %v3717, %v3724
      %v3727 = vunpack.c.l.s4 1983009808
      %v3728 = vunpack.c.0.s8 %v3727
      %v3729 = vlaneseq
      %v3730 = vshrl.u32 %v3729, 7
      %v3731 = vsub.s32 %v3728, %v3730
      %v3732 = vrot.slane %v3718, %v3731
      %v3733 = vcombine.low %v3655, %v3661
      %v3734 = vcombine.high %v3655, %v3661
      %v3736 = vunpack.c.l.s4 1983009808
      %v3737 = vunpack.c.0.s8 %v3736
      %v3738 = vlaneseq
      %v3739 = vshrl.u32 %v3738, 7
      %v3740 = vsub.s32 %v3737, %v3739
      %v3741 = vrot.slane %v3733, %v3740
      %v3743 = vunpack.c.l.s4 1983009808
      %v3744 = vunpack.c.0.s8 %v3743
      %v3745 = vlaneseq
      %v3746 = vshrl.u32 %v3745, 7
      %v3747 = vsub.s32 %v3744, %v3746
      %v3748 = vrot.slane %v3734, %v3747
      %v3749 = vcombine.low %v3693, %v3709
      %v3750 = vcombine.high %v3693, %v3709
      %v3752 = vunpack.c.l.s4 1934713408
      %v3753 = vunpack.c.0.s8 %v3752
      %v3754 = vlaneseq
      %v3755 = vshrl.u32 %v3754, 7
      %v3756 = vsub.s32 %v3753, %v3755
      %v3757 = vrot.slane %v3749, %v3756
      %v3759 = vunpack.c.l.s4 1934713408
      %v3760 = vunpack.c.0.s8 %v3759
      %v3761 = vlaneseq
      %v3762 = vshrl.u32 %v3761, 7
      %v3763 = vsub.s32 %v3760, %v3762
      %v3764 = vrot.slane %v3750, %v3763
      %v3765 = vcombine.low %v3700, %v3716
      %v3766 = vcombine.high %v3700, %v3716
      %v3768 = vunpack.c.l.s4 1934713408
      %v3769 = vunpack.c.0.s8 %v3768
      %v3770 = vlaneseq
      %v3771 = vshrl.u32 %v3770, 7
      %v3772 = vsub.s32 %v3769, %v3771
      %v3773 = vrot.slane %v3765, %v3772
      %v3775 = vunpack.c.l.s4 1934713408
      %v3776 = vunpack.c.0.s8 %v3775
      %v3777 = vlaneseq
      %v3778 = vshrl.u32 %v3777, 7
      %v3779 = vsub.s32 %v3776, %v3778
      %v3780 = vrot.slane %v3766, %v3779
      %v3781 = vcombine.low %v3725, %v3741
      %v3782 = vcombine.high %v3725, %v3741
      %v3784 = vunpack.c.l.s4 1934713408
      %v3785 = vunpack.c.0.s8 %v3784
      %v3786 = vlaneseq
      %v3787 = vshrl.u32 %v3786, 7
      %v3788 = vsub.s32 %v3785, %v3787
      %v3789 = vrot.slane %v3781, %v3788
      %v3791 = vunpack.c.l.s4 1934713408
      %v3792 = vunpack.c.0.s8 %v3791
      %v3793 = vlaneseq
      %v3794 = vshrl.u32 %v3793, 7
      %v3795 = vsub.s32 %v3792, %v3794
      %v3796 = vrot.slane %v3782, %v3795
      %v3797 = vcombine.low %v3732, %v3748
      %v3798 = vcombine.high %v3732, %v3748
      %v3800 = vunpack.c.l.s4 1934713408
      %v3801 = vunpack.c.0.s8 %v3800
      %v3802 = vlaneseq
      %v3803 = vshrl.u32 %v3802, 7
      %v3804 = vsub.s32 %v3801, %v3803
      %v3805 = vrot.slane %v3797, %v3804
      %v3807 = vunpack.c.l.s4 1934713408
      %v3808 = vunpack.c.0.s8 %v3807
      %v3809 = vlaneseq
      %v3810 = vshrl.u32 %v3809, 7
      %v3811 = vsub.s32 %v3808, %v3810
      %v3812 = vrot.slane %v3798, %v3811
      %v3813 = vcombine.low %v3757, %v3789
      %v3814 = vcombine.high %v3757, %v3789
      %v3815 = vcombine.low %v3764, %v3796
      %v3816 = vcombine.high %v3764, %v3796
      %v3817 = vcombine.low %v3773, %v3805
      %v3818 = vcombine.high %v3773, %v3805
      %v3819 = vcombine.low %v3780, %v3812
      %v3820 = vcombine.high %v3780, %v3812
      %v3821 = vcombine.low %v3637, %v3668
      %v3822 = vcombine.high %v3637, %v3668
      %v3824 = vunpack.c.l.s4 1983009808
      %v3825 = vunpack.c.0.s8 %v3824
      %v3826 = vlaneseq
      %v3827 = vshrl.u32 %v3826, 7
      %v3828 = vsub.s32 %v3825, %v3827
      %v3829 = vrot.slane %v3821, %v3828
      %v3831 = vunpack.c.l.s4 1983009808
      %v3832 = vunpack.c.0.s8 %v3831
      %v3833 = vlaneseq
      %v3834 = vshrl.u32 %v3833, 7
      %v3835 = vsub.s32 %v3832, %v3834
      %v3836 = vrot.slane %v3822, %v3835
      %v3837 = vcombine.low %v3665, %v3671
      %v3838 = vcombine.high %v3665, %v3671
      %v3840 = vunpack.c.l.s4 1983009808
      %v3841 = vunpack.c.0.s8 %v3840
      %v3842 = vlaneseq
      %v3843 = vshrl.u32 %v3842, 7
      %v3844 = vsub.s32 %v3841, %v3843
      %v3845 = vrot.slane %v3837, %v3844
      %v3847 = vunpack.c.l.s4 1983009808
      %v3848 = vunpack.c.0.s8 %v3847
      %v3849 = vlaneseq
      %v3850 = vshrl.u32 %v3849, 7
      %v3851 = vsub.s32 %v3848, %v3850
      %v3852 = vrot.slane %v3838, %v3851
      %v3853 = vcombine.low %v3674, %v3680
      %v3854 = vcombine.high %v3674, %v3680
      %v3856 = vunpack.c.l.s4 1983009808
      %v3857 = vunpack.c.0.s8 %v3856
      %v3858 = vlaneseq
      %v3859 = vshrl.u32 %v3858, 7
      %v3860 = vsub.s32 %v3857, %v3859
      %v3861 = vrot.slane %v3853, %v3860
      %v3863 = vunpack.c.l.s4 1983009808
      %v3864 = vunpack.c.0.s8 %v3863
      %v3865 = vlaneseq
      %v3866 = vshrl.u32 %v3865, 7
      %v3867 = vsub.s32 %v3864, %v3866
      %v3868 = vrot.slane %v3854, %v3867
      %v3869 = vcombine.low %v3677, %v3683
      %v3870 = vcombine.high %v3677, %v3683
      %v3872 = vunpack.c.l.s4 1983009808
      %v3873 = vunpack.c.0.s8 %v3872
      %v3874 = vlaneseq
      %v3875 = vshrl.u32 %v3874, 7
      %v3876 = vsub.s32 %v3873, %v3875
      %v3877 = vrot.slane %v3869, %v3876
      %v3879 = vunpack.c.l.s4 1983009808
      %v3880 = vunpack.c.0.s8 %v3879
      %v3881 = vlaneseq
      %v3882 = vshrl.u32 %v3881, 7
      %v3883 = vsub.s32 %v3880, %v3882
      %v3884 = vrot.slane %v3870, %v3883
      %v3885 = vcombine.low %v3829, %v3845
      %v3886 = vcombine.high %v3829, %v3845
      %v3888 = vunpack.c.l.s4 1934713408
      %v3889 = vunpack.c.0.s8 %v3888
      %v3890 = vlaneseq
      %v3891 = vshrl.u32 %v3890, 7
      %v3892 = vsub.s32 %v3889, %v3891
      %v3893 = vrot.slane %v3885, %v3892
      %v3895 = vunpack.c.l.s4 1934713408
      %v3896 = vunpack.c.0.s8 %v3895
      %v3897 = vlaneseq
      %v3898 = vshrl.u32 %v3897, 7
      %v3899 = vsub.s32 %v3896, %v3898
      %v3900 = vrot.slane %v3886, %v3899
      %v3901 = vcombine.low %v3836, %v3852
      %v3902 = vcombine.high %v3836, %v3852
      %v3904 = vunpack.c.l.s4 1934713408
      %v3905 = vunpack.c.0.s8 %v3904
      %v3906 = vlaneseq
      %v3907 = vshrl.u32 %v3906, 7
      %v3908 = vsub.s32 %v3905, %v3907
      %v3909 = vrot.slane %v3901, %v3908
      %v3911 = vunpack.c.l.s4 1934713408
      %v3912 = vunpack.c.0.s8 %v3911
      %v3913 = vlaneseq
      %v3914 = vshrl.u32 %v3913, 7
      %v3915 = vsub.s32 %v3912, %v3914
      %v3916 = vrot.slane %v3902, %v3915
      %v3917 = vcombine.low %v3861, %v3877
      %v3918 = vcombine.high %v3861, %v3877
      %v3920 = vunpack.c.l.s4 1934713408
      %v3921 = vunpack.c.0.s8 %v3920
      %v3922 = vlaneseq
      %v3923 = vshrl.u32 %v3922, 7
      %v3924 = vsub.s32 %v3921, %v3923
      %v3925 = vrot.slane %v3917, %v3924
      %v3927 = vunpack.c.l.s4 1934713408
      %v3928 = vunpack.c.0.s8 %v3927
      %v3929 = vlaneseq
      %v3930 = vshrl.u32 %v3929, 7
      %v3931 = vsub.s32 %v3928, %v3930
      %v3932 = vrot.slane %v3918, %v3931
      %v3933 = vcombine.low %v3868, %v3884
      %v3934 = vcombine.high %v3868, %v3884
      %v3936 = vunpack.c.l.s4 1934713408
      %v3937 = vunpack.c.0.s8 %v3936
      %v3938 = vlaneseq
      %v3939 = vshrl.u32 %v3938, 7
      %v3940 = vsub.s32 %v3937, %v3939
      %v3941 = vrot.slane %v3933, %v3940
      %v3943 = vunpack.c.l.s4 1934713408
      %v3944 = vunpack.c.0.s8 %v3943
      %v3945 = vlaneseq
      %v3946 = vshrl.u32 %v3945, 7
      %v3947 = vsub.s32 %v3944, %v3946
      %v3948 = vrot.slane %v3934, %v3947
      %v3949 = vcombine.low %v3893, %v3925
      %v3950 = vcombine.high %v3893, %v3925
      %v3951 = vcombine.low %v3900, %v3932
      %v3952 = vcombine.high %v3900, %v3932
      %v3953 = vcombine.low %v3909, %v3941
      %v3954 = vcombine.high %v3909, %v3941
      %v3955 = vcombine.low %v3916, %v3948
      %v3956 = vcombine.high %v3916, %v3948
      %v3973 = vrot.slane %v3813, 2
      %v3974 = vrot.slane %v3949, 2
      %v3975 = vsel %vm3538, %v3973, %v3974
      %v3976 = vrot.slane %v3814, 2
      %v3977 = vrot.slane %v3950, 2
      %v3978 = vsel %vm3538, %v3976, %v3977
      %v3979 = vrot.slane %v3815, 2
      %v3980 = vrot.slane %v3951, 2
      %v3981 = vsel %vm3538, %v3979, %v3980
      %v3982 = vrot.slane %v3816, 2
      %v3983 = vrot.slane %v3952, 2
      %v3984 = vsel %vm3538, %v3982, %v3983
      %v3985 = vrot.slane %v3817, 2
      %v3986 = vrot.slane %v3953, 2
      %v3987 = vsel %vm3538, %v3985, %v3986
      %v3988 = vrot.slane %v3818, 2
      %v3989 = vrot.slane %v3954, 2
      %v3990 = vsel %vm3538, %v3988, %v3989
      %v3991 = vrot.slane %v3819, 2
      %v3992 = vrot.slane %v3955, 2
      %v3993 = vsel %vm3538, %v3991, %v3992
      %v3994 = vrot.slane %v3820, 2
      %v3995 = vrot.slane %v3956, 2
      %v3996 = vsel %vm3538, %v3994, %v3995
      %3997 = vrot.lane.b32.xlu0 %v3975, 127
      %v3998 = vpop.permute.xlu0 %3997
      %3999 = vrot.lane.b32.xlu0 %v3974, 127
      %v4000 = vpop.permute.xlu0 %3999
      %4001 = vrot.lane.b32.xlu0 %v3978, 127
      %v4002 = vpop.permute.xlu0 %4001
      %4003 = vrot.lane.b32.xlu0 %v3977, 127
      %v4004 = vpop.permute.xlu0 %4003
      %4005 = vrot.lane.b32.xlu0 %v3981, 127
      %v4006 = vpop.permute.xlu0 %4005
      %4007 = vrot.lane.b32.xlu0 %v3980, 127
      %v4008 = vpop.permute.xlu0 %4007
      %4009 = vrot.lane.b32.xlu0 %v3984, 127
      %v4010 = vpop.permute.xlu0 %4009
      %4011 = vrot.lane.b32.xlu0 %v3983, 127
      %v4012 = vpop.permute.xlu0 %4011
      %4013 = vrot.lane.b32.xlu0 %v3987, 127
      %v4014 = vpop.permute.xlu0 %4013
      %4015 = vrot.lane.b32.xlu0 %v3986, 127
      %v4016 = vpop.permute.xlu0 %4015
      %4017 = vrot.lane.b32.xlu0 %v3990, 127
      %v4018 = vpop.permute.xlu0 %4017
      %4019 = vrot.lane.b32.xlu0 %v3989, 127
      %v4020 = vpop.permute.xlu0 %4019
      %4021 = vrot.lane.b32.xlu0 %v3993, 127
      %v4022 = vpop.permute.xlu0 %4021
      %4023 = vrot.lane.b32.xlu0 %v3992, 127
      %v4024 = vpop.permute.xlu0 %4023
      %4025 = vrot.lane.b32.xlu0 %v3996, 127
      %v4026 = vpop.permute.xlu0 %4025
      %4027 = vrot.lane.b32.xlu0 %v3995, 127
      %v4028 = vpop.permute.xlu0 %4027
      %v4045 = vadd.f32 %v3579, %v3998
      %v4046 = vadd.f32 %v3580, %v4000
      %v4047 = vadd.f32 %v3581, %v4002
      %v4048 = vadd.f32 %v3582, %v4004
      %v4049 = vadd.f32 %v3583, %v4006
      %v4050 = vadd.f32 %v3584, %v4008
      %v4051 = vadd.f32 %v3585, %v4010
      %v4052 = vadd.f32 %v3586, %v4012
      %v4053 = vadd.f32 %v3587, %v4014
      %v4054 = vadd.f32 %v3588, %v4016
      %v4055 = vadd.f32 %v3589, %v4018
      %v4056 = vadd.f32 %v3590, %v4020
      %v4057 = vadd.f32 %v3591, %v4022
      %v4058 = vadd.f32 %v3592, %v4024
      %v4059 = vadd.f32 %v3593, %v4026
      %v4060 = vadd.f32 %v3594, %v4028
      %s4061 = scalar_lea.vmem %s1, 32
      %v4062 = vld [vmem:[%s4061] sm:$0xf]
      %v4064 = vsel %vm525, %v4062, 0
      %4066 = vmatprep.subr.bf16.mxu0 0
      %4067 = vmatpush1.bf16.msra.mxu0 0
      %4068 = vmatprep.subr.bf16.mxu0 0
      %4069 = vmatpush1.bf16.msra.mxu0 0
      %4070 = vmatprep.subr.bf16.mxu0 0
      %4071 = vmatpush1.bf16.msra.mxu0 0
      %4072 = vmatprep.subr.bf16.mxu0 0
      %4073 = vmatpush1.bf16.msra.mxu0 0
      %4074 = vmatprep.subr.bf16.mxu0 0
      %4075 = vmatpush1.bf16.msra.mxu0 0
      %4076 = vmatprep.subr.bf16.mxu0 0
      %4077 = vmatpush1.bf16.msra.mxu0 0
      %4078 = vmatprep.subr.bf16.mxu0 0
      %4079 = vmatpush1.bf16.msra.mxu0 0
      %4080 = vmatprep.subr.bf16.mxu0 %v534
      %4081 = vmatpush1.bf16.msra.mxu0 %v531
      %4082 = vmatprep.subr.bf16.mxu0 0
      %4083 = vmatpush2.bf16.msra.mxu0 0
      %4084 = vmatprep.subr.bf16.mxu0 0
      %4085 = vmatpush2.bf16.msra.mxu0 0
      %4086 = vmatprep.subr.bf16.mxu0 0
      %4087 = vmatpush2.bf16.msra.mxu0 0
      %4088 = vmatprep.subr.bf16.mxu0 0
      %4089 = vmatpush2.bf16.msra.mxu0 0
      %4090 = vmatprep.subr.bf16.mxu0 0
      %4091 = vmatpush2.bf16.msra.mxu0 0
      %4092 = vmatprep.subr.bf16.mxu0 0
      %4093 = vmatpush2.bf16.msra.mxu0 0
      %4094 = vmatprep.subr.bf16.mxu0 0
      %4095 = vmatpush2.bf16.msra.mxu0 0
      %4096 = vmatprep.subr.bf16.mxu0 0
      %4097 = vmatpush2.bf16.msra.mxu0 0
      %4098 = vmatprep.mubr.bf16.mxu0 0
      %4099 = vmatmul.mubr.bf16.gmra.mxu0 %v4064
      %v4100 = vpop.f32.mrf.mxu0
      %v4101 = vadd.f32 0.0, %v4100
      %v4102 = vpop.f32.mrf.mxu0
      %v4103 = vadd.f32 0.0, %v4102
      %v4104 = vpop.f32.mrf.mxu0
      %v4105 = vpop.f32.mrf.mxu0
      %4106 = vdwg.mxu0
      %4108 = vrot.lane.b32.xlu0 %v4101, 112
      %v4109 = vpop.permute.xlu0 %4108
      %4111 = vrot.lane.b32.xlu0 %v4101, 96
      %v4112 = vpop.permute.xlu0 %4111
      %4114 = vrot.lane.b32.xlu0 %v4101, 80
      %v4115 = vpop.permute.xlu0 %4114
      %4117 = vrot.lane.b32.xlu0 %v4101, 64
      %v4118 = vpop.permute.xlu0 %4117
      %4120 = vrot.lane.b32.xlu0 %v4101, 48
      %v4121 = vpop.permute.xlu0 %4120
      %4123 = vrot.lane.b32.xlu0 %v4101, 32
      %v4124 = vpop.permute.xlu0 %4123
      %4126 = vrot.lane.b32.xlu0 %v4101, 16
      %v4127 = vpop.permute.xlu0 %4126
      %4130 = vrot.lane.b32.xlu0 %v4103, 112
      %v4131 = vpop.permute.xlu0 %4130
      %4133 = vrot.lane.b32.xlu0 %v4103, 96
      %v4134 = vpop.permute.xlu0 %4133
      %4136 = vrot.lane.b32.xlu0 %v4103, 80
      %v4137 = vpop.permute.xlu0 %4136
      %4139 = vrot.lane.b32.xlu0 %v4103, 64
      %v4140 = vpop.permute.xlu0 %4139
      %4142 = vrot.lane.b32.xlu0 %v4103, 48
      %v4143 = vpop.permute.xlu0 %4142
      %4145 = vrot.lane.b32.xlu0 %v4103, 32
      %v4146 = vpop.permute.xlu0 %4145
      %4148 = vrot.lane.b32.xlu0 %v4103, 16
      %v4149 = vpop.permute.xlu0 %4148
      %v4151 = vcombine.low %v4101, %v4112
      %v4152 = vcombine.high %v4101, %v4112
      %v4154 = vunpack.c.l.s4 1983009808
      %v4155 = vunpack.c.0.s8 %v4154
      %v4156 = vlaneseq
      %v4157 = vshrl.u32 %v4156, 7
      %v4158 = vsub.s32 %v4155, %v4157
      %v4159 = vrot.slane %v4151, %v4158
      %v4161 = vunpack.c.l.s4 1983009808
      %v4162 = vunpack.c.0.s8 %v4161
      %v4163 = vlaneseq
      %v4164 = vshrl.u32 %v4163, 7
      %v4165 = vsub.s32 %v4162, %v4164
      %v4166 = vrot.slane %v4152, %v4165
      %v4167 = vcombine.low %v4109, %v4115
      %v4168 = vcombine.high %v4109, %v4115
      %v4170 = vunpack.c.l.s4 1983009808
      %v4171 = vunpack.c.0.s8 %v4170
      %v4172 = vlaneseq
      %v4173 = vshrl.u32 %v4172, 7
      %v4174 = vsub.s32 %v4171, %v4173
      %v4175 = vrot.slane %v4167, %v4174
      %v4177 = vunpack.c.l.s4 1983009808
      %v4178 = vunpack.c.0.s8 %v4177
      %v4179 = vlaneseq
      %v4180 = vshrl.u32 %v4179, 7
      %v4181 = vsub.s32 %v4178, %v4180
      %v4182 = vrot.slane %v4168, %v4181
      %v4183 = vcombine.low %v4118, %v4124
      %v4184 = vcombine.high %v4118, %v4124
      %v4186 = vunpack.c.l.s4 1983009808
      %v4187 = vunpack.c.0.s8 %v4186
      %v4188 = vlaneseq
      %v4189 = vshrl.u32 %v4188, 7
      %v4190 = vsub.s32 %v4187, %v4189
      %v4191 = vrot.slane %v4183, %v4190
      %v4193 = vunpack.c.l.s4 1983009808
      %v4194 = vunpack.c.0.s8 %v4193
      %v4195 = vlaneseq
      %v4196 = vshrl.u32 %v4195, 7
      %v4197 = vsub.s32 %v4194, %v4196
      %v4198 = vrot.slane %v4184, %v4197
      %v4199 = vcombine.low %v4121, %v4127
      %v4200 = vcombine.high %v4121, %v4127
      %v4202 = vunpack.c.l.s4 1983009808
      %v4203 = vunpack.c.0.s8 %v4202
      %v4204 = vlaneseq
      %v4205 = vshrl.u32 %v4204, 7
      %v4206 = vsub.s32 %v4203, %v4205
      %v4207 = vrot.slane %v4199, %v4206
      %v4209 = vunpack.c.l.s4 1983009808
      %v4210 = vunpack.c.0.s8 %v4209
      %v4211 = vlaneseq
      %v4212 = vshrl.u32 %v4211, 7
      %v4213 = vsub.s32 %v4210, %v4212
      %v4214 = vrot.slane %v4200, %v4213
      %v4215 = vcombine.low %v4159, %v4175
      %v4216 = vcombine.high %v4159, %v4175
      %v4218 = vunpack.c.l.s4 1934713408
      %v4219 = vunpack.c.0.s8 %v4218
      %v4220 = vlaneseq
      %v4221 = vshrl.u32 %v4220, 7
      %v4222 = vsub.s32 %v4219, %v4221
      %v4223 = vrot.slane %v4215, %v4222
      %v4225 = vunpack.c.l.s4 1934713408
      %v4226 = vunpack.c.0.s8 %v4225
      %v4227 = vlaneseq
      %v4228 = vshrl.u32 %v4227, 7
      %v4229 = vsub.s32 %v4226, %v4228
      %v4230 = vrot.slane %v4216, %v4229
      %v4231 = vcombine.low %v4166, %v4182
      %v4232 = vcombine.high %v4166, %v4182
      %v4234 = vunpack.c.l.s4 1934713408
      %v4235 = vunpack.c.0.s8 %v4234
      %v4236 = vlaneseq
      %v4237 = vshrl.u32 %v4236, 7
      %v4238 = vsub.s32 %v4235, %v4237
      %v4239 = vrot.slane %v4231, %v4238
      %v4241 = vunpack.c.l.s4 1934713408
      %v4242 = vunpack.c.0.s8 %v4241
      %v4243 = vlaneseq
      %v4244 = vshrl.u32 %v4243, 7
      %v4245 = vsub.s32 %v4242, %v4244
      %v4246 = vrot.slane %v4232, %v4245
      %v4247 = vcombine.low %v4191, %v4207
      %v4248 = vcombine.high %v4191, %v4207
      %v4250 = vunpack.c.l.s4 1934713408
      %v4251 = vunpack.c.0.s8 %v4250
      %v4252 = vlaneseq
      %v4253 = vshrl.u32 %v4252, 7
      %v4254 = vsub.s32 %v4251, %v4253
      %v4255 = vrot.slane %v4247, %v4254
      %v4257 = vunpack.c.l.s4 1934713408
      %v4258 = vunpack.c.0.s8 %v4257
      %v4259 = vlaneseq
      %v4260 = vshrl.u32 %v4259, 7
      %v4261 = vsub.s32 %v4258, %v4260
      %v4262 = vrot.slane %v4248, %v4261
      %v4263 = vcombine.low %v4198, %v4214
      %v4264 = vcombine.high %v4198, %v4214
      %v4266 = vunpack.c.l.s4 1934713408
      %v4267 = vunpack.c.0.s8 %v4266
      %v4268 = vlaneseq
      %v4269 = vshrl.u32 %v4268, 7
      %v4270 = vsub.s32 %v4267, %v4269
      %v4271 = vrot.slane %v4263, %v4270
      %v4273 = vunpack.c.l.s4 1934713408
      %v4274 = vunpack.c.0.s8 %v4273
      %v4275 = vlaneseq
      %v4276 = vshrl.u32 %v4275, 7
      %v4277 = vsub.s32 %v4274, %v4276
      %v4278 = vrot.slane %v4264, %v4277
      %v4279 = vcombine.low %v4223, %v4255
      %v4280 = vcombine.high %v4223, %v4255
      %v4281 = vcombine.low %v4230, %v4262
      %v4282 = vcombine.high %v4230, %v4262
      %v4283 = vcombine.low %v4239, %v4271
      %v4284 = vcombine.high %v4239, %v4271
      %v4285 = vcombine.low %v4246, %v4278
      %v4286 = vcombine.high %v4246, %v4278
      %v4287 = vcombine.low %v4103, %v4134
      %v4288 = vcombine.high %v4103, %v4134
      %v4290 = vunpack.c.l.s4 1983009808
      %v4291 = vunpack.c.0.s8 %v4290
      %v4292 = vlaneseq
      %v4293 = vshrl.u32 %v4292, 7
      %v4294 = vsub.s32 %v4291, %v4293
      %v4295 = vrot.slane %v4287, %v4294
      %v4297 = vunpack.c.l.s4 1983009808
      %v4298 = vunpack.c.0.s8 %v4297
      %v4299 = vlaneseq
      %v4300 = vshrl.u32 %v4299, 7
      %v4301 = vsub.s32 %v4298, %v4300
      %v4302 = vrot.slane %v4288, %v4301
      %v4303 = vcombine.low %v4131, %v4137
      %v4304 = vcombine.high %v4131, %v4137
      %v4306 = vunpack.c.l.s4 1983009808
      %v4307 = vunpack.c.0.s8 %v4306
      %v4308 = vlaneseq
      %v4309 = vshrl.u32 %v4308, 7
      %v4310 = vsub.s32 %v4307, %v4309
      %v4311 = vrot.slane %v4303, %v4310
      %v4313 = vunpack.c.l.s4 1983009808
      %v4314 = vunpack.c.0.s8 %v4313
      %v4315 = vlaneseq
      %v4316 = vshrl.u32 %v4315, 7
      %v4317 = vsub.s32 %v4314, %v4316
      %v4318 = vrot.slane %v4304, %v4317
      %v4319 = vcombine.low %v4140, %v4146
      %v4320 = vcombine.high %v4140, %v4146
      %v4322 = vunpack.c.l.s4 1983009808
      %v4323 = vunpack.c.0.s8 %v4322
      %v4324 = vlaneseq
      %v4325 = vshrl.u32 %v4324, 7
      %v4326 = vsub.s32 %v4323, %v4325
      %v4327 = vrot.slane %v4319, %v4326
      %v4329 = vunpack.c.l.s4 1983009808
      %v4330 = vunpack.c.0.s8 %v4329
      %v4331 = vlaneseq
      %v4332 = vshrl.u32 %v4331, 7
      %v4333 = vsub.s32 %v4330, %v4332
      %v4334 = vrot.slane %v4320, %v4333
      %v4335 = vcombine.low %v4143, %v4149
      %v4336 = vcombine.high %v4143, %v4149
      %v4338 = vunpack.c.l.s4 1983009808
      %v4339 = vunpack.c.0.s8 %v4338
      %v4340 = vlaneseq
      %v4341 = vshrl.u32 %v4340, 7
      %v4342 = vsub.s32 %v4339, %v4341
      %v4343 = vrot.slane %v4335, %v4342
      %v4345 = vunpack.c.l.s4 1983009808
      %v4346 = vunpack.c.0.s8 %v4345
      %v4347 = vlaneseq
      %v4348 = vshrl.u32 %v4347, 7
      %v4349 = vsub.s32 %v4346, %v4348
      %v4350 = vrot.slane %v4336, %v4349
      %v4351 = vcombine.low %v4295, %v4311
      %v4352 = vcombine.high %v4295, %v4311
      %v4354 = vunpack.c.l.s4 1934713408
      %v4355 = vunpack.c.0.s8 %v4354
      %v4356 = vlaneseq
      %v4357 = vshrl.u32 %v4356, 7
      %v4358 = vsub.s32 %v4355, %v4357
      %v4359 = vrot.slane %v4351, %v4358
      %v4361 = vunpack.c.l.s4 1934713408
      %v4362 = vunpack.c.0.s8 %v4361
      %v4363 = vlaneseq
      %v4364 = vshrl.u32 %v4363, 7
      %v4365 = vsub.s32 %v4362, %v4364
      %v4366 = vrot.slane %v4352, %v4365
      %v4367 = vcombine.low %v4302, %v4318
      %v4368 = vcombine.high %v4302, %v4318
      %v4370 = vunpack.c.l.s4 1934713408
      %v4371 = vunpack.c.0.s8 %v4370
      %v4372 = vlaneseq
      %v4373 = vshrl.u32 %v4372, 7
      %v4374 = vsub.s32 %v4371, %v4373
      %v4375 = vrot.slane %v4367, %v4374
      %v4377 = vunpack.c.l.s4 1934713408
      %v4378 = vunpack.c.0.s8 %v4377
      %v4379 = vlaneseq
      %v4380 = vshrl.u32 %v4379, 7
      %v4381 = vsub.s32 %v4378, %v4380
      %v4382 = vrot.slane %v4368, %v4381
      %v4383 = vcombine.low %v4327, %v4343
      %v4384 = vcombine.high %v4327, %v4343
      %v4386 = vunpack.c.l.s4 1934713408
      %v4387 = vunpack.c.0.s8 %v4386
      %v4388 = vlaneseq
      %v4389 = vshrl.u32 %v4388, 7
      %v4390 = vsub.s32 %v4387, %v4389
      %v4391 = vrot.slane %v4383, %v4390
      %v4393 = vunpack.c.l.s4 1934713408
      %v4394 = vunpack.c.0.s8 %v4393
      %v4395 = vlaneseq
      %v4396 = vshrl.u32 %v4395, 7
      %v4397 = vsub.s32 %v4394, %v4396
      %v4398 = vrot.slane %v4384, %v4397
      %v4399 = vcombine.low %v4334, %v4350
      %v4400 = vcombine.high %v4334, %v4350
      %v4402 = vunpack.c.l.s4 1934713408
      %v4403 = vunpack.c.0.s8 %v4402
      %v4404 = vlaneseq
      %v4405 = vshrl.u32 %v4404, 7
      %v4406 = vsub.s32 %v4403, %v4405
      %v4407 = vrot.slane %v4399, %v4406
      %v4409 = vunpack.c.l.s4 1934713408
      %v4410 = vunpack.c.0.s8 %v4409
      %v4411 = vlaneseq
      %v4412 = vshrl.u32 %v4411, 7
      %v4413 = vsub.s32 %v4410, %v4412
      %v4414 = vrot.slane %v4400, %v4413
      %v4415 = vcombine.low %v4359, %v4391
      %v4416 = vcombine.high %v4359, %v4391
      %v4417 = vcombine.low %v4366, %v4398
      %v4418 = vcombine.high %v4366, %v4398
      %v4419 = vcombine.low %v4375, %v4407
      %v4420 = vcombine.high %v4375, %v4407
      %v4421 = vcombine.low %v4382, %v4414
      %v4422 = vcombine.high %v4382, %v4414
      %v4439 = vrot.slane %v4279, 2
      %v4440 = vrot.slane %v4415, 2
      %v4441 = vsel %vm3538, %v4439, %v4440
      %v4442 = vrot.slane %v4280, 2
      %v4443 = vrot.slane %v4416, 2
      %v4444 = vsel %vm3538, %v4442, %v4443
      %v4445 = vrot.slane %v4281, 2
      %v4446 = vrot.slane %v4417, 2
      %v4447 = vsel %vm3538, %v4445, %v4446
      %v4448 = vrot.slane %v4282, 2
      %v4449 = vrot.slane %v4418, 2
      %v4450 = vsel %vm3538, %v4448, %v4449
      %v4451 = vrot.slane %v4283, 2
      %v4452 = vrot.slane %v4419, 2
      %v4453 = vsel %vm3538, %v4451, %v4452
      %v4454 = vrot.slane %v4284, 2
      %v4455 = vrot.slane %v4420, 2
      %v4456 = vsel %vm3538, %v4454, %v4455
      %v4457 = vrot.slane %v4285, 2
      %v4458 = vrot.slane %v4421, 2
      %v4459 = vsel %vm3538, %v4457, %v4458
      %v4460 = vrot.slane %v4286, 2
      %v4461 = vrot.slane %v4422, 2
      %v4462 = vsel %vm3538, %v4460, %v4461
      %4463 = vrot.lane.b32.xlu0 %v4441, 126
      %v4464 = vpop.permute.xlu0 %4463
      %4465 = vrot.lane.b32.xlu0 %v4440, 126
      %v4466 = vpop.permute.xlu0 %4465
      %4467 = vrot.lane.b32.xlu0 %v4444, 126
      %v4468 = vpop.permute.xlu0 %4467
      %4469 = vrot.lane.b32.xlu0 %v4443, 126
      %v4470 = vpop.permute.xlu0 %4469
      %4471 = vrot.lane.b32.xlu0 %v4447, 126
      %v4472 = vpop.permute.xlu0 %4471
      %4473 = vrot.lane.b32.xlu0 %v4446, 126
      %v4474 = vpop.permute.xlu0 %4473
      %4475 = vrot.lane.b32.xlu0 %v4450, 126
      %v4476 = vpop.permute.xlu0 %4475
      %4477 = vrot.lane.b32.xlu0 %v4449, 126
      %v4478 = vpop.permute.xlu0 %4477
      %4479 = vrot.lane.b32.xlu0 %v4453, 126
      %v4480 = vpop.permute.xlu0 %4479
      %4481 = vrot.lane.b32.xlu0 %v4452, 126
      %v4482 = vpop.permute.xlu0 %4481
      %4483 = vrot.lane.b32.xlu0 %v4456, 126
      %v4484 = vpop.permute.xlu0 %4483
      %4485 = vrot.lane.b32.xlu0 %v4455, 126
      %v4486 = vpop.permute.xlu0 %4485
      %4487 = vrot.lane.b32.xlu0 %v4459, 126
      %v4488 = vpop.permute.xlu0 %4487
      %4489 = vrot.lane.b32.xlu0 %v4458, 126
      %v4490 = vpop.permute.xlu0 %4489
      %4491 = vrot.lane.b32.xlu0 %v4462, 126
      %v4492 = vpop.permute.xlu0 %4491
      %4493 = vrot.lane.b32.xlu0 %v4461, 126
      %v4494 = vpop.permute.xlu0 %4493
      %v4511 = vadd.f32 %v4045, %v4464
      %v4512 = vadd.f32 %v4046, %v4466
      %v4513 = vadd.f32 %v4047, %v4468
      %v4514 = vadd.f32 %v4048, %v4470
      %v4515 = vadd.f32 %v4049, %v4472
      %v4516 = vadd.f32 %v4050, %v4474
      %v4517 = vadd.f32 %v4051, %v4476
      %v4518 = vadd.f32 %v4052, %v4478
      %v4519 = vadd.f32 %v4053, %v4480
      %v4520 = vadd.f32 %v4054, %v4482
      %v4521 = vadd.f32 %v4055, %v4484
      %v4522 = vadd.f32 %v4056, %v4486
      %v4523 = vadd.f32 %v4057, %v4488
      %v4524 = vadd.f32 %v4058, %v4490
      %v4525 = vadd.f32 %v4059, %v4492
      %v4526 = vadd.f32 %v4060, %v4494
      %v4527 = vcombine.low %v4511, %v4515
      %v4528 = vcombine.high %v4511, %v4515
      %v4530 = vunpack.c.l.s4 1983009808
      %v4531 = vunpack.c.0.s8 %v4530
      %v4532 = vlaneseq
      %v4533 = vshrl.u32 %v4532, 7
      %v4534 = vsub.s32 %v4531, %v4533
      %v4535 = vrot.slane %v4527, %v4534
      %v4537 = vunpack.c.l.s4 1983009808
      %v4538 = vunpack.c.0.s8 %v4537
      %v4539 = vlaneseq
      %v4540 = vshrl.u32 %v4539, 7
      %v4541 = vsub.s32 %v4538, %v4540
      %v4542 = vrot.slane %v4528, %v4541
      %v4543 = vcombine.low %v4513, %v4517
      %v4544 = vcombine.high %v4513, %v4517
      %v4546 = vunpack.c.l.s4 1983009808
      %v4547 = vunpack.c.0.s8 %v4546
      %v4548 = vlaneseq
      %v4549 = vshrl.u32 %v4548, 7
      %v4550 = vsub.s32 %v4547, %v4549
      %v4551 = vrot.slane %v4543, %v4550
      %v4553 = vunpack.c.l.s4 1983009808
      %v4554 = vunpack.c.0.s8 %v4553
      %v4555 = vlaneseq
      %v4556 = vshrl.u32 %v4555, 7
      %v4557 = vsub.s32 %v4554, %v4556
      %v4558 = vrot.slane %v4544, %v4557
      %v4559 = vcombine.low %v4519, %v4523
      %v4560 = vcombine.high %v4519, %v4523
      %v4562 = vunpack.c.l.s4 1983009808
      %v4563 = vunpack.c.0.s8 %v4562
      %v4564 = vlaneseq
      %v4565 = vshrl.u32 %v4564, 7
      %v4566 = vsub.s32 %v4563, %v4565
      %v4567 = vrot.slane %v4559, %v4566
      %v4569 = vunpack.c.l.s4 1983009808
      %v4570 = vunpack.c.0.s8 %v4569
      %v4571 = vlaneseq
      %v4572 = vshrl.u32 %v4571, 7
      %v4573 = vsub.s32 %v4570, %v4572
      %v4574 = vrot.slane %v4560, %v4573
      %v4575 = vcombine.low %v4521, %v4525
      %v4576 = vcombine.high %v4521, %v4525
      %v4578 = vunpack.c.l.s4 1983009808
      %v4579 = vunpack.c.0.s8 %v4578
      %v4580 = vlaneseq
      %v4581 = vshrl.u32 %v4580, 7
      %v4582 = vsub.s32 %v4579, %v4581
      %v4583 = vrot.slane %v4575, %v4582
      %v4585 = vunpack.c.l.s4 1983009808
      %v4586 = vunpack.c.0.s8 %v4585
      %v4587 = vlaneseq
      %v4588 = vshrl.u32 %v4587, 7
      %v4589 = vsub.s32 %v4586, %v4588
      %v4590 = vrot.slane %v4576, %v4589
      %v4591 = vcombine.low %v4535, %v4551
      %v4592 = vcombine.high %v4535, %v4551
      %v4594 = vunpack.c.l.s4 1934713408
      %v4595 = vunpack.c.0.s8 %v4594
      %v4596 = vlaneseq
      %v4597 = vshrl.u32 %v4596, 7
      %v4598 = vsub.s32 %v4595, %v4597
      %v4599 = vrot.slane %v4591, %v4598
      %v4601 = vunpack.c.l.s4 1934713408
      %v4602 = vunpack.c.0.s8 %v4601
      %v4603 = vlaneseq
      %v4604 = vshrl.u32 %v4603, 7
      %v4605 = vsub.s32 %v4602, %v4604
      %v4606 = vrot.slane %v4592, %v4605
      %v4607 = vcombine.low %v4542, %v4558
      %v4608 = vcombine.high %v4542, %v4558
      %v4610 = vunpack.c.l.s4 1934713408
      %v4611 = vunpack.c.0.s8 %v4610
      %v4612 = vlaneseq
      %v4613 = vshrl.u32 %v4612, 7
      %v4614 = vsub.s32 %v4611, %v4613
      %v4615 = vrot.slane %v4607, %v4614
      %v4617 = vunpack.c.l.s4 1934713408
      %v4618 = vunpack.c.0.s8 %v4617
      %v4619 = vlaneseq
      %v4620 = vshrl.u32 %v4619, 7
      %v4621 = vsub.s32 %v4618, %v4620
      %v4622 = vrot.slane %v4608, %v4621
      %v4623 = vcombine.low %v4567, %v4583
      %v4624 = vcombine.high %v4567, %v4583
      %v4626 = vunpack.c.l.s4 1934713408
      %v4627 = vunpack.c.0.s8 %v4626
      %v4628 = vlaneseq
      %v4629 = vshrl.u32 %v4628, 7
      %v4630 = vsub.s32 %v4627, %v4629
      %v4631 = vrot.slane %v4623, %v4630
      %v4633 = vunpack.c.l.s4 1934713408
      %v4634 = vunpack.c.0.s8 %v4633
      %v4635 = vlaneseq
      %v4636 = vshrl.u32 %v4635, 7
      %v4637 = vsub.s32 %v4634, %v4636
      %v4638 = vrot.slane %v4624, %v4637
      %v4639 = vcombine.low %v4574, %v4590
      %v4640 = vcombine.high %v4574, %v4590
      %v4642 = vunpack.c.l.s4 1934713408
      %v4643 = vunpack.c.0.s8 %v4642
      %v4644 = vlaneseq
      %v4645 = vshrl.u32 %v4644, 7
      %v4646 = vsub.s32 %v4643, %v4645
      %v4647 = vrot.slane %v4639, %v4646
      %v4649 = vunpack.c.l.s4 1934713408
      %v4650 = vunpack.c.0.s8 %v4649
      %v4651 = vlaneseq
      %v4652 = vshrl.u32 %v4651, 7
      %v4653 = vsub.s32 %v4650, %v4652
      %v4654 = vrot.slane %v4640, %v4653
      %v4655 = vcombine.low %v4599, %v4631
      %v4656 = vcombine.high %v4599, %v4631
      %v4657 = vcombine.low %v4606, %v4638
      %v4658 = vcombine.high %v4606, %v4638
      %v4659 = vcombine.low %v4615, %v4647
      %v4660 = vcombine.high %v4615, %v4647
      %v4661 = vcombine.low %v4622, %v4654
      %v4662 = vcombine.high %v4622, %v4654
      %v4663 = vcombine.low %v4512, %v4516
      %v4664 = vcombine.high %v4512, %v4516
      %v4666 = vunpack.c.l.s4 1983009808
      %v4667 = vunpack.c.0.s8 %v4666
      %v4668 = vlaneseq
      %v4669 = vshrl.u32 %v4668, 7
      %v4670 = vsub.s32 %v4667, %v4669
      %v4671 = vrot.slane %v4663, %v4670
      %v4673 = vunpack.c.l.s4 1983009808
      %v4674 = vunpack.c.0.s8 %v4673
      %v4675 = vlaneseq
      %v4676 = vshrl.u32 %v4675, 7
      %v4677 = vsub.s32 %v4674, %v4676
      %v4678 = vrot.slane %v4664, %v4677
      %v4679 = vcombine.low %v4514, %v4518
      %v4680 = vcombine.high %v4514, %v4518
      %v4682 = vunpack.c.l.s4 1983009808
      %v4683 = vunpack.c.0.s8 %v4682
      %v4684 = vlaneseq
      %v4685 = vshrl.u32 %v4684, 7
      %v4686 = vsub.s32 %v4683, %v4685
      %v4687 = vrot.slane %v4679, %v4686
      %v4689 = vunpack.c.l.s4 1983009808
      %v4690 = vunpack.c.0.s8 %v4689
      %v4691 = vlaneseq
      %v4692 = vshrl.u32 %v4691, 7
      %v4693 = vsub.s32 %v4690, %v4692
      %v4694 = vrot.slane %v4680, %v4693
      %v4695 = vcombine.low %v4520, %v4524
      %v4696 = vcombine.high %v4520, %v4524
      %v4698 = vunpack.c.l.s4 1983009808
      %v4699 = vunpack.c.0.s8 %v4698
      %v4700 = vlaneseq
      %v4701 = vshrl.u32 %v4700, 7
      %v4702 = vsub.s32 %v4699, %v4701
      %v4703 = vrot.slane %v4695, %v4702
      %v4705 = vunpack.c.l.s4 1983009808
      %v4706 = vunpack.c.0.s8 %v4705
      %v4707 = vlaneseq
      %v4708 = vshrl.u32 %v4707, 7
      %v4709 = vsub.s32 %v4706, %v4708
      %v4710 = vrot.slane %v4696, %v4709
      %v4711 = vcombine.low %v4522, %v4526
      %v4712 = vcombine.high %v4522, %v4526
      %v4714 = vunpack.c.l.s4 1983009808
      %v4715 = vunpack.c.0.s8 %v4714
      %v4716 = vlaneseq
      %v4717 = vshrl.u32 %v4716, 7
      %v4718 = vsub.s32 %v4715, %v4717
      %v4719 = vrot.slane %v4711, %v4718
      %v4721 = vunpack.c.l.s4 1983009808
      %v4722 = vunpack.c.0.s8 %v4721
      %v4723 = vlaneseq
      %v4724 = vshrl.u32 %v4723, 7
      %v4725 = vsub.s32 %v4722, %v4724
      %v4726 = vrot.slane %v4712, %v4725
      %v4727 = vcombine.low %v4671, %v4687
      %v4728 = vcombine.high %v4671, %v4687
      %v4730 = vunpack.c.l.s4 1934713408
      %v4731 = vunpack.c.0.s8 %v4730
      %v4732 = vlaneseq
      %v4733 = vshrl.u32 %v4732, 7
      %v4734 = vsub.s32 %v4731, %v4733
      %v4735 = vrot.slane %v4727, %v4734
      %v4737 = vunpack.c.l.s4 1934713408
      %v4738 = vunpack.c.0.s8 %v4737
      %v4739 = vlaneseq
      %v4740 = vshrl.u32 %v4739, 7
      %v4741 = vsub.s32 %v4738, %v4740
      %v4742 = vrot.slane %v4728, %v4741
      %v4743 = vcombine.low %v4678, %v4694
      %v4745 = vunpack.c.l.s4 1934713408
      %v4746 = vunpack.c.0.s8 %v4745
      %v4747 = vlaneseq
      %v4748 = vshrl.u32 %v4747, 7
      %v4749 = vsub.s32 %v4746, %v4748
      %v4750 = vrot.slane %v4743, %v4749
      %v4751 = vcombine.low %v4703, %v4719
      %v4752 = vcombine.high %v4703, %v4719
      %v4754 = vunpack.c.l.s4 1934713408
      %v4755 = vunpack.c.0.s8 %v4754
      %v4756 = vlaneseq
      %v4757 = vshrl.u32 %v4756, 7
      %v4758 = vsub.s32 %v4755, %v4757
      %v4759 = vrot.slane %v4751, %v4758
      %v4761 = vunpack.c.l.s4 1934713408
      %v4762 = vunpack.c.0.s8 %v4761
      %v4763 = vlaneseq
      %v4764 = vshrl.u32 %v4763, 7
      %v4765 = vsub.s32 %v4762, %v4764
      %v4766 = vrot.slane %v4752, %v4765
      %v4767 = vcombine.low %v4710, %v4726
      %v4769 = vunpack.c.l.s4 1934713408
      %v4770 = vunpack.c.0.s8 %v4769
      %v4771 = vlaneseq
      %v4772 = vshrl.u32 %v4771, 7
      %v4773 = vsub.s32 %v4770, %v4772
      %v4774 = vrot.slane %v4767, %v4773
      %v4775 = vcombine.low %v4735, %v4759
      %v4776 = vcombine.high %v4735, %v4759
      %v4777 = vcombine.low %v4742, %v4766
      %v4778 = vcombine.high %v4742, %v4766
      %v4779 = vcombine.low %v4750, %v4774
      %v4780 = vcombine.high %v4750, %v4774
      %4782 = vrot.lane.b32.xlu0 %v4656, 14
      %v4783 = vpop.permute.xlu0 %4782
      %4786 = vrot.lane.b32.xlu0 %v4657, 28
      %v4787 = vpop.permute.xlu0 %4786
      %4790 = vrot.lane.b32.xlu0 %v4658, 42
      %v4791 = vpop.permute.xlu0 %4790
      %4794 = vrot.lane.b32.xlu0 %v4659, 56
      %v4795 = vpop.permute.xlu0 %4794
      %4798 = vrot.lane.b32.xlu0 %v4660, 70
      %v4799 = vpop.permute.xlu0 %4798
      %4802 = vrot.lane.b32.xlu0 %v4661, 84
      %v4803 = vpop.permute.xlu0 %4802
      %4806 = vrot.lane.b32.xlu0 %v4662, 98
      %v4807 = vpop.permute.xlu0 %4806
      %4810 = vrot.lane.b32.xlu0 %v4775, 112
      %v4811 = vpop.permute.xlu0 %4810
      %4814 = vrot.lane.b32.xlu0 %v4776, 126
      %v4815 = vpop.permute.xlu0 %4814
      %4818 = vrot.lane.b32.xlu0 %v4777, 12
      %v4819 = vpop.permute.xlu0 %4818
      %4822 = vrot.lane.b32.xlu0 %v4778, 26
      %v4823 = vpop.permute.xlu0 %4822
      %4826 = vrot.lane.b32.xlu0 %v4779, 40
      %v4827 = vpop.permute.xlu0 %4826
      %4830 = vrot.lane.b32.xlu0 %v4780, 54
      %v4831 = vpop.permute.xlu0 %4830
      %vm4833 = vcmask 113664
      %v4834 = vsel %vm4833, %v4655, %v4783
      %vm4835 = vcmask 228352
      %v4836 = vsel %vm4835, %v4834, %v4787
      %vm4837 = vcmask 343040
      %v4838 = vsel %vm4837, %v4836, %v4791
      %vm4839 = vcmask 457728
      %v4840 = vsel %vm4839, %v4838, %v4795
      %vm4841 = vcmask 572416
      %v4842 = vsel %vm4841, %v4840, %v4799
      %vm4843 = vcmask 687104
      %v4844 = vsel %vm4843, %v4842, %v4803
      %vm4845 = vcmask 801792
      %v4846 = vsel %vm4845, %v4844, %v4807
      %v4847 = vsel %vm513, %v4846, %v4811
      %vm4848 = vcmask 1031168
      %v4849 = vsel %vm4848, %v4847, %v4815
      %vm4850 = vcmask 97280
      %v4851 = vsel %vm4850, %v4815, %v4819
      %vm4852 = vcmask 211968
      %v4853 = vsel %vm4852, %v4851, %v4823
      %vm4854 = vcmask 326656
      %v4855 = vsel %vm4854, %v4853, %v4827
      %vm4856 = vcmask 441344
      %v4857 = vsel %vm4856, %v4855, %v4831
      %v4858 = vld [vmem:[%s2] sm:$0xff]
      %4860 = vset.pattern.permute.xlu0 0
      %4861 = vperm.xlu0 %4860, %v4858
      %v4862 = vpop.permute.xlu0 %4861
      %v4864 = vadd.f32 %v4849, %v4862
      %v4865 = vadd.f32 %v4857, %v4862
      %v4866 = vpack.c.bf16 %v4864, %v4864
      %v4867 = vpack.c.bf16 %v4865, %v4865
      %v4870 = vunpack.c.l.b16 %v4866
      %v4871 = vunpack.c.l.b16 %v4867
      %v4872 = vpack.c.b16 %v4871, %v4870
      %vm4874 = vcmask 1043456
      %vm4875 = vcmask 556036
      %vm4876 = vmor %vm4875, %vm4874
      %4877 = vst.msk [vmem:[%s291] sm:$0xff] %vm4876, %v4872
      %vm4878 = vcmask 556032
      %v4879 = vsel %vm4878, %v4865, 0.0
      %v4880 = vadd.f32 %v4864, %v4879
      %4881 = vadd.xlane.f32.xlu0 %v4880
      %v4882 = vpop.xlane.xlu0 %4881
      %vm4883 = vcmask 7168
      %4884 = vst.msk [vmem:[%s295] sm:$0xff] %vm4883, %v4882
      %v4885 = vmul.f32 %v4864, %v4864
      %v4886 = vmul.f32 %v4865, %v4865
      %v4887 = vsel %vm4878, %v4886, 0.0
      %v4888 = vadd.f32 %v4885, %v4887
      %4889 = vadd.xlane.f32.xlu0 %v4888
      %v4890 = vpop.xlane.xlu0 %4889
      %4891 = vst.msk [vmem:[%s299] sm:$0xff] %vm4883, %v4890
      %p4892 = scmp.lt.s32.totalorder %s19, 1
      %s4893 = scalar_select %p4892, %s19, 1
      %s4894 = smul.addr %s4893, 2
      %s4895 = smul.addr %s4894, 4
      %s4896 = scalar_lea.vmem %s5, %s4895
      %p4897 = scmp.lt.s32.totalorder %s19, 1
      %s4898 = scalar_select %p4897, %s19, 1
      %s4899 = smul.addr %s4898, 8
      %s4900 = scalar_lea.vmem %s6, %s4899
      %p4901 = scmp.lt.s32.totalorder %s19, 1
      %s4902 = scalar_select %p4901, %s19, 1
      %s4903 = smul.addr %s4902, 8
      %s4904 = scalar_lea.vmem %s7, %s4903
      // Predicated region
      $region41: #{unet_down_forward.3} parent=39 // pred_check
        %p4905 = pneg %p147
      $region42: #{unet_down_forward.3} parent=39 // pred_check_branch
        %4907 = sbr.rel (%p4905) target = $region44
      $region43: #{unet_down_forward.3} parent=39 // pred_region
        _
      $region44: #{unet_down_forward.3} parent=39 // pred_fallthru
        _
      // Predicated region
      $region45: #{unet_down_forward.3} parent=39 // pred_check
        %p4908 = pneg %p173
      $region46: #{unet_down_forward.3} parent=39 // pred_check_branch
        %4910 = sbr.rel (%p4908) target = $region48
      $region47: #{unet_down_forward.3} parent=39 // pred_region
        _
      $region48: #{unet_down_forward.3} parent=39 // pred_fallthru
        _
      // Predicated region
      $region49: #{unet_down_forward.3} parent=39 // pred_check
        %p4911 = pneg %p199
      $region50: #{unet_down_forward.3} parent=39 // pred_check_branch
        %4913 = sbr.rel (%p4911) target = $region52
      $region51: #{unet_down_forward.3} parent=39 // pred_region
        _
      $region52: #{unet_down_forward.3} parent=39 // pred_fallthru
        _
    $region40: #{unet_down_forward.3} parent=5 // pred_fallthru
      _
    %p4914 = scmp.le.s32.totalorder 2, %s14
    // Predicated region
    $region53: #{unet_down_forward.3} parent=5 // pred_check
      %p4915 = pneg %p4914
    $region54: #{unet_down_forward.3} parent=5 // pred_check_branch
      %4917 = sbr.rel (%p4915) target = $region56
    $region55: #{unet_down_forward.3} parent=5 // pred_region
      %s4918 = ssub.s32 %s14, 2
      // Predicated region
      $region57: #{unet_down_forward.3} parent=55 // pred_check
        %p4919 = pneg %p153
      $region58: #{unet_down_forward.3} parent=55 // pred_check_branch
        %4921 = sbr.rel (%p4919) target = $region60
      $region59: #{unet_down_forward.3} parent=55 // pred_region
        %p4922 = scmp.lt.s32.totalorder %s20, 1
        %s4923 = scalar_select %p4922, %s20, 1
        %s4924 = smul.addr %s4923, 2
        %s4925 = smul.addr %s4924, 4
        %s4926 = scalar_lea.vmem %s5, %s4925
      $region60: #{unet_down_forward.3} parent=55 // pred_fallthru
        _
      // Predicated region
      $region61: #{unet_down_forward.3} parent=55 // pred_check
        %p4927 = pneg %p179
      $region62: #{unet_down_forward.3} parent=55 // pred_check_branch
        %4929 = sbr.rel (%p4927) target = $region64
      $region63: #{unet_down_forward.3} parent=55 // pred_region
        %p4930 = scmp.lt.s32.totalorder %s20, 1
        %s4931 = scalar_select %p4930, %s20, 1
        %s4932 = smul.addr %s4931, 8
        %s4933 = scalar_lea.vmem %s6, %s4932
      $region64: #{unet_down_forward.3} parent=55 // pred_fallthru
        _
      // Predicated region
      $region65: #{unet_down_forward.3} parent=55 // pred_check
        %p4934 = pneg %p205
      $region66: #{unet_down_forward.3} parent=55 // pred_check_branch
        %4936 = sbr.rel (%p4934) target = $region68
      $region67: #{unet_down_forward.3} parent=55 // pred_region
        %p4937 = scmp.lt.s32.totalorder %s20, 1
        %s4938 = scalar_select %p4937, %s20, 1
        %s4939 = smul.addr %s4938, 8
        %s4940 = scalar_lea.vmem %s7, %s4939
      $region68: #{unet_down_forward.3} parent=55 // pred_fallthru
        _
    $region56: #{unet_down_forward.3} parent=5 // pred_fallthru
      _
  $region6: #{unet_down_forward.3} parent=0 // loop_footer
    %s18 = sadd.s32 1, %s14
  $region7: #{unet_down_forward.3} parent=0 // loop_footer_branch
    %13 = sbr.rel target = $region3
  $region8: #{unet_down_forward.3} parent=0 // loop_exit
    _

// kernel: unet_down_forward.4
$region0: #{unet_down_forward.4}
  #allocation0 [shape = 'u32[]', space=smem, size = 0x4, offset = 0x4, fixed_abs, tag = 'smem constant byte address 0x4 - core index']
  #allocation1 [shape = 'u32[144,128]{1,0:T(1,128)}', space=vmem, size = 0x12000, scoped, tag = 'internal scratch']
  %s0 = inlined_call_operand.vmem [shape: bf16[2,8,14,14], index: 0, kind: input, shape index: {}]
  %s1 = inlined_call_operand.vmem [shape: bf16[9,8,8], index: 1, kind: input, shape index: {}]
  %s2 = inlined_call_operand.vmem [shape: f32[8,1], index: 2, kind: input, shape index: {}]
  %s3 = inlined_call_operand.vmem [shape: f32[8,1], index: 3, kind: input, shape index: {}]
  %s4 = inlined_call_operand.vmem [shape: f32[8,1], index: 4, kind: input, shape index: {}]
  %s5 = inlined_call_operand.vmem [shape: f32[2,8,144], index: 5, kind: output, shape index: {0}]
  %s6 = inlined_call_operand.vmem [shape: f32[2,8,1], index: 6, kind: output, shape index: {1}]
  %s7 = inlined_call_operand.vmem [shape: f32[2,8,1], index: 7, kind: output, shape index: {2}]
  %8 = xla_tuple %s5, %s6, %s7
  %s9 = sld [smem:[#allocation0]]
  $region69: #{unet_down_forward.4} parent=0
    _
  %s11 = ssub.s32 1, %s9
  %s12 = scalar_select 0, %s11, %s9
  loop: start=0, step=1, limit=4
  $region2: #{unet_down_forward.4} parent=0 // loop_pre_header
    _
  $region3: #{unet_down_forward.4} parent=0 // loop_header
    %s14 = sphi 0, %s18
    %p15 = scmp.ge.s32.totalorder %s14, 4
    %s24 = sphi 0, %s26
    %s27 = sphi 0, %s24
    %s28 = sphi 0, %s27
    %s44 = sphi 0, %s28
    %s48 = sphi 0, %s48
    %s50 = sphi 0, %s48
    %s51 = sphi 0, %s50
    %s65 = sphi 0, %s51
    %s69 = sphi 0, %s69
    %s71 = sphi 0, %s69
    %s72 = sphi 0, %s71
    %s86 = sphi 0, %s72
    %s90 = sphi 0, %s90
    %s92 = sphi 0, %s90
    %s93 = sphi 0, %s92
    %s107 = sphi 0, %s93
    %s111 = sphi 0, %s111
    %s113 = sphi 0, %s111
    %s114 = sphi 0, %s113
    %s128 = sphi 0, %s114
    %s134 = sphi 0, %s136
    %s137 = sphi 0, %s134
    %s138 = sphi 0, %s137
    %s154 = sphi 0, %s138
    %s160 = sphi 0, %s162
    %s163 = sphi 0, %s160
    %s164 = sphi 0, %s163
    %s180 = sphi 0, %s164
    %s186 = sphi 0, %s188
    %s189 = sphi 0, %s186
    %s190 = sphi 0, %s189
    %s206 = sphi 0, %s190
  $region4: #{unet_down_forward.4} parent=0 // loop_header_branch
    %17 = sbr.rel (%p15) target = $region8
  $region5: #{unet_down_forward.4} parent=0 // loop_body
    %s19 = ssub.s32 %s14, 1
    %s20 = ssub.s32 %s14, 2
    %s21 = sadd.s32 %s14, 1
    %s22 = ssub.s32 %s14, %s21
    %p23 = scmp.eq.s32.totalorder %s22, 0
    %s25 = sadd.s32 %s24, 1
    %s26 = scalar_select %p23, %s24, %s25
    %p29 = pneg %p23
    %p30 = scmp.eq.s32.totalorder %s14, 1
    %p31 = por %p29, %p30
    %p32 = scmp.ne.s32.totalorder %s24, %s27
    %p33 = scmp.eq.s32.totalorder %s14, 0
    %p34 = por %p32, %p33
    %p35 = scmp.ne.s32.totalorder %s24, %s27
    %p36 = scmp.eq.s32.totalorder %s19, 1
    %p37 = por %p35, %p36
    %p38 = scmp.ne.s32.totalorder %s27, %s28
    %p39 = scmp.eq.s32.totalorder %s19, 0
    %p40 = por %p38, %p39
    %p41 = scmp.ne.s32.totalorder %s27, %s28
    %p42 = scmp.eq.s32.totalorder %s20, 1
    %p43 = por %p41, %p42
    %p45 = scmp.ne.s32.totalorder %s28, %s44
    %p46 = scmp.eq.s32.totalorder %s20, 0
    %p47 = por %p45, %p46
    %s49 = sadd.s32 %s48, 1
    %p52 = scmp.eq.s32.totalorder %s14, 1
    %p53 = scmp.ne.s32.totalorder %s48, %s50
    %p54 = scmp.eq.s32.totalorder %s14, 0
    %p55 = por %p53, %p54
    %p56 = scmp.ne.s32.totalorder %s48, %s50
    %p57 = scmp.eq.s32.totalorder %s19, 1
    %p58 = por %p56, %p57
    %p59 = scmp.ne.s32.totalorder %s50, %s51
    %p60 = scmp.eq.s32.totalorder %s19, 0
    %p61 = por %p59, %p60
    %p62 = scmp.ne.s32.totalorder %s50, %s51
    %p63 = scmp.eq.s32.totalorder %s20, 1
    %p64 = por %p62, %p63
    %p66 = scmp.ne.s32.totalorder %s51, %s65
    %p67 = scmp.eq.s32.totalorder %s20, 0
    %p68 = por %p66, %p67
    %s70 = sadd.s32 %s69, 1
    %p73 = scmp.eq.s32.totalorder %s14, 1
    %p74 = scmp.ne.s32.totalorder %s69, %s71
    %p75 = scmp.eq.s32.totalorder %s14, 0
    %p76 = por %p74, %p75
    %p77 = scmp.ne.s32.totalorder %s69, %s71
    %p78 = scmp.eq.s32.totalorder %s19, 1
    %p79 = por %p77, %p78
    %p80 = scmp.ne.s32.totalorder %s71, %s72
    %p81 = scmp.eq.s32.totalorder %s19, 0
    %p82 = por %p80, %p81
    %p83 = scmp.ne.s32.totalorder %s71, %s72
    %p84 = scmp.eq.s32.totalorder %s20, 1
    %p85 = por %p83, %p84
    %p87 = scmp.ne.s32.totalorder %s72, %s86
    %p88 = scmp.eq.s32.totalorder %s20, 0
    %p89 = por %p87, %p88
    %s91 = sadd.s32 %s90, 1
    %p94 = scmp.eq.s32.totalorder %s14, 1
    %p95 = scmp.ne.s32.totalorder %s90, %s92
    %p96 = scmp.eq.s32.totalorder %s14, 0
    %p97 = por %p95, %p96
    %p98 = scmp.ne.s32.totalorder %s90, %s92
    %p99 = scmp.eq.s32.totalorder %s19, 1
    %p100 = por %p98, %p99
    %p101 = scmp.ne.s32.totalorder %s92, %s93
    %p102 = scmp.eq.s32.totalorder %s19, 0
    %p103 = por %p101, %p102
    %p104 = scmp.ne.s32.totalorder %s92, %s93
    %p105 = scmp.eq.s32.totalorder %s20, 1
    %p106 = por %p104, %p105
    %p108 = scmp.ne.s32.totalorder %s93, %s107
    %p109 = scmp.eq.s32.totalorder %s20, 0
    %p110 = por %p108, %p109
    %s112 = sadd.s32 %s111, 1
    %p115 = scmp.eq.s32.totalorder %s14, 1
    %p116 = scmp.ne.s32.totalorder %s111, %s113
    %p117 = scmp.eq.s32.totalorder %s14, 0
    %p118 = por %p116, %p117
    %p119 = scmp.ne.s32.totalorder %s111, %s113
    %p120 = scmp.eq.s32.totalorder %s19, 1
    %p121 = por %p119, %p120
    %p122 = scmp.ne.s32.totalorder %s113, %s114
    %p123 = scmp.eq.s32.totalorder %s19, 0
    %p124 = por %p122, %p123
    %p125 = scmp.ne.s32.totalorder %s113, %s114
    %p126 = scmp.eq.s32.totalorder %s20, 1
    %p127 = por %p125, %p126
    %p129 = scmp.ne.s32.totalorder %s114, %s128
    %p130 = scmp.eq.s32.totalorder %s20, 0
    %p131 = por %p129, %p130
    %s132 = ssub.s32 %s14, %s21
    %p133 = scmp.eq.s32.totalorder %s132, 0
    %s135 = sadd.s32 %s134, 1
    %s136 = scalar_select %p133, %s134, %s135
    %p139 = pneg %p133
    %p140 = scmp.eq.s32.totalorder %s14, 1
    %p141 = por %p139, %p140
    %p142 = scmp.ne.s32.totalorder %s134, %s137
    %p143 = scmp.eq.s32.totalorder %s14, 0
    %p144 = por %p142, %p143
    %p145 = scmp.ne.s32.totalorder %s134, %s137
    %p146 = scmp.eq.s32.totalorder %s19, 1
    %p147 = por %p145, %p146
    %p148 = scmp.ne.s32.totalorder %s137, %s138
    %p149 = scmp.eq.s32.totalorder %s19, 0
    %p150 = por %p148, %p149
    %p151 = scmp.ne.s32.totalorder %s137, %s138
    %p152 = scmp.eq.s32.totalorder %s20, 1
    %p153 = por %p151, %p152
    %p155 = scmp.ne.s32.totalorder %s138, %s154
    %p156 = scmp.eq.s32.totalorder %s20, 0
    %p157 = por %p155, %p156
    %s158 = ssub.s32 %s14, %s21
    %p159 = scmp.eq.s32.totalorder %s158, 0
    %s161 = sadd.s32 %s160, 1
    %s162 = scalar_select %p159, %s160, %s161
    %p165 = pneg %p159
    %p166 = scmp.eq.s32.totalorder %s14, 1
    %p167 = por %p165, %p166
    %p168 = scmp.ne.s32.totalorder %s160, %s163
    %p169 = scmp.eq.s32.totalorder %s14, 0
    %p170 = por %p168, %p169
    %p171 = scmp.ne.s32.totalorder %s160, %s163
    %p172 = scmp.eq.s32.totalorder %s19, 1
    %p173 = por %p171, %p172
    %p174 = scmp.ne.s32.totalorder %s163, %s164
    %p175 = scmp.eq.s32.totalorder %s19, 0
    %p176 = por %p174, %p175
    %p177 = scmp.ne.s32.totalorder %s163, %s164
    %p178 = scmp.eq.s32.totalorder %s20, 1
    %p179 = por %p177, %p178
    %p181 = scmp.ne.s32.totalorder %s164, %s180
    %p182 = scmp.eq.s32.totalorder %s20, 0
    %p183 = por %p181, %p182
    %s184 = ssub.s32 %s14, %s21
    %p185 = scmp.eq.s32.totalorder %s184, 0
    %s187 = sadd.s32 %s186, 1
    %s188 = scalar_select %p185, %s186, %s187
    %p191 = pneg %p185
    %p192 = scmp.eq.s32.totalorder %s14, 1
    %p193 = por %p191, %p192
    %p194 = scmp.ne.s32.totalorder %s186, %s189
    %p195 = scmp.eq.s32.totalorder %s14, 0
    %p196 = por %p194, %p195
    %p197 = scmp.ne.s32.totalorder %s186, %s189
    %p198 = scmp.eq.s32.totalorder %s19, 1
    %p199 = por %p197, %p198
    %p200 = scmp.ne.s32.totalorder %s189, %s190
    %p201 = scmp.eq.s32.totalorder %s19, 0
    %p202 = por %p200, %p201
    %p203 = scmp.ne.s32.totalorder %s189, %s190
    %p204 = scmp.eq.s32.totalorder %s20, 1
    %p205 = por %p203, %p204
    %p207 = scmp.ne.s32.totalorder %s190, %s206
    %p208 = scmp.eq.s32.totalorder %s20, 0
    %p209 = por %p207, %p208
    %p210 = scmp.le.s32.totalorder 1, %s14
    %p211 = scmp.lt.s32.totalorder %s14, 3
    %p212 = pnand %p210, %p211
    %p213 = pneg %p212
    // Predicated region
    $region9: #{unet_down_forward.4} parent=5 // pred_check
      _
    $region10: #{unet_down_forward.4} parent=5 // pred_check_branch
      %215 = sbr.rel (%p212) target = $region12
    $region11: #{unet_down_forward.4} parent=5 // pred_region
      %s216 = ssub.s32 %s14, 1
      // Predicated region
      $region13: #{unet_down_forward.4} parent=11 // pred_check
        %p217 = pneg %p61
      $region14: #{unet_down_forward.4} parent=11 // pred_check_branch
        %219 = sbr.rel (%p217) target = $region16
      $region15: #{unet_down_forward.4} parent=11 // pred_region
        _
      $region16: #{unet_down_forward.4} parent=11 // pred_fallthru
        _
      // Predicated region
      $region17: #{unet_down_forward.4} parent=11 // pred_check
        %p220 = pneg %p82
      $region18: #{unet_down_forward.4} parent=11 // pred_check_branch
        %222 = sbr.rel (%p220) target = $region20
      $region19: #{unet_down_forward.4} parent=11 // pred_region
        _
      $region20: #{unet_down_forward.4} parent=11 // pred_fallthru
        _
      // Predicated region
      $region21: #{unet_down_forward.4} parent=11 // pred_check
        %p223 = pneg %p103
      $region22: #{unet_down_forward.4} parent=11 // pred_check_branch
        %225 = sbr.rel (%p223) target = $region24
      $region23: #{unet_down_forward.4} parent=11 // pred_region
        _
      $region24: #{unet_down_forward.4} parent=11 // pred_fallthru
        _
      // Predicated region
      $region25: #{unet_down_forward.4} parent=11 // pred_check
        %p226 = pneg %p124
      $region26: #{unet_down_forward.4} parent=11 // pred_check_branch
        %228 = sbr.rel (%p226) target = $region28
      $region27: #{unet_down_forward.4} parent=11 // pred_region
        _
      $region28: #{unet_down_forward.4} parent=11 // pred_fallthru
        _
    $region12: #{unet_down_forward.4} parent=5 // pred_fallthru
      _
    %p229 = scmp.lt.s32.totalorder %s14, 2
    // Predicated region
    $region29: #{unet_down_forward.4} parent=5 // pred_check
      %p230 = pneg %p229
    $region30: #{unet_down_forward.4} parent=5 // pred_check_branch
      %232 = sbr.rel (%p230) target = $region32
    $region31: #{unet_down_forward.4} parent=5 // pred_region
      // Predicated region
      $region33: #{unet_down_forward.4} parent=31 // pred_check
        %p233 = pneg %p34
      $region34: #{unet_down_forward.4} parent=31 // pred_check_branch
        %235 = sbr.rel (%p233) target = $region36
      $region35: #{unet_down_forward.4} parent=31 // pred_region
        %p236 = scmp.lt.s32.totalorder %s14, 1
        %s237 = scalar_select %p236, %s14, 1
        %s238 = smul.addr %s237, 16
        %s239 = smul.addr %s238, 4
        %s240 = scalar_lea.vmem %s0, %s239
      $region36: #{unet_down_forward.4} parent=31 // pred_fallthru
        _
    $region32: #{unet_down_forward.4} parent=5 // pred_fallthru
      _
    %p241 = scmp.le.s32.totalorder 1, %s14
    %p242 = scmp.lt.s32.totalorder %s14, 3
    %p243 = pnand %p241, %p242
    %p244 = pneg %p243
    // Predicated region
    $region37: #{unet_down_forward.4} parent=5 // pred_check
      _
    $region38: #{unet_down_forward.4} parent=5 // pred_check_branch
      %246 = sbr.rel (%p243) target = $region40
    $region39: #{unet_down_forward.4} parent=5 // pred_region
      %s247 = ssub.s32 %s14, 1
      %p248 = scmp.lt.s32.totalorder %s19, 1
      %s249 = scalar_select %p248, %s19, 1
      %s250 = smul.addr %s249, 16
      %s251 = smul.addr %s250, 4
      %s252 = scalar_lea.vmem %s0, %s251
      %p253 = pneg %p40
      %p254 = pneg %p37
      %p255 = pneg %p61
      %p256 = pneg %p58
      %p257 = pneg %p82
      %p258 = pneg %p79
      %p259 = pneg %p103
      %p260 = pneg %p100
      %p261 = pneg %p124
      %p262 = pneg %p121
      %p263 = pneg %p150
      %p264 = pneg %p147
      %p265 = scmp.lt.s32.totalorder %s19, 1
      %s266 = scalar_select %p265, %s19, 1
      %s267 = smul.addr %s266, 2
      %s268 = smul.addr %s267, 8
      %s269 = scalar_lea.vmem %s5, %s268
      %p270 = pneg %p176
      %p271 = pneg %p173
      %p272 = scmp.lt.s32.totalorder %s19, 1
      %s273 = scalar_select %p272, %s19, 1
      %s274 = smul.addr %s273, 8
      %s275 = scalar_lea.vmem %s6, %s274
      %p276 = pneg %p202
      %p277 = pneg %p199
      %p278 = scmp.lt.s32.totalorder %s19, 1
      %s279 = scalar_select %p278, %s19, 1
      %s280 = smul.addr %s279, 8
      %s281 = scalar_lea.vmem %s7, %s280
      %p282 = scmp.lt.s32.totalorder %s19, 1
      %s283 = scalar_select %p282, %s19, 1
      %s284 = smul.addr %s283, 16
      %s285 = smul.addr %s284, 4
      %s286 = scalar_lea.vmem %s0, %s285
      %p287 = scmp.lt.s32.totalorder %s19, 1
      %s288 = scalar_select %p287, %s19, 1
      %s289 = smul.addr %s288, 2
      %s290 = smul.addr %s289, 8
      %s291 = scalar_lea.vmem %s5, %s290
      %p292 = scmp.lt.s32.totalorder %s19, 1
      %s293 = scalar_select %p292, %s19, 1
      %s294 = smul.addr %s293, 8
      %s295 = scalar_lea.vmem %s6, %s294
      %p296 = scmp.lt.s32.totalorder %s19, 1
      %s297 = scalar_select %p296, %s19, 1
      %s298 = smul.addr %s297, 8
      %s299 = scalar_lea.vmem %s7, %s298
      %v301 = vld [vmem:[%s286] sm:$0xf]
      %v302 = vld [vmem:[%s286 + $0x4] sm:$0x7]
      %v303 = vld [vmem:[%s286 + $0x8] sm:$0xf]
      %v304 = vld [vmem:[%s286 + $0xc] sm:$0x7]
      %v305 = vld [vmem:[%s286 + $0x10] sm:$0xf]
      %v306 = vld [vmem:[%s286 + $0x14] sm:$0x7]
      %v307 = vld [vmem:[%s286 + $0x18] sm:$0xf]
      %v308 = vld [vmem:[%s286 + $0x1c] sm:$0x7]
      %v309 = vld [vmem:[%s286 + $0x20] sm:$0xf]
      %v310 = vld [vmem:[%s286 + $0x24] sm:$0x7]
      %v311 = vld [vmem:[%s286 + $0x28] sm:$0xf]
      %v312 = vld [vmem:[%s286 + $0x2c] sm:$0x7]
      %v313 = vld [vmem:[%s286 + $0x30] sm:$0xf]
      %v314 = vld [vmem:[%s286 + $0x34] sm:$0x7]
      %v315 = vld [vmem:[%s286 + $0x38] sm:$0xf]
      %v316 = vld [vmem:[%s286 + $0x3c] sm:$0x7]
      %v317 = vcombine.low %v301, %v309
      %v319 = vunpack.c.l.s4 1983009808
      %v320 = vunpack.c.0.s8 %v319
      %v321 = vlaneseq
      %v322 = vshrl.u32 %v321, 7
      %v323 = vsub.s32 %v320, %v322
      %v324 = vrot.slane %v317, %v323
      %v325 = vcombine.low %v305, %v313
      %v327 = vunpack.c.l.s4 1983009808
      %v328 = vunpack.c.0.s8 %v327
      %v329 = vlaneseq
      %v330 = vshrl.u32 %v329, 7
      %v331 = vsub.s32 %v328, %v330
      %v332 = vrot.slane %v325, %v331
      %v333 = vcombine.low %v324, %v332
      %v334 = vcombine.high %v324, %v332
      %v336 = vunpack.c.l.s4 1934713408
      %v337 = vunpack.c.0.s8 %v336
      %v338 = vlaneseq
      %v339 = vshrl.u32 %v338, 7
      %v340 = vsub.s32 %v337, %v339
      %v341 = vrot.slane %v333, %v340
      %v343 = vunpack.c.l.s4 1934713408
      %v344 = vunpack.c.0.s8 %v343
      %v345 = vlaneseq
      %v346 = vshrl.u32 %v345, 7
      %v347 = vsub.s32 %v344, %v346
      %v348 = vrot.slane %v334, %v347
      %v349 = vcombine.high %v341, 0
      %v350 = vcombine.high %v348, 0
      %v351 = vcombine.low %v303, %v311
      %v353 = vunpack.c.l.s4 1983009808
      %v354 = vunpack.c.0.s8 %v353
      %v355 = vlaneseq
      %v356 = vshrl.u32 %v355, 7
      %v357 = vsub.s32 %v354, %v356
      %v358 = vrot.slane %v351, %v357
      %v359 = vcombine.low %v307, %v315
      %v361 = vunpack.c.l.s4 1983009808
      %v362 = vunpack.c.0.s8 %v361
      %v363 = vlaneseq
      %v364 = vshrl.u32 %v363, 7
      %v365 = vsub.s32 %v362, %v364
      %v366 = vrot.slane %v359, %v365
      %v367 = vcombine.low %v358, %v366
      %v368 = vcombine.high %v358, %v366
      %v370 = vunpack.c.l.s4 1934713408
      %v371 = vunpack.c.0.s8 %v370
      %v372 = vlaneseq
      %v373 = vshrl.u32 %v372, 7
      %v374 = vsub.s32 %v371, %v373
      %v375 = vrot.slane %v367, %v374
      %v377 = vunpack.c.l.s4 1934713408
      %v378 = vunpack.c.0.s8 %v377
      %v379 = vlaneseq
      %v380 = vshrl.u32 %v379, 7
      %v381 = vsub.s32 %v378, %v380
      %v382 = vrot.slane %v368, %v381
      %v383 = vcombine.high %v375, 0
      %v384 = vcombine.high %v382, 0
      %v385 = vcombine.low %v302, %v310
      %v387 = vunpack.c.l.s4 1983009808
      %v388 = vunpack.c.0.s8 %v387
      %v389 = vlaneseq
      %v390 = vshrl.u32 %v389, 7
      %v391 = vsub.s32 %v388, %v390
      %v392 = vrot.slane %v385, %v391
      %v393 = vcombine.low %v306, %v314
      %v395 = vunpack.c.l.s4 1983009808
      %v396 = vunpack.c.0.s8 %v395
      %v397 = vlaneseq
      %v398 = vshrl.u32 %v397, 7
      %v399 = vsub.s32 %v396, %v398
      %v400 = vrot.slane %v393, %v399
      %v401 = vcombine.low %v392, %v400
      %v402 = vcombine.high %v392, %v400
      %v404 = vunpack.c.l.s4 1934713408
      %v405 = vunpack.c.0.s8 %v404
      %v406 = vlaneseq
      %v407 = vshrl.u32 %v406, 7
      %v408 = vsub.s32 %v405, %v407
      %v409 = vrot.slane %v401, %v408
      %v410 = vcombine.high %v409, 0
      %v412 = vunpack.c.l.s4 1934713408
      %v413 = vunpack.c.0.s8 %v412
      %v414 = vlaneseq
      %v415 = vshrl.u32 %v414, 7
      %v416 = vsub.s32 %v413, %v415
      %v417 = vrot.slane %v402, %v416
      %v418 = vcombine.low %v304, %v312
      %v420 = vunpack.c.l.s4 1983009808
      %v421 = vunpack.c.0.s8 %v420
      %v422 = vlaneseq
      %v423 = vshrl.u32 %v422, 7
      %v424 = vsub.s32 %v421, %v423
      %v425 = vrot.slane %v418, %v424
      %v426 = vcombine.low %v308, %v316
      %v428 = vunpack.c.l.s4 1983009808
      %v429 = vunpack.c.0.s8 %v428
      %v430 = vlaneseq
      %v431 = vshrl.u32 %v430, 7
      %v432 = vsub.s32 %v429, %v431
      %v433 = vrot.slane %v426, %v432
      %v434 = vcombine.low %v425, %v433
      %v435 = vcombine.high %v425, %v433
      %v437 = vunpack.c.l.s4 1934713408
      %v438 = vunpack.c.0.s8 %v437
      %v439 = vlaneseq
      %v440 = vshrl.u32 %v439, 7
      %v441 = vsub.s32 %v438, %v440
      %v442 = vrot.slane %v434, %v441
      %v443 = vcombine.high %v442, 0
      %v445 = vunpack.c.l.s4 1934713408
      %v446 = vunpack.c.0.s8 %v445
      %v447 = vlaneseq
      %v448 = vshrl.u32 %v447, 7
      %v449 = vsub.s32 %v446, %v448
      %v450 = vrot.slane %v435, %v449
      %v453 = vpack.i.b16 %v375, %v341
      %v454 = vshrl.u32 %v341, 16
      %v455 = vshrl.u32 %v375, 16
      %v456 = vpack.i.b16 %v455, %v454
      %v459 = vpack.i.b16 %v383, %v349
      %v460 = vshrl.u32 %v349, 16
      %v461 = vshrl.u32 %v383, 16
      %v462 = vpack.i.b16 %v461, %v460
      %v465 = vpack.i.b16 %v382, %v348
      %v466 = vshrl.u32 %v348, 16
      %v467 = vshrl.u32 %v382, 16
      %v468 = vpack.i.b16 %v467, %v466
      %v471 = vpack.i.b16 %v384, %v350
      %v472 = vshrl.u32 %v350, 16
      %v473 = vshrl.u32 %v384, 16
      %v474 = vpack.i.b16 %v473, %v472
      %v477 = vpack.i.b16 %v442, %v409
      %v478 = vshrl.u32 %v409, 16
      %v479 = vshrl.u32 %v442, 16
      %v480 = vpack.i.b16 %v479, %v478
      %v483 = vpack.i.b16 %v443, %v410
      %v484 = vshrl.u32 %v410, 16
      %v485 = vshrl.u32 %v443, 16
      %v486 = vpack.i.b16 %v485, %v484
      %v489 = vpack.i.b16 %v450, %v417
      %v490 = vshrl.u32 %v417, 16
      %v491 = vshrl.u32 %v450, 16
      %v492 = vpack.i.b16 %v491, %v490
      %v493 = vunpack.c.l.b16 %v456
      %v494 = vpack.c.b16 %v493, %v493
      %495 = vrot.lane.b32.xlu0 %v494, 14
      %v496 = vpop.permute.xlu0 %495
      %v497 = vunpack.c.l.b16 %v459
      %v498 = vpack.c.b16 %v497, %v497
      %499 = vrot.lane.b32.xlu0 %v498, 28
      %v500 = vpop.permute.xlu0 %499
      %v501 = vunpack.c.l.b16 %v462
      %v502 = vpack.c.b16 %v501, %v501
      %503 = vrot.lane.b32.xlu0 %v502, 42
      %v504 = vpop.permute.xlu0 %503
      %v505 = vunpack.c.l.b16 %v465
      %v506 = vpack.c.b16 %v505, %v505
      %507 = vrot.lane.b32.xlu0 %v506, 56
      %v508 = vpop.permute.xlu0 %507
      %v509 = vunpack.c.l.b16 %v468
      %v510 = vpack.c.b16 %v509, %v509
      %511 = vrot.lane.b32.xlu0 %v510, 70
      %v512 = vpop.permute.xlu0 %511
      %v513 = vunpack.c.l.b16 %v471
      %v514 = vpack.c.b16 %v513, %v513
      %515 = vrot.lane.b32.xlu0 %v514, 84
      %v516 = vpop.permute.xlu0 %515
      %v517 = vunpack.c.l.b16 %v474
      %v518 = vpack.c.b16 %v517, %v517
      %519 = vrot.lane.b32.xlu0 %v518, 98
      %v520 = vpop.permute.xlu0 %519
      %v521 = vunpack.c.l.b16 %v477
      %v522 = vpack.c.b16 %v521, %v521
      %523 = vrot.lane.b32.xlu0 %v522, 112
      %v524 = vpop.permute.xlu0 %523
      %v525 = vunpack.c.l.b16 %v480
      %v526 = vpack.c.b16 %v525, %v525
      %527 = vrot.lane.b32.xlu0 %v526, 126
      %v528 = vpop.permute.xlu0 %527
      %v529 = vunpack.c.l.b16 %v483
      %v530 = vpack.c.b16 %v529, %v529
      %531 = vrot.lane.b32.xlu0 %v530, 12
      %v532 = vpop.permute.xlu0 %531
      %v533 = vunpack.c.l.b16 %v486
      %v534 = vpack.c.b16 %v533, %v533
      %535 = vrot.lane.b32.xlu0 %v534, 26
      %v536 = vpop.permute.xlu0 %535
      %v537 = vunpack.c.l.b16 %v489
      %v538 = vpack.c.b16 %v537, %v537
      %539 = vrot.lane.b32.xlu0 %v538, 40
      %v540 = vpop.permute.xlu0 %539
      %v541 = vunpack.c.l.b16 %v492
      %v542 = vpack.c.b16 %v541, %v541
      %543 = vrot.lane.b32.xlu0 %v542, 54
      %v544 = vpop.permute.xlu0 %543
      %vm545 = vcmask 113664
      %v548 = vsel %vm545, %v453, %v496
      %vm549 = vcmask 228352
      %v551 = vsel %vm549, %v548, %v500
      %vm552 = vcmask 343040
      %v554 = vsel %vm552, %v551, %v504
      %vm555 = vcmask 457728
      %v557 = vsel %vm555, %v554, %v508
      %vm558 = vcmask 572416
      %v560 = vsel %vm558, %v557, %v512
      %vm561 = vcmask 687104
      %v563 = vsel %vm561, %v560, %v516
      %vm564 = vcmask 801792
      %v566 = vsel %vm564, %v563, %v520
      %vm567 = vcmask 916480
      %v569 = vsel %vm567, %v566, %v524
      %vm570 = vcmask 1031168
      %v572 = vsel %vm570, %v569, %v528
      %vm574 = vcmask 97280
      %v576 = vsel %vm574, %v528, %v532
      %vm577 = vcmask 211968
      %v579 = vsel %vm577, %v576, %v536
      %vm580 = vcmask 326656
      %v582 = vsel %vm580, %v579, %v540
      %vm583 = vcmask 441344
      %v585 = vsel %vm583, %v582, %v544
      %v587 = vunpack.c.l.bf16 %v572
      %v588 = vunpack.c.l.bf16 %v585
      %v589 = vld [vmem:[%s3] sm:$0xff]
      %591 = vset.pattern.permute.xlu0 0
      %592 = vperm.xlu0 %591, %v589
      %v593 = vpop.permute.xlu0 %592
      %v595 = vmul.f32 %v587, %v593
      %v596 = vmul.f32 %v588, %v593
      %v597 = vld [vmem:[%s4] sm:$0xff]
      %599 = vset.pattern.permute.xlu0 0
      %600 = vperm.xlu0 %599, %v597
      %v601 = vpop.permute.xlu0 %600
      %v603 = vadd.f32 %v595, %v601
      %v604 = vadd.f32 %v596, %v601
      %v605 = vmax.f32 %v603, 0.0
      %v606 = vmax.f32 %v604, 0.0
      %v607 = vpack.c.bf16 %v605, %v605
      %v608 = vpack.c.bf16 %v606, %v606
      %v609 = vld [vmem:[%s1] sm:$0xf]
      %vm610 = vcmask 64512
      %v612 = vsel %vm610, %v609, 0
      %vm614 = vcmask 1043456
      %v616 = vsel %vm614, %v607, 0
      %v619 = vsel %vm614, %v608, 0
      %621 = vmatprep.subr.bf16.mxu0 0
      %622 = vmatpush1.bf16.msra.mxu0 0
      %623 = vmatprep.subr.bf16.mxu0 0
      %624 = vmatpush1.bf16.msra.mxu0 0
      %625 = vmatprep.subr.bf16.mxu0 0
      %626 = vmatpush1.bf16.msra.mxu0 0
      %627 = vmatprep.subr.bf16.mxu0 0
      %628 = vmatpush1.bf16.msra.mxu0 0
      %629 = vmatprep.subr.bf16.mxu0 0
      %630 = vmatpush1.bf16.msra.mxu0 0
      %631 = vmatprep.subr.bf16.mxu0 0
      %632 = vmatpush1.bf16.msra.mxu0 0
      %633 = vmatprep.subr.bf16.mxu0 0
      %634 = vmatpush1.bf16.msra.mxu0 0
      %635 = vmatprep.subr.bf16.mxu0 %v619
      %636 = vmatpush1.bf16.msra.mxu0 %v616
      %637 = vmatprep.subr.bf16.mxu0 0
      %638 = vmatpush2.bf16.msra.mxu0 0
      %639 = vmatprep.subr.bf16.mxu0 0
      %640 = vmatpush2.bf16.msra.mxu0 0
      %641 = vmatprep.subr.bf16.mxu0 0
      %642 = vmatpush2.bf16.msra.mxu0 0
      %643 = vmatprep.subr.bf16.mxu0 0
      %644 = vmatpush2.bf16.msra.mxu0 0
      %645 = vmatprep.subr.bf16.mxu0 0
      %646 = vmatpush2.bf16.msra.mxu0 0
      %647 = vmatprep.subr.bf16.mxu0 0
      %648 = vmatpush2.bf16.msra.mxu0 0
      %649 = vmatprep.subr.bf16.mxu0 0
      %650 = vmatpush2.bf16.msra.mxu0 0
      %651 = vmatprep.subr.bf16.mxu0 0
      %652 = vmatpush2.bf16.msra.mxu0 0
      %653 = vmatprep.mubr.bf16.mxu0 0
      %654 = vmatmul.mubr.bf16.gmra.mxu0 %v612
      %v655 = vpop.f32.mrf.mxu0
      %v656 = vadd.f32 0.0, %v655
      %v657 = vpop.f32.mrf.mxu0
      %v658 = vadd.f32 0.0, %v657
      %v659 = vpop.f32.mrf.mxu0
      %v660 = vpop.f32.mrf.mxu0
      %661 = vdwg.mxu0
      %663 = vrot.lane.b32.xlu0 %v656, 114
      %v664 = vpop.permute.xlu0 %663
      %666 = vrot.lane.b32.xlu0 %v656, 100
      %v667 = vpop.permute.xlu0 %666
      %669 = vrot.lane.b32.xlu0 %v656, 86
      %v670 = vpop.permute.xlu0 %669
      %672 = vrot.lane.b32.xlu0 %v656, 72
      %v673 = vpop.permute.xlu0 %672
      %675 = vrot.lane.b32.xlu0 %v656, 58
      %v676 = vpop.permute.xlu0 %675
      %678 = vrot.lane.b32.xlu0 %v656, 44
      %v679 = vpop.permute.xlu0 %678
      %681 = vrot.lane.b32.xlu0 %v656, 30
      %v682 = vpop.permute.xlu0 %681
      %684 = vrot.lane.b32.xlu0 %v656, 16
      %v685 = vpop.permute.xlu0 %684
      %688 = vrot.lane.b32.xlu0 %v656, 2
      %v689 = vpop.permute.xlu0 %688
      %690 = vrot.lane.b32.xlu0 %v658, 2
      %v691 = vpop.permute.xlu0 %690
      %vm692 = vcmask 15360
      %v693 = vsel %vm692, %v689, %v691
      %695 = vrot.lane.b32.xlu0 %v658, 116
      %v696 = vpop.permute.xlu0 %695
      %698 = vrot.lane.b32.xlu0 %v658, 102
      %v699 = vpop.permute.xlu0 %698
      %701 = vrot.lane.b32.xlu0 %v658, 88
      %v702 = vpop.permute.xlu0 %701
      %704 = vrot.lane.b32.xlu0 %v658, 74
      %v705 = vpop.permute.xlu0 %704
      %v707 = vcombine.low %v656, %v667
      %v708 = vcombine.high %v656, %v667
      %v710 = vunpack.c.l.s4 1983009808
      %v711 = vunpack.c.0.s8 %v710
      %v712 = vlaneseq
      %v713 = vshrl.u32 %v712, 7
      %v714 = vsub.s32 %v711, %v713
      %v715 = vrot.slane %v707, %v714
      %v717 = vunpack.c.l.s4 1983009808
      %v718 = vunpack.c.0.s8 %v717
      %v719 = vlaneseq
      %v720 = vshrl.u32 %v719, 7
      %v721 = vsub.s32 %v718, %v720
      %v722 = vrot.slane %v708, %v721
      %v723 = vcombine.low %v664, %v670
      %v724 = vcombine.high %v664, %v670
      %v726 = vunpack.c.l.s4 1983009808
      %v727 = vunpack.c.0.s8 %v726
      %v728 = vlaneseq
      %v729 = vshrl.u32 %v728, 7
      %v730 = vsub.s32 %v727, %v729
      %v731 = vrot.slane %v723, %v730
      %v733 = vunpack.c.l.s4 1983009808
      %v734 = vunpack.c.0.s8 %v733
      %v735 = vlaneseq
      %v736 = vshrl.u32 %v735, 7
      %v737 = vsub.s32 %v734, %v736
      %v738 = vrot.slane %v724, %v737
      %v739 = vcombine.low %v673, %v679
      %v740 = vcombine.high %v673, %v679
      %v742 = vunpack.c.l.s4 1983009808
      %v743 = vunpack.c.0.s8 %v742
      %v744 = vlaneseq
      %v745 = vshrl.u32 %v744, 7
      %v746 = vsub.s32 %v743, %v745
      %v747 = vrot.slane %v739, %v746
      %v749 = vunpack.c.l.s4 1983009808
      %v750 = vunpack.c.0.s8 %v749
      %v751 = vlaneseq
      %v752 = vshrl.u32 %v751, 7
      %v753 = vsub.s32 %v750, %v752
      %v754 = vrot.slane %v740, %v753
      %v755 = vcombine.low %v676, %v682
      %v756 = vcombine.high %v676, %v682
      %v758 = vunpack.c.l.s4 1983009808
      %v759 = vunpack.c.0.s8 %v758
      %v760 = vlaneseq
      %v761 = vshrl.u32 %v760, 7
      %v762 = vsub.s32 %v759, %v761
      %v763 = vrot.slane %v755, %v762
      %v765 = vunpack.c.l.s4 1983009808
      %v766 = vunpack.c.0.s8 %v765
      %v767 = vlaneseq
      %v768 = vshrl.u32 %v767, 7
      %v769 = vsub.s32 %v766, %v768
      %v770 = vrot.slane %v756, %v769
      %v771 = vcombine.low %v715, %v731
      %v772 = vcombine.high %v715, %v731
      %v774 = vunpack.c.l.s4 1934713408
      %v775 = vunpack.c.0.s8 %v774
      %v776 = vlaneseq
      %v777 = vshrl.u32 %v776, 7
      %v778 = vsub.s32 %v775, %v777
      %v779 = vrot.slane %v771, %v778
      %v781 = vunpack.c.l.s4 1934713408
      %v782 = vunpack.c.0.s8 %v781
      %v783 = vlaneseq
      %v784 = vshrl.u32 %v783, 7
      %v785 = vsub.s32 %v782, %v784
      %v786 = vrot.slane %v772, %v785
      %v787 = vcombine.low %v722, %v738
      %v788 = vcombine.high %v722, %v738
      %v790 = vunpack.c.l.s4 1934713408
      %v791 = vunpack.c.0.s8 %v790
      %v792 = vlaneseq
      %v793 = vshrl.u32 %v792, 7
      %v794 = vsub.s32 %v791, %v793
      %v795 = vrot.slane %v787, %v794
      %v797 = vunpack.c.l.s4 1934713408
      %v798 = vunpack.c.0.s8 %v797
      %v799 = vlaneseq
      %v800 = vshrl.u32 %v799, 7
      %v801 = vsub.s32 %v798, %v800
      %v802 = vrot.slane %v788, %v801
      %v803 = vcombine.low %v747, %v763
      %v804 = vcombine.high %v747, %v763
      %v806 = vunpack.c.l.s4 1934713408
      %v807 = vunpack.c.0.s8 %v806
      %v808 = vlaneseq
      %v809 = vshrl.u32 %v808, 7
      %v810 = vsub.s32 %v807, %v809
      %v811 = vrot.slane %v803, %v810
      %v813 = vunpack.c.l.s4 1934713408
      %v814 = vunpack.c.0.s8 %v813
      %v815 = vlaneseq
      %v816 = vshrl.u32 %v815, 7
      %v817 = vsub.s32 %v814, %v816
      %v818 = vrot.slane %v804, %v817
      %v819 = vcombine.low %v754, %v770
      %v820 = vcombine.high %v754, %v770
      %v822 = vunpack.c.l.s4 1934713408
      %v823 = vunpack.c.0.s8 %v822
      %v824 = vlaneseq
      %v825 = vshrl.u32 %v824, 7
      %v826 = vsub.s32 %v823, %v825
      %v827 = vrot.slane %v819, %v826
      %v829 = vunpack.c.l.s4 1934713408
      %v830 = vunpack.c.0.s8 %v829
      %v831 = vlaneseq
      %v832 = vshrl.u32 %v831, 7
      %v833 = vsub.s32 %v830, %v832
      %v834 = vrot.slane %v820, %v833
      %v835 = vcombine.low %v779, %v811
      %v836 = vcombine.high %v779, %v811
      %v837 = vcombine.low %v786, %v818
      %v838 = vcombine.high %v786, %v818
      %v839 = vcombine.low %v795, %v827
      %v840 = vcombine.high %v795, %v827
      %v841 = vcombine.low %v802, %v834
      %v842 = vcombine.high %v802, %v834
      %v843 = vcombine.low %v685, %v696
      %v844 = vcombine.high %v685, %v696
      %v846 = vunpack.c.l.s4 1983009808
      %v847 = vunpack.c.0.s8 %v846
      %v848 = vlaneseq
      %v849 = vshrl.u32 %v848, 7
      %v850 = vsub.s32 %v847, %v849
      %v851 = vrot.slane %v843, %v850
      %v853 = vunpack.c.l.s4 1983009808
      %v854 = vunpack.c.0.s8 %v853
      %v855 = vlaneseq
      %v856 = vshrl.u32 %v855, 7
      %v857 = vsub.s32 %v854, %v856
      %v858 = vrot.slane %v844, %v857
      %v859 = vcombine.low %v693, %v699
      %v860 = vcombine.high %v693, %v699
      %v862 = vunpack.c.l.s4 1983009808
      %v863 = vunpack.c.0.s8 %v862
      %v864 = vlaneseq
      %v865 = vshrl.u32 %v864, 7
      %v866 = vsub.s32 %v863, %v865
      %v867 = vrot.slane %v859, %v866
      %v869 = vunpack.c.l.s4 1983009808
      %v870 = vunpack.c.0.s8 %v869
      %v871 = vlaneseq
      %v872 = vshrl.u32 %v871, 7
      %v873 = vsub.s32 %v870, %v872
      %v874 = vrot.slane %v860, %v873
      %v875 = vcombine.high %v702, 0.0
      %v877 = vunpack.c.l.s4 1983009808
      %v878 = vunpack.c.0.s8 %v877
      %v879 = vlaneseq
      %v880 = vshrl.u32 %v879, 7
      %v881 = vsub.s32 %v878, %v880
      %v882 = vrot.slane %v702, %v881
      %v884 = vunpack.c.l.s4 1983009808
      %v885 = vunpack.c.0.s8 %v884
      %v886 = vlaneseq
      %v887 = vshrl.u32 %v886, 7
      %v888 = vsub.s32 %v885, %v887
      %v889 = vrot.slane %v875, %v888
      %v890 = vcombine.high %v705, 0.0
      %v892 = vunpack.c.l.s4 1983009808
      %v893 = vunpack.c.0.s8 %v892
      %v894 = vlaneseq
      %v895 = vshrl.u32 %v894, 7
      %v896 = vsub.s32 %v893, %v895
      %v897 = vrot.slane %v705, %v896
      %v899 = vunpack.c.l.s4 1983009808
      %v900 = vunpack.c.0.s8 %v899
      %v901 = vlaneseq
      %v902 = vshrl.u32 %v901, 7
      %v903 = vsub.s32 %v900, %v902
      %v904 = vrot.slane %v890, %v903
      %v905 = vcombine.low %v851, %v867
      %v906 = vcombine.high %v851, %v867
      %v908 = vunpack.c.l.s4 1934713408
      %v909 = vunpack.c.0.s8 %v908
      %v910 = vlaneseq
      %v911 = vshrl.u32 %v910, 7
      %v912 = vsub.s32 %v909, %v911
      %v913 = vrot.slane %v905, %v912
      %v915 = vunpack.c.l.s4 1934713408
      %v916 = vunpack.c.0.s8 %v915
      %v917 = vlaneseq
      %v918 = vshrl.u32 %v917, 7
      %v919 = vsub.s32 %v916, %v918
      %v920 = vrot.slane %v906, %v919
      %v921 = vcombine.low %v858, %v874
      %v922 = vcombine.high %v858, %v874
      %v924 = vunpack.c.l.s4 1934713408
      %v925 = vunpack.c.0.s8 %v924
      %v926 = vlaneseq
      %v927 = vshrl.u32 %v926, 7
      %v928 = vsub.s32 %v925, %v927
      %v929 = vrot.slane %v921, %v928
      %v931 = vunpack.c.l.s4 1934713408
      %v932 = vunpack.c.0.s8 %v931
      %v933 = vlaneseq
      %v934 = vshrl.u32 %v933, 7
      %v935 = vsub.s32 %v932, %v934
      %v936 = vrot.slane %v922, %v935
      %v937 = vcombine.low %v882, %v897
      %v938 = vcombine.high %v882, %v897
      %v940 = vunpack.c.l.s4 1934713408
      %v941 = vunpack.c.0.s8 %v940
      %v942 = vlaneseq
      %v943 = vshrl.u32 %v942, 7
      %v944 = vsub.s32 %v941, %v943
      %v945 = vrot.slane %v937, %v944
      %v947 = vunpack.c.l.s4 1934713408
      %v948 = vunpack.c.0.s8 %v947
      %v949 = vlaneseq
      %v950 = vshrl.u32 %v949, 7
      %v951 = vsub.s32 %v948, %v950
      %v952 = vrot.slane %v938, %v951
      %v953 = vcombine.low %v889, %v904
      %v954 = vcombine.high %v889, %v904
      %v956 = vunpack.c.l.s4 1934713408
      %v957 = vunpack.c.0.s8 %v956
      %v958 = vlaneseq
      %v959 = vshrl.u32 %v958, 7
      %v960 = vsub.s32 %v957, %v959
      %v961 = vrot.slane %v953, %v960
      %v963 = vunpack.c.l.s4 1934713408
      %v964 = vunpack.c.0.s8 %v963
      %v965 = vlaneseq
      %v966 = vshrl.u32 %v965, 7
      %v967 = vsub.s32 %v964, %v966
      %v968 = vrot.slane %v954, %v967
      %v969 = vcombine.low %v913, %v945
      %v970 = vcombine.high %v913, %v945
      %v971 = vcombine.low %v920, %v952
      %v972 = vcombine.high %v920, %v952
      %v973 = vcombine.low %v929, %v961
      %v974 = vcombine.high %v929, %v961
      %v975 = vcombine.low %v936, %v968
      %v976 = vcombine.high %v936, %v968
      %v977 = vadd.f32 %v835, 0.0
      %v978 = vadd.f32 %v969, 0.0
      %v979 = vadd.f32 %v836, 0.0
      %v980 = vadd.f32 %v970, 0.0
      %v981 = vadd.f32 %v837, 0.0
      %v982 = vadd.f32 %v971, 0.0
      %v983 = vadd.f32 %v838, 0.0
      %v984 = vadd.f32 %v972, 0.0
      %v985 = vadd.f32 %v839, 0.0
      %v986 = vadd.f32 %v973, 0.0
      %v987 = vadd.f32 %v840, 0.0
      %v988 = vadd.f32 %v974, 0.0
      %v989 = vadd.f32 %v841, 0.0
      %v990 = vadd.f32 %v975, 0.0
      %v991 = vadd.f32 %v842, 0.0
      %v992 = vadd.f32 %v976, 0.0
      %s993 = scalar_lea.vmem %s1, 4
      %v994 = vld [vmem:[%s993] sm:$0xf]
      %v996 = vsel %vm610, %v994, 0
      %998 = vmatprep.subr.bf16.mxu0 0
      %999 = vmatpush1.bf16.msra.mxu0 0
      %1000 = vmatprep.subr.bf16.mxu0 0
      %1001 = vmatpush1.bf16.msra.mxu0 0
      %1002 = vmatprep.subr.bf16.mxu0 0
      %1003 = vmatpush1.bf16.msra.mxu0 0
      %1004 = vmatprep.subr.bf16.mxu0 0
      %1005 = vmatpush1.bf16.msra.mxu0 0
      %1006 = vmatprep.subr.bf16.mxu0 0
      %1007 = vmatpush1.bf16.msra.mxu0 0
      %1008 = vmatprep.subr.bf16.mxu0 0
      %1009 = vmatpush1.bf16.msra.mxu0 0
      %1010 = vmatprep.subr.bf16.mxu0 0
      %1011 = vmatpush1.bf16.msra.mxu0 0
      %1012 = vmatprep.subr.bf16.mxu0 %v619
      %1013 = vmatpush1.bf16.msra.mxu0 %v616
      %1014 = vmatprep.subr.bf16.mxu0 0
      %1015 = vmatpush2.bf16.msra.mxu0 0
      %1016 = vmatprep.subr.bf16.mxu0 0
      %1017 = vmatpush2.bf16.msra.mxu0 0
      %1018 = vmatprep.subr.bf16.mxu0 0
      %1019 = vmatpush2.bf16.msra.mxu0 0
      %1020 = vmatprep.subr.bf16.mxu0 0
      %1021 = vmatpush2.bf16.msra.mxu0 0
      %1022 = vmatprep.subr.bf16.mxu0 0
      %1023 = vmatpush2.bf16.msra.mxu0 0
      %1024 = vmatprep.subr.bf16.mxu0 0
      %1025 = vmatpush2.bf16.msra.mxu0 0
      %1026 = vmatprep.subr.bf16.mxu0 0
      %1027 = vmatpush2.bf16.msra.mxu0 0
      %1028 = vmatprep.subr.bf16.mxu0 0
      %1029 = vmatpush2.bf16.msra.mxu0 0
      %1030 = vmatprep.mubr.bf16.mxu0 0
      %1031 = vmatmul.mubr.bf16.gmra.mxu0 %v996
      %v1032 = vpop.f32.mrf.mxu0
      %v1033 = vadd.f32 0.0, %v1032
      %v1034 = vpop.f32.mrf.mxu0
      %v1035 = vadd.f32 0.0, %v1034
      %v1036 = vpop.f32.mrf.mxu0
      %v1037 = vpop.f32.mrf.mxu0
      %1038 = vdwg.mxu0
      %1040 = vrot.lane.b32.xlu0 %v1033, 114
      %v1041 = vpop.permute.xlu0 %1040
      %1043 = vrot.lane.b32.xlu0 %v1033, 100
      %v1044 = vpop.permute.xlu0 %1043
      %1046 = vrot.lane.b32.xlu0 %v1033, 86
      %v1047 = vpop.permute.xlu0 %1046
      %1049 = vrot.lane.b32.xlu0 %v1033, 72
      %v1050 = vpop.permute.xlu0 %1049
      %1052 = vrot.lane.b32.xlu0 %v1033, 58
      %v1053 = vpop.permute.xlu0 %1052
      %1055 = vrot.lane.b32.xlu0 %v1033, 44
      %v1056 = vpop.permute.xlu0 %1055
      %1058 = vrot.lane.b32.xlu0 %v1033, 30
      %v1059 = vpop.permute.xlu0 %1058
      %1061 = vrot.lane.b32.xlu0 %v1033, 16
      %v1062 = vpop.permute.xlu0 %1061
      %1065 = vrot.lane.b32.xlu0 %v1033, 2
      %v1066 = vpop.permute.xlu0 %1065
      %1067 = vrot.lane.b32.xlu0 %v1035, 2
      %v1068 = vpop.permute.xlu0 %1067
      %v1069 = vsel %vm692, %v1066, %v1068
      %1071 = vrot.lane.b32.xlu0 %v1035, 116
      %v1072 = vpop.permute.xlu0 %1071
      %1074 = vrot.lane.b32.xlu0 %v1035, 102
      %v1075 = vpop.permute.xlu0 %1074
      %1077 = vrot.lane.b32.xlu0 %v1035, 88
      %v1078 = vpop.permute.xlu0 %1077
      %1080 = vrot.lane.b32.xlu0 %v1035, 74
      %v1081 = vpop.permute.xlu0 %1080
      %v1083 = vcombine.low %v1033, %v1044
      %v1084 = vcombine.high %v1033, %v1044
      %v1086 = vunpack.c.l.s4 1983009808
      %v1087 = vunpack.c.0.s8 %v1086
      %v1088 = vlaneseq
      %v1089 = vshrl.u32 %v1088, 7
      %v1090 = vsub.s32 %v1087, %v1089
      %v1091 = vrot.slane %v1083, %v1090
      %v1093 = vunpack.c.l.s4 1983009808
      %v1094 = vunpack.c.0.s8 %v1093
      %v1095 = vlaneseq
      %v1096 = vshrl.u32 %v1095, 7
      %v1097 = vsub.s32 %v1094, %v1096
      %v1098 = vrot.slane %v1084, %v1097
      %v1099 = vcombine.low %v1041, %v1047
      %v1100 = vcombine.high %v1041, %v1047
      %v1102 = vunpack.c.l.s4 1983009808
      %v1103 = vunpack.c.0.s8 %v1102
      %v1104 = vlaneseq
      %v1105 = vshrl.u32 %v1104, 7
      %v1106 = vsub.s32 %v1103, %v1105
      %v1107 = vrot.slane %v1099, %v1106
      %v1109 = vunpack.c.l.s4 1983009808
      %v1110 = vunpack.c.0.s8 %v1109
      %v1111 = vlaneseq
      %v1112 = vshrl.u32 %v1111, 7
      %v1113 = vsub.s32 %v1110, %v1112
      %v1114 = vrot.slane %v1100, %v1113
      %v1115 = vcombine.low %v1050, %v1056
      %v1116 = vcombine.high %v1050, %v1056
      %v1118 = vunpack.c.l.s4 1983009808
      %v1119 = vunpack.c.0.s8 %v1118
      %v1120 = vlaneseq
      %v1121 = vshrl.u32 %v1120, 7
      %v1122 = vsub.s32 %v1119, %v1121
      %v1123 = vrot.slane %v1115, %v1122
      %v1125 = vunpack.c.l.s4 1983009808
      %v1126 = vunpack.c.0.s8 %v1125
      %v1127 = vlaneseq
      %v1128 = vshrl.u32 %v1127, 7
      %v1129 = vsub.s32 %v1126, %v1128
      %v1130 = vrot.slane %v1116, %v1129
      %v1131 = vcombine.low %v1053, %v1059
      %v1132 = vcombine.high %v1053, %v1059
      %v1134 = vunpack.c.l.s4 1983009808
      %v1135 = vunpack.c.0.s8 %v1134
      %v1136 = vlaneseq
      %v1137 = vshrl.u32 %v1136, 7
      %v1138 = vsub.s32 %v1135, %v1137
      %v1139 = vrot.slane %v1131, %v1138
      %v1141 = vunpack.c.l.s4 1983009808
      %v1142 = vunpack.c.0.s8 %v1141
      %v1143 = vlaneseq
      %v1144 = vshrl.u32 %v1143, 7
      %v1145 = vsub.s32 %v1142, %v1144
      %v1146 = vrot.slane %v1132, %v1145
      %v1147 = vcombine.low %v1091, %v1107
      %v1148 = vcombine.high %v1091, %v1107
      %v1150 = vunpack.c.l.s4 1934713408
      %v1151 = vunpack.c.0.s8 %v1150
      %v1152 = vlaneseq
      %v1153 = vshrl.u32 %v1152, 7
      %v1154 = vsub.s32 %v1151, %v1153
      %v1155 = vrot.slane %v1147, %v1154
      %v1157 = vunpack.c.l.s4 1934713408
      %v1158 = vunpack.c.0.s8 %v1157
      %v1159 = vlaneseq
      %v1160 = vshrl.u32 %v1159, 7
      %v1161 = vsub.s32 %v1158, %v1160
      %v1162 = vrot.slane %v1148, %v1161
      %v1163 = vcombine.low %v1098, %v1114
      %v1164 = vcombine.high %v1098, %v1114
      %v1166 = vunpack.c.l.s4 1934713408
      %v1167 = vunpack.c.0.s8 %v1166
      %v1168 = vlaneseq
      %v1169 = vshrl.u32 %v1168, 7
      %v1170 = vsub.s32 %v1167, %v1169
      %v1171 = vrot.slane %v1163, %v1170
      %v1173 = vunpack.c.l.s4 1934713408
      %v1174 = vunpack.c.0.s8 %v1173
      %v1175 = vlaneseq
      %v1176 = vshrl.u32 %v1175, 7
      %v1177 = vsub.s32 %v1174, %v1176
      %v1178 = vrot.slane %v1164, %v1177
      %v1179 = vcombine.low %v1123, %v1139
      %v1180 = vcombine.high %v1123, %v1139
      %v1182 = vunpack.c.l.s4 1934713408
      %v1183 = vunpack.c.0.s8 %v1182
      %v1184 = vlaneseq
      %v1185 = vshrl.u32 %v1184, 7
      %v1186 = vsub.s32 %v1183, %v1185
      %v1187 = vrot.slane %v1179, %v1186
      %v1189 = vunpack.c.l.s4 1934713408
      %v1190 = vunpack.c.0.s8 %v1189
      %v1191 = vlaneseq
      %v1192 = vshrl.u32 %v1191, 7
      %v1193 = vsub.s32 %v1190, %v1192
      %v1194 = vrot.slane %v1180, %v1193
      %v1195 = vcombine.low %v1130, %v1146
      %v1196 = vcombine.high %v1130, %v1146
      %v1198 = vunpack.c.l.s4 1934713408
      %v1199 = vunpack.c.0.s8 %v1198
      %v1200 = vlaneseq
      %v1201 = vshrl.u32 %v1200, 7
      %v1202 = vsub.s32 %v1199, %v1201
      %v1203 = vrot.slane %v1195, %v1202
      %v1205 = vunpack.c.l.s4 1934713408
      %v1206 = vunpack.c.0.s8 %v1205
      %v1207 = vlaneseq
      %v1208 = vshrl.u32 %v1207, 7
      %v1209 = vsub.s32 %v1206, %v1208
      %v1210 = vrot.slane %v1196, %v1209
      %v1211 = vcombine.low %v1155, %v1187
      %v1212 = vcombine.high %v1155, %v1187
      %v1213 = vcombine.low %v1162, %v1194
      %v1214 = vcombine.high %v1162, %v1194
      %v1215 = vcombine.low %v1171, %v1203
      %v1216 = vcombine.high %v1171, %v1203
      %v1217 = vcombine.low %v1178, %v1210
      %v1218 = vcombine.high %v1178, %v1210
      %v1219 = vcombine.low %v1062, %v1072
      %v1220 = vcombine.high %v1062, %v1072
      %v1222 = vunpack.c.l.s4 1983009808
      %v1223 = vunpack.c.0.s8 %v1222
      %v1224 = vlaneseq
      %v1225 = vshrl.u32 %v1224, 7
      %v1226 = vsub.s32 %v1223, %v1225
      %v1227 = vrot.slane %v1219, %v1226
      %v1229 = vunpack.c.l.s4 1983009808
      %v1230 = vunpack.c.0.s8 %v1229
      %v1231 = vlaneseq
      %v1232 = vshrl.u32 %v1231, 7
      %v1233 = vsub.s32 %v1230, %v1232
      %v1234 = vrot.slane %v1220, %v1233
      %v1235 = vcombine.low %v1069, %v1075
      %v1236 = vcombine.high %v1069, %v1075
      %v1238 = vunpack.c.l.s4 1983009808
      %v1239 = vunpack.c.0.s8 %v1238
      %v1240 = vlaneseq
      %v1241 = vshrl.u32 %v1240, 7
      %v1242 = vsub.s32 %v1239, %v1241
      %v1243 = vrot.slane %v1235, %v1242
      %v1245 = vunpack.c.l.s4 1983009808
      %v1246 = vunpack.c.0.s8 %v1245
      %v1247 = vlaneseq
      %v1248 = vshrl.u32 %v1247, 7
      %v1249 = vsub.s32 %v1246, %v1248
      %v1250 = vrot.slane %v1236, %v1249
      %v1251 = vcombine.high %v1078, 0.0
      %v1253 = vunpack.c.l.s4 1983009808
      %v1254 = vunpack.c.0.s8 %v1253
      %v1255 = vlaneseq
      %v1256 = vshrl.u32 %v1255, 7
      %v1257 = vsub.s32 %v1254, %v1256
      %v1258 = vrot.slane %v1078, %v1257
      %v1260 = vunpack.c.l.s4 1983009808
      %v1261 = vunpack.c.0.s8 %v1260
      %v1262 = vlaneseq
      %v1263 = vshrl.u32 %v1262, 7
      %v1264 = vsub.s32 %v1261, %v1263
      %v1265 = vrot.slane %v1251, %v1264
      %v1266 = vcombine.high %v1081, 0.0
      %v1268 = vunpack.c.l.s4 1983009808
      %v1269 = vunpack.c.0.s8 %v1268
      %v1270 = vlaneseq
      %v1271 = vshrl.u32 %v1270, 7
      %v1272 = vsub.s32 %v1269, %v1271
      %v1273 = vrot.slane %v1081, %v1272
      %v1275 = vunpack.c.l.s4 1983009808
      %v1276 = vunpack.c.0.s8 %v1275
      %v1277 = vlaneseq
      %v1278 = vshrl.u32 %v1277, 7
      %v1279 = vsub.s32 %v1276, %v1278
      %v1280 = vrot.slane %v1266, %v1279
      %v1281 = vcombine.low %v1227, %v1243
      %v1282 = vcombine.high %v1227, %v1243
      %v1284 = vunpack.c.l.s4 1934713408
      %v1285 = vunpack.c.0.s8 %v1284
      %v1286 = vlaneseq
      %v1287 = vshrl.u32 %v1286, 7
      %v1288 = vsub.s32 %v1285, %v1287
      %v1289 = vrot.slane %v1281, %v1288
      %v1291 = vunpack.c.l.s4 1934713408
      %v1292 = vunpack.c.0.s8 %v1291
      %v1293 = vlaneseq
      %v1294 = vshrl.u32 %v1293, 7
      %v1295 = vsub.s32 %v1292, %v1294
      %v1296 = vrot.slane %v1282, %v1295
      %v1297 = vcombine.low %v1234, %v1250
      %v1298 = vcombine.high %v1234, %v1250
      %v1300 = vunpack.c.l.s4 1934713408
      %v1301 = vunpack.c.0.s8 %v1300
      %v1302 = vlaneseq
      %v1303 = vshrl.u32 %v1302, 7
      %v1304 = vsub.s32 %v1301, %v1303
      %v1305 = vrot.slane %v1297, %v1304
      %v1307 = vunpack.c.l.s4 1934713408
      %v1308 = vunpack.c.0.s8 %v1307
      %v1309 = vlaneseq
      %v1310 = vshrl.u32 %v1309, 7
      %v1311 = vsub.s32 %v1308, %v1310
      %v1312 = vrot.slane %v1298, %v1311
      %v1313 = vcombine.low %v1258, %v1273
      %v1314 = vcombine.high %v1258, %v1273
      %v1316 = vunpack.c.l.s4 1934713408
      %v1317 = vunpack.c.0.s8 %v1316
      %v1318 = vlaneseq
      %v1319 = vshrl.u32 %v1318, 7
      %v1320 = vsub.s32 %v1317, %v1319
      %v1321 = vrot.slane %v1313, %v1320
      %v1323 = vunpack.c.l.s4 1934713408
      %v1324 = vunpack.c.0.s8 %v1323
      %v1325 = vlaneseq
      %v1326 = vshrl.u32 %v1325, 7
      %v1327 = vsub.s32 %v1324, %v1326
      %v1328 = vrot.slane %v1314, %v1327
      %v1329 = vcombine.low %v1265, %v1280
      %v1330 = vcombine.high %v1265, %v1280
      %v1332 = vunpack.c.l.s4 1934713408
      %v1333 = vunpack.c.0.s8 %v1332
      %v1334 = vlaneseq
      %v1335 = vshrl.u32 %v1334, 7
      %v1336 = vsub.s32 %v1333, %v1335
      %v1337 = vrot.slane %v1329, %v1336
      %v1339 = vunpack.c.l.s4 1934713408
      %v1340 = vunpack.c.0.s8 %v1339
      %v1341 = vlaneseq
      %v1342 = vshrl.u32 %v1341, 7
      %v1343 = vsub.s32 %v1340, %v1342
      %v1344 = vrot.slane %v1330, %v1343
      %v1345 = vcombine.low %v1289, %v1321
      %v1346 = vcombine.high %v1289, %v1321
      %v1347 = vcombine.low %v1296, %v1328
      %v1348 = vcombine.high %v1296, %v1328
      %v1349 = vcombine.low %v1305, %v1337
      %v1350 = vcombine.high %v1305, %v1337
      %v1351 = vcombine.low %v1312, %v1344
      %v1352 = vcombine.high %v1312, %v1344
      %1369 = vrot.lane.b32.xlu0 %v1211, 127
      %v1370 = vpop.permute.xlu0 %1369
      %1371 = vrot.lane.b32.xlu0 %v1345, 127
      %v1372 = vpop.permute.xlu0 %1371
      %1373 = vrot.lane.b32.xlu0 %v1212, 127
      %v1374 = vpop.permute.xlu0 %1373
      %1375 = vrot.lane.b32.xlu0 %v1346, 127
      %v1376 = vpop.permute.xlu0 %1375
      %1377 = vrot.lane.b32.xlu0 %v1213, 127
      %v1378 = vpop.permute.xlu0 %1377
      %1379 = vrot.lane.b32.xlu0 %v1347, 127
      %v1380 = vpop.permute.xlu0 %1379
      %1381 = vrot.lane.b32.xlu0 %v1214, 127
      %v1382 = vpop.permute.xlu0 %1381
      %1383 = vrot.lane.b32.xlu0 %v1348, 127
      %v1384 = vpop.permute.xlu0 %1383
      %1385 = vrot.lane.b32.xlu0 %v1215, 127
      %v1386 = vpop.permute.xlu0 %1385
      %1387 = vrot.lane.b32.xlu0 %v1349, 127
      %v1388 = vpop.permute.xlu0 %1387
      %1389 = vrot.lane.b32.xlu0 %v1216, 127
      %v1390 = vpop.permute.xlu0 %1389
      %1391 = vrot.lane.b32.xlu0 %v1350, 127
      %v1392 = vpop.permute.xlu0 %1391
      %1393 = vrot.lane.b32.xlu0 %v1217, 127
      %v1394 = vpop.permute.xlu0 %1393
      %1395 = vrot.lane.b32.xlu0 %v1351, 127
      %v1396 = vpop.permute.xlu0 %1395
      %1397 = vrot.lane.b32.xlu0 %v1218, 127
      %v1398 = vpop.permute.xlu0 %1397
      %1399 = vrot.lane.b32.xlu0 %v1352, 127
      %v1400 = vpop.permute.xlu0 %1399
      %v1417 = vadd.f32 %v977, %v1370
      %v1418 = vadd.f32 %v978, %v1372
      %v1419 = vadd.f32 %v979, %v1374
      %v1420 = vadd.f32 %v980, %v1376
      %v1421 = vadd.f32 %v981, %v1378
      %v1422 = vadd.f32 %v982, %v1380
      %v1423 = vadd.f32 %v983, %v1382
      %v1424 = vadd.f32 %v984, %v1384
      %v1425 = vadd.f32 %v985, %v1386
      %v1426 = vadd.f32 %v986, %v1388
      %v1427 = vadd.f32 %v987, %v1390
      %v1428 = vadd.f32 %v988, %v1392
      %v1429 = vadd.f32 %v989, %v1394
      %v1430 = vadd.f32 %v990, %v1396
      %v1431 = vadd.f32 %v991, %v1398
      %v1432 = vadd.f32 %v992, %v1400
      %s1433 = scalar_lea.vmem %s1, 8
      %v1434 = vld [vmem:[%s1433] sm:$0xf]
      %v1436 = vsel %vm610, %v1434, 0
      %1438 = vmatprep.subr.bf16.mxu0 0
      %1439 = vmatpush1.bf16.msra.mxu0 0
      %1440 = vmatprep.subr.bf16.mxu0 0
      %1441 = vmatpush1.bf16.msra.mxu0 0
      %1442 = vmatprep.subr.bf16.mxu0 0
      %1443 = vmatpush1.bf16.msra.mxu0 0
      %1444 = vmatprep.subr.bf16.mxu0 0
      %1445 = vmatpush1.bf16.msra.mxu0 0
      %1446 = vmatprep.subr.bf16.mxu0 0
      %1447 = vmatpush1.bf16.msra.mxu0 0
      %1448 = vmatprep.subr.bf16.mxu0 0
      %1449 = vmatpush1.bf16.msra.mxu0 0
      %1450 = vmatprep.subr.bf16.mxu0 0
      %1451 = vmatpush1.bf16.msra.mxu0 0
      %1452 = vmatprep.subr.bf16.mxu0 %v619
      %1453 = vmatpush1.bf16.msra.mxu0 %v616
      %1454 = vmatprep.subr.bf16.mxu0 0
      %1455 = vmatpush2.bf16.msra.mxu0 0
      %1456 = vmatprep.subr.bf16.mxu0 0
      %1457 = vmatpush2.bf16.msra.mxu0 0
      %1458 = vmatprep.subr.bf16.mxu0 0
      %1459 = vmatpush2.bf16.msra.mxu0 0
      %1460 = vmatprep.subr.bf16.mxu0 0
      %1461 = vmatpush2.bf16.msra.mxu0 0
      %1462 = vmatprep.subr.bf16.mxu0 0
      %1463 = vmatpush2.bf16.msra.mxu0 0
      %1464 = vmatprep.subr.bf16.mxu0 0
      %1465 = vmatpush2.bf16.msra.mxu0 0
      %1466 = vmatprep.subr.bf16.mxu0 0
      %1467 = vmatpush2.bf16.msra.mxu0 0
      %1468 = vmatprep.subr.bf16.mxu0 0
      %1469 = vmatpush2.bf16.msra.mxu0 0
      %1470 = vmatprep.mubr.bf16.mxu0 0
      %1471 = vmatmul.mubr.bf16.gmra.mxu0 %v1436
      %v1472 = vpop.f32.mrf.mxu0
      %v1473 = vadd.f32 0.0, %v1472
      %v1474 = vpop.f32.mrf.mxu0
      %v1475 = vadd.f32 0.0, %v1474
      %v1476 = vpop.f32.mrf.mxu0
      %v1477 = vpop.f32.mrf.mxu0
      %1478 = vdwg.mxu0
      %1480 = vrot.lane.b32.xlu0 %v1473, 114
      %v1481 = vpop.permute.xlu0 %1480
      %1483 = vrot.lane.b32.xlu0 %v1473, 100
      %v1484 = vpop.permute.xlu0 %1483
      %1486 = vrot.lane.b32.xlu0 %v1473, 86
      %v1487 = vpop.permute.xlu0 %1486
      %1489 = vrot.lane.b32.xlu0 %v1473, 72
      %v1490 = vpop.permute.xlu0 %1489
      %1492 = vrot.lane.b32.xlu0 %v1473, 58
      %v1493 = vpop.permute.xlu0 %1492
      %1495 = vrot.lane.b32.xlu0 %v1473, 44
      %v1496 = vpop.permute.xlu0 %1495
      %1498 = vrot.lane.b32.xlu0 %v1473, 30
      %v1499 = vpop.permute.xlu0 %1498
      %1501 = vrot.lane.b32.xlu0 %v1473, 16
      %v1502 = vpop.permute.xlu0 %1501
      %1505 = vrot.lane.b32.xlu0 %v1473, 2
      %v1506 = vpop.permute.xlu0 %1505
      %1507 = vrot.lane.b32.xlu0 %v1475, 2
      %v1508 = vpop.permute.xlu0 %1507
      %v1509 = vsel %vm692, %v1506, %v1508
      %1511 = vrot.lane.b32.xlu0 %v1475, 116
      %v1512 = vpop.permute.xlu0 %1511
      %1514 = vrot.lane.b32.xlu0 %v1475, 102
      %v1515 = vpop.permute.xlu0 %1514
      %1517 = vrot.lane.b32.xlu0 %v1475, 88
      %v1518 = vpop.permute.xlu0 %1517
      %1520 = vrot.lane.b32.xlu0 %v1475, 74
      %v1521 = vpop.permute.xlu0 %1520
      %v1523 = vcombine.low %v1473, %v1484
      %v1524 = vcombine.high %v1473, %v1484
      %v1526 = vunpack.c.l.s4 1983009808
      %v1527 = vunpack.c.0.s8 %v1526
      %v1528 = vlaneseq
      %v1529 = vshrl.u32 %v1528, 7
      %v1530 = vsub.s32 %v1527, %v1529
      %v1531 = vrot.slane %v1523, %v1530
      %v1533 = vunpack.c.l.s4 1983009808
      %v1534 = vunpack.c.0.s8 %v1533
      %v1535 = vlaneseq
      %v1536 = vshrl.u32 %v1535, 7
      %v1537 = vsub.s32 %v1534, %v1536
      %v1538 = vrot.slane %v1524, %v1537
      %v1539 = vcombine.low %v1481, %v1487
      %v1540 = vcombine.high %v1481, %v1487
      %v1542 = vunpack.c.l.s4 1983009808
      %v1543 = vunpack.c.0.s8 %v1542
      %v1544 = vlaneseq
      %v1545 = vshrl.u32 %v1544, 7
      %v1546 = vsub.s32 %v1543, %v1545
      %v1547 = vrot.slane %v1539, %v1546
      %v1549 = vunpack.c.l.s4 1983009808
      %v1550 = vunpack.c.0.s8 %v1549
      %v1551 = vlaneseq
      %v1552 = vshrl.u32 %v1551, 7
      %v1553 = vsub.s32 %v1550, %v1552
      %v1554 = vrot.slane %v1540, %v1553
      %v1555 = vcombine.low %v1490, %v1496
      %v1556 = vcombine.high %v1490, %v1496
      %v1558 = vunpack.c.l.s4 1983009808
      %v1559 = vunpack.c.0.s8 %v1558
      %v1560 = vlaneseq
      %v1561 = vshrl.u32 %v1560, 7
      %v1562 = vsub.s32 %v1559, %v1561
      %v1563 = vrot.slane %v1555, %v1562
      %v1565 = vunpack.c.l.s4 1983009808
      %v1566 = vunpack.c.0.s8 %v1565
      %v1567 = vlaneseq
      %v1568 = vshrl.u32 %v1567, 7
      %v1569 = vsub.s32 %v1566, %v1568
      %v1570 = vrot.slane %v1556, %v1569
      %v1571 = vcombine.low %v1493, %v1499
      %v1572 = vcombine.high %v1493, %v1499
      %v1574 = vunpack.c.l.s4 1983009808
      %v1575 = vunpack.c.0.s8 %v1574
      %v1576 = vlaneseq
      %v1577 = vshrl.u32 %v1576, 7
      %v1578 = vsub.s32 %v1575, %v1577
      %v1579 = vrot.slane %v1571, %v1578
      %v1581 = vunpack.c.l.s4 1983009808
      %v1582 = vunpack.c.0.s8 %v1581
      %v1583 = vlaneseq
      %v1584 = vshrl.u32 %v1583, 7
      %v1585 = vsub.s32 %v1582, %v1584
      %v1586 = vrot.slane %v1572, %v1585
      %v1587 = vcombine.low %v1531, %v1547
      %v1588 = vcombine.high %v1531, %v1547
      %v1590 = vunpack.c.l.s4 1934713408
      %v1591 = vunpack.c.0.s8 %v1590
      %v1592 = vlaneseq
      %v1593 = vshrl.u32 %v1592, 7
      %v1594 = vsub.s32 %v1591, %v1593
      %v1595 = vrot.slane %v1587, %v1594
      %v1597 = vunpack.c.l.s4 1934713408
      %v1598 = vunpack.c.0.s8 %v1597
      %v1599 = vlaneseq
      %v1600 = vshrl.u32 %v1599, 7
      %v1601 = vsub.s32 %v1598, %v1600
      %v1602 = vrot.slane %v1588, %v1601
      %v1603 = vcombine.low %v1538, %v1554
      %v1604 = vcombine.high %v1538, %v1554
      %v1606 = vunpack.c.l.s4 1934713408
      %v1607 = vunpack.c.0.s8 %v1606
      %v1608 = vlaneseq
      %v1609 = vshrl.u32 %v1608, 7
      %v1610 = vsub.s32 %v1607, %v1609
      %v1611 = vrot.slane %v1603, %v1610
      %v1613 = vunpack.c.l.s4 1934713408
      %v1614 = vunpack.c.0.s8 %v1613
      %v1615 = vlaneseq
      %v1616 = vshrl.u32 %v1615, 7
      %v1617 = vsub.s32 %v1614, %v1616
      %v1618 = vrot.slane %v1604, %v1617
      %v1619 = vcombine.low %v1563, %v1579
      %v1620 = vcombine.high %v1563, %v1579
      %v1622 = vunpack.c.l.s4 1934713408
      %v1623 = vunpack.c.0.s8 %v1622
      %v1624 = vlaneseq
      %v1625 = vshrl.u32 %v1624, 7
      %v1626 = vsub.s32 %v1623, %v1625
      %v1627 = vrot.slane %v1619, %v1626
      %v1629 = vunpack.c.l.s4 1934713408
      %v1630 = vunpack.c.0.s8 %v1629
      %v1631 = vlaneseq
      %v1632 = vshrl.u32 %v1631, 7
      %v1633 = vsub.s32 %v1630, %v1632
      %v1634 = vrot.slane %v1620, %v1633
      %v1635 = vcombine.low %v1570, %v1586
      %v1636 = vcombine.high %v1570, %v1586
      %v1638 = vunpack.c.l.s4 1934713408
      %v1639 = vunpack.c.0.s8 %v1638
      %v1640 = vlaneseq
      %v1641 = vshrl.u32 %v1640, 7
      %v1642 = vsub.s32 %v1639, %v1641
      %v1643 = vrot.slane %v1635, %v1642
      %v1645 = vunpack.c.l.s4 1934713408
      %v1646 = vunpack.c.0.s8 %v1645
      %v1647 = vlaneseq
      %v1648 = vshrl.u32 %v1647, 7
      %v1649 = vsub.s32 %v1646, %v1648
      %v1650 = vrot.slane %v1636, %v1649
      %v1651 = vcombine.low %v1595, %v1627
      %v1652 = vcombine.high %v1595, %v1627
      %v1653 = vcombine.low %v1602, %v1634
      %v1654 = vcombine.high %v1602, %v1634
      %v1655 = vcombine.low %v1611, %v1643
      %v1656 = vcombine.high %v1611, %v1643
      %v1657 = vcombine.low %v1618, %v1650
      %v1658 = vcombine.high %v1618, %v1650
      %v1659 = vcombine.low %v1502, %v1512
      %v1660 = vcombine.high %v1502, %v1512
      %v1662 = vunpack.c.l.s4 1983009808
      %v1663 = vunpack.c.0.s8 %v1662
      %v1664 = vlaneseq
      %v1665 = vshrl.u32 %v1664, 7
      %v1666 = vsub.s32 %v1663, %v1665
      %v1667 = vrot.slane %v1659, %v1666
      %v1669 = vunpack.c.l.s4 1983009808
      %v1670 = vunpack.c.0.s8 %v1669
      %v1671 = vlaneseq
      %v1672 = vshrl.u32 %v1671, 7
      %v1673 = vsub.s32 %v1670, %v1672
      %v1674 = vrot.slane %v1660, %v1673
      %v1675 = vcombine.low %v1509, %v1515
      %v1676 = vcombine.high %v1509, %v1515
      %v1678 = vunpack.c.l.s4 1983009808
      %v1679 = vunpack.c.0.s8 %v1678
      %v1680 = vlaneseq
      %v1681 = vshrl.u32 %v1680, 7
      %v1682 = vsub.s32 %v1679, %v1681
      %v1683 = vrot.slane %v1675, %v1682
      %v1685 = vunpack.c.l.s4 1983009808
      %v1686 = vunpack.c.0.s8 %v1685
      %v1687 = vlaneseq
      %v1688 = vshrl.u32 %v1687, 7
      %v1689 = vsub.s32 %v1686, %v1688
      %v1690 = vrot.slane %v1676, %v1689
      %v1691 = vcombine.high %v1518, 0.0
      %v1693 = vunpack.c.l.s4 1983009808
      %v1694 = vunpack.c.0.s8 %v1693
      %v1695 = vlaneseq
      %v1696 = vshrl.u32 %v1695, 7
      %v1697 = vsub.s32 %v1694, %v1696
      %v1698 = vrot.slane %v1518, %v1697
      %v1700 = vunpack.c.l.s4 1983009808
      %v1701 = vunpack.c.0.s8 %v1700
      %v1702 = vlaneseq
      %v1703 = vshrl.u32 %v1702, 7
      %v1704 = vsub.s32 %v1701, %v1703
      %v1705 = vrot.slane %v1691, %v1704
      %v1706 = vcombine.high %v1521, 0.0
      %v1708 = vunpack.c.l.s4 1983009808
      %v1709 = vunpack.c.0.s8 %v1708
      %v1710 = vlaneseq
      %v1711 = vshrl.u32 %v1710, 7
      %v1712 = vsub.s32 %v1709, %v1711
      %v1713 = vrot.slane %v1521, %v1712
      %v1715 = vunpack.c.l.s4 1983009808
      %v1716 = vunpack.c.0.s8 %v1715
      %v1717 = vlaneseq
      %v1718 = vshrl.u32 %v1717, 7
      %v1719 = vsub.s32 %v1716, %v1718
      %v1720 = vrot.slane %v1706, %v1719
      %v1721 = vcombine.low %v1667, %v1683
      %v1722 = vcombine.high %v1667, %v1683
      %v1724 = vunpack.c.l.s4 1934713408
      %v1725 = vunpack.c.0.s8 %v1724
      %v1726 = vlaneseq
      %v1727 = vshrl.u32 %v1726, 7
      %v1728 = vsub.s32 %v1725, %v1727
      %v1729 = vrot.slane %v1721, %v1728
      %v1731 = vunpack.c.l.s4 1934713408
      %v1732 = vunpack.c.0.s8 %v1731
      %v1733 = vlaneseq
      %v1734 = vshrl.u32 %v1733, 7
      %v1735 = vsub.s32 %v1732, %v1734
      %v1736 = vrot.slane %v1722, %v1735
      %v1737 = vcombine.low %v1674, %v1690
      %v1738 = vcombine.high %v1674, %v1690
      %v1740 = vunpack.c.l.s4 1934713408
      %v1741 = vunpack.c.0.s8 %v1740
      %v1742 = vlaneseq
      %v1743 = vshrl.u32 %v1742, 7
      %v1744 = vsub.s32 %v1741, %v1743
      %v1745 = vrot.slane %v1737, %v1744
      %v1747 = vunpack.c.l.s4 1934713408
      %v1748 = vunpack.c.0.s8 %v1747
      %v1749 = vlaneseq
      %v1750 = vshrl.u32 %v1749, 7
      %v1751 = vsub.s32 %v1748, %v1750
      %v1752 = vrot.slane %v1738, %v1751
      %v1753 = vcombine.low %v1698, %v1713
      %v1754 = vcombine.high %v1698, %v1713
      %v1756 = vunpack.c.l.s4 1934713408
      %v1757 = vunpack.c.0.s8 %v1756
      %v1758 = vlaneseq
      %v1759 = vshrl.u32 %v1758, 7
      %v1760 = vsub.s32 %v1757, %v1759
      %v1761 = vrot.slane %v1753, %v1760
      %v1763 = vunpack.c.l.s4 1934713408
      %v1764 = vunpack.c.0.s8 %v1763
      %v1765 = vlaneseq
      %v1766 = vshrl.u32 %v1765, 7
      %v1767 = vsub.s32 %v1764, %v1766
      %v1768 = vrot.slane %v1754, %v1767
      %v1769 = vcombine.low %v1705, %v1720
      %v1770 = vcombine.high %v1705, %v1720
      %v1772 = vunpack.c.l.s4 1934713408
      %v1773 = vunpack.c.0.s8 %v1772
      %v1774 = vlaneseq
      %v1775 = vshrl.u32 %v1774, 7
      %v1776 = vsub.s32 %v1773, %v1775
      %v1777 = vrot.slane %v1769, %v1776
      %v1779 = vunpack.c.l.s4 1934713408
      %v1780 = vunpack.c.0.s8 %v1779
      %v1781 = vlaneseq
      %v1782 = vshrl.u32 %v1781, 7
      %v1783 = vsub.s32 %v1780, %v1782
      %v1784 = vrot.slane %v1770, %v1783
      %v1785 = vcombine.low %v1729, %v1761
      %v1786 = vcombine.high %v1729, %v1761
      %v1787 = vcombine.low %v1736, %v1768
      %v1788 = vcombine.high %v1736, %v1768
      %v1789 = vcombine.low %v1745, %v1777
      %v1790 = vcombine.high %v1745, %v1777
      %v1791 = vcombine.low %v1752, %v1784
      %v1792 = vcombine.high %v1752, %v1784
      %1809 = vrot.lane.b32.xlu0 %v1651, 126
      %v1810 = vpop.permute.xlu0 %1809
      %1811 = vrot.lane.b32.xlu0 %v1785, 126
      %v1812 = vpop.permute.xlu0 %1811
      %1813 = vrot.lane.b32.xlu0 %v1652, 126
      %v1814 = vpop.permute.xlu0 %1813
      %1815 = vrot.lane.b32.xlu0 %v1786, 126
      %v1816 = vpop.permute.xlu0 %1815
      %1817 = vrot.lane.b32.xlu0 %v1653, 126
      %v1818 = vpop.permute.xlu0 %1817
      %1819 = vrot.lane.b32.xlu0 %v1787, 126
      %v1820 = vpop.permute.xlu0 %1819
      %1821 = vrot.lane.b32.xlu0 %v1654, 126
      %v1822 = vpop.permute.xlu0 %1821
      %1823 = vrot.lane.b32.xlu0 %v1788, 126
      %v1824 = vpop.permute.xlu0 %1823
      %1825 = vrot.lane.b32.xlu0 %v1655, 126
      %v1826 = vpop.permute.xlu0 %1825
      %1827 = vrot.lane.b32.xlu0 %v1789, 126
      %v1828 = vpop.permute.xlu0 %1827
      %1829 = vrot.lane.b32.xlu0 %v1656, 126
      %v1830 = vpop.permute.xlu0 %1829
      %1831 = vrot.lane.b32.xlu0 %v1790, 126
      %v1832 = vpop.permute.xlu0 %1831
      %1833 = vrot.lane.b32.xlu0 %v1657, 126
      %v1834 = vpop.permute.xlu0 %1833
      %1835 = vrot.lane.b32.xlu0 %v1791, 126
      %v1836 = vpop.permute.xlu0 %1835
      %1837 = vrot.lane.b32.xlu0 %v1658, 126
      %v1838 = vpop.permute.xlu0 %1837
      %1839 = vrot.lane.b32.xlu0 %v1792, 126
      %v1840 = vpop.permute.xlu0 %1839
      %v1857 = vadd.f32 %v1417, %v1810
      %v1858 = vadd.f32 %v1418, %v1812
      %v1859 = vadd.f32 %v1419, %v1814
      %v1860 = vadd.f32 %v1420, %v1816
      %v1861 = vadd.f32 %v1421, %v1818
      %v1862 = vadd.f32 %v1422, %v1820
      %v1863 = vadd.f32 %v1423, %v1822
      %v1864 = vadd.f32 %v1424, %v1824
      %v1865 = vadd.f32 %v1425, %v1826
      %v1866 = vadd.f32 %v1426, %v1828
      %v1867 = vadd.f32 %v1427, %v1830
      %v1868 = vadd.f32 %v1428, %v1832
      %v1869 = vadd.f32 %v1429, %v1834
      %v1870 = vadd.f32 %v1430, %v1836
      %v1871 = vadd.f32 %v1431, %v1838
      %v1872 = vadd.f32 %v1432, %v1840
      %s1873 = scalar_lea.vmem %s1, 12
      %v1874 = vld [vmem:[%s1873] sm:$0xf]
      %v1876 = vsel %vm610, %v1874, 0
      %1878 = vmatprep.subr.bf16.mxu0 0
      %1879 = vmatpush1.bf16.msra.mxu0 0
      %1880 = vmatprep.subr.bf16.mxu0 0
      %1881 = vmatpush1.bf16.msra.mxu0 0
      %1882 = vmatprep.subr.bf16.mxu0 0
      %1883 = vmatpush1.bf16.msra.mxu0 0
      %1884 = vmatprep.subr.bf16.mxu0 0
      %1885 = vmatpush1.bf16.msra.mxu0 0
      %1886 = vmatprep.subr.bf16.mxu0 0
      %1887 = vmatpush1.bf16.msra.mxu0 0
      %1888 = vmatprep.subr.bf16.mxu0 0
      %1889 = vmatpush1.bf16.msra.mxu0 0
      %1890 = vmatprep.subr.bf16.mxu0 0
      %1891 = vmatpush1.bf16.msra.mxu0 0
      %1892 = vmatprep.subr.bf16.mxu0 %v619
      %1893 = vmatpush1.bf16.msra.mxu0 %v616
      %1894 = vmatprep.subr.bf16.mxu0 0
      %1895 = vmatpush2.bf16.msra.mxu0 0
      %1896 = vmatprep.subr.bf16.mxu0 0
      %1897 = vmatpush2.bf16.msra.mxu0 0
      %1898 = vmatprep.subr.bf16.mxu0 0
      %1899 = vmatpush2.bf16.msra.mxu0 0
      %1900 = vmatprep.subr.bf16.mxu0 0
      %1901 = vmatpush2.bf16.msra.mxu0 0
      %1902 = vmatprep.subr.bf16.mxu0 0
      %1903 = vmatpush2.bf16.msra.mxu0 0
      %1904 = vmatprep.subr.bf16.mxu0 0
      %1905 = vmatpush2.bf16.msra.mxu0 0
      %1906 = vmatprep.subr.bf16.mxu0 0
      %1907 = vmatpush2.bf16.msra.mxu0 0
      %1908 = vmatprep.subr.bf16.mxu0 0
      %1909 = vmatpush2.bf16.msra.mxu0 0
      %1910 = vmatprep.mubr.bf16.mxu0 0
      %1911 = vmatmul.mubr.bf16.gmra.mxu0 %v1876
      %v1912 = vpop.f32.mrf.mxu0
      %v1913 = vadd.f32 0.0, %v1912
      %v1914 = vpop.f32.mrf.mxu0
      %v1915 = vadd.f32 0.0, %v1914
      %v1916 = vpop.f32.mrf.mxu0
      %v1917 = vpop.f32.mrf.mxu0
      %1918 = vdwg.mxu0
      %1920 = vrot.lane.b32.xlu0 %v1913, 114
      %v1921 = vpop.permute.xlu0 %1920
      %1923 = vrot.lane.b32.xlu0 %v1913, 100
      %v1924 = vpop.permute.xlu0 %1923
      %1926 = vrot.lane.b32.xlu0 %v1913, 86
      %v1927 = vpop.permute.xlu0 %1926
      %1929 = vrot.lane.b32.xlu0 %v1913, 72
      %v1930 = vpop.permute.xlu0 %1929
      %1932 = vrot.lane.b32.xlu0 %v1913, 58
      %v1933 = vpop.permute.xlu0 %1932
      %1935 = vrot.lane.b32.xlu0 %v1913, 44
      %v1936 = vpop.permute.xlu0 %1935
      %1938 = vrot.lane.b32.xlu0 %v1913, 30
      %v1939 = vpop.permute.xlu0 %1938
      %1941 = vrot.lane.b32.xlu0 %v1913, 16
      %v1942 = vpop.permute.xlu0 %1941
      %1945 = vrot.lane.b32.xlu0 %v1913, 2
      %v1946 = vpop.permute.xlu0 %1945
      %1947 = vrot.lane.b32.xlu0 %v1915, 2
      %v1948 = vpop.permute.xlu0 %1947
      %v1949 = vsel %vm692, %v1946, %v1948
      %1951 = vrot.lane.b32.xlu0 %v1915, 116
      %v1952 = vpop.permute.xlu0 %1951
      %1954 = vrot.lane.b32.xlu0 %v1915, 102
      %v1955 = vpop.permute.xlu0 %1954
      %1957 = vrot.lane.b32.xlu0 %v1915, 88
      %v1958 = vpop.permute.xlu0 %1957
      %1960 = vrot.lane.b32.xlu0 %v1915, 74
      %v1961 = vpop.permute.xlu0 %1960
      %v1963 = vcombine.low %v1913, %v1924
      %v1964 = vcombine.high %v1913, %v1924
      %v1966 = vunpack.c.l.s4 1983009808
      %v1967 = vunpack.c.0.s8 %v1966
      %v1968 = vlaneseq
      %v1969 = vshrl.u32 %v1968, 7
      %v1970 = vsub.s32 %v1967, %v1969
      %v1971 = vrot.slane %v1963, %v1970
      %v1973 = vunpack.c.l.s4 1983009808
      %v1974 = vunpack.c.0.s8 %v1973
      %v1975 = vlaneseq
      %v1976 = vshrl.u32 %v1975, 7
      %v1977 = vsub.s32 %v1974, %v1976
      %v1978 = vrot.slane %v1964, %v1977
      %v1979 = vcombine.low %v1921, %v1927
      %v1980 = vcombine.high %v1921, %v1927
      %v1982 = vunpack.c.l.s4 1983009808
      %v1983 = vunpack.c.0.s8 %v1982
      %v1984 = vlaneseq
      %v1985 = vshrl.u32 %v1984, 7
      %v1986 = vsub.s32 %v1983, %v1985
      %v1987 = vrot.slane %v1979, %v1986
      %v1989 = vunpack.c.l.s4 1983009808
      %v1990 = vunpack.c.0.s8 %v1989
      %v1991 = vlaneseq
      %v1992 = vshrl.u32 %v1991, 7
      %v1993 = vsub.s32 %v1990, %v1992
      %v1994 = vrot.slane %v1980, %v1993
      %v1995 = vcombine.low %v1930, %v1936
      %v1996 = vcombine.high %v1930, %v1936
      %v1998 = vunpack.c.l.s4 1983009808
      %v1999 = vunpack.c.0.s8 %v1998
      %v2000 = vlaneseq
      %v2001 = vshrl.u32 %v2000, 7
      %v2002 = vsub.s32 %v1999, %v2001
      %v2003 = vrot.slane %v1995, %v2002
      %v2005 = vunpack.c.l.s4 1983009808
      %v2006 = vunpack.c.0.s8 %v2005
      %v2007 = vlaneseq
      %v2008 = vshrl.u32 %v2007, 7
      %v2009 = vsub.s32 %v2006, %v2008
      %v2010 = vrot.slane %v1996, %v2009
      %v2011 = vcombine.low %v1933, %v1939
      %v2012 = vcombine.high %v1933, %v1939
      %v2014 = vunpack.c.l.s4 1983009808
      %v2015 = vunpack.c.0.s8 %v2014
      %v2016 = vlaneseq
      %v2017 = vshrl.u32 %v2016, 7
      %v2018 = vsub.s32 %v2015, %v2017
      %v2019 = vrot.slane %v2011, %v2018
      %v2021 = vunpack.c.l.s4 1983009808
      %v2022 = vunpack.c.0.s8 %v2021
      %v2023 = vlaneseq
      %v2024 = vshrl.u32 %v2023, 7
      %v2025 = vsub.s32 %v2022, %v2024
      %v2026 = vrot.slane %v2012, %v2025
      %v2027 = vcombine.low %v1971, %v1987
      %v2028 = vcombine.high %v1971, %v1987
      %v2030 = vunpack.c.l.s4 1934713408
      %v2031 = vunpack.c.0.s8 %v2030
      %v2032 = vlaneseq
      %v2033 = vshrl.u32 %v2032, 7
      %v2034 = vsub.s32 %v2031, %v2033
      %v2035 = vrot.slane %v2027, %v2034
      %v2037 = vunpack.c.l.s4 1934713408
      %v2038 = vunpack.c.0.s8 %v2037
      %v2039 = vlaneseq
      %v2040 = vshrl.u32 %v2039, 7
      %v2041 = vsub.s32 %v2038, %v2040
      %v2042 = vrot.slane %v2028, %v2041
      %v2043 = vcombine.low %v1978, %v1994
      %v2044 = vcombine.high %v1978, %v1994
      %v2046 = vunpack.c.l.s4 1934713408
      %v2047 = vunpack.c.0.s8 %v2046
      %v2048 = vlaneseq
      %v2049 = vshrl.u32 %v2048, 7
      %v2050 = vsub.s32 %v2047, %v2049
      %v2051 = vrot.slane %v2043, %v2050
      %v2053 = vunpack.c.l.s4 1934713408
      %v2054 = vunpack.c.0.s8 %v2053
      %v2055 = vlaneseq
      %v2056 = vshrl.u32 %v2055, 7
      %v2057 = vsub.s32 %v2054, %v2056
      %v2058 = vrot.slane %v2044, %v2057
      %v2059 = vcombine.low %v2003, %v2019
      %v2060 = vcombine.high %v2003, %v2019
      %v2062 = vunpack.c.l.s4 1934713408
      %v2063 = vunpack.c.0.s8 %v2062
      %v2064 = vlaneseq
      %v2065 = vshrl.u32 %v2064, 7
      %v2066 = vsub.s32 %v2063, %v2065
      %v2067 = vrot.slane %v2059, %v2066
      %v2069 = vunpack.c.l.s4 1934713408
      %v2070 = vunpack.c.0.s8 %v2069
      %v2071 = vlaneseq
      %v2072 = vshrl.u32 %v2071, 7
      %v2073 = vsub.s32 %v2070, %v2072
      %v2074 = vrot.slane %v2060, %v2073
      %v2075 = vcombine.low %v2010, %v2026
      %v2076 = vcombine.high %v2010, %v2026
      %v2078 = vunpack.c.l.s4 1934713408
      %v2079 = vunpack.c.0.s8 %v2078
      %v2080 = vlaneseq
      %v2081 = vshrl.u32 %v2080, 7
      %v2082 = vsub.s32 %v2079, %v2081
      %v2083 = vrot.slane %v2075, %v2082
      %v2085 = vunpack.c.l.s4 1934713408
      %v2086 = vunpack.c.0.s8 %v2085
      %v2087 = vlaneseq
      %v2088 = vshrl.u32 %v2087, 7
      %v2089 = vsub.s32 %v2086, %v2088
      %v2090 = vrot.slane %v2076, %v2089
      %v2091 = vcombine.low %v2035, %v2067
      %v2092 = vcombine.high %v2035, %v2067
      %v2093 = vcombine.low %v2042, %v2074
      %v2094 = vcombine.high %v2042, %v2074
      %v2095 = vcombine.low %v2051, %v2083
      %v2096 = vcombine.high %v2051, %v2083
      %v2097 = vcombine.low %v2058, %v2090
      %v2098 = vcombine.high %v2058, %v2090
      %v2099 = vcombine.low %v1942, %v1952
      %v2100 = vcombine.high %v1942, %v1952
      %v2102 = vunpack.c.l.s4 1983009808
      %v2103 = vunpack.c.0.s8 %v2102
      %v2104 = vlaneseq
      %v2105 = vshrl.u32 %v2104, 7
      %v2106 = vsub.s32 %v2103, %v2105
      %v2107 = vrot.slane %v2099, %v2106
      %v2109 = vunpack.c.l.s4 1983009808
      %v2110 = vunpack.c.0.s8 %v2109
      %v2111 = vlaneseq
      %v2112 = vshrl.u32 %v2111, 7
      %v2113 = vsub.s32 %v2110, %v2112
      %v2114 = vrot.slane %v2100, %v2113
      %v2115 = vcombine.low %v1949, %v1955
      %v2116 = vcombine.high %v1949, %v1955
      %v2118 = vunpack.c.l.s4 1983009808
      %v2119 = vunpack.c.0.s8 %v2118
      %v2120 = vlaneseq
      %v2121 = vshrl.u32 %v2120, 7
      %v2122 = vsub.s32 %v2119, %v2121
      %v2123 = vrot.slane %v2115, %v2122
      %v2125 = vunpack.c.l.s4 1983009808
      %v2126 = vunpack.c.0.s8 %v2125
      %v2127 = vlaneseq
      %v2128 = vshrl.u32 %v2127, 7
      %v2129 = vsub.s32 %v2126, %v2128
      %v2130 = vrot.slane %v2116, %v2129
      %v2131 = vcombine.high %v1958, 0.0
      %v2133 = vunpack.c.l.s4 1983009808
      %v2134 = vunpack.c.0.s8 %v2133
      %v2135 = vlaneseq
      %v2136 = vshrl.u32 %v2135, 7
      %v2137 = vsub.s32 %v2134, %v2136
      %v2138 = vrot.slane %v1958, %v2137
      %v2140 = vunpack.c.l.s4 1983009808
      %v2141 = vunpack.c.0.s8 %v2140
      %v2142 = vlaneseq
      %v2143 = vshrl.u32 %v2142, 7
      %v2144 = vsub.s32 %v2141, %v2143
      %v2145 = vrot.slane %v2131, %v2144
      %v2146 = vcombine.high %v1961, 0.0
      %v2148 = vunpack.c.l.s4 1983009808
      %v2149 = vunpack.c.0.s8 %v2148
      %v2150 = vlaneseq
      %v2151 = vshrl.u32 %v2150, 7
      %v2152 = vsub.s32 %v2149, %v2151
      %v2153 = vrot.slane %v1961, %v2152
      %v2155 = vunpack.c.l.s4 1983009808
      %v2156 = vunpack.c.0.s8 %v2155
      %v2157 = vlaneseq
      %v2158 = vshrl.u32 %v2157, 7
      %v2159 = vsub.s32 %v2156, %v2158
      %v2160 = vrot.slane %v2146, %v2159
      %v2161 = vcombine.low %v2107, %v2123
      %v2162 = vcombine.high %v2107, %v2123
      %v2164 = vunpack.c.l.s4 1934713408
      %v2165 = vunpack.c.0.s8 %v2164
      %v2166 = vlaneseq
      %v2167 = vshrl.u32 %v2166, 7
      %v2168 = vsub.s32 %v2165, %v2167
      %v2169 = vrot.slane %v2161, %v2168
      %v2171 = vunpack.c.l.s4 1934713408
      %v2172 = vunpack.c.0.s8 %v2171
      %v2173 = vlaneseq
      %v2174 = vshrl.u32 %v2173, 7
      %v2175 = vsub.s32 %v2172, %v2174
      %v2176 = vrot.slane %v2162, %v2175
      %v2177 = vcombine.low %v2114, %v2130
      %v2178 = vcombine.high %v2114, %v2130
      %v2180 = vunpack.c.l.s4 1934713408
      %v2181 = vunpack.c.0.s8 %v2180
      %v2182 = vlaneseq
      %v2183 = vshrl.u32 %v2182, 7
      %v2184 = vsub.s32 %v2181, %v2183
      %v2185 = vrot.slane %v2177, %v2184
      %v2187 = vunpack.c.l.s4 1934713408
      %v2188 = vunpack.c.0.s8 %v2187
      %v2189 = vlaneseq
      %v2190 = vshrl.u32 %v2189, 7
      %v2191 = vsub.s32 %v2188, %v2190
      %v2192 = vrot.slane %v2178, %v2191
      %v2193 = vcombine.low %v2138, %v2153
      %v2194 = vcombine.high %v2138, %v2153
      %v2196 = vunpack.c.l.s4 1934713408
      %v2197 = vunpack.c.0.s8 %v2196
      %v2198 = vlaneseq
      %v2199 = vshrl.u32 %v2198, 7
      %v2200 = vsub.s32 %v2197, %v2199
      %v2201 = vrot.slane %v2193, %v2200
      %v2203 = vunpack.c.l.s4 1934713408
      %v2204 = vunpack.c.0.s8 %v2203
      %v2205 = vlaneseq
      %v2206 = vshrl.u32 %v2205, 7
      %v2207 = vsub.s32 %v2204, %v2206
      %v2208 = vrot.slane %v2194, %v2207
      %v2209 = vcombine.low %v2145, %v2160
      %v2210 = vcombine.high %v2145, %v2160
      %v2212 = vunpack.c.l.s4 1934713408
      %v2213 = vunpack.c.0.s8 %v2212
      %v2214 = vlaneseq
      %v2215 = vshrl.u32 %v2214, 7
      %v2216 = vsub.s32 %v2213, %v2215
      %v2217 = vrot.slane %v2209, %v2216
      %v2219 = vunpack.c.l.s4 1934713408
      %v2220 = vunpack.c.0.s8 %v2219
      %v2221 = vlaneseq
      %v2222 = vshrl.u32 %v2221, 7
      %v2223 = vsub.s32 %v2220, %v2222
      %v2224 = vrot.slane %v2210, %v2223
      %v2225 = vcombine.low %v2169, %v2201
      %v2226 = vcombine.high %v2169, %v2201
      %v2227 = vcombine.low %v2176, %v2208
      %v2228 = vcombine.high %v2176, %v2208
      %v2229 = vcombine.low %v2185, %v2217
      %v2230 = vcombine.high %v2185, %v2217
      %v2231 = vcombine.low %v2192, %v2224
      %v2232 = vcombine.high %v2192, %v2224
      %vm2249 = vcmask 1046528
      %v2250 = vrot.slane %v2091, 1
      %v2251 = vrot.slane %v2225, 1
      %v2252 = vsel %vm2249, %v2250, %v2251
      %v2253 = vrot.slane %v2092, 1
      %v2254 = vrot.slane %v2226, 1
      %v2255 = vsel %vm2249, %v2253, %v2254
      %v2256 = vrot.slane %v2093, 1
      %v2257 = vrot.slane %v2227, 1
      %v2258 = vsel %vm2249, %v2256, %v2257
      %v2259 = vrot.slane %v2094, 1
      %v2260 = vrot.slane %v2228, 1
      %v2261 = vsel %vm2249, %v2259, %v2260
      %v2262 = vrot.slane %v2095, 1
      %v2263 = vrot.slane %v2229, 1
      %v2264 = vsel %vm2249, %v2262, %v2263
      %v2265 = vrot.slane %v2096, 1
      %v2266 = vrot.slane %v2230, 1
      %v2267 = vsel %vm2249, %v2265, %v2266
      %v2268 = vrot.slane %v2097, 1
      %v2269 = vrot.slane %v2231, 1
      %v2270 = vsel %vm2249, %v2268, %v2269
      %v2271 = vrot.slane %v2098, 1
      %v2272 = vrot.slane %v2232, 1
      %v2273 = vsel %vm2249, %v2271, %v2272
      %v2290 = vadd.f32 %v1857, %v2252
      %v2291 = vadd.f32 %v1858, %v2251
      %v2292 = vadd.f32 %v1859, %v2255
      %v2293 = vadd.f32 %v1860, %v2254
      %v2294 = vadd.f32 %v1861, %v2258
      %v2295 = vadd.f32 %v1862, %v2257
      %v2296 = vadd.f32 %v1863, %v2261
      %v2297 = vadd.f32 %v1864, %v2260
      %v2298 = vadd.f32 %v1865, %v2264
      %v2299 = vadd.f32 %v1866, %v2263
      %v2300 = vadd.f32 %v1867, %v2267
      %v2301 = vadd.f32 %v1868, %v2266
      %v2302 = vadd.f32 %v1869, %v2270
      %v2303 = vadd.f32 %v1870, %v2269
      %v2304 = vadd.f32 %v1871, %v2273
      %v2305 = vadd.f32 %v1872, %v2272
      %s2306 = scalar_lea.vmem %s1, 16
      %v2307 = vld [vmem:[%s2306] sm:$0xf]
      %v2309 = vsel %vm610, %v2307, 0
      %2311 = vmatprep.subr.bf16.mxu0 0
      %2312 = vmatpush1.bf16.msra.mxu0 0
      %2313 = vmatprep.subr.bf16.mxu0 0
      %2314 = vmatpush1.bf16.msra.mxu0 0
      %2315 = vmatprep.subr.bf16.mxu0 0
      %2316 = vmatpush1.bf16.msra.mxu0 0
      %2317 = vmatprep.subr.bf16.mxu0 0
      %2318 = vmatpush1.bf16.msra.mxu0 0
      %2319 = vmatprep.subr.bf16.mxu0 0
      %2320 = vmatpush1.bf16.msra.mxu0 0
      %2321 = vmatprep.subr.bf16.mxu0 0
      %2322 = vmatpush1.bf16.msra.mxu0 0
      %2323 = vmatprep.subr.bf16.mxu0 0
      %2324 = vmatpush1.bf16.msra.mxu0 0
      %2325 = vmatprep.subr.bf16.mxu0 %v619
      %2326 = vmatpush1.bf16.msra.mxu0 %v616
      %2327 = vmatprep.subr.bf16.mxu0 0
      %2328 = vmatpush2.bf16.msra.mxu0 0
      %2329 = vmatprep.subr.bf16.mxu0 0
      %2330 = vmatpush2.bf16.msra.mxu0 0
      %2331 = vmatprep.subr.bf16.mxu0 0
      %2332 = vmatpush2.bf16.msra.mxu0 0
      %2333 = vmatprep.subr.bf16.mxu0 0
      %2334 = vmatpush2.bf16.msra.mxu0 0
      %2335 = vmatprep.subr.bf16.mxu0 0
      %2336 = vmatpush2.bf16.msra.mxu0 0
      %2337 = vmatprep.subr.bf16.mxu0 0
      %2338 = vmatpush2.bf16.msra.mxu0 0
      %2339 = vmatprep.subr.bf16.mxu0 0
      %2340 = vmatpush2.bf16.msra.mxu0 0
      %2341 = vmatprep.subr.bf16.mxu0 0
      %2342 = vmatpush2.bf16.msra.mxu0 0
      %2343 = vmatprep.mubr.bf16.mxu0 0
      %2344 = vmatmul.mubr.bf16.gmra.mxu0 %v2309
      %v2345 = vpop.f32.mrf.mxu0
      %v2346 = vadd.f32 0.0, %v2345
      %v2347 = vpop.f32.mrf.mxu0
      %v2348 = vadd.f32 0.0, %v2347
      %v2349 = vpop.f32.mrf.mxu0
      %v2350 = vpop.f32.mrf.mxu0
      %2351 = vdwg.mxu0
      %2353 = vrot.lane.b32.xlu0 %v2346, 114
      %v2354 = vpop.permute.xlu0 %2353
      %2356 = vrot.lane.b32.xlu0 %v2346, 100
      %v2357 = vpop.permute.xlu0 %2356
      %2359 = vrot.lane.b32.xlu0 %v2346, 86
      %v2360 = vpop.permute.xlu0 %2359
      %2362 = vrot.lane.b32.xlu0 %v2346, 72
      %v2363 = vpop.permute.xlu0 %2362
      %2365 = vrot.lane.b32.xlu0 %v2346, 58
      %v2366 = vpop.permute.xlu0 %2365
      %2368 = vrot.lane.b32.xlu0 %v2346, 44
      %v2369 = vpop.permute.xlu0 %2368
      %2371 = vrot.lane.b32.xlu0 %v2346, 30
      %v2372 = vpop.permute.xlu0 %2371
      %2374 = vrot.lane.b32.xlu0 %v2346, 16
      %v2375 = vpop.permute.xlu0 %2374
      %2378 = vrot.lane.b32.xlu0 %v2346, 2
      %v2379 = vpop.permute.xlu0 %2378
      %2380 = vrot.lane.b32.xlu0 %v2348, 2
      %v2381 = vpop.permute.xlu0 %2380
      %v2382 = vsel %vm692, %v2379, %v2381
      %2384 = vrot.lane.b32.xlu0 %v2348, 116
      %v2385 = vpop.permute.xlu0 %2384
      %2387 = vrot.lane.b32.xlu0 %v2348, 102
      %v2388 = vpop.permute.xlu0 %2387
      %2390 = vrot.lane.b32.xlu0 %v2348, 88
      %v2391 = vpop.permute.xlu0 %2390
      %2393 = vrot.lane.b32.xlu0 %v2348, 74
      %v2394 = vpop.permute.xlu0 %2393
      %v2396 = vcombine.low %v2346, %v2357
      %v2397 = vcombine.high %v2346, %v2357
      %v2399 = vunpack.c.l.s4 1983009808
      %v2400 = vunpack.c.0.s8 %v2399
      %v2401 = vlaneseq
      %v2402 = vshrl.u32 %v2401, 7
      %v2403 = vsub.s32 %v2400, %v2402
      %v2404 = vrot.slane %v2396, %v2403
      %v2406 = vunpack.c.l.s4 1983009808
      %v2407 = vunpack.c.0.s8 %v2406
      %v2408 = vlaneseq
      %v2409 = vshrl.u32 %v2408, 7
      %v2410 = vsub.s32 %v2407, %v2409
      %v2411 = vrot.slane %v2397, %v2410
      %v2412 = vcombine.low %v2354, %v2360
      %v2413 = vcombine.high %v2354, %v2360
      %v2415 = vunpack.c.l.s4 1983009808
      %v2416 = vunpack.c.0.s8 %v2415
      %v2417 = vlaneseq
      %v2418 = vshrl.u32 %v2417, 7
      %v2419 = vsub.s32 %v2416, %v2418
      %v2420 = vrot.slane %v2412, %v2419
      %v2422 = vunpack.c.l.s4 1983009808
      %v2423 = vunpack.c.0.s8 %v2422
      %v2424 = vlaneseq
      %v2425 = vshrl.u32 %v2424, 7
      %v2426 = vsub.s32 %v2423, %v2425
      %v2427 = vrot.slane %v2413, %v2426
      %v2428 = vcombine.low %v2363, %v2369
      %v2429 = vcombine.high %v2363, %v2369
      %v2431 = vunpack.c.l.s4 1983009808
      %v2432 = vunpack.c.0.s8 %v2431
      %v2433 = vlaneseq
      %v2434 = vshrl.u32 %v2433, 7
      %v2435 = vsub.s32 %v2432, %v2434
      %v2436 = vrot.slane %v2428, %v2435
      %v2438 = vunpack.c.l.s4 1983009808
      %v2439 = vunpack.c.0.s8 %v2438
      %v2440 = vlaneseq
      %v2441 = vshrl.u32 %v2440, 7
      %v2442 = vsub.s32 %v2439, %v2441
      %v2443 = vrot.slane %v2429, %v2442
      %v2444 = vcombine.low %v2366, %v2372
      %v2445 = vcombine.high %v2366, %v2372
      %v2447 = vunpack.c.l.s4 1983009808
      %v2448 = vunpack.c.0.s8 %v2447
      %v2449 = vlaneseq
      %v2450 = vshrl.u32 %v2449, 7
      %v2451 = vsub.s32 %v2448, %v2450
      %v2452 = vrot.slane %v2444, %v2451
      %v2454 = vunpack.c.l.s4 1983009808
      %v2455 = vunpack.c.0.s8 %v2454
      %v2456 = vlaneseq
      %v2457 = vshrl.u32 %v2456, 7
      %v2458 = vsub.s32 %v2455, %v2457
      %v2459 = vrot.slane %v2445, %v2458
      %v2460 = vcombine.low %v2404, %v2420
      %v2461 = vcombine.high %v2404, %v2420
      %v2463 = vunpack.c.l.s4 1934713408
      %v2464 = vunpack.c.0.s8 %v2463
      %v2465 = vlaneseq
      %v2466 = vshrl.u32 %v2465, 7
      %v2467 = vsub.s32 %v2464, %v2466
      %v2468 = vrot.slane %v2460, %v2467
      %v2470 = vunpack.c.l.s4 1934713408
      %v2471 = vunpack.c.0.s8 %v2470
      %v2472 = vlaneseq
      %v2473 = vshrl.u32 %v2472, 7
      %v2474 = vsub.s32 %v2471, %v2473
      %v2475 = vrot.slane %v2461, %v2474
      %v2476 = vcombine.low %v2411, %v2427
      %v2477 = vcombine.high %v2411, %v2427
      %v2479 = vunpack.c.l.s4 1934713408
      %v2480 = vunpack.c.0.s8 %v2479
      %v2481 = vlaneseq
      %v2482 = vshrl.u32 %v2481, 7
      %v2483 = vsub.s32 %v2480, %v2482
      %v2484 = vrot.slane %v2476, %v2483
      %v2486 = vunpack.c.l.s4 1934713408
      %v2487 = vunpack.c.0.s8 %v2486
      %v2488 = vlaneseq
      %v2489 = vshrl.u32 %v2488, 7
      %v2490 = vsub.s32 %v2487, %v2489
      %v2491 = vrot.slane %v2477, %v2490
      %v2492 = vcombine.low %v2436, %v2452
      %v2493 = vcombine.high %v2436, %v2452
      %v2495 = vunpack.c.l.s4 1934713408
      %v2496 = vunpack.c.0.s8 %v2495
      %v2497 = vlaneseq
      %v2498 = vshrl.u32 %v2497, 7
      %v2499 = vsub.s32 %v2496, %v2498
      %v2500 = vrot.slane %v2492, %v2499
      %v2502 = vunpack.c.l.s4 1934713408
      %v2503 = vunpack.c.0.s8 %v2502
      %v2504 = vlaneseq
      %v2505 = vshrl.u32 %v2504, 7
      %v2506 = vsub.s32 %v2503, %v2505
      %v2507 = vrot.slane %v2493, %v2506
      %v2508 = vcombine.low %v2443, %v2459
      %v2509 = vcombine.high %v2443, %v2459
      %v2511 = vunpack.c.l.s4 1934713408
      %v2512 = vunpack.c.0.s8 %v2511
      %v2513 = vlaneseq
      %v2514 = vshrl.u32 %v2513, 7
      %v2515 = vsub.s32 %v2512, %v2514
      %v2516 = vrot.slane %v2508, %v2515
      %v2518 = vunpack.c.l.s4 1934713408
      %v2519 = vunpack.c.0.s8 %v2518
      %v2520 = vlaneseq
      %v2521 = vshrl.u32 %v2520, 7
      %v2522 = vsub.s32 %v2519, %v2521
      %v2523 = vrot.slane %v2509, %v2522
      %v2524 = vcombine.low %v2468, %v2500
      %v2525 = vcombine.high %v2468, %v2500
      %v2526 = vcombine.low %v2475, %v2507
      %v2527 = vcombine.high %v2475, %v2507
      %v2528 = vcombine.low %v2484, %v2516
      %v2529 = vcombine.high %v2484, %v2516
      %v2530 = vcombine.low %v2491, %v2523
      %v2531 = vcombine.high %v2491, %v2523
      %v2532 = vcombine.low %v2375, %v2385
      %v2533 = vcombine.high %v2375, %v2385
      %v2535 = vunpack.c.l.s4 1983009808
      %v2536 = vunpack.c.0.s8 %v2535
      %v2537 = vlaneseq
      %v2538 = vshrl.u32 %v2537, 7
      %v2539 = vsub.s32 %v2536, %v2538
      %v2540 = vrot.slane %v2532, %v2539
      %v2542 = vunpack.c.l.s4 1983009808
      %v2543 = vunpack.c.0.s8 %v2542
      %v2544 = vlaneseq
      %v2545 = vshrl.u32 %v2544, 7
      %v2546 = vsub.s32 %v2543, %v2545
      %v2547 = vrot.slane %v2533, %v2546
      %v2548 = vcombine.low %v2382, %v2388
      %v2549 = vcombine.high %v2382, %v2388
      %v2551 = vunpack.c.l.s4 1983009808
      %v2552 = vunpack.c.0.s8 %v2551
      %v2553 = vlaneseq
      %v2554 = vshrl.u32 %v2553, 7
      %v2555 = vsub.s32 %v2552, %v2554
      %v2556 = vrot.slane %v2548, %v2555
      %v2558 = vunpack.c.l.s4 1983009808
      %v2559 = vunpack.c.0.s8 %v2558
      %v2560 = vlaneseq
      %v2561 = vshrl.u32 %v2560, 7
      %v2562 = vsub.s32 %v2559, %v2561
      %v2563 = vrot.slane %v2549, %v2562
      %v2564 = vcombine.high %v2391, 0.0
      %v2566 = vunpack.c.l.s4 1983009808
      %v2567 = vunpack.c.0.s8 %v2566
      %v2568 = vlaneseq
      %v2569 = vshrl.u32 %v2568, 7
      %v2570 = vsub.s32 %v2567, %v2569
      %v2571 = vrot.slane %v2391, %v2570
      %v2573 = vunpack.c.l.s4 1983009808
      %v2574 = vunpack.c.0.s8 %v2573
      %v2575 = vlaneseq
      %v2576 = vshrl.u32 %v2575, 7
      %v2577 = vsub.s32 %v2574, %v2576
      %v2578 = vrot.slane %v2564, %v2577
      %v2579 = vcombine.high %v2394, 0.0
      %v2581 = vunpack.c.l.s4 1983009808
      %v2582 = vunpack.c.0.s8 %v2581
      %v2583 = vlaneseq
      %v2584 = vshrl.u32 %v2583, 7
      %v2585 = vsub.s32 %v2582, %v2584
      %v2586 = vrot.slane %v2394, %v2585
      %v2588 = vunpack.c.l.s4 1983009808
      %v2589 = vunpack.c.0.s8 %v2588
      %v2590 = vlaneseq
      %v2591 = vshrl.u32 %v2590, 7
      %v2592 = vsub.s32 %v2589, %v2591
      %v2593 = vrot.slane %v2579, %v2592
      %v2594 = vcombine.low %v2540, %v2556
      %v2595 = vcombine.high %v2540, %v2556
      %v2597 = vunpack.c.l.s4 1934713408
      %v2598 = vunpack.c.0.s8 %v2597
      %v2599 = vlaneseq
      %v2600 = vshrl.u32 %v2599, 7
      %v2601 = vsub.s32 %v2598, %v2600
      %v2602 = vrot.slane %v2594, %v2601
      %v2604 = vunpack.c.l.s4 1934713408
      %v2605 = vunpack.c.0.s8 %v2604
      %v2606 = vlaneseq
      %v2607 = vshrl.u32 %v2606, 7
      %v2608 = vsub.s32 %v2605, %v2607
      %v2609 = vrot.slane %v2595, %v2608
      %v2610 = vcombine.low %v2547, %v2563
      %v2611 = vcombine.high %v2547, %v2563
      %v2613 = vunpack.c.l.s4 1934713408
      %v2614 = vunpack.c.0.s8 %v2613
      %v2615 = vlaneseq
      %v2616 = vshrl.u32 %v2615, 7
      %v2617 = vsub.s32 %v2614, %v2616
      %v2618 = vrot.slane %v2610, %v2617
      %v2620 = vunpack.c.l.s4 1934713408
      %v2621 = vunpack.c.0.s8 %v2620
      %v2622 = vlaneseq
      %v2623 = vshrl.u32 %v2622, 7
      %v2624 = vsub.s32 %v2621, %v2623
      %v2625 = vrot.slane %v2611, %v2624
      %v2626 = vcombine.low %v2571, %v2586
      %v2627 = vcombine.high %v2571, %v2586
      %v2629 = vunpack.c.l.s4 1934713408
      %v2630 = vunpack.c.0.s8 %v2629
      %v2631 = vlaneseq
      %v2632 = vshrl.u32 %v2631, 7
      %v2633 = vsub.s32 %v2630, %v2632
      %v2634 = vrot.slane %v2626, %v2633
      %v2636 = vunpack.c.l.s4 1934713408
      %v2637 = vunpack.c.0.s8 %v2636
      %v2638 = vlaneseq
      %v2639 = vshrl.u32 %v2638, 7
      %v2640 = vsub.s32 %v2637, %v2639
      %v2641 = vrot.slane %v2627, %v2640
      %v2642 = vcombine.low %v2578, %v2593
      %v2643 = vcombine.high %v2578, %v2593
      %v2645 = vunpack.c.l.s4 1934713408
      %v2646 = vunpack.c.0.s8 %v2645
      %v2647 = vlaneseq
      %v2648 = vshrl.u32 %v2647, 7
      %v2649 = vsub.s32 %v2646, %v2648
      %v2650 = vrot.slane %v2642, %v2649
      %v2652 = vunpack.c.l.s4 1934713408
      %v2653 = vunpack.c.0.s8 %v2652
      %v2654 = vlaneseq
      %v2655 = vshrl.u32 %v2654, 7
      %v2656 = vsub.s32 %v2653, %v2655
      %v2657 = vrot.slane %v2643, %v2656
      %v2658 = vcombine.low %v2602, %v2634
      %v2659 = vcombine.high %v2602, %v2634
      %v2660 = vcombine.low %v2609, %v2641
      %v2661 = vcombine.high %v2609, %v2641
      %v2662 = vcombine.low %v2618, %v2650
      %v2663 = vcombine.high %v2618, %v2650
      %v2664 = vcombine.low %v2625, %v2657
      %v2665 = vcombine.high %v2625, %v2657
      %v2682 = vrot.slane %v2524, 1
      %v2683 = vrot.slane %v2658, 1
      %v2684 = vsel %vm2249, %v2682, %v2683
      %v2685 = vrot.slane %v2525, 1
      %v2686 = vrot.slane %v2659, 1
      %v2687 = vsel %vm2249, %v2685, %v2686
      %v2688 = vrot.slane %v2526, 1
      %v2689 = vrot.slane %v2660, 1
      %v2690 = vsel %vm2249, %v2688, %v2689
      %v2691 = vrot.slane %v2527, 1
      %v2692 = vrot.slane %v2661, 1
      %v2693 = vsel %vm2249, %v2691, %v2692
      %v2694 = vrot.slane %v2528, 1
      %v2695 = vrot.slane %v2662, 1
      %v2696 = vsel %vm2249, %v2694, %v2695
      %v2697 = vrot.slane %v2529, 1
      %v2698 = vrot.slane %v2663, 1
      %v2699 = vsel %vm2249, %v2697, %v2698
      %v2700 = vrot.slane %v2530, 1
      %v2701 = vrot.slane %v2664, 1
      %v2702 = vsel %vm2249, %v2700, %v2701
      %v2703 = vrot.slane %v2531, 1
      %v2704 = vrot.slane %v2665, 1
      %v2705 = vsel %vm2249, %v2703, %v2704
      %2706 = vrot.lane.b32.xlu0 %v2684, 127
      %v2707 = vpop.permute.xlu0 %2706
      %2708 = vrot.lane.b32.xlu0 %v2683, 127
      %v2709 = vpop.permute.xlu0 %2708
      %2710 = vrot.lane.b32.xlu0 %v2687, 127
      %v2711 = vpop.permute.xlu0 %2710
      %2712 = vrot.lane.b32.xlu0 %v2686, 127
      %v2713 = vpop.permute.xlu0 %2712
      %2714 = vrot.lane.b32.xlu0 %v2690, 127
      %v2715 = vpop.permute.xlu0 %2714
      %2716 = vrot.lane.b32.xlu0 %v2689, 127
      %v2717 = vpop.permute.xlu0 %2716
      %2718 = vrot.lane.b32.xlu0 %v2693, 127
      %v2719 = vpop.permute.xlu0 %2718
      %2720 = vrot.lane.b32.xlu0 %v2692, 127
      %v2721 = vpop.permute.xlu0 %2720
      %2722 = vrot.lane.b32.xlu0 %v2696, 127
      %v2723 = vpop.permute.xlu0 %2722
      %2724 = vrot.lane.b32.xlu0 %v2695, 127
      %v2725 = vpop.permute.xlu0 %2724
      %2726 = vrot.lane.b32.xlu0 %v2699, 127
      %v2727 = vpop.permute.xlu0 %2726
      %2728 = vrot.lane.b32.xlu0 %v2698, 127
      %v2729 = vpop.permute.xlu0 %2728
      %2730 = vrot.lane.b32.xlu0 %v2702, 127
      %v2731 = vpop.permute.xlu0 %2730
      %2732 = vrot.lane.b32.xlu0 %v2701, 127
      %v2733 = vpop.permute.xlu0 %2732
      %2734 = vrot.lane.b32.xlu0 %v2705, 127
      %v2735 = vpop.permute.xlu0 %2734
      %2736 = vrot.lane.b32.xlu0 %v2704, 127
      %v2737 = vpop.permute.xlu0 %2736
      %v2754 = vadd.f32 %v2290, %v2707
      %v2755 = vadd.f32 %v2291, %v2709
      %v2756 = vadd.f32 %v2292, %v2711
      %v2757 = vadd.f32 %v2293, %v2713
      %v2758 = vadd.f32 %v2294, %v2715
      %v2759 = vadd.f32 %v2295, %v2717
      %v2760 = vadd.f32 %v2296, %v2719
      %v2761 = vadd.f32 %v2297, %v2721
      %v2762 = vadd.f32 %v2298, %v2723
      %v2763 = vadd.f32 %v2299, %v2725
      %v2764 = vadd.f32 %v2300, %v2727
      %v2765 = vadd.f32 %v2301, %v2729
      %v2766 = vadd.f32 %v2302, %v2731
      %v2767 = vadd.f32 %v2303, %v2733
      %v2768 = vadd.f32 %v2304, %v2735
      %v2769 = vadd.f32 %v2305, %v2737
      %s2770 = scalar_lea.vmem %s1, 20
      %v2771 = vld [vmem:[%s2770] sm:$0xf]
      %v2773 = vsel %vm610, %v2771, 0
      %2775 = vmatprep.subr.bf16.mxu0 0
      %2776 = vmatpush1.bf16.msra.mxu0 0
      %2777 = vmatprep.subr.bf16.mxu0 0
      %2778 = vmatpush1.bf16.msra.mxu0 0
      %2779 = vmatprep.subr.bf16.mxu0 0
      %2780 = vmatpush1.bf16.msra.mxu0 0
      %2781 = vmatprep.subr.bf16.mxu0 0
      %2782 = vmatpush1.bf16.msra.mxu0 0
      %2783 = vmatprep.subr.bf16.mxu0 0
      %2784 = vmatpush1.bf16.msra.mxu0 0
      %2785 = vmatprep.subr.bf16.mxu0 0
      %2786 = vmatpush1.bf16.msra.mxu0 0
      %2787 = vmatprep.subr.bf16.mxu0 0
      %2788 = vmatpush1.bf16.msra.mxu0 0
      %2789 = vmatprep.subr.bf16.mxu0 %v619
      %2790 = vmatpush1.bf16.msra.mxu0 %v616
      %2791 = vmatprep.subr.bf16.mxu0 0
      %2792 = vmatpush2.bf16.msra.mxu0 0
      %2793 = vmatprep.subr.bf16.mxu0 0
      %2794 = vmatpush2.bf16.msra.mxu0 0
      %2795 = vmatprep.subr.bf16.mxu0 0
      %2796 = vmatpush2.bf16.msra.mxu0 0
      %2797 = vmatprep.subr.bf16.mxu0 0
      %2798 = vmatpush2.bf16.msra.mxu0 0
      %2799 = vmatprep.subr.bf16.mxu0 0
      %2800 = vmatpush2.bf16.msra.mxu0 0
      %2801 = vmatprep.subr.bf16.mxu0 0
      %2802 = vmatpush2.bf16.msra.mxu0 0
      %2803 = vmatprep.subr.bf16.mxu0 0
      %2804 = vmatpush2.bf16.msra.mxu0 0
      %2805 = vmatprep.subr.bf16.mxu0 0
      %2806 = vmatpush2.bf16.msra.mxu0 0
      %2807 = vmatprep.mubr.bf16.mxu0 0
      %2808 = vmatmul.mubr.bf16.gmra.mxu0 %v2773
      %v2809 = vpop.f32.mrf.mxu0
      %v2810 = vadd.f32 0.0, %v2809
      %v2811 = vpop.f32.mrf.mxu0
      %v2812 = vadd.f32 0.0, %v2811
      %v2813 = vpop.f32.mrf.mxu0
      %v2814 = vpop.f32.mrf.mxu0
      %2815 = vdwg.mxu0
      %2817 = vrot.lane.b32.xlu0 %v2810, 114
      %v2818 = vpop.permute.xlu0 %2817
      %2820 = vrot.lane.b32.xlu0 %v2810, 100
      %v2821 = vpop.permute.xlu0 %2820
      %2823 = vrot.lane.b32.xlu0 %v2810, 86
      %v2824 = vpop.permute.xlu0 %2823
      %2826 = vrot.lane.b32.xlu0 %v2810, 72
      %v2827 = vpop.permute.xlu0 %2826
      %2829 = vrot.lane.b32.xlu0 %v2810, 58
      %v2830 = vpop.permute.xlu0 %2829
      %2832 = vrot.lane.b32.xlu0 %v2810, 44
      %v2833 = vpop.permute.xlu0 %2832
      %2835 = vrot.lane.b32.xlu0 %v2810, 30
      %v2836 = vpop.permute.xlu0 %2835
      %2838 = vrot.lane.b32.xlu0 %v2810, 16
      %v2839 = vpop.permute.xlu0 %2838
      %2842 = vrot.lane.b32.xlu0 %v2810, 2
      %v2843 = vpop.permute.xlu0 %2842
      %2844 = vrot.lane.b32.xlu0 %v2812, 2
      %v2845 = vpop.permute.xlu0 %2844
      %v2846 = vsel %vm692, %v2843, %v2845
      %2848 = vrot.lane.b32.xlu0 %v2812, 116
      %v2849 = vpop.permute.xlu0 %2848
      %2851 = vrot.lane.b32.xlu0 %v2812, 102
      %v2852 = vpop.permute.xlu0 %2851
      %2854 = vrot.lane.b32.xlu0 %v2812, 88
      %v2855 = vpop.permute.xlu0 %2854
      %2857 = vrot.lane.b32.xlu0 %v2812, 74
      %v2858 = vpop.permute.xlu0 %2857
      %v2860 = vcombine.low %v2810, %v2821
      %v2861 = vcombine.high %v2810, %v2821
      %v2863 = vunpack.c.l.s4 1983009808
      %v2864 = vunpack.c.0.s8 %v2863
      %v2865 = vlaneseq
      %v2866 = vshrl.u32 %v2865, 7
      %v2867 = vsub.s32 %v2864, %v2866
      %v2868 = vrot.slane %v2860, %v2867
      %v2870 = vunpack.c.l.s4 1983009808
      %v2871 = vunpack.c.0.s8 %v2870
      %v2872 = vlaneseq
      %v2873 = vshrl.u32 %v2872, 7
      %v2874 = vsub.s32 %v2871, %v2873
      %v2875 = vrot.slane %v2861, %v2874
      %v2876 = vcombine.low %v2818, %v2824
      %v2877 = vcombine.high %v2818, %v2824
      %v2879 = vunpack.c.l.s4 1983009808
      %v2880 = vunpack.c.0.s8 %v2879
      %v2881 = vlaneseq
      %v2882 = vshrl.u32 %v2881, 7
      %v2883 = vsub.s32 %v2880, %v2882
      %v2884 = vrot.slane %v2876, %v2883
      %v2886 = vunpack.c.l.s4 1983009808
      %v2887 = vunpack.c.0.s8 %v2886
      %v2888 = vlaneseq
      %v2889 = vshrl.u32 %v2888, 7
      %v2890 = vsub.s32 %v2887, %v2889
      %v2891 = vrot.slane %v2877, %v2890
      %v2892 = vcombine.low %v2827, %v2833
      %v2893 = vcombine.high %v2827, %v2833
      %v2895 = vunpack.c.l.s4 1983009808
      %v2896 = vunpack.c.0.s8 %v2895
      %v2897 = vlaneseq
      %v2898 = vshrl.u32 %v2897, 7
      %v2899 = vsub.s32 %v2896, %v2898
      %v2900 = vrot.slane %v2892, %v2899
      %v2902 = vunpack.c.l.s4 1983009808
      %v2903 = vunpack.c.0.s8 %v2902
      %v2904 = vlaneseq
      %v2905 = vshrl.u32 %v2904, 7
      %v2906 = vsub.s32 %v2903, %v2905
      %v2907 = vrot.slane %v2893, %v2906
      %v2908 = vcombine.low %v2830, %v2836
      %v2909 = vcombine.high %v2830, %v2836
      %v2911 = vunpack.c.l.s4 1983009808
      %v2912 = vunpack.c.0.s8 %v2911
      %v2913 = vlaneseq
      %v2914 = vshrl.u32 %v2913, 7
      %v2915 = vsub.s32 %v2912, %v2914
      %v2916 = vrot.slane %v2908, %v2915
      %v2918 = vunpack.c.l.s4 1983009808
      %v2919 = vunpack.c.0.s8 %v2918
      %v2920 = vlaneseq
      %v2921 = vshrl.u32 %v2920, 7
      %v2922 = vsub.s32 %v2919, %v2921
      %v2923 = vrot.slane %v2909, %v2922
      %v2924 = vcombine.low %v2868, %v2884
      %v2925 = vcombine.high %v2868, %v2884
      %v2927 = vunpack.c.l.s4 1934713408
      %v2928 = vunpack.c.0.s8 %v2927
      %v2929 = vlaneseq
      %v2930 = vshrl.u32 %v2929, 7
      %v2931 = vsub.s32 %v2928, %v2930
      %v2932 = vrot.slane %v2924, %v2931
      %v2934 = vunpack.c.l.s4 1934713408
      %v2935 = vunpack.c.0.s8 %v2934
      %v2936 = vlaneseq
      %v2937 = vshrl.u32 %v2936, 7
      %v2938 = vsub.s32 %v2935, %v2937
      %v2939 = vrot.slane %v2925, %v2938
      %v2940 = vcombine.low %v2875, %v2891
      %v2941 = vcombine.high %v2875, %v2891
      %v2943 = vunpack.c.l.s4 1934713408
      %v2944 = vunpack.c.0.s8 %v2943
      %v2945 = vlaneseq
      %v2946 = vshrl.u32 %v2945, 7
      %v2947 = vsub.s32 %v2944, %v2946
      %v2948 = vrot.slane %v2940, %v2947
      %v2950 = vunpack.c.l.s4 1934713408
      %v2951 = vunpack.c.0.s8 %v2950
      %v2952 = vlaneseq
      %v2953 = vshrl.u32 %v2952, 7
      %v2954 = vsub.s32 %v2951, %v2953
      %v2955 = vrot.slane %v2941, %v2954
      %v2956 = vcombine.low %v2900, %v2916
      %v2957 = vcombine.high %v2900, %v2916
      %v2959 = vunpack.c.l.s4 1934713408
      %v2960 = vunpack.c.0.s8 %v2959
      %v2961 = vlaneseq
      %v2962 = vshrl.u32 %v2961, 7
      %v2963 = vsub.s32 %v2960, %v2962
      %v2964 = vrot.slane %v2956, %v2963
      %v2966 = vunpack.c.l.s4 1934713408
      %v2967 = vunpack.c.0.s8 %v2966
      %v2968 = vlaneseq
      %v2969 = vshrl.u32 %v2968, 7
      %v2970 = vsub.s32 %v2967, %v2969
      %v2971 = vrot.slane %v2957, %v2970
      %v2972 = vcombine.low %v2907, %v2923
      %v2973 = vcombine.high %v2907, %v2923
      %v2975 = vunpack.c.l.s4 1934713408
      %v2976 = vunpack.c.0.s8 %v2975
      %v2977 = vlaneseq
      %v2978 = vshrl.u32 %v2977, 7
      %v2979 = vsub.s32 %v2976, %v2978
      %v2980 = vrot.slane %v2972, %v2979
      %v2982 = vunpack.c.l.s4 1934713408
      %v2983 = vunpack.c.0.s8 %v2982
      %v2984 = vlaneseq
      %v2985 = vshrl.u32 %v2984, 7
      %v2986 = vsub.s32 %v2983, %v2985
      %v2987 = vrot.slane %v2973, %v2986
      %v2988 = vcombine.low %v2932, %v2964
      %v2989 = vcombine.high %v2932, %v2964
      %v2990 = vcombine.low %v2939, %v2971
      %v2991 = vcombine.high %v2939, %v2971
      %v2992 = vcombine.low %v2948, %v2980
      %v2993 = vcombine.high %v2948, %v2980
      %v2994 = vcombine.low %v2955, %v2987
      %v2995 = vcombine.high %v2955, %v2987
      %v2996 = vcombine.low %v2839, %v2849
      %v2997 = vcombine.high %v2839, %v2849
      %v2999 = vunpack.c.l.s4 1983009808
      %v3000 = vunpack.c.0.s8 %v2999
      %v3001 = vlaneseq
      %v3002 = vshrl.u32 %v3001, 7
      %v3003 = vsub.s32 %v3000, %v3002
      %v3004 = vrot.slane %v2996, %v3003
      %v3006 = vunpack.c.l.s4 1983009808
      %v3007 = vunpack.c.0.s8 %v3006
      %v3008 = vlaneseq
      %v3009 = vshrl.u32 %v3008, 7
      %v3010 = vsub.s32 %v3007, %v3009
      %v3011 = vrot.slane %v2997, %v3010
      %v3012 = vcombine.low %v2846, %v2852
      %v3013 = vcombine.high %v2846, %v2852
      %v3015 = vunpack.c.l.s4 1983009808
      %v3016 = vunpack.c.0.s8 %v3015
      %v3017 = vlaneseq
      %v3018 = vshrl.u32 %v3017, 7
      %v3019 = vsub.s32 %v3016, %v3018
      %v3020 = vrot.slane %v3012, %v3019
      %v3022 = vunpack.c.l.s4 1983009808
      %v3023 = vunpack.c.0.s8 %v3022
      %v3024 = vlaneseq
      %v3025 = vshrl.u32 %v3024, 7
      %v3026 = vsub.s32 %v3023, %v3025
      %v3027 = vrot.slane %v3013, %v3026
      %v3028 = vcombine.high %v2855, 0.0
      %v3030 = vunpack.c.l.s4 1983009808
      %v3031 = vunpack.c.0.s8 %v3030
      %v3032 = vlaneseq
      %v3033 = vshrl.u32 %v3032, 7
      %v3034 = vsub.s32 %v3031, %v3033
      %v3035 = vrot.slane %v2855, %v3034
      %v3037 = vunpack.c.l.s4 1983009808
      %v3038 = vunpack.c.0.s8 %v3037
      %v3039 = vlaneseq
      %v3040 = vshrl.u32 %v3039, 7
      %v3041 = vsub.s32 %v3038, %v3040
      %v3042 = vrot.slane %v3028, %v3041
      %v3043 = vcombine.high %v2858, 0.0
      %v3045 = vunpack.c.l.s4 1983009808
      %v3046 = vunpack.c.0.s8 %v3045
      %v3047 = vlaneseq
      %v3048 = vshrl.u32 %v3047, 7
      %v3049 = vsub.s32 %v3046, %v3048
      %v3050 = vrot.slane %v2858, %v3049
      %v3052 = vunpack.c.l.s4 1983009808
      %v3053 = vunpack.c.0.s8 %v3052
      %v3054 = vlaneseq
      %v3055 = vshrl.u32 %v3054, 7
      %v3056 = vsub.s32 %v3053, %v3055
      %v3057 = vrot.slane %v3043, %v3056
      %v3058 = vcombine.low %v3004, %v3020
      %v3059 = vcombine.high %v3004, %v3020
      %v3061 = vunpack.c.l.s4 1934713408
      %v3062 = vunpack.c.0.s8 %v3061
      %v3063 = vlaneseq
      %v3064 = vshrl.u32 %v3063, 7
      %v3065 = vsub.s32 %v3062, %v3064
      %v3066 = vrot.slane %v3058, %v3065
      %v3068 = vunpack.c.l.s4 1934713408
      %v3069 = vunpack.c.0.s8 %v3068
      %v3070 = vlaneseq
      %v3071 = vshrl.u32 %v3070, 7
      %v3072 = vsub.s32 %v3069, %v3071
      %v3073 = vrot.slane %v3059, %v3072
      %v3074 = vcombine.low %v3011, %v3027
      %v3075 = vcombine.high %v3011, %v3027
      %v3077 = vunpack.c.l.s4 1934713408
      %v3078 = vunpack.c.0.s8 %v3077
      %v3079 = vlaneseq
      %v3080 = vshrl.u32 %v3079, 7
      %v3081 = vsub.s32 %v3078, %v3080
      %v3082 = vrot.slane %v3074, %v3081
      %v3084 = vunpack.c.l.s4 1934713408
      %v3085 = vunpack.c.0.s8 %v3084
      %v3086 = vlaneseq
      %v3087 = vshrl.u32 %v3086, 7
      %v3088 = vsub.s32 %v3085, %v3087
      %v3089 = vrot.slane %v3075, %v3088
      %v3090 = vcombine.low %v3035, %v3050
      %v3091 = vcombine.high %v3035, %v3050
      %v3093 = vunpack.c.l.s4 1934713408
      %v3094 = vunpack.c.0.s8 %v3093
      %v3095 = vlaneseq
      %v3096 = vshrl.u32 %v3095, 7
      %v3097 = vsub.s32 %v3094, %v3096
      %v3098 = vrot.slane %v3090, %v3097
      %v3100 = vunpack.c.l.s4 1934713408
      %v3101 = vunpack.c.0.s8 %v3100
      %v3102 = vlaneseq
      %v3103 = vshrl.u32 %v3102, 7
      %v3104 = vsub.s32 %v3101, %v3103
      %v3105 = vrot.slane %v3091, %v3104
      %v3106 = vcombine.low %v3042, %v3057
      %v3107 = vcombine.high %v3042, %v3057
      %v3109 = vunpack.c.l.s4 1934713408
      %v3110 = vunpack.c.0.s8 %v3109
      %v3111 = vlaneseq
      %v3112 = vshrl.u32 %v3111, 7
      %v3113 = vsub.s32 %v3110, %v3112
      %v3114 = vrot.slane %v3106, %v3113
      %v3116 = vunpack.c.l.s4 1934713408
      %v3117 = vunpack.c.0.s8 %v3116
      %v3118 = vlaneseq
      %v3119 = vshrl.u32 %v3118, 7
      %v3120 = vsub.s32 %v3117, %v3119
      %v3121 = vrot.slane %v3107, %v3120
      %v3122 = vcombine.low %v3066, %v3098
      %v3123 = vcombine.high %v3066, %v3098
      %v3124 = vcombine.low %v3073, %v3105
      %v3125 = vcombine.high %v3073, %v3105
      %v3126 = vcombine.low %v3082, %v3114
      %v3127 = vcombine.high %v3082, %v3114
      %v3128 = vcombine.low %v3089, %v3121
      %v3129 = vcombine.high %v3089, %v3121
      %v3146 = vrot.slane %v2988, 1
      %v3147 = vrot.slane %v3122, 1
      %v3148 = vsel %vm2249, %v3146, %v3147
      %v3149 = vrot.slane %v2989, 1
      %v3150 = vrot.slane %v3123, 1
      %v3151 = vsel %vm2249, %v3149, %v3150
      %v3152 = vrot.slane %v2990, 1
      %v3153 = vrot.slane %v3124, 1
      %v3154 = vsel %vm2249, %v3152, %v3153
      %v3155 = vrot.slane %v2991, 1
      %v3156 = vrot.slane %v3125, 1
      %v3157 = vsel %vm2249, %v3155, %v3156
      %v3158 = vrot.slane %v2992, 1
      %v3159 = vrot.slane %v3126, 1
      %v3160 = vsel %vm2249, %v3158, %v3159
      %v3161 = vrot.slane %v2993, 1
      %v3162 = vrot.slane %v3127, 1
      %v3163 = vsel %vm2249, %v3161, %v3162
      %v3164 = vrot.slane %v2994, 1
      %v3165 = vrot.slane %v3128, 1
      %v3166 = vsel %vm2249, %v3164, %v3165
      %v3167 = vrot.slane %v2995, 1
      %v3168 = vrot.slane %v3129, 1
      %v3169 = vsel %vm2249, %v3167, %v3168
      %3170 = vrot.lane.b32.xlu0 %v3148, 126
      %v3171 = vpop.permute.xlu0 %3170
      %3172 = vrot.lane.b32.xlu0 %v3147, 126
      %v3173 = vpop.permute.xlu0 %3172
      %3174 = vrot.lane.b32.xlu0 %v3151, 126
      %v3175 = vpop.permute.xlu0 %3174
      %3176 = vrot.lane.b32.xlu0 %v3150, 126
      %v3177 = vpop.permute.xlu0 %3176
      %3178 = vrot.lane.b32.xlu0 %v3154, 126
      %v3179 = vpop.permute.xlu0 %3178
      %3180 = vrot.lane.b32.xlu0 %v3153, 126
      %v3181 = vpop.permute.xlu0 %3180
      %3182 = vrot.lane.b32.xlu0 %v3157, 126
      %v3183 = vpop.permute.xlu0 %3182
      %3184 = vrot.lane.b32.xlu0 %v3156, 126
      %v3185 = vpop.permute.xlu0 %3184
      %3186 = vrot.lane.b32.xlu0 %v3160, 126
      %v3187 = vpop.permute.xlu0 %3186
      %3188 = vrot.lane.b32.xlu0 %v3159, 126
      %v3189 = vpop.permute.xlu0 %3188
      %3190 = vrot.lane.b32.xlu0 %v3163, 126
      %v3191 = vpop.permute.xlu0 %3190
      %3192 = vrot.lane.b32.xlu0 %v3162, 126
      %v3193 = vpop.permute.xlu0 %3192
      %3194 = vrot.lane.b32.xlu0 %v3166, 126
      %v3195 = vpop.permute.xlu0 %3194
      %3196 = vrot.lane.b32.xlu0 %v3165, 126
      %v3197 = vpop.permute.xlu0 %3196
      %3198 = vrot.lane.b32.xlu0 %v3169, 126
      %v3199 = vpop.permute.xlu0 %3198
      %3200 = vrot.lane.b32.xlu0 %v3168, 126
      %v3201 = vpop.permute.xlu0 %3200
      %v3218 = vadd.f32 %v2754, %v3171
      %v3219 = vadd.f32 %v2755, %v3173
      %v3220 = vadd.f32 %v2756, %v3175
      %v3221 = vadd.f32 %v2757, %v3177
      %v3222 = vadd.f32 %v2758, %v3179
      %v3223 = vadd.f32 %v2759, %v3181
      %v3224 = vadd.f32 %v2760, %v3183
      %v3225 = vadd.f32 %v2761, %v3185
      %v3226 = vadd.f32 %v2762, %v3187
      %v3227 = vadd.f32 %v2763, %v3189
      %v3228 = vadd.f32 %v2764, %v3191
      %v3229 = vadd.f32 %v2765, %v3193
      %v3230 = vadd.f32 %v2766, %v3195
      %v3231 = vadd.f32 %v2767, %v3197
      %v3232 = vadd.f32 %v2768, %v3199
      %v3233 = vadd.f32 %v2769, %v3201
      %s3234 = scalar_lea.vmem %s1, 24
      %v3235 = vld [vmem:[%s3234] sm:$0xf]
      %v3237 = vsel %vm610, %v3235, 0
      %3239 = vmatprep.subr.bf16.mxu0 0
      %3240 = vmatpush1.bf16.msra.mxu0 0
      %3241 = vmatprep.subr.bf16.mxu0 0
      %3242 = vmatpush1.bf16.msra.mxu0 0
      %3243 = vmatprep.subr.bf16.mxu0 0
      %3244 = vmatpush1.bf16.msra.mxu0 0
      %3245 = vmatprep.subr.bf16.mxu0 0
      %3246 = vmatpush1.bf16.msra.mxu0 0
      %3247 = vmatprep.subr.bf16.mxu0 0
      %3248 = vmatpush1.bf16.msra.mxu0 0
      %3249 = vmatprep.subr.bf16.mxu0 0
      %3250 = vmatpush1.bf16.msra.mxu0 0
      %3251 = vmatprep.subr.bf16.mxu0 0
      %3252 = vmatpush1.bf16.msra.mxu0 0
      %3253 = vmatprep.subr.bf16.mxu0 %v619
      %3254 = vmatpush1.bf16.msra.mxu0 %v616
      %3255 = vmatprep.subr.bf16.mxu0 0
      %3256 = vmatpush2.bf16.msra.mxu0 0
      %3257 = vmatprep.subr.bf16.mxu0 0
      %3258 = vmatpush2.bf16.msra.mxu0 0
      %3259 = vmatprep.subr.bf16.mxu0 0
      %3260 = vmatpush2.bf16.msra.mxu0 0
      %3261 = vmatprep.subr.bf16.mxu0 0
      %3262 = vmatpush2.bf16.msra.mxu0 0
      %3263 = vmatprep.subr.bf16.mxu0 0
      %3264 = vmatpush2.bf16.msra.mxu0 0
      %3265 = vmatprep.subr.bf16.mxu0 0
      %3266 = vmatpush2.bf16.msra.mxu0 0
      %3267 = vmatprep.subr.bf16.mxu0 0
      %3268 = vmatpush2.bf16.msra.mxu0 0
      %3269 = vmatprep.subr.bf16.mxu0 0
      %3270 = vmatpush2.bf16.msra.mxu0 0
      %3271 = vmatprep.mubr.bf16.mxu0 0
      %3272 = vmatmul.mubr.bf16.gmra.mxu0 %v3237
      %v3273 = vpop.f32.mrf.mxu0
      %v3274 = vadd.f32 0.0, %v3273
      %v3275 = vpop.f32.mrf.mxu0
      %v3276 = vadd.f32 0.0, %v3275
      %v3277 = vpop.f32.mrf.mxu0
      %v3278 = vpop.f32.mrf.mxu0
      %3279 = vdwg.mxu0
      %3281 = vrot.lane.b32.xlu0 %v3274, 114
      %v3282 = vpop.permute.xlu0 %3281
      %3284 = vrot.lane.b32.xlu0 %v3274, 100
      %v3285 = vpop.permute.xlu0 %3284
      %3287 = vrot.lane.b32.xlu0 %v3274, 86
      %v3288 = vpop.permute.xlu0 %3287
      %3290 = vrot.lane.b32.xlu0 %v3274, 72
      %v3291 = vpop.permute.xlu0 %3290
      %3293 = vrot.lane.b32.xlu0 %v3274, 58
      %v3294 = vpop.permute.xlu0 %3293
      %3296 = vrot.lane.b32.xlu0 %v3274, 44
      %v3297 = vpop.permute.xlu0 %3296
      %3299 = vrot.lane.b32.xlu0 %v3274, 30
      %v3300 = vpop.permute.xlu0 %3299
      %3302 = vrot.lane.b32.xlu0 %v3274, 16
      %v3303 = vpop.permute.xlu0 %3302
      %3306 = vrot.lane.b32.xlu0 %v3274, 2
      %v3307 = vpop.permute.xlu0 %3306
      %3308 = vrot.lane.b32.xlu0 %v3276, 2
      %v3309 = vpop.permute.xlu0 %3308
      %v3310 = vsel %vm692, %v3307, %v3309
      %3312 = vrot.lane.b32.xlu0 %v3276, 116
      %v3313 = vpop.permute.xlu0 %3312
      %3315 = vrot.lane.b32.xlu0 %v3276, 102
      %v3316 = vpop.permute.xlu0 %3315
      %3318 = vrot.lane.b32.xlu0 %v3276, 88
      %v3319 = vpop.permute.xlu0 %3318
      %3321 = vrot.lane.b32.xlu0 %v3276, 74
      %v3322 = vpop.permute.xlu0 %3321
      %v3324 = vcombine.low %v3274, %v3285
      %v3325 = vcombine.high %v3274, %v3285
      %v3327 = vunpack.c.l.s4 1983009808
      %v3328 = vunpack.c.0.s8 %v3327
      %v3329 = vlaneseq
      %v3330 = vshrl.u32 %v3329, 7
      %v3331 = vsub.s32 %v3328, %v3330
      %v3332 = vrot.slane %v3324, %v3331
      %v3334 = vunpack.c.l.s4 1983009808
      %v3335 = vunpack.c.0.s8 %v3334
      %v3336 = vlaneseq
      %v3337 = vshrl.u32 %v3336, 7
      %v3338 = vsub.s32 %v3335, %v3337
      %v3339 = vrot.slane %v3325, %v3338
      %v3340 = vcombine.low %v3282, %v3288
      %v3341 = vcombine.high %v3282, %v3288
      %v3343 = vunpack.c.l.s4 1983009808
      %v3344 = vunpack.c.0.s8 %v3343
      %v3345 = vlaneseq
      %v3346 = vshrl.u32 %v3345, 7
      %v3347 = vsub.s32 %v3344, %v3346
      %v3348 = vrot.slane %v3340, %v3347
      %v3350 = vunpack.c.l.s4 1983009808
      %v3351 = vunpack.c.0.s8 %v3350
      %v3352 = vlaneseq
      %v3353 = vshrl.u32 %v3352, 7
      %v3354 = vsub.s32 %v3351, %v3353
      %v3355 = vrot.slane %v3341, %v3354
      %v3356 = vcombine.low %v3291, %v3297
      %v3357 = vcombine.high %v3291, %v3297
      %v3359 = vunpack.c.l.s4 1983009808
      %v3360 = vunpack.c.0.s8 %v3359
      %v3361 = vlaneseq
      %v3362 = vshrl.u32 %v3361, 7
      %v3363 = vsub.s32 %v3360, %v3362
      %v3364 = vrot.slane %v3356, %v3363
      %v3366 = vunpack.c.l.s4 1983009808
      %v3367 = vunpack.c.0.s8 %v3366
      %v3368 = vlaneseq
      %v3369 = vshrl.u32 %v3368, 7
      %v3370 = vsub.s32 %v3367, %v3369
      %v3371 = vrot.slane %v3357, %v3370
      %v3372 = vcombine.low %v3294, %v3300
      %v3373 = vcombine.high %v3294, %v3300
      %v3375 = vunpack.c.l.s4 1983009808
      %v3376 = vunpack.c.0.s8 %v3375
      %v3377 = vlaneseq
      %v3378 = vshrl.u32 %v3377, 7
      %v3379 = vsub.s32 %v3376, %v3378
      %v3380 = vrot.slane %v3372, %v3379
      %v3382 = vunpack.c.l.s4 1983009808
      %v3383 = vunpack.c.0.s8 %v3382
      %v3384 = vlaneseq
      %v3385 = vshrl.u32 %v3384, 7
      %v3386 = vsub.s32 %v3383, %v3385
      %v3387 = vrot.slane %v3373, %v3386
      %v3388 = vcombine.low %v3332, %v3348
      %v3389 = vcombine.high %v3332, %v3348
      %v3391 = vunpack.c.l.s4 1934713408
      %v3392 = vunpack.c.0.s8 %v3391
      %v3393 = vlaneseq
      %v3394 = vshrl.u32 %v3393, 7
      %v3395 = vsub.s32 %v3392, %v3394
      %v3396 = vrot.slane %v3388, %v3395
      %v3398 = vunpack.c.l.s4 1934713408
      %v3399 = vunpack.c.0.s8 %v3398
      %v3400 = vlaneseq
      %v3401 = vshrl.u32 %v3400, 7
      %v3402 = vsub.s32 %v3399, %v3401
      %v3403 = vrot.slane %v3389, %v3402
      %v3404 = vcombine.low %v3339, %v3355
      %v3405 = vcombine.high %v3339, %v3355
      %v3407 = vunpack.c.l.s4 1934713408
      %v3408 = vunpack.c.0.s8 %v3407
      %v3409 = vlaneseq
      %v3410 = vshrl.u32 %v3409, 7
      %v3411 = vsub.s32 %v3408, %v3410
      %v3412 = vrot.slane %v3404, %v3411
      %v3414 = vunpack.c.l.s4 1934713408
      %v3415 = vunpack.c.0.s8 %v3414
      %v3416 = vlaneseq
      %v3417 = vshrl.u32 %v3416, 7
      %v3418 = vsub.s32 %v3415, %v3417
      %v3419 = vrot.slane %v3405, %v3418
      %v3420 = vcombine.low %v3364, %v3380
      %v3421 = vcombine.high %v3364, %v3380
      %v3423 = vunpack.c.l.s4 1934713408
      %v3424 = vunpack.c.0.s8 %v3423
      %v3425 = vlaneseq
      %v3426 = vshrl.u32 %v3425, 7
      %v3427 = vsub.s32 %v3424, %v3426
      %v3428 = vrot.slane %v3420, %v3427
      %v3430 = vunpack.c.l.s4 1934713408
      %v3431 = vunpack.c.0.s8 %v3430
      %v3432 = vlaneseq
      %v3433 = vshrl.u32 %v3432, 7
      %v3434 = vsub.s32 %v3431, %v3433
      %v3435 = vrot.slane %v3421, %v3434
      %v3436 = vcombine.low %v3371, %v3387
      %v3437 = vcombine.high %v3371, %v3387
      %v3439 = vunpack.c.l.s4 1934713408
      %v3440 = vunpack.c.0.s8 %v3439
      %v3441 = vlaneseq
      %v3442 = vshrl.u32 %v3441, 7
      %v3443 = vsub.s32 %v3440, %v3442
      %v3444 = vrot.slane %v3436, %v3443
      %v3446 = vunpack.c.l.s4 1934713408
      %v3447 = vunpack.c.0.s8 %v3446
      %v3448 = vlaneseq
      %v3449 = vshrl.u32 %v3448, 7
      %v3450 = vsub.s32 %v3447, %v3449
      %v3451 = vrot.slane %v3437, %v3450
      %v3452 = vcombine.low %v3396, %v3428
      %v3453 = vcombine.high %v3396, %v3428
      %v3454 = vcombine.low %v3403, %v3435
      %v3455 = vcombine.high %v3403, %v3435
      %v3456 = vcombine.low %v3412, %v3444
      %v3457 = vcombine.high %v3412, %v3444
      %v3458 = vcombine.low %v3419, %v3451
      %v3459 = vcombine.high %v3419, %v3451
      %v3460 = vcombine.low %v3303, %v3313
      %v3461 = vcombine.high %v3303, %v3313
      %v3463 = vunpack.c.l.s4 1983009808
      %v3464 = vunpack.c.0.s8 %v3463
      %v3465 = vlaneseq
      %v3466 = vshrl.u32 %v3465, 7
      %v3467 = vsub.s32 %v3464, %v3466
      %v3468 = vrot.slane %v3460, %v3467
      %v3470 = vunpack.c.l.s4 1983009808
      %v3471 = vunpack.c.0.s8 %v3470
      %v3472 = vlaneseq
      %v3473 = vshrl.u32 %v3472, 7
      %v3474 = vsub.s32 %v3471, %v3473
      %v3475 = vrot.slane %v3461, %v3474
      %v3476 = vcombine.low %v3310, %v3316
      %v3477 = vcombine.high %v3310, %v3316
      %v3479 = vunpack.c.l.s4 1983009808
      %v3480 = vunpack.c.0.s8 %v3479
      %v3481 = vlaneseq
      %v3482 = vshrl.u32 %v3481, 7
      %v3483 = vsub.s32 %v3480, %v3482
      %v3484 = vrot.slane %v3476, %v3483
      %v3486 = vunpack.c.l.s4 1983009808
      %v3487 = vunpack.c.0.s8 %v3486
      %v3488 = vlaneseq
      %v3489 = vshrl.u32 %v3488, 7
      %v3490 = vsub.s32 %v3487, %v3489
      %v3491 = vrot.slane %v3477, %v3490
      %v3492 = vcombine.high %v3319, 0.0
      %v3494 = vunpack.c.l.s4 1983009808
      %v3495 = vunpack.c.0.s8 %v3494
      %v3496 = vlaneseq
      %v3497 = vshrl.u32 %v3496, 7
      %v3498 = vsub.s32 %v3495, %v3497
      %v3499 = vrot.slane %v3319, %v3498
      %v3501 = vunpack.c.l.s4 1983009808
      %v3502 = vunpack.c.0.s8 %v3501
      %v3503 = vlaneseq
      %v3504 = vshrl.u32 %v3503, 7
      %v3505 = vsub.s32 %v3502, %v3504
      %v3506 = vrot.slane %v3492, %v3505
      %v3507 = vcombine.high %v3322, 0.0
      %v3509 = vunpack.c.l.s4 1983009808
      %v3510 = vunpack.c.0.s8 %v3509
      %v3511 = vlaneseq
      %v3512 = vshrl.u32 %v3511, 7
      %v3513 = vsub.s32 %v3510, %v3512
      %v3514 = vrot.slane %v3322, %v3513
      %v3516 = vunpack.c.l.s4 1983009808
      %v3517 = vunpack.c.0.s8 %v3516
      %v3518 = vlaneseq
      %v3519 = vshrl.u32 %v3518, 7
      %v3520 = vsub.s32 %v3517, %v3519
      %v3521 = vrot.slane %v3507, %v3520
      %v3522 = vcombine.low %v3468, %v3484
      %v3523 = vcombine.high %v3468, %v3484
      %v3525 = vunpack.c.l.s4 1934713408
      %v3526 = vunpack.c.0.s8 %v3525
      %v3527 = vlaneseq
      %v3528 = vshrl.u32 %v3527, 7
      %v3529 = vsub.s32 %v3526, %v3528
      %v3530 = vrot.slane %v3522, %v3529
      %v3532 = vunpack.c.l.s4 1934713408
      %v3533 = vunpack.c.0.s8 %v3532
      %v3534 = vlaneseq
      %v3535 = vshrl.u32 %v3534, 7
      %v3536 = vsub.s32 %v3533, %v3535
      %v3537 = vrot.slane %v3523, %v3536
      %v3538 = vcombine.low %v3475, %v3491
      %v3539 = vcombine.high %v3475, %v3491
      %v3541 = vunpack.c.l.s4 1934713408
      %v3542 = vunpack.c.0.s8 %v3541
      %v3543 = vlaneseq
      %v3544 = vshrl.u32 %v3543, 7
      %v3545 = vsub.s32 %v3542, %v3544
      %v3546 = vrot.slane %v3538, %v3545
      %v3548 = vunpack.c.l.s4 1934713408
      %v3549 = vunpack.c.0.s8 %v3548
      %v3550 = vlaneseq
      %v3551 = vshrl.u32 %v3550, 7
      %v3552 = vsub.s32 %v3549, %v3551
      %v3553 = vrot.slane %v3539, %v3552
      %v3554 = vcombine.low %v3499, %v3514
      %v3555 = vcombine.high %v3499, %v3514
      %v3557 = vunpack.c.l.s4 1934713408
      %v3558 = vunpack.c.0.s8 %v3557
      %v3559 = vlaneseq
      %v3560 = vshrl.u32 %v3559, 7
      %v3561 = vsub.s32 %v3558, %v3560
      %v3562 = vrot.slane %v3554, %v3561
      %v3564 = vunpack.c.l.s4 1934713408
      %v3565 = vunpack.c.0.s8 %v3564
      %v3566 = vlaneseq
      %v3567 = vshrl.u32 %v3566, 7
      %v3568 = vsub.s32 %v3565, %v3567
      %v3569 = vrot.slane %v3555, %v3568
      %v3570 = vcombine.low %v3506, %v3521
      %v3571 = vcombine.high %v3506, %v3521
      %v3573 = vunpack.c.l.s4 1934713408
      %v3574 = vunpack.c.0.s8 %v3573
      %v3575 = vlaneseq
      %v3576 = vshrl.u32 %v3575, 7
      %v3577 = vsub.s32 %v3574, %v3576
      %v3578 = vrot.slane %v3570, %v3577
      %v3580 = vunpack.c.l.s4 1934713408
      %v3581 = vunpack.c.0.s8 %v3580
      %v3582 = vlaneseq
      %v3583 = vshrl.u32 %v3582, 7
      %v3584 = vsub.s32 %v3581, %v3583
      %v3585 = vrot.slane %v3571, %v3584
      %v3586 = vcombine.low %v3530, %v3562
      %v3587 = vcombine.high %v3530, %v3562
      %v3588 = vcombine.low %v3537, %v3569
      %v3589 = vcombine.high %v3537, %v3569
      %v3590 = vcombine.low %v3546, %v3578
      %v3591 = vcombine.high %v3546, %v3578
      %v3592 = vcombine.low %v3553, %v3585
      %v3593 = vcombine.high %v3553, %v3585
      %vm3610 = vcmask 1045504
      %v3611 = vrot.slane %v3452, 2
      %v3612 = vrot.slane %v3586, 2
      %v3613 = vsel %vm3610, %v3611, %v3612
      %v3614 = vrot.slane %v3453, 2
      %v3615 = vrot.slane %v3587, 2
      %v3616 = vsel %vm3610, %v3614, %v3615
      %v3617 = vrot.slane %v3454, 2
      %v3618 = vrot.slane %v3588, 2
      %v3619 = vsel %vm3610, %v3617, %v3618
      %v3620 = vrot.slane %v3455, 2
      %v3621 = vrot.slane %v3589, 2
      %v3622 = vsel %vm3610, %v3620, %v3621
      %v3623 = vrot.slane %v3456, 2
      %v3624 = vrot.slane %v3590, 2
      %v3625 = vsel %vm3610, %v3623, %v3624
      %v3626 = vrot.slane %v3457, 2
      %v3627 = vrot.slane %v3591, 2
      %v3628 = vsel %vm3610, %v3626, %v3627
      %v3629 = vrot.slane %v3458, 2
      %v3630 = vrot.slane %v3592, 2
      %v3631 = vsel %vm3610, %v3629, %v3630
      %v3632 = vrot.slane %v3459, 2
      %v3633 = vrot.slane %v3593, 2
      %v3634 = vsel %vm3610, %v3632, %v3633
      %v3651 = vadd.f32 %v3218, %v3613
      %v3652 = vadd.f32 %v3219, %v3612
      %v3653 = vadd.f32 %v3220, %v3616
      %v3654 = vadd.f32 %v3221, %v3615
      %v3655 = vadd.f32 %v3222, %v3619
      %v3656 = vadd.f32 %v3223, %v3618
      %v3657 = vadd.f32 %v3224, %v3622
      %v3658 = vadd.f32 %v3225, %v3621
      %v3659 = vadd.f32 %v3226, %v3625
      %v3660 = vadd.f32 %v3227, %v3624
      %v3661 = vadd.f32 %v3228, %v3628
      %v3662 = vadd.f32 %v3229, %v3627
      %v3663 = vadd.f32 %v3230, %v3631
      %v3664 = vadd.f32 %v3231, %v3630
      %v3665 = vadd.f32 %v3232, %v3634
      %v3666 = vadd.f32 %v3233, %v3633
      %s3667 = scalar_lea.vmem %s1, 28
      %v3668 = vld [vmem:[%s3667] sm:$0xf]
      %v3670 = vsel %vm610, %v3668, 0
      %3672 = vmatprep.subr.bf16.mxu0 0
      %3673 = vmatpush1.bf16.msra.mxu0 0
      %3674 = vmatprep.subr.bf16.mxu0 0
      %3675 = vmatpush1.bf16.msra.mxu0 0
      %3676 = vmatprep.subr.bf16.mxu0 0
      %3677 = vmatpush1.bf16.msra.mxu0 0
      %3678 = vmatprep.subr.bf16.mxu0 0
      %3679 = vmatpush1.bf16.msra.mxu0 0
      %3680 = vmatprep.subr.bf16.mxu0 0
      %3681 = vmatpush1.bf16.msra.mxu0 0
      %3682 = vmatprep.subr.bf16.mxu0 0
      %3683 = vmatpush1.bf16.msra.mxu0 0
      %3684 = vmatprep.subr.bf16.mxu0 0
      %3685 = vmatpush1.bf16.msra.mxu0 0
      %3686 = vmatprep.subr.bf16.mxu0 %v619
      %3687 = vmatpush1.bf16.msra.mxu0 %v616
      %3688 = vmatprep.subr.bf16.mxu0 0
      %3689 = vmatpush2.bf16.msra.mxu0 0
      %3690 = vmatprep.subr.bf16.mxu0 0
      %3691 = vmatpush2.bf16.msra.mxu0 0
      %3692 = vmatprep.subr.bf16.mxu0 0
      %3693 = vmatpush2.bf16.msra.mxu0 0
      %3694 = vmatprep.subr.bf16.mxu0 0
      %3695 = vmatpush2.bf16.msra.mxu0 0
      %3696 = vmatprep.subr.bf16.mxu0 0
      %3697 = vmatpush2.bf16.msra.mxu0 0
      %3698 = vmatprep.subr.bf16.mxu0 0
      %3699 = vmatpush2.bf16.msra.mxu0 0
      %3700 = vmatprep.subr.bf16.mxu0 0
      %3701 = vmatpush2.bf16.msra.mxu0 0
      %3702 = vmatprep.subr.bf16.mxu0 0
      %3703 = vmatpush2.bf16.msra.mxu0 0
      %3704 = vmatprep.mubr.bf16.mxu0 0
      %3705 = vmatmul.mubr.bf16.gmra.mxu0 %v3670
      %v3706 = vpop.f32.mrf.mxu0
      %v3707 = vadd.f32 0.0, %v3706
      %v3708 = vpop.f32.mrf.mxu0
      %v3709 = vadd.f32 0.0, %v3708
      %v3710 = vpop.f32.mrf.mxu0
      %v3711 = vpop.f32.mrf.mxu0
      %3712 = vdwg.mxu0
      %3714 = vrot.lane.b32.xlu0 %v3707, 114
      %v3715 = vpop.permute.xlu0 %3714
      %3717 = vrot.lane.b32.xlu0 %v3707, 100
      %v3718 = vpop.permute.xlu0 %3717
      %3720 = vrot.lane.b32.xlu0 %v3707, 86
      %v3721 = vpop.permute.xlu0 %3720
      %3723 = vrot.lane.b32.xlu0 %v3707, 72
      %v3724 = vpop.permute.xlu0 %3723
      %3726 = vrot.lane.b32.xlu0 %v3707, 58
      %v3727 = vpop.permute.xlu0 %3726
      %3729 = vrot.lane.b32.xlu0 %v3707, 44
      %v3730 = vpop.permute.xlu0 %3729
      %3732 = vrot.lane.b32.xlu0 %v3707, 30
      %v3733 = vpop.permute.xlu0 %3732
      %3735 = vrot.lane.b32.xlu0 %v3707, 16
      %v3736 = vpop.permute.xlu0 %3735
      %3739 = vrot.lane.b32.xlu0 %v3707, 2
      %v3740 = vpop.permute.xlu0 %3739
      %3741 = vrot.lane.b32.xlu0 %v3709, 2
      %v3742 = vpop.permute.xlu0 %3741
      %v3743 = vsel %vm692, %v3740, %v3742
      %3745 = vrot.lane.b32.xlu0 %v3709, 116
      %v3746 = vpop.permute.xlu0 %3745
      %3748 = vrot.lane.b32.xlu0 %v3709, 102
      %v3749 = vpop.permute.xlu0 %3748
      %3751 = vrot.lane.b32.xlu0 %v3709, 88
      %v3752 = vpop.permute.xlu0 %3751
      %3754 = vrot.lane.b32.xlu0 %v3709, 74
      %v3755 = vpop.permute.xlu0 %3754
      %v3757 = vcombine.low %v3707, %v3718
      %v3758 = vcombine.high %v3707, %v3718
      %v3760 = vunpack.c.l.s4 1983009808
      %v3761 = vunpack.c.0.s8 %v3760
      %v3762 = vlaneseq
      %v3763 = vshrl.u32 %v3762, 7
      %v3764 = vsub.s32 %v3761, %v3763
      %v3765 = vrot.slane %v3757, %v3764
      %v3767 = vunpack.c.l.s4 1983009808
      %v3768 = vunpack.c.0.s8 %v3767
      %v3769 = vlaneseq
      %v3770 = vshrl.u32 %v3769, 7
      %v3771 = vsub.s32 %v3768, %v3770
      %v3772 = vrot.slane %v3758, %v3771
      %v3773 = vcombine.low %v3715, %v3721
      %v3774 = vcombine.high %v3715, %v3721
      %v3776 = vunpack.c.l.s4 1983009808
      %v3777 = vunpack.c.0.s8 %v3776
      %v3778 = vlaneseq
      %v3779 = vshrl.u32 %v3778, 7
      %v3780 = vsub.s32 %v3777, %v3779
      %v3781 = vrot.slane %v3773, %v3780
      %v3783 = vunpack.c.l.s4 1983009808
      %v3784 = vunpack.c.0.s8 %v3783
      %v3785 = vlaneseq
      %v3786 = vshrl.u32 %v3785, 7
      %v3787 = vsub.s32 %v3784, %v3786
      %v3788 = vrot.slane %v3774, %v3787
      %v3789 = vcombine.low %v3724, %v3730
      %v3790 = vcombine.high %v3724, %v3730
      %v3792 = vunpack.c.l.s4 1983009808
      %v3793 = vunpack.c.0.s8 %v3792
      %v3794 = vlaneseq
      %v3795 = vshrl.u32 %v3794, 7
      %v3796 = vsub.s32 %v3793, %v3795
      %v3797 = vrot.slane %v3789, %v3796
      %v3799 = vunpack.c.l.s4 1983009808
      %v3800 = vunpack.c.0.s8 %v3799
      %v3801 = vlaneseq
      %v3802 = vshrl.u32 %v3801, 7
      %v3803 = vsub.s32 %v3800, %v3802
      %v3804 = vrot.slane %v3790, %v3803
      %v3805 = vcombine.low %v3727, %v3733
      %v3806 = vcombine.high %v3727, %v3733
      %v3808 = vunpack.c.l.s4 1983009808
      %v3809 = vunpack.c.0.s8 %v3808
      %v3810 = vlaneseq
      %v3811 = vshrl.u32 %v3810, 7
      %v3812 = vsub.s32 %v3809, %v3811
      %v3813 = vrot.slane %v3805, %v3812
      %v3815 = vunpack.c.l.s4 1983009808
      %v3816 = vunpack.c.0.s8 %v3815
      %v3817 = vlaneseq
      %v3818 = vshrl.u32 %v3817, 7
      %v3819 = vsub.s32 %v3816, %v3818
      %v3820 = vrot.slane %v3806, %v3819
      %v3821 = vcombine.low %v3765, %v3781
      %v3822 = vcombine.high %v3765, %v3781
      %v3824 = vunpack.c.l.s4 1934713408
      %v3825 = vunpack.c.0.s8 %v3824
      %v3826 = vlaneseq
      %v3827 = vshrl.u32 %v3826, 7
      %v3828 = vsub.s32 %v3825, %v3827
      %v3829 = vrot.slane %v3821, %v3828
      %v3831 = vunpack.c.l.s4 1934713408
      %v3832 = vunpack.c.0.s8 %v3831
      %v3833 = vlaneseq
      %v3834 = vshrl.u32 %v3833, 7
      %v3835 = vsub.s32 %v3832, %v3834
      %v3836 = vrot.slane %v3822, %v3835
      %v3837 = vcombine.low %v3772, %v3788
      %v3838 = vcombine.high %v3772, %v3788
      %v3840 = vunpack.c.l.s4 1934713408
      %v3841 = vunpack.c.0.s8 %v3840
      %v3842 = vlaneseq
      %v3843 = vshrl.u32 %v3842, 7
      %v3844 = vsub.s32 %v3841, %v3843
      %v3845 = vrot.slane %v3837, %v3844
      %v3847 = vunpack.c.l.s4 1934713408
      %v3848 = vunpack.c.0.s8 %v3847
      %v3849 = vlaneseq
      %v3850 = vshrl.u32 %v3849, 7
      %v3851 = vsub.s32 %v3848, %v3850
      %v3852 = vrot.slane %v3838, %v3851
      %v3853 = vcombine.low %v3797, %v3813
      %v3854 = vcombine.high %v3797, %v3813
      %v3856 = vunpack.c.l.s4 1934713408
      %v3857 = vunpack.c.0.s8 %v3856
      %v3858 = vlaneseq
      %v3859 = vshrl.u32 %v3858, 7
      %v3860 = vsub.s32 %v3857, %v3859
      %v3861 = vrot.slane %v3853, %v3860
      %v3863 = vunpack.c.l.s4 1934713408
      %v3864 = vunpack.c.0.s8 %v3863
      %v3865 = vlaneseq
      %v3866 = vshrl.u32 %v3865, 7
      %v3867 = vsub.s32 %v3864, %v3866
      %v3868 = vrot.slane %v3854, %v3867
      %v3869 = vcombine.low %v3804, %v3820
      %v3870 = vcombine.high %v3804, %v3820
      %v3872 = vunpack.c.l.s4 1934713408
      %v3873 = vunpack.c.0.s8 %v3872
      %v3874 = vlaneseq
      %v3875 = vshrl.u32 %v3874, 7
      %v3876 = vsub.s32 %v3873, %v3875
      %v3877 = vrot.slane %v3869, %v3876
      %v3879 = vunpack.c.l.s4 1934713408
      %v3880 = vunpack.c.0.s8 %v3879
      %v3881 = vlaneseq
      %v3882 = vshrl.u32 %v3881, 7
      %v3883 = vsub.s32 %v3880, %v3882
      %v3884 = vrot.slane %v3870, %v3883
      %v3885 = vcombine.low %v3829, %v3861
      %v3886 = vcombine.high %v3829, %v3861
      %v3887 = vcombine.low %v3836, %v3868
      %v3888 = vcombine.high %v3836, %v3868
      %v3889 = vcombine.low %v3845, %v3877
      %v3890 = vcombine.high %v3845, %v3877
      %v3891 = vcombine.low %v3852, %v3884
      %v3892 = vcombine.high %v3852, %v3884
      %v3893 = vcombine.low %v3736, %v3746
      %v3894 = vcombine.high %v3736, %v3746
      %v3896 = vunpack.c.l.s4 1983009808
      %v3897 = vunpack.c.0.s8 %v3896
      %v3898 = vlaneseq
      %v3899 = vshrl.u32 %v3898, 7
      %v3900 = vsub.s32 %v3897, %v3899
      %v3901 = vrot.slane %v3893, %v3900
      %v3903 = vunpack.c.l.s4 1983009808
      %v3904 = vunpack.c.0.s8 %v3903
      %v3905 = vlaneseq
      %v3906 = vshrl.u32 %v3905, 7
      %v3907 = vsub.s32 %v3904, %v3906
      %v3908 = vrot.slane %v3894, %v3907
      %v3909 = vcombine.low %v3743, %v3749
      %v3910 = vcombine.high %v3743, %v3749
      %v3912 = vunpack.c.l.s4 1983009808
      %v3913 = vunpack.c.0.s8 %v3912
      %v3914 = vlaneseq
      %v3915 = vshrl.u32 %v3914, 7
      %v3916 = vsub.s32 %v3913, %v3915
      %v3917 = vrot.slane %v3909, %v3916
      %v3919 = vunpack.c.l.s4 1983009808
      %v3920 = vunpack.c.0.s8 %v3919
      %v3921 = vlaneseq
      %v3922 = vshrl.u32 %v3921, 7
      %v3923 = vsub.s32 %v3920, %v3922
      %v3924 = vrot.slane %v3910, %v3923
      %v3925 = vcombine.high %v3752, 0.0
      %v3927 = vunpack.c.l.s4 1983009808
      %v3928 = vunpack.c.0.s8 %v3927
      %v3929 = vlaneseq
      %v3930 = vshrl.u32 %v3929, 7
      %v3931 = vsub.s32 %v3928, %v3930
      %v3932 = vrot.slane %v3752, %v3931
      %v3934 = vunpack.c.l.s4 1983009808
      %v3935 = vunpack.c.0.s8 %v3934
      %v3936 = vlaneseq
      %v3937 = vshrl.u32 %v3936, 7
      %v3938 = vsub.s32 %v3935, %v3937
      %v3939 = vrot.slane %v3925, %v3938
      %v3940 = vcombine.high %v3755, 0.0
      %v3942 = vunpack.c.l.s4 1983009808
      %v3943 = vunpack.c.0.s8 %v3942
      %v3944 = vlaneseq
      %v3945 = vshrl.u32 %v3944, 7
      %v3946 = vsub.s32 %v3943, %v3945
      %v3947 = vrot.slane %v3755, %v3946
      %v3949 = vunpack.c.l.s4 1983009808
      %v3950 = vunpack.c.0.s8 %v3949
      %v3951 = vlaneseq
      %v3952 = vshrl.u32 %v3951, 7
      %v3953 = vsub.s32 %v3950, %v3952
      %v3954 = vrot.slane %v3940, %v3953
      %v3955 = vcombine.low %v3901, %v3917
      %v3956 = vcombine.high %v3901, %v3917
      %v3958 = vunpack.c.l.s4 1934713408
      %v3959 = vunpack.c.0.s8 %v3958
      %v3960 = vlaneseq
      %v3961 = vshrl.u32 %v3960, 7
      %v3962 = vsub.s32 %v3959, %v3961
      %v3963 = vrot.slane %v3955, %v3962
      %v3965 = vunpack.c.l.s4 1934713408
      %v3966 = vunpack.c.0.s8 %v3965
      %v3967 = vlaneseq
      %v3968 = vshrl.u32 %v3967, 7
      %v3969 = vsub.s32 %v3966, %v3968
      %v3970 = vrot.slane %v3956, %v3969
      %v3971 = vcombine.low %v3908, %v3924
      %v3972 = vcombine.high %v3908, %v3924
      %v3974 = vunpack.c.l.s4 1934713408
      %v3975 = vunpack.c.0.s8 %v3974
      %v3976 = vlaneseq
      %v3977 = vshrl.u32 %v3976, 7
      %v3978 = vsub.s32 %v3975, %v3977
      %v3979 = vrot.slane %v3971, %v3978
      %v3981 = vunpack.c.l.s4 1934713408
      %v3982 = vunpack.c.0.s8 %v3981
      %v3983 = vlaneseq
      %v3984 = vshrl.u32 %v3983, 7
      %v3985 = vsub.s32 %v3982, %v3984
      %v3986 = vrot.slane %v3972, %v3985
      %v3987 = vcombine.low %v3932, %v3947
      %v3988 = vcombine.high %v3932, %v3947
      %v3990 = vunpack.c.l.s4 1934713408
      %v3991 = vunpack.c.0.s8 %v3990
      %v3992 = vlaneseq
      %v3993 = vshrl.u32 %v3992, 7
      %v3994 = vsub.s32 %v3991, %v3993
      %v3995 = vrot.slane %v3987, %v3994
      %v3997 = vunpack.c.l.s4 1934713408
      %v3998 = vunpack.c.0.s8 %v3997
      %v3999 = vlaneseq
      %v4000 = vshrl.u32 %v3999, 7
      %v4001 = vsub.s32 %v3998, %v4000
      %v4002 = vrot.slane %v3988, %v4001
      %v4003 = vcombine.low %v3939, %v3954
      %v4004 = vcombine.high %v3939, %v3954
      %v4006 = vunpack.c.l.s4 1934713408
      %v4007 = vunpack.c.0.s8 %v4006
      %v4008 = vlaneseq
      %v4009 = vshrl.u32 %v4008, 7
      %v4010 = vsub.s32 %v4007, %v4009
      %v4011 = vrot.slane %v4003, %v4010
      %v4013 = vunpack.c.l.s4 1934713408
      %v4014 = vunpack.c.0.s8 %v4013
      %v4015 = vlaneseq
      %v4016 = vshrl.u32 %v4015, 7
      %v4017 = vsub.s32 %v4014, %v4016
      %v4018 = vrot.slane %v4004, %v4017
      %v4019 = vcombine.low %v3963, %v3995
      %v4020 = vcombine.high %v3963, %v3995
      %v4021 = vcombine.low %v3970, %v4002
      %v4022 = vcombine.high %v3970, %v4002
      %v4023 = vcombine.low %v3979, %v4011
      %v4024 = vcombine.high %v3979, %v4011
      %v4025 = vcombine.low %v3986, %v4018
      %v4026 = vcombine.high %v3986, %v4018
      %v4043 = vrot.slane %v3885, 2
      %v4044 = vrot.slane %v4019, 2
      %v4045 = vsel %vm3610, %v4043, %v4044
      %v4046 = vrot.slane %v3886, 2
      %v4047 = vrot.slane %v4020, 2
      %v4048 = vsel %vm3610, %v4046, %v4047
      %v4049 = vrot.slane %v3887, 2
      %v4050 = vrot.slane %v4021, 2
      %v4051 = vsel %vm3610, %v4049, %v4050
      %v4052 = vrot.slane %v3888, 2
      %v4053 = vrot.slane %v4022, 2
      %v4054 = vsel %vm3610, %v4052, %v4053
      %v4055 = vrot.slane %v3889, 2
      %v4056 = vrot.slane %v4023, 2
      %v4057 = vsel %vm3610, %v4055, %v4056
      %v4058 = vrot.slane %v3890, 2
      %v4059 = vrot.slane %v4024, 2
      %v4060 = vsel %vm3610, %v4058, %v4059
      %v4061 = vrot.slane %v3891, 2
      %v4062 = vrot.slane %v4025, 2
      %v4063 = vsel %vm3610, %v4061, %v4062
      %v4064 = vrot.slane %v3892, 2
      %v4065 = vrot.slane %v4026, 2
      %v4066 = vsel %vm3610, %v4064, %v4065
      %4067 = vrot.lane.b32.xlu0 %v4045, 127
      %v4068 = vpop.permute.xlu0 %4067
      %4069 = vrot.lane.b32.xlu0 %v4044, 127
      %v4070 = vpop.permute.xlu0 %4069
      %4071 = vrot.lane.b32.xlu0 %v4048, 127
      %v4072 = vpop.permute.xlu0 %4071
      %4073 = vrot.lane.b32.xlu0 %v4047, 127
      %v4074 = vpop.permute.xlu0 %4073
      %4075 = vrot.lane.b32.xlu0 %v4051, 127
      %v4076 = vpop.permute.xlu0 %4075
      %4077 = vrot.lane.b32.xlu0 %v4050, 127
      %v4078 = vpop.permute.xlu0 %4077
      %4079 = vrot.lane.b32.xlu0 %v4054, 127
      %v4080 = vpop.permute.xlu0 %4079
      %4081 = vrot.lane.b32.xlu0 %v4053, 127
      %v4082 = vpop.permute.xlu0 %4081
      %4083 = vrot.lane.b32.xlu0 %v4057, 127
      %v4084 = vpop.permute.xlu0 %4083
      %4085 = vrot.lane.b32.xlu0 %v4056, 127
      %v4086 = vpop.permute.xlu0 %4085
      %4087 = vrot.lane.b32.xlu0 %v4060, 127
      %v4088 = vpop.permute.xlu0 %4087
      %4089 = vrot.lane.b32.xlu0 %v4059, 127
      %v4090 = vpop.permute.xlu0 %4089
      %4091 = vrot.lane.b32.xlu0 %v4063, 127
      %v4092 = vpop.permute.xlu0 %4091
      %4093 = vrot.lane.b32.xlu0 %v4062, 127
      %v4094 = vpop.permute.xlu0 %4093
      %4095 = vrot.lane.b32.xlu0 %v4066, 127
      %v4096 = vpop.permute.xlu0 %4095
      %4097 = vrot.lane.b32.xlu0 %v4065, 127
      %v4098 = vpop.permute.xlu0 %4097
      %v4115 = vadd.f32 %v3651, %v4068
      %v4116 = vadd.f32 %v3652, %v4070
      %v4117 = vadd.f32 %v3653, %v4072
      %v4118 = vadd.f32 %v3654, %v4074
      %v4119 = vadd.f32 %v3655, %v4076
      %v4120 = vadd.f32 %v3656, %v4078
      %v4121 = vadd.f32 %v3657, %v4080
      %v4122 = vadd.f32 %v3658, %v4082
      %v4123 = vadd.f32 %v3659, %v4084
      %v4124 = vadd.f32 %v3660, %v4086
      %v4125 = vadd.f32 %v3661, %v4088
      %v4126 = vadd.f32 %v3662, %v4090
      %v4127 = vadd.f32 %v3663, %v4092
      %v4128 = vadd.f32 %v3664, %v4094
      %v4129 = vadd.f32 %v3665, %v4096
      %v4130 = vadd.f32 %v3666, %v4098
      %s4131 = scalar_lea.vmem %s1, 32
      %v4132 = vld [vmem:[%s4131] sm:$0xf]
      %v4134 = vsel %vm610, %v4132, 0
      %4136 = vmatprep.subr.bf16.mxu0 0
      %4137 = vmatpush1.bf16.msra.mxu0 0
      %4138 = vmatprep.subr.bf16.mxu0 0
      %4139 = vmatpush1.bf16.msra.mxu0 0
      %4140 = vmatprep.subr.bf16.mxu0 0
      %4141 = vmatpush1.bf16.msra.mxu0 0
      %4142 = vmatprep.subr.bf16.mxu0 0
      %4143 = vmatpush1.bf16.msra.mxu0 0
      %4144 = vmatprep.subr.bf16.mxu0 0
      %4145 = vmatpush1.bf16.msra.mxu0 0
      %4146 = vmatprep.subr.bf16.mxu0 0
      %4147 = vmatpush1.bf16.msra.mxu0 0
      %4148 = vmatprep.subr.bf16.mxu0 0
      %4149 = vmatpush1.bf16.msra.mxu0 0
      %4150 = vmatprep.subr.bf16.mxu0 %v619
      %4151 = vmatpush1.bf16.msra.mxu0 %v616
      %4152 = vmatprep.subr.bf16.mxu0 0
      %4153 = vmatpush2.bf16.msra.mxu0 0
      %4154 = vmatprep.subr.bf16.mxu0 0
      %4155 = vmatpush2.bf16.msra.mxu0 0
      %4156 = vmatprep.subr.bf16.mxu0 0
      %4157 = vmatpush2.bf16.msra.mxu0 0
      %4158 = vmatprep.subr.bf16.mxu0 0
      %4159 = vmatpush2.bf16.msra.mxu0 0
      %4160 = vmatprep.subr.bf16.mxu0 0
      %4161 = vmatpush2.bf16.msra.mxu0 0
      %4162 = vmatprep.subr.bf16.mxu0 0
      %4163 = vmatpush2.bf16.msra.mxu0 0
      %4164 = vmatprep.subr.bf16.mxu0 0
      %4165 = vmatpush2.bf16.msra.mxu0 0
      %4166 = vmatprep.subr.bf16.mxu0 0
      %4167 = vmatpush2.bf16.msra.mxu0 0
      %4168 = vmatprep.mubr.bf16.mxu0 0
      %4169 = vmatmul.mubr.bf16.gmra.mxu0 %v4134
      %v4170 = vpop.f32.mrf.mxu0
      %v4171 = vadd.f32 0.0, %v4170
      %v4172 = vpop.f32.mrf.mxu0
      %v4173 = vadd.f32 0.0, %v4172
      %v4174 = vpop.f32.mrf.mxu0
      %v4175 = vpop.f32.mrf.mxu0
      %4176 = vdwg.mxu0
      %4178 = vrot.lane.b32.xlu0 %v4171, 114
      %v4179 = vpop.permute.xlu0 %4178
      %4181 = vrot.lane.b32.xlu0 %v4171, 100
      %v4182 = vpop.permute.xlu0 %4181
      %4184 = vrot.lane.b32.xlu0 %v4171, 86
      %v4185 = vpop.permute.xlu0 %4184
      %4187 = vrot.lane.b32.xlu0 %v4171, 72
      %v4188 = vpop.permute.xlu0 %4187
      %4190 = vrot.lane.b32.xlu0 %v4171, 58
      %v4191 = vpop.permute.xlu0 %4190
      %4193 = vrot.lane.b32.xlu0 %v4171, 44
      %v4194 = vpop.permute.xlu0 %4193
      %4196 = vrot.lane.b32.xlu0 %v4171, 30
      %v4197 = vpop.permute.xlu0 %4196
      %4199 = vrot.lane.b32.xlu0 %v4171, 16
      %v4200 = vpop.permute.xlu0 %4199
      %4203 = vrot.lane.b32.xlu0 %v4171, 2
      %v4204 = vpop.permute.xlu0 %4203
      %4205 = vrot.lane.b32.xlu0 %v4173, 2
      %v4206 = vpop.permute.xlu0 %4205
      %v4207 = vsel %vm692, %v4204, %v4206
      %4209 = vrot.lane.b32.xlu0 %v4173, 116
      %v4210 = vpop.permute.xlu0 %4209
      %4212 = vrot.lane.b32.xlu0 %v4173, 102
      %v4213 = vpop.permute.xlu0 %4212
      %4215 = vrot.lane.b32.xlu0 %v4173, 88
      %v4216 = vpop.permute.xlu0 %4215
      %4218 = vrot.lane.b32.xlu0 %v4173, 74
      %v4219 = vpop.permute.xlu0 %4218
      %v4221 = vcombine.low %v4171, %v4182
      %v4222 = vcombine.high %v4171, %v4182
      %v4224 = vunpack.c.l.s4 1983009808
      %v4225 = vunpack.c.0.s8 %v4224
      %v4226 = vlaneseq
      %v4227 = vshrl.u32 %v4226, 7
      %v4228 = vsub.s32 %v4225, %v4227
      %v4229 = vrot.slane %v4221, %v4228
      %v4231 = vunpack.c.l.s4 1983009808
      %v4232 = vunpack.c.0.s8 %v4231
      %v4233 = vlaneseq
      %v4234 = vshrl.u32 %v4233, 7
      %v4235 = vsub.s32 %v4232, %v4234
      %v4236 = vrot.slane %v4222, %v4235
      %v4237 = vcombine.low %v4179, %v4185
      %v4238 = vcombine.high %v4179, %v4185
      %v4240 = vunpack.c.l.s4 1983009808
      %v4241 = vunpack.c.0.s8 %v4240
      %v4242 = vlaneseq
      %v4243 = vshrl.u32 %v4242, 7
      %v4244 = vsub.s32 %v4241, %v4243
      %v4245 = vrot.slane %v4237, %v4244
      %v4247 = vunpack.c.l.s4 1983009808
      %v4248 = vunpack.c.0.s8 %v4247
      %v4249 = vlaneseq
      %v4250 = vshrl.u32 %v4249, 7
      %v4251 = vsub.s32 %v4248, %v4250
      %v4252 = vrot.slane %v4238, %v4251
      %v4253 = vcombine.low %v4188, %v4194
      %v4254 = vcombine.high %v4188, %v4194
      %v4256 = vunpack.c.l.s4 1983009808
      %v4257 = vunpack.c.0.s8 %v4256
      %v4258 = vlaneseq
      %v4259 = vshrl.u32 %v4258, 7
      %v4260 = vsub.s32 %v4257, %v4259
      %v4261 = vrot.slane %v4253, %v4260
      %v4263 = vunpack.c.l.s4 1983009808
      %v4264 = vunpack.c.0.s8 %v4263
      %v4265 = vlaneseq
      %v4266 = vshrl.u32 %v4265, 7
      %v4267 = vsub.s32 %v4264, %v4266
      %v4268 = vrot.slane %v4254, %v4267
      %v4269 = vcombine.low %v4191, %v4197
      %v4270 = vcombine.high %v4191, %v4197
      %v4272 = vunpack.c.l.s4 1983009808
      %v4273 = vunpack.c.0.s8 %v4272
      %v4274 = vlaneseq
      %v4275 = vshrl.u32 %v4274, 7
      %v4276 = vsub.s32 %v4273, %v4275
      %v4277 = vrot.slane %v4269, %v4276
      %v4279 = vunpack.c.l.s4 1983009808
      %v4280 = vunpack.c.0.s8 %v4279
      %v4281 = vlaneseq
      %v4282 = vshrl.u32 %v4281, 7
      %v4283 = vsub.s32 %v4280, %v4282
      %v4284 = vrot.slane %v4270, %v4283
      %v4285 = vcombine.low %v4229, %v4245
      %v4286 = vcombine.high %v4229, %v4245
      %v4288 = vunpack.c.l.s4 1934713408
      %v4289 = vunpack.c.0.s8 %v4288
      %v4290 = vlaneseq
      %v4291 = vshrl.u32 %v4290, 7
      %v4292 = vsub.s32 %v4289, %v4291
      %v4293 = vrot.slane %v4285, %v4292
      %v4295 = vunpack.c.l.s4 1934713408
      %v4296 = vunpack.c.0.s8 %v4295
      %v4297 = vlaneseq
      %v4298 = vshrl.u32 %v4297, 7
      %v4299 = vsub.s32 %v4296, %v4298
      %v4300 = vrot.slane %v4286, %v4299
      %v4301 = vcombine.low %v4236, %v4252
      %v4302 = vcombine.high %v4236, %v4252
      %v4304 = vunpack.c.l.s4 1934713408
      %v4305 = vunpack.c.0.s8 %v4304
      %v4306 = vlaneseq
      %v4307 = vshrl.u32 %v4306, 7
      %v4308 = vsub.s32 %v4305, %v4307
      %v4309 = vrot.slane %v4301, %v4308
      %v4311 = vunpack.c.l.s4 1934713408
      %v4312 = vunpack.c.0.s8 %v4311
      %v4313 = vlaneseq
      %v4314 = vshrl.u32 %v4313, 7
      %v4315 = vsub.s32 %v4312, %v4314
      %v4316 = vrot.slane %v4302, %v4315
      %v4317 = vcombine.low %v4261, %v4277
      %v4318 = vcombine.high %v4261, %v4277
      %v4320 = vunpack.c.l.s4 1934713408
      %v4321 = vunpack.c.0.s8 %v4320
      %v4322 = vlaneseq
      %v4323 = vshrl.u32 %v4322, 7
      %v4324 = vsub.s32 %v4321, %v4323
      %v4325 = vrot.slane %v4317, %v4324
      %v4327 = vunpack.c.l.s4 1934713408
      %v4328 = vunpack.c.0.s8 %v4327
      %v4329 = vlaneseq
      %v4330 = vshrl.u32 %v4329, 7
      %v4331 = vsub.s32 %v4328, %v4330
      %v4332 = vrot.slane %v4318, %v4331
      %v4333 = vcombine.low %v4268, %v4284
      %v4334 = vcombine.high %v4268, %v4284
      %v4336 = vunpack.c.l.s4 1934713408
      %v4337 = vunpack.c.0.s8 %v4336
      %v4338 = vlaneseq
      %v4339 = vshrl.u32 %v4338, 7
      %v4340 = vsub.s32 %v4337, %v4339
      %v4341 = vrot.slane %v4333, %v4340
      %v4343 = vunpack.c.l.s4 1934713408
      %v4344 = vunpack.c.0.s8 %v4343
      %v4345 = vlaneseq
      %v4346 = vshrl.u32 %v4345, 7
      %v4347 = vsub.s32 %v4344, %v4346
      %v4348 = vrot.slane %v4334, %v4347
      %v4349 = vcombine.low %v4293, %v4325
      %v4350 = vcombine.high %v4293, %v4325
      %v4351 = vcombine.low %v4300, %v4332
      %v4352 = vcombine.high %v4300, %v4332
      %v4353 = vcombine.low %v4309, %v4341
      %v4354 = vcombine.high %v4309, %v4341
      %v4355 = vcombine.low %v4316, %v4348
      %v4356 = vcombine.high %v4316, %v4348
      %v4357 = vcombine.low %v4200, %v4210
      %v4358 = vcombine.high %v4200, %v4210
      %v4360 = vunpack.c.l.s4 1983009808
      %v4361 = vunpack.c.0.s8 %v4360
      %v4362 = vlaneseq
      %v4363 = vshrl.u32 %v4362, 7
      %v4364 = vsub.s32 %v4361, %v4363
      %v4365 = vrot.slane %v4357, %v4364
      %v4367 = vunpack.c.l.s4 1983009808
      %v4368 = vunpack.c.0.s8 %v4367
      %v4369 = vlaneseq
      %v4370 = vshrl.u32 %v4369, 7
      %v4371 = vsub.s32 %v4368, %v4370
      %v4372 = vrot.slane %v4358, %v4371
      %v4373 = vcombine.low %v4207, %v4213
      %v4374 = vcombine.high %v4207, %v4213
      %v4376 = vunpack.c.l.s4 1983009808
      %v4377 = vunpack.c.0.s8 %v4376
      %v4378 = vlaneseq
      %v4379 = vshrl.u32 %v4378, 7
      %v4380 = vsub.s32 %v4377, %v4379
      %v4381 = vrot.slane %v4373, %v4380
      %v4383 = vunpack.c.l.s4 1983009808
      %v4384 = vunpack.c.0.s8 %v4383
      %v4385 = vlaneseq
      %v4386 = vshrl.u32 %v4385, 7
      %v4387 = vsub.s32 %v4384, %v4386
      %v4388 = vrot.slane %v4374, %v4387
      %v4389 = vcombine.high %v4216, 0.0
      %v4391 = vunpack.c.l.s4 1983009808
      %v4392 = vunpack.c.0.s8 %v4391
      %v4393 = vlaneseq
      %v4394 = vshrl.u32 %v4393, 7
      %v4395 = vsub.s32 %v4392, %v4394
      %v4396 = vrot.slane %v4216, %v4395
      %v4398 = vunpack.c.l.s4 1983009808
      %v4399 = vunpack.c.0.s8 %v4398
      %v4400 = vlaneseq
      %v4401 = vshrl.u32 %v4400, 7
      %v4402 = vsub.s32 %v4399, %v4401
      %v4403 = vrot.slane %v4389, %v4402
      %v4404 = vcombine.high %v4219, 0.0
      %v4406 = vunpack.c.l.s4 1983009808
      %v4407 = vunpack.c.0.s8 %v4406
      %v4408 = vlaneseq
      %v4409 = vshrl.u32 %v4408, 7
      %v4410 = vsub.s32 %v4407, %v4409
      %v4411 = vrot.slane %v4219, %v4410
      %v4413 = vunpack.c.l.s4 1983009808
      %v4414 = vunpack.c.0.s8 %v4413
      %v4415 = vlaneseq
      %v4416 = vshrl.u32 %v4415, 7
      %v4417 = vsub.s32 %v4414, %v4416
      %v4418 = vrot.slane %v4404, %v4417
      %v4419 = vcombine.low %v4365, %v4381
      %v4420 = vcombine.high %v4365, %v4381
      %v4422 = vunpack.c.l.s4 1934713408
      %v4423 = vunpack.c.0.s8 %v4422
      %v4424 = vlaneseq
      %v4425 = vshrl.u32 %v4424, 7
      %v4426 = vsub.s32 %v4423, %v4425
      %v4427 = vrot.slane %v4419, %v4426
      %v4429 = vunpack.c.l.s4 1934713408
      %v4430 = vunpack.c.0.s8 %v4429
      %v4431 = vlaneseq
      %v4432 = vshrl.u32 %v4431, 7
      %v4433 = vsub.s32 %v4430, %v4432
      %v4434 = vrot.slane %v4420, %v4433
      %v4435 = vcombine.low %v4372, %v4388
      %v4436 = vcombine.high %v4372, %v4388
      %v4438 = vunpack.c.l.s4 1934713408
      %v4439 = vunpack.c.0.s8 %v4438
      %v4440 = vlaneseq
      %v4441 = vshrl.u32 %v4440, 7
      %v4442 = vsub.s32 %v4439, %v4441
      %v4443 = vrot.slane %v4435, %v4442
      %v4445 = vunpack.c.l.s4 1934713408
      %v4446 = vunpack.c.0.s8 %v4445
      %v4447 = vlaneseq
      %v4448 = vshrl.u32 %v4447, 7
      %v4449 = vsub.s32 %v4446, %v4448
      %v4450 = vrot.slane %v4436, %v4449
      %v4451 = vcombine.low %v4396, %v4411
      %v4452 = vcombine.high %v4396, %v4411
      %v4454 = vunpack.c.l.s4 1934713408
      %v4455 = vunpack.c.0.s8 %v4454
      %v4456 = vlaneseq
      %v4457 = vshrl.u32 %v4456, 7
      %v4458 = vsub.s32 %v4455, %v4457
      %v4459 = vrot.slane %v4451, %v4458
      %v4461 = vunpack.c.l.s4 1934713408
      %v4462 = vunpack.c.0.s8 %v4461
      %v4463 = vlaneseq
      %v4464 = vshrl.u32 %v4463, 7
      %v4465 = vsub.s32 %v4462, %v4464
      %v4466 = vrot.slane %v4452, %v4465
      %v4467 = vcombine.low %v4403, %v4418
      %v4468 = vcombine.high %v4403, %v4418
      %v4470 = vunpack.c.l.s4 1934713408
      %v4471 = vunpack.c.0.s8 %v4470
      %v4472 = vlaneseq
      %v4473 = vshrl.u32 %v4472, 7
      %v4474 = vsub.s32 %v4471, %v4473
      %v4475 = vrot.slane %v4467, %v4474
      %v4477 = vunpack.c.l.s4 1934713408
      %v4478 = vunpack.c.0.s8 %v4477
      %v4479 = vlaneseq
      %v4480 = vshrl.u32 %v4479, 7
      %v4481 = vsub.s32 %v4478, %v4480
      %v4482 = vrot.slane %v4468, %v4481
      %v4483 = vcombine.low %v4427, %v4459
      %v4484 = vcombine.high %v4427, %v4459
      %v4485 = vcombine.low %v4434, %v4466
      %v4486 = vcombine.high %v4434, %v4466
      %v4487 = vcombine.low %v4443, %v4475
      %v4488 = vcombine.high %v4443, %v4475
      %v4489 = vcombine.low %v4450, %v4482
      %v4490 = vcombine.high %v4450, %v4482
      %v4507 = vrot.slane %v4349, 2
      %v4508 = vrot.slane %v4483, 2
      %v4509 = vsel %vm3610, %v4507, %v4508
      %v4510 = vrot.slane %v4350, 2
      %v4511 = vrot.slane %v4484, 2
      %v4512 = vsel %vm3610, %v4510, %v4511
      %v4513 = vrot.slane %v4351, 2
      %v4514 = vrot.slane %v4485, 2
      %v4515 = vsel %vm3610, %v4513, %v4514
      %v4516 = vrot.slane %v4352, 2
      %v4517 = vrot.slane %v4486, 2
      %v4518 = vsel %vm3610, %v4516, %v4517
      %v4519 = vrot.slane %v4353, 2
      %v4520 = vrot.slane %v4487, 2
      %v4521 = vsel %vm3610, %v4519, %v4520
      %v4522 = vrot.slane %v4354, 2
      %v4523 = vrot.slane %v4488, 2
      %v4524 = vsel %vm3610, %v4522, %v4523
      %v4525 = vrot.slane %v4355, 2
      %v4526 = vrot.slane %v4489, 2
      %v4527 = vsel %vm3610, %v4525, %v4526
      %v4528 = vrot.slane %v4356, 2
      %v4529 = vrot.slane %v4490, 2
      %v4530 = vsel %vm3610, %v4528, %v4529
      %4531 = vrot.lane.b32.xlu0 %v4509, 126
      %v4532 = vpop.permute.xlu0 %4531
      %4533 = vrot.lane.b32.xlu0 %v4508, 126
      %v4534 = vpop.permute.xlu0 %4533
      %4535 = vrot.lane.b32.xlu0 %v4512, 126
      %v4536 = vpop.permute.xlu0 %4535
      %4537 = vrot.lane.b32.xlu0 %v4511, 126
      %v4538 = vpop.permute.xlu0 %4537
      %4539 = vrot.lane.b32.xlu0 %v4515, 126
      %v4540 = vpop.permute.xlu0 %4539
      %4541 = vrot.lane.b32.xlu0 %v4514, 126
      %v4542 = vpop.permute.xlu0 %4541
      %4543 = vrot.lane.b32.xlu0 %v4518, 126
      %v4544 = vpop.permute.xlu0 %4543
      %4545 = vrot.lane.b32.xlu0 %v4517, 126
      %v4546 = vpop.permute.xlu0 %4545
      %4547 = vrot.lane.b32.xlu0 %v4521, 126
      %v4548 = vpop.permute.xlu0 %4547
      %4549 = vrot.lane.b32.xlu0 %v4520, 126
      %v4550 = vpop.permute.xlu0 %4549
      %4551 = vrot.lane.b32.xlu0 %v4524, 126
      %v4552 = vpop.permute.xlu0 %4551
      %4553 = vrot.lane.b32.xlu0 %v4523, 126
      %v4554 = vpop.permute.xlu0 %4553
      %4555 = vrot.lane.b32.xlu0 %v4527, 126
      %v4556 = vpop.permute.xlu0 %4555
      %4557 = vrot.lane.b32.xlu0 %v4526, 126
      %v4558 = vpop.permute.xlu0 %4557
      %4559 = vrot.lane.b32.xlu0 %v4530, 126
      %v4560 = vpop.permute.xlu0 %4559
      %4561 = vrot.lane.b32.xlu0 %v4529, 126
      %v4562 = vpop.permute.xlu0 %4561
      %v4579 = vadd.f32 %v4115, %v4532
      %v4580 = vadd.f32 %v4116, %v4534
      %v4581 = vadd.f32 %v4117, %v4536
      %v4582 = vadd.f32 %v4118, %v4538
      %v4583 = vadd.f32 %v4119, %v4540
      %v4584 = vadd.f32 %v4120, %v4542
      %v4585 = vadd.f32 %v4121, %v4544
      %v4586 = vadd.f32 %v4122, %v4546
      %v4587 = vadd.f32 %v4123, %v4548
      %v4588 = vadd.f32 %v4124, %v4550
      %v4589 = vadd.f32 %v4125, %v4552
      %v4590 = vadd.f32 %v4126, %v4554
      %v4591 = vadd.f32 %v4127, %v4556
      %v4592 = vadd.f32 %v4128, %v4558
      %v4593 = vadd.f32 %v4129, %v4560
      %v4594 = vadd.f32 %v4130, %v4562
      %v4595 = vcombine.low %v4579, %v4583
      %v4596 = vcombine.high %v4579, %v4583
      %v4598 = vunpack.c.l.s4 1983009808
      %v4599 = vunpack.c.0.s8 %v4598
      %v4600 = vlaneseq
      %v4601 = vshrl.u32 %v4600, 7
      %v4602 = vsub.s32 %v4599, %v4601
      %v4603 = vrot.slane %v4595, %v4602
      %v4605 = vunpack.c.l.s4 1983009808
      %v4606 = vunpack.c.0.s8 %v4605
      %v4607 = vlaneseq
      %v4608 = vshrl.u32 %v4607, 7
      %v4609 = vsub.s32 %v4606, %v4608
      %v4610 = vrot.slane %v4596, %v4609
      %v4611 = vcombine.low %v4581, %v4585
      %v4612 = vcombine.high %v4581, %v4585
      %v4614 = vunpack.c.l.s4 1983009808
      %v4615 = vunpack.c.0.s8 %v4614
      %v4616 = vlaneseq
      %v4617 = vshrl.u32 %v4616, 7
      %v4618 = vsub.s32 %v4615, %v4617
      %v4619 = vrot.slane %v4611, %v4618
      %v4621 = vunpack.c.l.s4 1983009808
      %v4622 = vunpack.c.0.s8 %v4621
      %v4623 = vlaneseq
      %v4624 = vshrl.u32 %v4623, 7
      %v4625 = vsub.s32 %v4622, %v4624
      %v4626 = vrot.slane %v4612, %v4625
      %v4627 = vcombine.low %v4587, %v4591
      %v4628 = vcombine.high %v4587, %v4591
      %v4630 = vunpack.c.l.s4 1983009808
      %v4631 = vunpack.c.0.s8 %v4630
      %v4632 = vlaneseq
      %v4633 = vshrl.u32 %v4632, 7
      %v4634 = vsub.s32 %v4631, %v4633
      %v4635 = vrot.slane %v4627, %v4634
      %v4637 = vunpack.c.l.s4 1983009808
      %v4638 = vunpack.c.0.s8 %v4637
      %v4639 = vlaneseq
      %v4640 = vshrl.u32 %v4639, 7
      %v4641 = vsub.s32 %v4638, %v4640
      %v4642 = vrot.slane %v4628, %v4641
      %v4643 = vcombine.low %v4589, %v4593
      %v4644 = vcombine.high %v4589, %v4593
      %v4646 = vunpack.c.l.s4 1983009808
      %v4647 = vunpack.c.0.s8 %v4646
      %v4648 = vlaneseq
      %v4649 = vshrl.u32 %v4648, 7
      %v4650 = vsub.s32 %v4647, %v4649
      %v4651 = vrot.slane %v4643, %v4650
      %v4653 = vunpack.c.l.s4 1983009808
      %v4654 = vunpack.c.0.s8 %v4653
      %v4655 = vlaneseq
      %v4656 = vshrl.u32 %v4655, 7
      %v4657 = vsub.s32 %v4654, %v4656
      %v4658 = vrot.slane %v4644, %v4657
      %v4659 = vcombine.low %v4603, %v4619
      %v4660 = vcombine.high %v4603, %v4619
      %v4662 = vunpack.c.l.s4 1934713408
      %v4663 = vunpack.c.0.s8 %v4662
      %v4664 = vlaneseq
      %v4665 = vshrl.u32 %v4664, 7
      %v4666 = vsub.s32 %v4663, %v4665
      %v4667 = vrot.slane %v4659, %v4666
      %v4669 = vunpack.c.l.s4 1934713408
      %v4670 = vunpack.c.0.s8 %v4669
      %v4671 = vlaneseq
      %v4672 = vshrl.u32 %v4671, 7
      %v4673 = vsub.s32 %v4670, %v4672
      %v4674 = vrot.slane %v4660, %v4673
      %v4675 = vcombine.low %v4610, %v4626
      %v4676 = vcombine.high %v4610, %v4626
      %v4678 = vunpack.c.l.s4 1934713408
      %v4679 = vunpack.c.0.s8 %v4678
      %v4680 = vlaneseq
      %v4681 = vshrl.u32 %v4680, 7
      %v4682 = vsub.s32 %v4679, %v4681
      %v4683 = vrot.slane %v4675, %v4682
      %v4685 = vunpack.c.l.s4 1934713408
      %v4686 = vunpack.c.0.s8 %v4685
      %v4687 = vlaneseq
      %v4688 = vshrl.u32 %v4687, 7
      %v4689 = vsub.s32 %v4686, %v4688
      %v4690 = vrot.slane %v4676, %v4689
      %v4691 = vcombine.low %v4635, %v4651
      %v4692 = vcombine.high %v4635, %v4651
      %v4694 = vunpack.c.l.s4 1934713408
      %v4695 = vunpack.c.0.s8 %v4694
      %v4696 = vlaneseq
      %v4697 = vshrl.u32 %v4696, 7
      %v4698 = vsub.s32 %v4695, %v4697
      %v4699 = vrot.slane %v4691, %v4698
      %v4701 = vunpack.c.l.s4 1934713408
      %v4702 = vunpack.c.0.s8 %v4701
      %v4703 = vlaneseq
      %v4704 = vshrl.u32 %v4703, 7
      %v4705 = vsub.s32 %v4702, %v4704
      %v4706 = vrot.slane %v4692, %v4705
      %v4707 = vcombine.low %v4642, %v4658
      %v4708 = vcombine.high %v4642, %v4658
      %v4710 = vunpack.c.l.s4 1934713408
      %v4711 = vunpack.c.0.s8 %v4710
      %v4712 = vlaneseq
      %v4713 = vshrl.u32 %v4712, 7
      %v4714 = vsub.s32 %v4711, %v4713
      %v4715 = vrot.slane %v4707, %v4714
      %v4717 = vunpack.c.l.s4 1934713408
      %v4718 = vunpack.c.0.s8 %v4717
      %v4719 = vlaneseq
      %v4720 = vshrl.u32 %v4719, 7
      %v4721 = vsub.s32 %v4718, %v4720
      %v4722 = vrot.slane %v4708, %v4721
      %v4723 = vcombine.low %v4667, %v4699
      %v4724 = vcombine.high %v4667, %v4699
      %v4725 = vcombine.low %v4674, %v4706
      %v4726 = vcombine.high %v4674, %v4706
      %v4727 = vcombine.low %v4683, %v4715
      %v4728 = vcombine.high %v4683, %v4715
      %v4729 = vcombine.low %v4690, %v4722
      %v4730 = vcombine.high %v4690, %v4722
      %v4731 = vcombine.low %v4580, %v4584
      %v4733 = vunpack.c.l.s4 1983009808
      %v4734 = vunpack.c.0.s8 %v4733
      %v4735 = vlaneseq
      %v4736 = vshrl.u32 %v4735, 7
      %v4737 = vsub.s32 %v4734, %v4736
      %v4738 = vrot.slane %v4731, %v4737
      %v4739 = vcombine.low %v4582, %v4586
      %v4741 = vunpack.c.l.s4 1983009808
      %v4742 = vunpack.c.0.s8 %v4741
      %v4743 = vlaneseq
      %v4744 = vshrl.u32 %v4743, 7
      %v4745 = vsub.s32 %v4742, %v4744
      %v4746 = vrot.slane %v4739, %v4745
      %v4747 = vcombine.low %v4588, %v4592
      %v4749 = vunpack.c.l.s4 1983009808
      %v4750 = vunpack.c.0.s8 %v4749
      %v4751 = vlaneseq
      %v4752 = vshrl.u32 %v4751, 7
      %v4753 = vsub.s32 %v4750, %v4752
      %v4754 = vrot.slane %v4747, %v4753
      %v4755 = vcombine.low %v4590, %v4594
      %v4757 = vunpack.c.l.s4 1983009808
      %v4758 = vunpack.c.0.s8 %v4757
      %v4759 = vlaneseq
      %v4760 = vshrl.u32 %v4759, 7
      %v4761 = vsub.s32 %v4758, %v4760
      %v4762 = vrot.slane %v4755, %v4761
      %v4763 = vcombine.low %v4738, %v4746
      %v4764 = vcombine.high %v4738, %v4746
      %v4766 = vunpack.c.l.s4 1934713408
      %v4767 = vunpack.c.0.s8 %v4766
      %v4768 = vlaneseq
      %v4769 = vshrl.u32 %v4768, 7
      %v4770 = vsub.s32 %v4767, %v4769
      %v4771 = vrot.slane %v4763, %v4770
      %v4773 = vunpack.c.l.s4 1934713408
      %v4774 = vunpack.c.0.s8 %v4773
      %v4775 = vlaneseq
      %v4776 = vshrl.u32 %v4775, 7
      %v4777 = vsub.s32 %v4774, %v4776
      %v4778 = vrot.slane %v4764, %v4777
      %v4779 = vcombine.low %v4754, %v4762
      %v4780 = vcombine.high %v4754, %v4762
      %v4782 = vunpack.c.l.s4 1934713408
      %v4783 = vunpack.c.0.s8 %v4782
      %v4784 = vlaneseq
      %v4785 = vshrl.u32 %v4784, 7
      %v4786 = vsub.s32 %v4783, %v4785
      %v4787 = vrot.slane %v4779, %v4786
      %v4789 = vunpack.c.l.s4 1934713408
      %v4790 = vunpack.c.0.s8 %v4789
      %v4791 = vlaneseq
      %v4792 = vshrl.u32 %v4791, 7
      %v4793 = vsub.s32 %v4790, %v4792
      %v4794 = vrot.slane %v4780, %v4793
      %v4795 = vcombine.low %v4771, %v4787
      %v4796 = vcombine.high %v4771, %v4787
      %v4797 = vcombine.low %v4778, %v4794
      %v4798 = vcombine.high %v4778, %v4794
      %4800 = vrot.lane.b32.xlu0 %v4724, 12
      %v4801 = vpop.permute.xlu0 %4800
      %4804 = vrot.lane.b32.xlu0 %v4725, 24
      %v4805 = vpop.permute.xlu0 %4804
      %4808 = vrot.lane.b32.xlu0 %v4726, 36
      %v4809 = vpop.permute.xlu0 %4808
      %4812 = vrot.lane.b32.xlu0 %v4727, 48
      %v4813 = vpop.permute.xlu0 %4812
      %4816 = vrot.lane.b32.xlu0 %v4728, 60
      %v4817 = vpop.permute.xlu0 %4816
      %4820 = vrot.lane.b32.xlu0 %v4729, 72
      %v4821 = vpop.permute.xlu0 %4820
      %4824 = vrot.lane.b32.xlu0 %v4730, 84
      %v4825 = vpop.permute.xlu0 %4824
      %4828 = vrot.lane.b32.xlu0 %v4795, 96
      %v4829 = vpop.permute.xlu0 %4828
      %4832 = vrot.lane.b32.xlu0 %v4796, 108
      %v4833 = vpop.permute.xlu0 %4832
      %4836 = vrot.lane.b32.xlu0 %v4797, 120
      %v4837 = vpop.permute.xlu0 %4836
      %4840 = vrot.lane.b32.xlu0 %v4798, 4
      %v4841 = vpop.permute.xlu0 %4840
      %v4843 = vsel %vm574, %v4723, %v4801
      %vm4844 = vcmask 195584
      %v4845 = vsel %vm4844, %v4843, %v4805
      %vm4846 = vcmask 293888
      %v4847 = vsel %vm4846, %v4845, %v4809
      %vm4848 = vcmask 392192
      %v4849 = vsel %vm4848, %v4847, %v4813
      %vm4850 = vcmask 490496
      %v4851 = vsel %vm4850, %v4849, %v4817
      %vm4852 = vcmask 588800
      %v4853 = vsel %vm4852, %v4851, %v4821
      %v4854 = vsel %vm561, %v4853, %v4825
      %vm4855 = vcmask 785408
      %v4856 = vsel %vm4855, %v4854, %v4829
      %vm4857 = vcmask 883712
      %v4858 = vsel %vm4857, %v4856, %v4833
      %vm4859 = vcmask 982016
      %v4860 = vsel %vm4859, %v4858, %v4837
      %vm4861 = vcmask 31744
      %v4862 = vsel %vm4861, %v4837, %v4841
      %v4863 = vld [vmem:[%s2] sm:$0xff]
      %4865 = vset.pattern.permute.xlu0 0
      %4866 = vperm.xlu0 %4865, %v4863
      %v4867 = vpop.permute.xlu0 %4866
      %v4869 = vadd.f32 %v4860, %v4867
      %v4870 = vadd.f32 %v4862, %v4867
      %4871 = vst [vmem:[%s291] sm:$0xff] %v4869
      %vm4872 = vcmask 130048
      %4873 = vst.msk [vmem:[%s291 + $0x8] sm:$0xff] %vm4872, %v4870
      %v4874 = vsel %vm4872, %v4870, 0.0
      %v4875 = vadd.f32 %v4869, %v4874
      %4876 = vadd.xlane.f32.xlu0 %v4875
      %v4877 = vpop.xlane.xlu0 %4876
      %vm4878 = vcmask 7168
      %4879 = vst.msk [vmem:[%s295] sm:$0xff] %vm4878, %v4877
      %v4880 = vmul.f32 %v4869, %v4869
      %v4881 = vmul.f32 %v4870, %v4870
      %v4882 = vsel %vm4872, %v4881, 0.0
      %v4883 = vadd.f32 %v4880, %v4882
      %4884 = vadd.xlane.f32.xlu0 %v4883
      %v4885 = vpop.xlane.xlu0 %4884
      %4886 = vst.msk [vmem:[%s299] sm:$0xff] %vm4878, %v4885
      %p4887 = scmp.lt.s32.totalorder %s19, 1
      %s4888 = scalar_select %p4887, %s19, 1
      %s4889 = smul.addr %s4888, 2
      %s4890 = smul.addr %s4889, 8
      %s4891 = scalar_lea.vmem %s5, %s4890
      %p4892 = scmp.lt.s32.totalorder %s19, 1
      %s4893 = scalar_select %p4892, %s19, 1
      %s4894 = smul.addr %s4893, 8
      %s4895 = scalar_lea.vmem %s6, %s4894
      %p4896 = scmp.lt.s32.totalorder %s19, 1
      %s4897 = scalar_select %p4896, %s19, 1
      %s4898 = smul.addr %s4897, 8
      %s4899 = scalar_lea.vmem %s7, %s4898
      // Predicated region
      $region41: #{unet_down_forward.4} parent=39 // pred_check
        %p4900 = pneg %p147
      $region42: #{unet_down_forward.4} parent=39 // pred_check_branch
        %4902 = sbr.rel (%p4900) target = $region44
      $region43: #{unet_down_forward.4} parent=39 // pred_region
        _
      $region44: #{unet_down_forward.4} parent=39 // pred_fallthru
        _
      // Predicated region
      $region45: #{unet_down_forward.4} parent=39 // pred_check
        %p4903 = pneg %p173
      $region46: #{unet_down_forward.4} parent=39 // pred_check_branch
        %4905 = sbr.rel (%p4903) target = $region48
      $region47: #{unet_down_forward.4} parent=39 // pred_region
        _
      $region48: #{unet_down_forward.4} parent=39 // pred_fallthru
        _
      // Predicated region
      $region49: #{unet_down_forward.4} parent=39 // pred_check
        %p4906 = pneg %p199
      $region50: #{unet_down_forward.4} parent=39 // pred_check_branch
        %4908 = sbr.rel (%p4906) target = $region52
      $region51: #{unet_down_forward.4} parent=39 // pred_region
        _
      $region52: #{unet_down_forward.4} parent=39 // pred_fallthru
        _
    $region40: #{unet_down_forward.4} parent=5 // pred_fallthru
      _
    %p4909 = scmp.le.s32.totalorder 2, %s14
    // Predicated region
    $region53: #{unet_down_forward.4} parent=5 // pred_check
      %p4910 = pneg %p4909
    $region54: #{unet_down_forward.4} parent=5 // pred_check_branch
      %4912 = sbr.rel (%p4910) target = $region56
    $region55: #{unet_down_forward.4} parent=5 // pred_region
      %s4913 = ssub.s32 %s14, 2
      // Predicated region
      $region57: #{unet_down_forward.4} parent=55 // pred_check
        %p4914 = pneg %p153
      $region58: #{unet_down_forward.4} parent=55 // pred_check_branch
        %4916 = sbr.rel (%p4914) target = $region60
      $region59: #{unet_down_forward.4} parent=55 // pred_region
        %p4917 = scmp.lt.s32.totalorder %s20, 1
        %s4918 = scalar_select %p4917, %s20, 1
        %s4919 = smul.addr %s4918, 2
        %s4920 = smul.addr %s4919, 8
        %s4921 = scalar_lea.vmem %s5, %s4920
      $region60: #{unet_down_forward.4} parent=55 // pred_fallthru
        _
      // Predicated region
      $region61: #{unet_down_forward.4} parent=55 // pred_check
        %p4922 = pneg %p179
      $region62: #{unet_down_forward.4} parent=55 // pred_check_branch
        %4924 = sbr.rel (%p4922) target = $region64
      $region63: #{unet_down_forward.4} parent=55 // pred_region
        %p4925 = scmp.lt.s32.totalorder %s20, 1
        %s4926 = scalar_select %p4925, %s20, 1
        %s4927 = smul.addr %s4926, 8
        %s4928 = scalar_lea.vmem %s6, %s4927
      $region64: #{unet_down_forward.4} parent=55 // pred_fallthru
        _
      // Predicated region
      $region65: #{unet_down_forward.4} parent=55 // pred_check
        %p4929 = pneg %p205
      $region66: #{unet_down_forward.4} parent=55 // pred_check_branch
        %4931 = sbr.rel (%p4929) target = $region68
      $region67: #{unet_down_forward.4} parent=55 // pred_region
        %p4932 = scmp.lt.s32.totalorder %s20, 1
        %s4933 = scalar_select %p4932, %s20, 1
        %s4934 = smul.addr %s4933, 8
        %s4935 = scalar_lea.vmem %s7, %s4934
      $region68: #{unet_down_forward.4} parent=55 // pred_fallthru
        _
    $region56: #{unet_down_forward.4} parent=5 // pred_fallthru
      _
  $region6: #{unet_down_forward.4} parent=0 // loop_footer
    %s18 = sadd.s32 1, %s14
  $region7: #{unet_down_forward.4} parent=0 // loop_footer_branch
    %13 = sbr.rel target = $region3
  $region8: #{unet_down_forward.4} parent=0 // loop_exit
    _

</llo_original>
